<compile_context>
chip_gen: v7x
topology: tpu7x:2x2x1
jax: 0.10.0
libtpu: 0.0.40
codegen_flags: <defaults>
</compile_context>

<pallas_src>
import functools
import math

import jax
import jax.numpy as jnp
import numpy as np
from jax.experimental import pallas as pl
from jax.experimental.pallas import tpu as pltpu


# ----------------------------------------------------------------------------
# Fused kernel: 5-layer mu+sigma GNN pair + Normal head, one pallas_call.
# ----------------------------------------------------------------------------

def _gnn_global_kernel(x_ref, mix_ref, tmix_ref, dsel_ref, esel_ref, eps_ref,
                       pw1x0_ref, pw1n_ref, pw1e_ref, pb1_ref, pw3_ref, pb3_ref,
                       gw1n0_ref, gw1n_ref, gw1m_ref, gb1_ref,
                       gw3_ref, gb3_ref, gw3f_ref, gb3f_ref,
                       out_ref, *, n_layers, seg_f, seg_g, ent_const, pmax):
    f32 = jnp.float32

    def mm(a, b):
        return jnp.dot(a, b, preferred_element_type=f32)

    # Spatial mixing matrices (hoisted once, reused as MXU operands every layer).
    m1 = mix_ref[0]               # ex @ X / n1   (column sums)
    m2 = mix_ref[1]               # X @ ex / n2   (row sums)
    m3 = mix_ref[2]               # ex @ X @ ex / n3
    tmix = tmix_ref[...]          # selection sandwich + mean over senders

    def pp(r, seg):
        # Postprocess: r is [4*seg, L] with `seg` = 2*feature_dim rows per
        # segment (mu/sigma interleaved inside each segment).
        return jnp.concatenate(
            [r[0 * seg:1 * seg],
             mm(r[1 * seg:2 * seg], m1),
             mm(r[2 * seg:3 * seg], m2),
             mm(r[3 * seg:4 * seg], m3)], axis=0)

    x = x_ref[...]                # [Din, A*B*P*P] raw input, shared by both nets
    node = x                      # layer-0 node features

    for l in range(n_layers):
        final = l == n_layers - 1
        # ---- Phi (edge) stage: all APs live in the lane axis (phi weights are
        #      shared across APs), mu/sigma nets packed block-diagonally.
        if l == 0:
            h = mm(pw1x0_ref[...], x) + pb1_ref[l]
        else:
            h = mm(pw1n_ref[l - 1], node) + mm(pw1e_ref[l - 1], x) + pb1_ref[l]
        h = pp(jnp.maximum(h, 0.0), seg_f)
        s = jnp.maximum(mm(pw3_ref[l], h) + pb3_ref[l], 0.0)
        phi_out = pp(s, seg_f)
        # ---- Message passing: sel_i^T (sel_j Phi_j sel_j^T) sel_i and the mean
        #      over senders j != i are one [L, L] right-multiplication.
        msg = mm(phi_out, tmix)
        # ---- Gamma (node) stage.
        if l == 0:
            a1 = mm(gw1n0_ref[...], node) + mm(gw1m_ref[l], msg) + gb1_ref[l]
        else:
            a1 = mm(gw1n_ref[l - 1], node) + mm(gw1m_ref[l], msg) + gb1_ref[l]
        a1 = pp(jnp.maximum(a1, 0.0), seg_g)
        if not final:
            a2 = mm(gw3_ref[l], a1) + gb3_ref[l]
            node = pp(jnp.maximum(a2, 0.0), seg_g)
        else:
            node = mm(gw3f_ref[...], a1) + gb3f_ref[...]   # [2, L]: mu / sigma raw

    # ---- Epilogue: diagonal extraction (lane gather as a matmul) + Normal head.
    diag = mm(node, dsel_ref[...])            # [2, B*P*P]; lanes (a, b, p) packed
    mu = diag[0:1]
    sigma = (diag[1:2] + 1.0) * pmax          # matches the reference affine map
    sample = mu + sigma * eps_ref[...]        # Normal(mu, sigma).rsample()
    p = pmax / (1.0 + jnp.exp(-sample))       # sigmoid(sample) * pmax
    ent = mm(jnp.log(sigma), esel_ref[...]) + ent_const
    out_ref[0:1, :] = mu
    out_ref[1:2, :] = sigma
    out_ref[2:3, :] = p
    out_ref[3:4, :] = ent


# ----------------------------------------------------------------------------
# Precomputed lane-mixing matrices (constants / selection-dependent).
# ----------------------------------------------------------------------------

def _build_mixing_constants(sel, *, A, B, P, n_users):
    """All mixers act on the flat lane axis (ap, batch, row, col)."""
    pp_ = P * P
    lanes = A * B * pp_
    bpp = B * pp_
    lane = jnp.arange(lanes)
    a_i = lane // (B * pp_)
    b_i = (lane // pp_) % B
    r_i = (lane // P) % P
    c_i = lane % P

    def same(v):
        return v[:, None] == v[None, :]

    same_ab = same(a_i) & same(b_i)
    eye = same_ab & same(r_i) & same(c_i)
    col = same_ab & same(c_i)          # same spatial column -> sum over rows
    row = same_ab & same(r_i)          # same spatial row    -> sum over cols
    f = lambda m: m.astype(jnp.float32)
    n1 = float(n_users - 1)
    n3 = float((n_users - 1) ** 2)
    mix = jnp.stack([(f(col) - f(eye)) / n1,
                     (f(row) - f(eye)) / n1,
                     (f(same_ab) - f(col) - f(row) + f(eye)) / n3], axis=0)

    # Message sandwich: M_ij = sel_i^T sel_j per batch; the message into node i
    # is mean_{j!=i} M_ij Phi_j M_ij^T, expressed as one right-multiplication.
    m_all = jnp.einsum('ibgr,jbgp->ijbrp', sel, sel)
    k = jnp.einsum('ijbrp,ijbtq->ijbpqrt', m_all, m_all).reshape(A, A, B, pp_, pp_)
    ap_mask = (1.0 - jnp.eye(A, dtype=jnp.float32)) / float(max(A - 1, 1))
    tmix = jnp.einsum('ijbxy,ij,bc->jbxicy', k, ap_mask,
                      jnp.eye(B, dtype=jnp.float32)).reshape(lanes, lanes)

    # Diagonal extraction + packing: lane (a, b, p, p) -> column a*B*P + b*P + p.
    dst = a_i * (B * P) + b_i * P + r_i
    dsel = ((r_i == c_i)[:, None]
            & (jnp.arange(bpp)[None, :] == dst[:, None])).astype(jnp.float32)

    # Per-batch entropy reduction over the packed diagonal lanes.
    lane2 = jnp.arange(bpp)
    esel = ((lane2 < A * B * P)[:, None]
            & (jnp.arange(bpp)[None, :] == ((lane2 // P) % B)[:, None])
            ).astype(jnp.float32)
    return mix, tmix, dsel, esel


# ----------------------------------------------------------------------------
# Host-side glue.
# ----------------------------------------------------------------------------

@functools.partial(jax.jit,
                   static_argnames=("A", "B", "P", "F", "G", "n_users",
                                    "pmax", "n_layers"))
def _forward_impl(packed, x_all, sel, eps_packed, *, A, B, P, F, G,
                  n_users, pmax, n_layers):
    mix, tmix, dsel, esel = _build_mixing_constants(sel, A=A, B=B, P=P,
                                                    n_users=n_users)
    bpp = B * P * P
    ent_const = A * P * (0.5 + 0.5 * math.log(2.0 * math.pi))
    kernel = functools.partial(_gnn_global_kernel, n_layers=n_layers,
                               seg_f=2 * F, seg_g=2 * G,
                               ent_const=ent_const, pmax=pmax)
    vmem = pl.BlockSpec(memory_space=pltpu.MemorySpace.VMEM)
    out = pl.pallas_call(
        kernel,
        out_shape=jax.ShapeDtypeStruct((4, bpp), jnp.float32),
        in_specs=[vmem] * 20,
        out_specs=vmem,
    )(x_all, mix, tmix, dsel, esel, eps_packed,
      packed["pw1x0"], packed["pw1n"], packed["pw1e"], packed["pb1"],
      packed["pw3"], packed["pb3"],
      packed["gw1n0"], packed["gw1n"], packed["gw1m"], packed["gb1"],
      packed["gw3"], packed["gb3"], packed["gw3f"], packed["gb3f"])
    return out


def gnn_global_forward(params_mu, params_sigma, gnn_input, selection, hp, eps):
    A = hp["num_aps"]
    P = hp["preselection_ap"]
    Din = hp["input_feature_dim"]
    F = hp["phi_feature_dim"]
    G = hp["gamma_feature_dim"]
    B = int(gnn_input[0].shape[0])
    bpp = B * P * P
    assert A * B * P <= bpp, "diag packing assumes num_aps <= preselection_ap"

    # One-time layout prep: NCHW -> channels-first flat lanes (ap, b, i, j).
    x_all = jnp.concatenate(
        [jnp.transpose(xi, (1, 0, 2, 3)).reshape(Din, bpp) for xi in gnn_input],
        axis=1)
    sel = jnp.stack([jnp.squeeze(s, axis=1) for s in selection],
                    axis=0).astype(jnp.float32)
    packed = pack_gnn_global_params(params_mu, params_sigma, hp)
    eps_packed = jnp.zeros((1, bpp), jnp.float32).at[:, :A * B * P].set(
        jnp.reshape(eps, (1, A * B * P)))

    out = _forward_impl(packed, x_all, sel, eps_packed, A=A, B=B, P=P, F=F,
                        G=G, n_users=hp["num_users"], pmax=float(hp["pmax"]),
                        n_layers=5)
    n = A * B * P
    mu = out[0, :n].reshape(A, B, P)
    sigma = out[1, :n].reshape(A, B, P)
    p = out[2, :n].reshape(A, B, P)
    entropy = out[3, :B]

    def per_ap(t):
        return [t[a][:, None, :] for a in range(A)]
    # NOTE: the reference also computes `normalized_p` but never returns it.
    return per_ap(p), per_ap(mu), per_ap(sigma), entropy


# ----------------------------------------------------------------------------
# Weight packing: mu/sigma nets block-diagonal, PP-segment-major channel order.
# ----------------------------------------------------------------------------

def _pp_perm(fd):
    """Packed channel order (segment, net, feature) -> index into [mu ; sigma]."""
    idx = []
    for k in range(4):
        for net in range(2):
            for f in range(fd):
                idx.append(net * 4 * fd + k * fd + f)
    return np.asarray(idx)


def pack_gnn_global_params(pm, ps, hp):
    din = hp["input_feature_dim"]
    fp, fg = hp["phi_feature_dim"], hp["gamma_feature_dim"]
    go = 4 * fg                      # per-net node feature dim after layer 0
    perm_f, perm_g = _pp_perm(fp), _pp_perm(fg)

    def rows(wm, ws, perm):          # shared-input columns, stacked outputs
        return jnp.concatenate([wm, ws], axis=0)[perm]

    def bias(bm, bs, perm):
        return jnp.concatenate([bm, bs], axis=0)[perm][:, None]

    def bd(wm, ws, perm_out, perm_in):   # block-diagonal (net) + channel perms
        z = jnp.zeros_like(wm)
        m = jnp.concatenate([jnp.concatenate([wm, z], axis=1),
                             jnp.concatenate([z, ws], axis=1)], axis=0)
        if perm_out is not None:
            m = m[perm_out]
        return m[:, perm_in]

    phm, phs = pm["phi"], ps["phi"]
    gam, gas = pm["gamma"], ps["gamma"]

    # Phi conv1, layer 0: input is cat(x, x) -> fold the duplicated columns.
    pw1x0 = rows(phm[0]["w1"][:, :din] + phm[0]["w1"][:, din:],
                 phs[0]["w1"][:, :din] + phs[0]["w1"][:, din:], perm_f)
    pw1n = jnp.stack([bd(phm[l]["w1"][:, :go], phs[l]["w1"][:, :go],
                         perm_f, perm_g) for l in range(1, 5)], axis=0)
    pw1e = jnp.stack([rows(phm[l]["w1"][:, go:], phs[l]["w1"][:, go:], perm_f)
                      for l in range(1, 5)], axis=0)
    pb1 = jnp.stack([bias(phm[l]["b1"], phs[l]["b1"], perm_f)
                     for l in range(5)], axis=0)
    pw3 = jnp.stack([bd(phm[l]["w3"], phs[l]["w3"], perm_f, perm_f)
                     for l in range(5)], axis=0)
    pb3 = jnp.stack([bias(phm[l]["b3"], phs[l]["b3"], perm_f)
                     for l in range(5)], axis=0)

    gw1n0 = rows(gam[0]["w1"][:, :din], gas[0]["w1"][:, :din], perm_g)
    gw1m = jnp.stack(
        [bd(gam[0]["w1"][:, din:], gas[0]["w1"][:, din:], perm_g, perm_f)]
        + [bd(gam[l]["w1"][:, go:], gas[l]["w1"][:, go:], perm_g, perm_f)
           for l in range(1, 5)], axis=0)
    gw1n = jnp.stack([bd(gam[l]["w1"][:, :go], gas[l]["w1"][:, :go],
                         perm_g, perm_g) for l in range(1, 5)], axis=0)
    gb1 = jnp.stack([bias(gam[l]["b1"], gas[l]["b1"], perm_g)
                     for l in range(5)], axis=0)
    gw3 = jnp.stack([bd(gam[l]["w3"], gas[l]["w3"], perm_g, perm_g)
                     for l in range(4)], axis=0)
    gb3 = jnp.stack([bias(gam[l]["b3"], gas[l]["b3"], perm_g)
                     for l in range(4)], axis=0)
    gw3f = bd(gam[4]["w3"], gas[4]["w3"], None, perm_g)          # [2, 8*fg]
    gb3f = jnp.concatenate([gam[4]["b3"], gas[4]["b3"]], axis=0)[:, None]

    return dict(pw1x0=pw1x0, pw1n=pw1n, pw1e=pw1e, pb1=pb1, pw3=pw3, pb3=pb3,
                gw1n0=gw1n0, gw1n=gw1n, gw1m=gw1m, gb1=gb1,
                gw3=gw3, gb3=gb3, gw3f=gw3f, gb3f=gb3f)


# ----------------------------------------------------------------------------
# Deterministic parameter init (shapes from the module __init__).
# ----------------------------------------------------------------------------

def _init_conv(key, cout, cin):
    wkey, bkey = jax.random.split(key)
    bound = 1.0 / math.sqrt(cin)
    w = jax.random.uniform(wkey, (cout, cin), jnp.float32, -bound, bound)
    b = jax.random.uniform(bkey, (cout,), jnp.float32, -bound, bound)
    return w, b


def _init_phi(key, in_dim, fd):
    k1, k3 = jax.random.split(key)
    w1, b1 = _init_conv(k1, 4 * fd, in_dim)
    w3, b3 = _init_conv(k3, 4 * fd, 4 * fd)   # conv2 exists in __init__ but is unused
    return {"w1": w1, "b1": b1, "w3": w3, "b3": b3}


def _init_gamma(key, in_dim, out_dim, fd):
    k1, k3 = jax.random.split(key)
    w1, b1 = _init_conv(k1, 4 * fd, in_dim)
    w3, b3 = _init_conv(k3, out_dim, 4 * fd)  # conv2 exists in __init__ but is unused
    return {"w1": w1, "b1": b1, "w3": w3, "b3": b3}


def init_gnn(key, hp):
    """One GNN's parameters (ex == ones-eye is folded into the kernel)."""
    ifd = hp["input_feature_dim"]
    pf, gf = hp["phi_feature_dim"], hp["gamma_feature_dim"]
    phi_out, g_out = pf * 4, gf * 4
    phi_in_init = 2 * ifd                    # reduced_msg_input=True
    phi_in = g_out + ifd
    g_in_init = ifd + phi_out
    g_in = g_out + phi_out
    keys = jax.random.split(key, 10)
    phis = [_init_phi(keys[0], phi_in_init, pf)] + \
           [_init_phi(keys[i], phi_in, pf) for i in range(1, 5)]
    gammas = [_init_gamma(keys[5], g_in_init, g_out, gf)] + \
             [_init_gamma(keys[5 + i], g_in, g_out, gf) for i in range(1, 4)] + \
             [_init_gamma(keys[9], g_in, 1, gf)]
    # NOTE: gamma_power_portion* / gamma_total_power* heads are unused by forward.
    return {"phi": phis, "gamma": gammas}


# ----------------------------------------------------------------------------

if __name__ == "__main__":
    hp = dict(num_aps=2, num_users=8, preselection_ap=8, input_feature_dim=4,
              phi_feature_dim=4, gamma_feature_dim=4, reduced_msg_input=True,
              pmax=1.0)
    B = 2
    A = hp["num_aps"]
    P = hp["preselection_ap"]
    G = hp["num_users"]
    Din = hp["input_feature_dim"]

    key = jax.random.PRNGKey(0)
    k_mu, k_sig, k_in, k_sel, k_eps = jax.random.split(key, 5)
    params_mu = init_gnn(k_mu, hp)
    params_sigma = init_gnn(k_sig, hp)

    gnn_input = [jax.random.normal(k, (B, Din, P, P), jnp.float32)
                 for k in jax.random.split(k_in, A)]
    selection = [(jax.random.uniform(k, (B, 1, G, P)) > 0.5).astype(jnp.float32)
                 for k in jax.random.split(k_sel, A)]
    eps = jax.random.normal(k_eps, (A, B, P), jnp.float32)  # rsample noise

    p, mu, sigma, entropy = gnn_global_forward(
        params_mu, params_sigma, gnn_input, selection, hp, eps)
    jax.block_until_ready((p, mu, sigma, entropy))
    assert len(p) == A and p[0].shape == (B, 1, P)
    assert mu[0].shape == (B, 1, P) and sigma[0].shape == (B, 1, P)
    assert entropy.shape == (B,)
    print("KERNEL_OK")
</pallas_src>

<mosaic_0001>
module attributes {stable_mosaic.version = 11 : i64} {
  func.func @_gnn_global_kernel(%arg0: memref<4x256xf32, #tpu.memory_space<vmem>>, %arg1: memref<3x256x256xf32, #tpu.memory_space<vmem>>, %arg2: memref<256x256xf32, #tpu.memory_space<vmem>>, %arg3: memref<256x128xf32, #tpu.memory_space<vmem>>, %arg4: memref<128x128xf32, #tpu.memory_space<vmem>>, %arg5: memref<1x128xf32, #tpu.memory_space<vmem>>, %arg6: memref<32x4xf32, #tpu.memory_space<vmem>>, %arg7: memref<4x32x32xf32, #tpu.memory_space<vmem>>, %arg8: memref<4x32x4xf32, #tpu.memory_space<vmem>>, %arg9: memref<5x32x1xf32, #tpu.memory_space<vmem>>, %arg10: memref<5x32x32xf32, #tpu.memory_space<vmem>>, %arg11: memref<5x32x1xf32, #tpu.memory_space<vmem>>, %arg12: memref<32x4xf32, #tpu.memory_space<vmem>>, %arg13: memref<4x32x32xf32, #tpu.memory_space<vmem>>, %arg14: memref<5x32x32xf32, #tpu.memory_space<vmem>>, %arg15: memref<5x32x1xf32, #tpu.memory_space<vmem>>, %arg16: memref<4x32x32xf32, #tpu.memory_space<vmem>>, %arg17: memref<4x32x1xf32, #tpu.memory_space<vmem>>, %arg18: memref<2x32xf32, #tpu.memory_space<vmem>>, %arg19: memref<2x1xf32, #tpu.memory_space<vmem>>, %arg20: memref<4x128xf32, #tpu.memory_space<vmem>>) attributes {dimension_semantics = [], scalar_prefetch = 0 : i64, scratch_operands = 0 : i64, tpu.core_type = #tpu.core_type<tc>} {
    %c0 = arith.constant 0 : index
    %c0_0 = arith.constant 0 : index
    %c0_1 = arith.constant 0 : index
    %0 = vector.load %arg1[%c0, %c0_0, %c0_1] : memref<3x256x256xf32, #tpu.memory_space<vmem>>, vector<1x256x256xf32>
    %1 = vector.shape_cast %0 : vector<1x256x256xf32> to vector<256x256xf32>
    %c1 = arith.constant 1 : index
    %c0_2 = arith.constant 0 : index
    %c0_3 = arith.constant 0 : index
    %2 = vector.load %arg1[%c1, %c0_2, %c0_3] : memref<3x256x256xf32, #tpu.memory_space<vmem>>, vector<1x256x256xf32>
    %3 = vector.shape_cast %2 : vector<1x256x256xf32> to vector<256x256xf32>
    %c2 = arith.constant 2 : index
    %c0_4 = arith.constant 0 : index
    %c0_5 = arith.constant 0 : index
    %4 = vector.load %arg1[%c2, %c0_4, %c0_5] : memref<3x256x256xf32, #tpu.memory_space<vmem>>, vector<1x256x256xf32>
    %5 = vector.shape_cast %4 : vector<1x256x256xf32> to vector<256x256xf32>
    %c0_6 = arith.constant 0 : index
    %c0_7 = arith.constant 0 : index
    %6 = vector.load %arg2[%c0_6, %c0_7] : memref<256x256xf32, #tpu.memory_space<vmem>>, vector<256x256xf32>
    %c0_8 = arith.constant 0 : index
    %c0_9 = arith.constant 0 : index
    %7 = vector.load %arg0[%c0_8, %c0_9] : memref<4x256xf32, #tpu.memory_space<vmem>>, vector<4x256xf32>
    %c0_10 = arith.constant 0 : index
    %c0_11 = arith.constant 0 : index
    %8 = vector.load %arg6[%c0_10, %c0_11] : memref<32x4xf32, #tpu.memory_space<vmem>>, vector<32x4xf32>
    %cst = arith.constant dense<0.000000e+00> : vector<32x256xf32>
    %9 = tpu.matmul %8, %7, %cst {dimension_numbers = #tpu.dot_dimension_numbers<[1], [0], [0], [1], [0, 0, 1, 1], [], []>} : vector<32x4xf32>, vector<4x256xf32>, vector<32x256xf32> -> vector<32x256xf32>
    %c0_12 = arith.constant 0 : index
    %c0_13 = arith.constant 0 : index
    %c0_14 = arith.constant 0 : index
    %10 = vector.load %arg9[%c0_12, %c0_13, %c0_14] : memref<5x32x1xf32, #tpu.memory_space<vmem>>, vector<1x32x1xf32>
    %11 = vector.shape_cast %10 : vector<1x32x1xf32> to vector<32x1xf32>
    %12 = vector.broadcast %11 : vector<32x1xf32> to vector<32x256xf32>
    %13 = arith.addf %9, %12 : vector<32x256xf32>
    %cst_15 = arith.constant 0.000000e+00 : f32
    %14 = vector.broadcast %cst_15 : f32 to vector<32x256xf32>
    %15 = arith.maximumf %13, %14 : vector<32x256xf32>
    %16 = vector.extract_strided_slice %15 {offsets = [0, 0], sizes = [8, 256], strides = [1, 1]} : vector<32x256xf32> to vector<8x256xf32>
    %17 = vector.extract_strided_slice %15 {offsets = [8, 0], sizes = [8, 256], strides = [1, 1]} : vector<32x256xf32> to vector<8x256xf32>
    %cst_16 = arith.constant dense<0.000000e+00> : vector<8x256xf32>
    %18 = tpu.matmul %17, %1, %cst_16 {dimension_numbers = #tpu.dot_dimension_numbers<[1], [0], [0], [1], [0, 0, 1, 1], [], []>} : vector<8x256xf32>, vector<256x256xf32>, vector<8x256xf32> -> vector<8x256xf32>
    %19 = vector.extract_strided_slice %15 {offsets = [16, 0], sizes = [8, 256], strides = [1, 1]} : vector<32x256xf32> to vector<8x256xf32>
    %cst_17 = arith.constant dense<0.000000e+00> : vector<8x256xf32>
    %20 = tpu.matmul %19, %3, %cst_17 {dimension_numbers = #tpu.dot_dimension_numbers<[1], [0], [0], [1], [0, 0, 1, 1], [], []>} : vector<8x256xf32>, vector<256x256xf32>, vector<8x256xf32> -> vector<8x256xf32>
    %21 = vector.extract_strided_slice %15 {offsets = [24, 0], sizes = [8, 256], strides = [1, 1]} : vector<32x256xf32> to vector<8x256xf32>
    %cst_18 = arith.constant dense<0.000000e+00> : vector<8x256xf32>
    %22 = tpu.matmul %21, %5, %cst_18 {dimension_numbers = #tpu.dot_dimension_numbers<[1], [0], [0], [1], [0, 0, 1, 1], [], []>} : vector<8x256xf32>, vector<256x256xf32>, vector<8x256xf32> -> vector<8x256xf32>
    %23 = tpu.concatenate %16, %18, %20, %22 in 0 : vector<8x256xf32>, vector<8x256xf32>, vector<8x256xf32>, vector<8x256xf32> -> vector<32x256xf32>
    %c0_19 = arith.constant 0 : index
    %c0_20 = arith.constant 0 : index
    %c0_21 = arith.constant 0 : index
    %24 = vector.load %arg10[%c0_19, %c0_20, %c0_21] : memref<5x32x32xf32, #tpu.memory_space<vmem>>, vector<1x32x32xf32>
    %25 = vector.shape_cast %24 : vector<1x32x32xf32> to vector<32x32xf32>
    %cst_22 = arith.constant dense<0.000000e+00> : vector<32x256xf32>
    %26 = tpu.matmul %25, %23, %cst_22 {dimension_numbers = #tpu.dot_dimension_numbers<[1], [0], [0], [1], [0, 0, 1, 1], [], []>} : vector<32x32xf32>, vector<32x256xf32>, vector<32x256xf32> -> vector<32x256xf32>
    %c0_23 = arith.constant 0 : index
    %c0_24 = arith.constant 0 : index
    %c0_25 = arith.constant 0 : index
    %27 = vector.load %arg11[%c0_23, %c0_24, %c0_25] : memref<5x32x1xf32, #tpu.memory_space<vmem>>, vector<1x32x1xf32>
    %28 = vector.shape_cast %27 : vector<1x32x1xf32> to vector<32x1xf32>
    %29 = vector.broadcast %28 : vector<32x1xf32> to vector<32x256xf32>
    %30 = arith.addf %26, %29 : vector<32x256xf32>
    %cst_26 = arith.constant 0.000000e+00 : f32
    %31 = vector.broadcast %cst_26 : f32 to vector<32x256xf32>
    %32 = arith.maximumf %30, %31 : vector<32x256xf32>
    %33 = vector.extract_strided_slice %32 {offsets = [0, 0], sizes = [8, 256], strides = [1, 1]} : vector<32x256xf32> to vector<8x256xf32>
    %34 = vector.extract_strided_slice %32 {offsets = [8, 0], sizes = [8, 256], strides = [1, 1]} : vector<32x256xf32> to vector<8x256xf32>
    %cst_27 = arith.constant dense<0.000000e+00> : vector<8x256xf32>
    %35 = tpu.matmul %34, %1, %cst_27 {dimension_numbers = #tpu.dot_dimension_numbers<[1], [0], [0], [1], [0, 0, 1, 1], [], []>} : vector<8x256xf32>, vector<256x256xf32>, vector<8x256xf32> -> vector<8x256xf32>
    %36 = vector.extract_strided_slice %32 {offsets = [16, 0], sizes = [8, 256], strides = [1, 1]} : vector<32x256xf32> to vector<8x256xf32>
    %cst_28 = arith.constant dense<0.000000e+00> : vector<8x256xf32>
    %37 = tpu.matmul %36, %3, %cst_28 {dimension_numbers = #tpu.dot_dimension_numbers<[1], [0], [0], [1], [0, 0, 1, 1], [], []>} : vector<8x256xf32>, vector<256x256xf32>, vector<8x256xf32> -> vector<8x256xf32>
    %38 = vector.extract_strided_slice %32 {offsets = [24, 0], sizes = [8, 256], strides = [1, 1]} : vector<32x256xf32> to vector<8x256xf32>
    %cst_29 = arith.constant dense<0.000000e+00> : vector<8x256xf32>
    %39 = tpu.matmul %38, %5, %cst_29 {dimension_numbers = #tpu.dot_dimension_numbers<[1], [0], [0], [1], [0, 0, 1, 1], [], []>} : vector<8x256xf32>, vector<256x256xf32>, vector<8x256xf32> -> vector<8x256xf32>
    %40 = tpu.concatenate %33, %35, %37, %39 in 0 : vector<8x256xf32>, vector<8x256xf32>, vector<8x256xf32>, vector<8x256xf32> -> vector<32x256xf32>
    %cst_30 = arith.constant dense<0.000000e+00> : vector<32x256xf32>
    %41 = tpu.matmul %40, %6, %cst_30 {dimension_numbers = #tpu.dot_dimension_numbers<[1], [0], [0], [1], [0, 0, 1, 1], [], []>} : vector<32x256xf32>, vector<256x256xf32>, vector<32x256xf32> -> vector<32x256xf32>
    %c0_31 = arith.constant 0 : index
    %c0_32 = arith.constant 0 : index
    %42 = vector.load %arg12[%c0_31, %c0_32] : memref<32x4xf32, #tpu.memory_space<vmem>>, vector<32x4xf32>
    %cst_33 = arith.constant dense<0.000000e+00> : vector<32x256xf32>
    %43 = tpu.matmul %42, %7, %cst_33 {dimension_numbers = #tpu.dot_dimension_numbers<[1], [0], [0], [1], [0, 0, 1, 1], [], []>} : vector<32x4xf32>, vector<4x256xf32>, vector<32x256xf32> -> vector<32x256xf32>
    %c0_34 = arith.constant 0 : index
    %c0_35 = arith.constant 0 : index
    %c0_36 = arith.constant 0 : index
    %44 = vector.load %arg14[%c0_34, %c0_35, %c0_36] : memref<5x32x32xf32, #tpu.memory_space<vmem>>, vector<1x32x32xf32>
    %45 = vector.shape_cast %44 : vector<1x32x32xf32> to vector<32x32xf32>
    %cst_37 = arith.constant dense<0.000000e+00> : vector<32x256xf32>
    %46 = tpu.matmul %45, %41, %cst_37 {dimension_numbers = #tpu.dot_dimension_numbers<[1], [0], [0], [1], [0, 0, 1, 1], [], []>} : vector<32x32xf32>, vector<32x256xf32>, vector<32x256xf32> -> vector<32x256xf32>
    %47 = arith.addf %43, %46 : vector<32x256xf32>
    %c0_38 = arith.constant 0 : index
    %c0_39 = arith.constant 0 : index
    %c0_40 = arith.constant 0 : index
    %48 = vector.load %arg15[%c0_38, %c0_39, %c0_40] : memref<5x32x1xf32, #tpu.memory_space<vmem>>, vector<1x32x1xf32>
    %49 = vector.shape_cast %48 : vector<1x32x1xf32> to vector<32x1xf32>
    %50 = vector.broadcast %49 : vector<32x1xf32> to vector<32x256xf32>
    %51 = arith.addf %47, %50 : vector<32x256xf32>
    %cst_41 = arith.constant 0.000000e+00 : f32
    %52 = vector.broadcast %cst_41 : f32 to vector<32x256xf32>
    %53 = arith.maximumf %51, %52 : vector<32x256xf32>
    %54 = vector.extract_strided_slice %53 {offsets = [0, 0], sizes = [8, 256], strides = [1, 1]} : vector<32x256xf32> to vector<8x256xf32>
    %55 = vector.extract_strided_slice %53 {offsets = [8, 0], sizes = [8, 256], strides = [1, 1]} : vector<32x256xf32> to vector<8x256xf32>
    %cst_42 = arith.constant dense<0.000000e+00> : vector<8x256xf32>
    %56 = tpu.matmul %55, %1, %cst_42 {dimension_numbers = #tpu.dot_dimension_numbers<[1], [0], [0], [1], [0, 0, 1, 1], [], []>} : vector<8x256xf32>, vector<256x256xf32>, vector<8x256xf32> -> vector<8x256xf32>
    %57 = vector.extract_strided_slice %53 {offsets = [16, 0], sizes = [8, 256], strides = [1, 1]} : vector<32x256xf32> to vector<8x256xf32>
    %cst_43 = arith.constant dense<0.000000e+00> : vector<8x256xf32>
    %58 = tpu.matmul %57, %3, %cst_43 {dimension_numbers = #tpu.dot_dimension_numbers<[1], [0], [0], [1], [0, 0, 1, 1], [], []>} : vector<8x256xf32>, vector<256x256xf32>, vector<8x256xf32> -> vector<8x256xf32>
    %59 = vector.extract_strided_slice %53 {offsets = [24, 0], sizes = [8, 256], strides = [1, 1]} : vector<32x256xf32> to vector<8x256xf32>
    %cst_44 = arith.constant dense<0.000000e+00> : vector<8x256xf32>
    %60 = tpu.matmul %59, %5, %cst_44 {dimension_numbers = #tpu.dot_dimension_numbers<[1], [0], [0], [1], [0, 0, 1, 1], [], []>} : vector<8x256xf32>, vector<256x256xf32>, vector<8x256xf32> -> vector<8x256xf32>
    %61 = tpu.concatenate %54, %56, %58, %60 in 0 : vector<8x256xf32>, vector<8x256xf32>, vector<8x256xf32>, vector<8x256xf32> -> vector<32x256xf32>
    %c0_45 = arith.constant 0 : index
    %c0_46 = arith.constant 0 : index
    %c0_47 = arith.constant 0 : index
    %62 = vector.load %arg16[%c0_45, %c0_46, %c0_47] : memref<4x32x32xf32, #tpu.memory_space<vmem>>, vector<1x32x32xf32>
    %63 = vector.shape_cast %62 : vector<1x32x32xf32> to vector<32x32xf32>
    %cst_48 = arith.constant dense<0.000000e+00> : vector<32x256xf32>
    %64 = tpu.matmul %63, %61, %cst_48 {dimension_numbers = #tpu.dot_dimension_numbers<[1], [0], [0], [1], [0, 0, 1, 1], [], []>} : vector<32x32xf32>, vector<32x256xf32>, vector<32x256xf32> -> vector<32x256xf32>
    %c0_49 = arith.constant 0 : index
    %c0_50 = arith.constant 0 : index
    %c0_51 = arith.constant 0 : index
    %65 = vector.load %arg17[%c0_49, %c0_50, %c0_51] : memref<4x32x1xf32, #tpu.memory_space<vmem>>, vector<1x32x1xf32>
    %66 = vector.shape_cast %65 : vector<1x32x1xf32> to vector<32x1xf32>
    %67 = vector.broadcast %66 : vector<32x1xf32> to vector<32x256xf32>
    %68 = arith.addf %64, %67 : vector<32x256xf32>
    %cst_52 = arith.constant 0.000000e+00 : f32
    %69 = vector.broadcast %cst_52 : f32 to vector<32x256xf32>
    %70 = arith.maximumf %68, %69 : vector<32x256xf32>
    %71 = vector.extract_strided_slice %70 {offsets = [0, 0], sizes = [8, 256], strides = [1, 1]} : vector<32x256xf32> to vector<8x256xf32>
    %72 = vector.extract_strided_slice %70 {offsets = [8, 0], sizes = [8, 256], strides = [1, 1]} : vector<32x256xf32> to vector<8x256xf32>
    %cst_53 = arith.constant dense<0.000000e+00> : vector<8x256xf32>
    %73 = tpu.matmul %72, %1, %cst_53 {dimension_numbers = #tpu.dot_dimension_numbers<[1], [0], [0], [1], [0, 0, 1, 1], [], []>} : vector<8x256xf32>, vector<256x256xf32>, vector<8x256xf32> -> vector<8x256xf32>
    %74 = vector.extract_strided_slice %70 {offsets = [16, 0], sizes = [8, 256], strides = [1, 1]} : vector<32x256xf32> to vector<8x256xf32>
    %cst_54 = arith.constant dense<0.000000e+00> : vector<8x256xf32>
    %75 = tpu.matmul %74, %3, %cst_54 {dimension_numbers = #tpu.dot_dimension_numbers<[1], [0], [0], [1], [0, 0, 1, 1], [], []>} : vector<8x256xf32>, vector<256x256xf32>, vector<8x256xf32> -> vector<8x256xf32>
    %76 = vector.extract_strided_slice %70 {offsets = [24, 0], sizes = [8, 256], strides = [1, 1]} : vector<32x256xf32> to vector<8x256xf32>
    %cst_55 = arith.constant dense<0.000000e+00> : vector<8x256xf32>
    %77 = tpu.matmul %76, %5, %cst_55 {dimension_numbers = #tpu.dot_dimension_numbers<[1], [0], [0], [1], [0, 0, 1, 1], [], []>} : vector<8x256xf32>, vector<256x256xf32>, vector<8x256xf32> -> vector<8x256xf32>
    %78 = tpu.concatenate %71, %73, %75, %77 in 0 : vector<8x256xf32>, vector<8x256xf32>, vector<8x256xf32>, vector<8x256xf32> -> vector<32x256xf32>
    %c0_56 = arith.constant 0 : index
    %c0_57 = arith.constant 0 : index
    %c0_58 = arith.constant 0 : index
    %79 = vector.load %arg7[%c0_56, %c0_57, %c0_58] : memref<4x32x32xf32, #tpu.memory_space<vmem>>, vector<1x32x32xf32>
    %80 = vector.shape_cast %79 : vector<1x32x32xf32> to vector<32x32xf32>
    %cst_59 = arith.constant dense<0.000000e+00> : vector<32x256xf32>
    %81 = tpu.matmul %80, %78, %cst_59 {dimension_numbers = #tpu.dot_dimension_numbers<[1], [0], [0], [1], [0, 0, 1, 1], [], []>} : vector<32x32xf32>, vector<32x256xf32>, vector<32x256xf32> -> vector<32x256xf32>
    %c0_60 = arith.constant 0 : index
    %c0_61 = arith.constant 0 : index
    %c0_62 = arith.constant 0 : index
    %82 = vector.load %arg8[%c0_60, %c0_61, %c0_62] : memref<4x32x4xf32, #tpu.memory_space<vmem>>, vector<1x32x4xf32>
    %83 = vector.shape_cast %82 : vector<1x32x4xf32> to vector<32x4xf32>
    %cst_63 = arith.constant dense<0.000000e+00> : vector<32x256xf32>
    %84 = tpu.matmul %83, %7, %cst_63 {dimension_numbers = #tpu.dot_dimension_numbers<[1], [0], [0], [1], [0, 0, 1, 1], [], []>} : vector<32x4xf32>, vector<4x256xf32>, vector<32x256xf32> -> vector<32x256xf32>
    %85 = arith.addf %81, %84 : vector<32x256xf32>
    %c1_64 = arith.constant 1 : index
    %c0_65 = arith.constant 0 : index
    %c0_66 = arith.constant 0 : index
    %86 = vector.load %arg9[%c1_64, %c0_65, %c0_66] : memref<5x32x1xf32, #tpu.memory_space<vmem>>, vector<1x32x1xf32>
    %87 = vector.shape_cast %86 : vector<1x32x1xf32> to vector<32x1xf32>
    %88 = vector.broadcast %87 : vector<32x1xf32> to vector<32x256xf32>
    %89 = arith.addf %85, %88 : vector<32x256xf32>
    %cst_67 = arith.constant 0.000000e+00 : f32
    %90 = vector.broadcast %cst_67 : f32 to vector<32x256xf32>
    %91 = arith.maximumf %89, %90 : vector<32x256xf32>
    %92 = vector.extract_strided_slice %91 {offsets = [0, 0], sizes = [8, 256], strides = [1, 1]} : vector<32x256xf32> to vector<8x256xf32>
    %93 = vector.extract_strided_slice %91 {offsets = [8, 0], sizes = [8, 256], strides = [1, 1]} : vector<32x256xf32> to vector<8x256xf32>
    %cst_68 = arith.constant dense<0.000000e+00> : vector<8x256xf32>
    %94 = tpu.matmul %93, %1, %cst_68 {dimension_numbers = #tpu.dot_dimension_numbers<[1], [0], [0], [1], [0, 0, 1, 1], [], []>} : vector<8x256xf32>, vector<256x256xf32>, vector<8x256xf32> -> vector<8x256xf32>
    %95 = vector.extract_strided_slice %91 {offsets = [16, 0], sizes = [8, 256], strides = [1, 1]} : vector<32x256xf32> to vector<8x256xf32>
    %cst_69 = arith.constant dense<0.000000e+00> : vector<8x256xf32>
    %96 = tpu.matmul %95, %3, %cst_69 {dimension_numbers = #tpu.dot_dimension_numbers<[1], [0], [0], [1], [0, 0, 1, 1], [], []>} : vector<8x256xf32>, vector<256x256xf32>, vector<8x256xf32> -> vector<8x256xf32>
    %97 = vector.extract_strided_slice %91 {offsets = [24, 0], sizes = [8, 256], strides = [1, 1]} : vector<32x256xf32> to vector<8x256xf32>
    %cst_70 = arith.constant dense<0.000000e+00> : vector<8x256xf32>
    %98 = tpu.matmul %97, %5, %cst_70 {dimension_numbers = #tpu.dot_dimension_numbers<[1], [0], [0], [1], [0, 0, 1, 1], [], []>} : vector<8x256xf32>, vector<256x256xf32>, vector<8x256xf32> -> vector<8x256xf32>
    %99 = tpu.concatenate %92, %94, %96, %98 in 0 : vector<8x256xf32>, vector<8x256xf32>, vector<8x256xf32>, vector<8x256xf32> -> vector<32x256xf32>
    %c1_71 = arith.constant 1 : index
    %c0_72 = arith.constant 0 : index
    %c0_73 = arith.constant 0 : index
    %100 = vector.load %arg10[%c1_71, %c0_72, %c0_73] : memref<5x32x32xf32, #tpu.memory_space<vmem>>, vector<1x32x32xf32>
    %101 = vector.shape_cast %100 : vector<1x32x32xf32> to vector<32x32xf32>
    %cst_74 = arith.constant dense<0.000000e+00> : vector<32x256xf32>
    %102 = tpu.matmul %101, %99, %cst_74 {dimension_numbers = #tpu.dot_dimension_numbers<[1], [0], [0], [1], [0, 0, 1, 1], [], []>} : vector<32x32xf32>, vector<32x256xf32>, vector<32x256xf32> -> vector<32x256xf32>
    %c1_75 = arith.constant 1 : index
    %c0_76 = arith.constant 0 : index
    %c0_77 = arith.constant 0 : index
    %103 = vector.load %arg11[%c1_75, %c0_76, %c0_77] : memref<5x32x1xf32, #tpu.memory_space<vmem>>, vector<1x32x1xf32>
    %104 = vector.shape_cast %103 : vector<1x32x1xf32> to vector<32x1xf32>
    %105 = vector.broadcast %104 : vector<32x1xf32> to vector<32x256xf32>
    %106 = arith.addf %102, %105 : vector<32x256xf32>
    %cst_78 = arith.constant 0.000000e+00 : f32
    %107 = vector.broadcast %cst_78 : f32 to vector<32x256xf32>
    %108 = arith.maximumf %106, %107 : vector<32x256xf32>
    %109 = vector.extract_strided_slice %108 {offsets = [0, 0], sizes = [8, 256], strides = [1, 1]} : vector<32x256xf32> to vector<8x256xf32>
    %110 = vector.extract_strided_slice %108 {offsets = [8, 0], sizes = [8, 256], strides = [1, 1]} : vector<32x256xf32> to vector<8x256xf32>
    %cst_79 = arith.constant dense<0.000000e+00> : vector<8x256xf32>
    %111 = tpu.matmul %110, %1, %cst_79 {dimension_numbers = #tpu.dot_dimension_numbers<[1], [0], [0], [1], [0, 0, 1, 1], [], []>} : vector<8x256xf32>, vector<256x256xf32>, vector<8x256xf32> -> vector<8x256xf32>
    %112 = vector.extract_strided_slice %108 {offsets = [16, 0], sizes = [8, 256], strides = [1, 1]} : vector<32x256xf32> to vector<8x256xf32>
    %cst_80 = arith.constant dense<0.000000e+00> : vector<8x256xf32>
    %113 = tpu.matmul %112, %3, %cst_80 {dimension_numbers = #tpu.dot_dimension_numbers<[1], [0], [0], [1], [0, 0, 1, 1], [], []>} : vector<8x256xf32>, vector<256x256xf32>, vector<8x256xf32> -> vector<8x256xf32>
    %114 = vector.extract_strided_slice %108 {offsets = [24, 0], sizes = [8, 256], strides = [1, 1]} : vector<32x256xf32> to vector<8x256xf32>
    %cst_81 = arith.constant dense<0.000000e+00> : vector<8x256xf32>
    %115 = tpu.matmul %114, %5, %cst_81 {dimension_numbers = #tpu.dot_dimension_numbers<[1], [0], [0], [1], [0, 0, 1, 1], [], []>} : vector<8x256xf32>, vector<256x256xf32>, vector<8x256xf32> -> vector<8x256xf32>
    %116 = tpu.concatenate %109, %111, %113, %115 in 0 : vector<8x256xf32>, vector<8x256xf32>, vector<8x256xf32>, vector<8x256xf32> -> vector<32x256xf32>
    %cst_82 = arith.constant dense<0.000000e+00> : vector<32x256xf32>
    %117 = tpu.matmul %116, %6, %cst_82 {dimension_numbers = #tpu.dot_dimension_numbers<[1], [0], [0], [1], [0, 0, 1, 1], [], []>} : vector<32x256xf32>, vector<256x256xf32>, vector<32x256xf32> -> vector<32x256xf32>
    %c0_83 = arith.constant 0 : index
    %c0_84 = arith.constant 0 : index
    %c0_85 = arith.constant 0 : index
    %118 = vector.load %arg13[%c0_83, %c0_84, %c0_85] : memref<4x32x32xf32, #tpu.memory_space<vmem>>, vector<1x32x32xf32>
    %119 = vector.shape_cast %118 : vector<1x32x32xf32> to vector<32x32xf32>
    %cst_86 = arith.constant dense<0.000000e+00> : vector<32x256xf32>
    %120 = tpu.matmul %119, %78, %cst_86 {dimension_numbers = #tpu.dot_dimension_numbers<[1], [0], [0], [1], [0, 0, 1, 1], [], []>} : vector<32x32xf32>, vector<32x256xf32>, vector<32x256xf32> -> vector<32x256xf32>
    %c1_87 = arith.constant 1 : index
    %c0_88 = arith.constant 0 : index
    %c0_89 = arith.constant 0 : index
    %121 = vector.load %arg14[%c1_87, %c0_88, %c0_89] : memref<5x32x32xf32, #tpu.memory_space<vmem>>, vector<1x32x32xf32>
    %122 = vector.shape_cast %121 : vector<1x32x32xf32> to vector<32x32xf32>
    %cst_90 = arith.constant dense<0.000000e+00> : vector<32x256xf32>
    %123 = tpu.matmul %122, %117, %cst_90 {dimension_numbers = #tpu.dot_dimension_numbers<[1], [0], [0], [1], [0, 0, 1, 1], [], []>} : vector<32x32xf32>, vector<32x256xf32>, vector<32x256xf32> -> vector<32x256xf32>
    %124 = arith.addf %120, %123 : vector<32x256xf32>
    %c1_91 = arith.constant 1 : index
    %c0_92 = arith.constant 0 : index
    %c0_93 = arith.constant 0 : index
    %125 = vector.load %arg15[%c1_91, %c0_92, %c0_93] : memref<5x32x1xf32, #tpu.memory_space<vmem>>, vector<1x32x1xf32>
    %126 = vector.shape_cast %125 : vector<1x32x1xf32> to vector<32x1xf32>
    %127 = vector.broadcast %126 : vector<32x1xf32> to vector<32x256xf32>
    %128 = arith.addf %124, %127 : vector<32x256xf32>
    %cst_94 = arith.constant 0.000000e+00 : f32
    %129 = vector.broadcast %cst_94 : f32 to vector<32x256xf32>
    %130 = arith.maximumf %128, %129 : vector<32x256xf32>
    %131 = vector.extract_strided_slice %130 {offsets = [0, 0], sizes = [8, 256], strides = [1, 1]} : vector<32x256xf32> to vector<8x256xf32>
    %132 = vector.extract_strided_slice %130 {offsets = [8, 0], sizes = [8, 256], strides = [1, 1]} : vector<32x256xf32> to vector<8x256xf32>
    %cst_95 = arith.constant dense<0.000000e+00> : vector<8x256xf32>
    %133 = tpu.matmul %132, %1, %cst_95 {dimension_numbers = #tpu.dot_dimension_numbers<[1], [0], [0], [1], [0, 0, 1, 1], [], []>} : vector<8x256xf32>, vector<256x256xf32>, vector<8x256xf32> -> vector<8x256xf32>
    %134 = vector.extract_strided_slice %130 {offsets = [16, 0], sizes = [8, 256], strides = [1, 1]} : vector<32x256xf32> to vector<8x256xf32>
    %cst_96 = arith.constant dense<0.000000e+00> : vector<8x256xf32>
    %135 = tpu.matmul %134, %3, %cst_96 {dimension_numbers = #tpu.dot_dimension_numbers<[1], [0], [0], [1], [0, 0, 1, 1], [], []>} : vector<8x256xf32>, vector<256x256xf32>, vector<8x256xf32> -> vector<8x256xf32>
    %136 = vector.extract_strided_slice %130 {offsets = [24, 0], sizes = [8, 256], strides = [1, 1]} : vector<32x256xf32> to vector<8x256xf32>
    %cst_97 = arith.constant dense<0.000000e+00> : vector<8x256xf32>
    %137 = tpu.matmul %136, %5, %cst_97 {dimension_numbers = #tpu.dot_dimension_numbers<[1], [0], [0], [1], [0, 0, 1, 1], [], []>} : vector<8x256xf32>, vector<256x256xf32>, vector<8x256xf32> -> vector<8x256xf32>
    %138 = tpu.concatenate %131, %133, %135, %137 in 0 : vector<8x256xf32>, vector<8x256xf32>, vector<8x256xf32>, vector<8x256xf32> -> vector<32x256xf32>
    %c1_98 = arith.constant 1 : index
    %c0_99 = arith.constant 0 : index
    %c0_100 = arith.constant 0 : index
    %139 = vector.load %arg16[%c1_98, %c0_99, %c0_100] : memref<4x32x32xf32, #tpu.memory_space<vmem>>, vector<1x32x32xf32>
    %140 = vector.shape_cast %139 : vector<1x32x32xf32> to vector<32x32xf32>
    %cst_101 = arith.constant dense<0.000000e+00> : vector<32x256xf32>
    %141 = tpu.matmul %140, %138, %cst_101 {dimension_numbers = #tpu.dot_dimension_numbers<[1], [0], [0], [1], [0, 0, 1, 1], [], []>} : vector<32x32xf32>, vector<32x256xf32>, vector<32x256xf32> -> vector<32x256xf32>
    %c1_102 = arith.constant 1 : index
    %c0_103 = arith.constant 0 : index
    %c0_104 = arith.constant 0 : index
    %142 = vector.load %arg17[%c1_102, %c0_103, %c0_104] : memref<4x32x1xf32, #tpu.memory_space<vmem>>, vector<1x32x1xf32>
    %143 = vector.shape_cast %142 : vector<1x32x1xf32> to vector<32x1xf32>
    %144 = vector.broadcast %143 : vector<32x1xf32> to vector<32x256xf32>
    %145 = arith.addf %141, %144 : vector<32x256xf32>
    %cst_105 = arith.constant 0.000000e+00 : f32
    %146 = vector.broadcast %cst_105 : f32 to vector<32x256xf32>
    %147 = arith.maximumf %145, %146 : vector<32x256xf32>
    %148 = vector.extract_strided_slice %147 {offsets = [0, 0], sizes = [8, 256], strides = [1, 1]} : vector<32x256xf32> to vector<8x256xf32>
    %149 = vector.extract_strided_slice %147 {offsets = [8, 0], sizes = [8, 256], strides = [1, 1]} : vector<32x256xf32> to vector<8x256xf32>
    %cst_106 = arith.constant dense<0.000000e+00> : vector<8x256xf32>
    %150 = tpu.matmul %149, %1, %cst_106 {dimension_numbers = #tpu.dot_dimension_numbers<[1], [0], [0], [1], [0, 0, 1, 1], [], []>} : vector<8x256xf32>, vector<256x256xf32>, vector<8x256xf32> -> vector<8x256xf32>
    %151 = vector.extract_strided_slice %147 {offsets = [16, 0], sizes = [8, 256], strides = [1, 1]} : vector<32x256xf32> to vector<8x256xf32>
    %cst_107 = arith.constant dense<0.000000e+00> : vector<8x256xf32>
    %152 = tpu.matmul %151, %3, %cst_107 {dimension_numbers = #tpu.dot_dimension_numbers<[1], [0], [0], [1], [0, 0, 1, 1], [], []>} : vector<8x256xf32>, vector<256x256xf32>, vector<8x256xf32> -> vector<8x256xf32>
    %153 = vector.extract_strided_slice %147 {offsets = [24, 0], sizes = [8, 256], strides = [1, 1]} : vector<32x256xf32> to vector<8x256xf32>
    %cst_108 = arith.constant dense<0.000000e+00> : vector<8x256xf32>
    %154 = tpu.matmul %153, %5, %cst_108 {dimension_numbers = #tpu.dot_dimension_numbers<[1], [0], [0], [1], [0, 0, 1, 1], [], []>} : vector<8x256xf32>, vector<256x256xf32>, vector<8x256xf32> -> vector<8x256xf32>
    %155 = tpu.concatenate %148, %150, %152, %154 in 0 : vector<8x256xf32>, vector<8x256xf32>, vector<8x256xf32>, vector<8x256xf32> -> vector<32x256xf32>
    %c1_109 = arith.constant 1 : index
    %c0_110 = arith.constant 0 : index
    %c0_111 = arith.constant 0 : index
    %156 = vector.load %arg7[%c1_109, %c0_110, %c0_111] : memref<4x32x32xf32, #tpu.memory_space<vmem>>, vector<1x32x32xf32>
    %157 = vector.shape_cast %156 : vector<1x32x32xf32> to vector<32x32xf32>
    %cst_112 = arith.constant dense<0.000000e+00> : vector<32x256xf32>
    %158 = tpu.matmul %157, %155, %cst_112 {dimension_numbers = #tpu.dot_dimension_numbers<[1], [0], [0], [1], [0, 0, 1, 1], [], []>} : vector<32x32xf32>, vector<32x256xf32>, vector<32x256xf32> -> vector<32x256xf32>
    %c1_113 = arith.constant 1 : index
    %c0_114 = arith.constant 0 : index
    %c0_115 = arith.constant 0 : index
    %159 = vector.load %arg8[%c1_113, %c0_114, %c0_115] : memref<4x32x4xf32, #tpu.memory_space<vmem>>, vector<1x32x4xf32>
    %160 = vector.shape_cast %159 : vector<1x32x4xf32> to vector<32x4xf32>
    %cst_116 = arith.constant dense<0.000000e+00> : vector<32x256xf32>
    %161 = tpu.matmul %160, %7, %cst_116 {dimension_numbers = #tpu.dot_dimension_numbers<[1], [0], [0], [1], [0, 0, 1, 1], [], []>} : vector<32x4xf32>, vector<4x256xf32>, vector<32x256xf32> -> vector<32x256xf32>
    %162 = arith.addf %158, %161 : vector<32x256xf32>
    %c2_117 = arith.constant 2 : index
    %c0_118 = arith.constant 0 : index
    %c0_119 = arith.constant 0 : index
    %163 = vector.load %arg9[%c2_117, %c0_118, %c0_119] : memref<5x32x1xf32, #tpu.memory_space<vmem>>, vector<1x32x1xf32>
    %164 = vector.shape_cast %163 : vector<1x32x1xf32> to vector<32x1xf32>
    %165 = vector.broadcast %164 : vector<32x1xf32> to vector<32x256xf32>
    %166 = arith.addf %162, %165 : vector<32x256xf32>
    %cst_120 = arith.constant 0.000000e+00 : f32
    %167 = vector.broadcast %cst_120 : f32 to vector<32x256xf32>
    %168 = arith.maximumf %166, %167 : vector<32x256xf32>
    %169 = vector.extract_strided_slice %168 {offsets = [0, 0], sizes = [8, 256], strides = [1, 1]} : vector<32x256xf32> to vector<8x256xf32>
    %170 = vector.extract_strided_slice %168 {offsets = [8, 0], sizes = [8, 256], strides = [1, 1]} : vector<32x256xf32> to vector<8x256xf32>
    %cst_121 = arith.constant dense<0.000000e+00> : vector<8x256xf32>
    %171 = tpu.matmul %170, %1, %cst_121 {dimension_numbers = #tpu.dot_dimension_numbers<[1], [0], [0], [1], [0, 0, 1, 1], [], []>} : vector<8x256xf32>, vector<256x256xf32>, vector<8x256xf32> -> vector<8x256xf32>
    %172 = vector.extract_strided_slice %168 {offsets = [16, 0], sizes = [8, 256], strides = [1, 1]} : vector<32x256xf32> to vector<8x256xf32>
    %cst_122 = arith.constant dense<0.000000e+00> : vector<8x256xf32>
    %173 = tpu.matmul %172, %3, %cst_122 {dimension_numbers = #tpu.dot_dimension_numbers<[1], [0], [0], [1], [0, 0, 1, 1], [], []>} : vector<8x256xf32>, vector<256x256xf32>, vector<8x256xf32> -> vector<8x256xf32>
    %174 = vector.extract_strided_slice %168 {offsets = [24, 0], sizes = [8, 256], strides = [1, 1]} : vector<32x256xf32> to vector<8x256xf32>
    %cst_123 = arith.constant dense<0.000000e+00> : vector<8x256xf32>
    %175 = tpu.matmul %174, %5, %cst_123 {dimension_numbers = #tpu.dot_dimension_numbers<[1], [0], [0], [1], [0, 0, 1, 1], [], []>} : vector<8x256xf32>, vector<256x256xf32>, vector<8x256xf32> -> vector<8x256xf32>
    %176 = tpu.concatenate %169, %171, %173, %175 in 0 : vector<8x256xf32>, vector<8x256xf32>, vector<8x256xf32>, vector<8x256xf32> -> vector<32x256xf32>
    %c2_124 = arith.constant 2 : index
    %c0_125 = arith.constant 0 : index
    %c0_126 = arith.constant 0 : index
    %177 = vector.load %arg10[%c2_124, %c0_125, %c0_126] : memref<5x32x32xf32, #tpu.memory_space<vmem>>, vector<1x32x32xf32>
    %178 = vector.shape_cast %177 : vector<1x32x32xf32> to vector<32x32xf32>
    %cst_127 = arith.constant dense<0.000000e+00> : vector<32x256xf32>
    %179 = tpu.matmul %178, %176, %cst_127 {dimension_numbers = #tpu.dot_dimension_numbers<[1], [0], [0], [1], [0, 0, 1, 1], [], []>} : vector<32x32xf32>, vector<32x256xf32>, vector<32x256xf32> -> vector<32x256xf32>
    %c2_128 = arith.constant 2 : index
    %c0_129 = arith.constant 0 : index
    %c0_130 = arith.constant 0 : index
    %180 = vector.load %arg11[%c2_128, %c0_129, %c0_130] : memref<5x32x1xf32, #tpu.memory_space<vmem>>, vector<1x32x1xf32>
    %181 = vector.shape_cast %180 : vector<1x32x1xf32> to vector<32x1xf32>
    %182 = vector.broadcast %181 : vector<32x1xf32> to vector<32x256xf32>
    %183 = arith.addf %179, %182 : vector<32x256xf32>
    %cst_131 = arith.constant 0.000000e+00 : f32
    %184 = vector.broadcast %cst_131 : f32 to vector<32x256xf32>
    %185 = arith.maximumf %183, %184 : vector<32x256xf32>
    %186 = vector.extract_strided_slice %185 {offsets = [0, 0], sizes = [8, 256], strides = [1, 1]} : vector<32x256xf32> to vector<8x256xf32>
    %187 = vector.extract_strided_slice %185 {offsets = [8, 0], sizes = [8, 256], strides = [1, 1]} : vector<32x256xf32> to vector<8x256xf32>
    %cst_132 = arith.constant dense<0.000000e+00> : vector<8x256xf32>
    %188 = tpu.matmul %187, %1, %cst_132 {dimension_numbers = #tpu.dot_dimension_numbers<[1], [0], [0], [1], [0, 0, 1, 1], [], []>} : vector<8x256xf32>, vector<256x256xf32>, vector<8x256xf32> -> vector<8x256xf32>
    %189 = vector.extract_strided_slice %185 {offsets = [16, 0], sizes = [8, 256], strides = [1, 1]} : vector<32x256xf32> to vector<8x256xf32>
    %cst_133 = arith.constant dense<0.000000e+00> : vector<8x256xf32>
    %190 = tpu.matmul %189, %3, %cst_133 {dimension_numbers = #tpu.dot_dimension_numbers<[1], [0], [0], [1], [0, 0, 1, 1], [], []>} : vector<8x256xf32>, vector<256x256xf32>, vector<8x256xf32> -> vector<8x256xf32>
    %191 = vector.extract_strided_slice %185 {offsets = [24, 0], sizes = [8, 256], strides = [1, 1]} : vector<32x256xf32> to vector<8x256xf32>
    %cst_134 = arith.constant dense<0.000000e+00> : vector<8x256xf32>
    %192 = tpu.matmul %191, %5, %cst_134 {dimension_numbers = #tpu.dot_dimension_numbers<[1], [0], [0], [1], [0, 0, 1, 1], [], []>} : vector<8x256xf32>, vector<256x256xf32>, vector<8x256xf32> -> vector<8x256xf32>
    %193 = tpu.concatenate %186, %188, %190, %192 in 0 : vector<8x256xf32>, vector<8x256xf32>, vector<8x256xf32>, vector<8x256xf32> -> vector<32x256xf32>
    %cst_135 = arith.constant dense<0.000000e+00> : vector<32x256xf32>
    %194 = tpu.matmul %193, %6, %cst_135 {dimension_numbers = #tpu.dot_dimension_numbers<[1], [0], [0], [1], [0, 0, 1, 1], [], []>} : vector<32x256xf32>, vector<256x256xf32>, vector<32x256xf32> -> vector<32x256xf32>
    %c1_136 = arith.constant 1 : index
    %c0_137 = arith.constant 0 : index
    %c0_138 = arith.constant 0 : index
    %195 = vector.load %arg13[%c1_136, %c0_137, %c0_138] : memref<4x32x32xf32, #tpu.memory_space<vmem>>, vector<1x32x32xf32>
    %196 = vector.shape_cast %195 : vector<1x32x32xf32> to vector<32x32xf32>
    %cst_139 = arith.constant dense<0.000000e+00> : vector<32x256xf32>
    %197 = tpu.matmul %196, %155, %cst_139 {dimension_numbers = #tpu.dot_dimension_numbers<[1], [0], [0], [1], [0, 0, 1, 1], [], []>} : vector<32x32xf32>, vector<32x256xf32>, vector<32x256xf32> -> vector<32x256xf32>
    %c2_140 = arith.constant 2 : index
    %c0_141 = arith.constant 0 : index
    %c0_142 = arith.constant 0 : index
    %198 = vector.load %arg14[%c2_140, %c0_141, %c0_142] : memref<5x32x32xf32, #tpu.memory_space<vmem>>, vector<1x32x32xf32>
    %199 = vector.shape_cast %198 : vector<1x32x32xf32> to vector<32x32xf32>
    %cst_143 = arith.constant dense<0.000000e+00> : vector<32x256xf32>
    %200 = tpu.matmul %199, %194, %cst_143 {dimension_numbers = #tpu.dot_dimension_numbers<[1], [0], [0], [1], [0, 0, 1, 1], [], []>} : vector<32x32xf32>, vector<32x256xf32>, vector<32x256xf32> -> vector<32x256xf32>
    %201 = arith.addf %197, %200 : vector<32x256xf32>
    %c2_144 = arith.constant 2 : index
    %c0_145 = arith.constant 0 : index
    %c0_146 = arith.constant 0 : index
    %202 = vector.load %arg15[%c2_144, %c0_145, %c0_146] : memref<5x32x1xf32, #tpu.memory_space<vmem>>, vector<1x32x1xf32>
    %203 = vector.shape_cast %202 : vector<1x32x1xf32> to vector<32x1xf32>
    %204 = vector.broadcast %203 : vector<32x1xf32> to vector<32x256xf32>
    %205 = arith.addf %201, %204 : vector<32x256xf32>
    %cst_147 = arith.constant 0.000000e+00 : f32
    %206 = vector.broadcast %cst_147 : f32 to vector<32x256xf32>
    %207 = arith.maximumf %205, %206 : vector<32x256xf32>
    %208 = vector.extract_strided_slice %207 {offsets = [0, 0], sizes = [8, 256], strides = [1, 1]} : vector<32x256xf32> to vector<8x256xf32>
    %209 = vector.extract_strided_slice %207 {offsets = [8, 0], sizes = [8, 256], strides = [1, 1]} : vector<32x256xf32> to vector<8x256xf32>
    %cst_148 = arith.constant dense<0.000000e+00> : vector<8x256xf32>
    %210 = tpu.matmul %209, %1, %cst_148 {dimension_numbers = #tpu.dot_dimension_numbers<[1], [0], [0], [1], [0, 0, 1, 1], [], []>} : vector<8x256xf32>, vector<256x256xf32>, vector<8x256xf32> -> vector<8x256xf32>
    %211 = vector.extract_strided_slice %207 {offsets = [16, 0], sizes = [8, 256], strides = [1, 1]} : vector<32x256xf32> to vector<8x256xf32>
    %cst_149 = arith.constant dense<0.000000e+00> : vector<8x256xf32>
    %212 = tpu.matmul %211, %3, %cst_149 {dimension_numbers = #tpu.dot_dimension_numbers<[1], [0], [0], [1], [0, 0, 1, 1], [], []>} : vector<8x256xf32>, vector<256x256xf32>, vector<8x256xf32> -> vector<8x256xf32>
    %213 = vector.extract_strided_slice %207 {offsets = [24, 0], sizes = [8, 256], strides = [1, 1]} : vector<32x256xf32> to vector<8x256xf32>
    %cst_150 = arith.constant dense<0.000000e+00> : vector<8x256xf32>
    %214 = tpu.matmul %213, %5, %cst_150 {dimension_numbers = #tpu.dot_dimension_numbers<[1], [0], [0], [1], [0, 0, 1, 1], [], []>} : vector<8x256xf32>, vector<256x256xf32>, vector<8x256xf32> -> vector<8x256xf32>
    %215 = tpu.concatenate %208, %210, %212, %214 in 0 : vector<8x256xf32>, vector<8x256xf32>, vector<8x256xf32>, vector<8x256xf32> -> vector<32x256xf32>
    %c2_151 = arith.constant 2 : index
    %c0_152 = arith.constant 0 : index
    %c0_153 = arith.constant 0 : index
    %216 = vector.load %arg16[%c2_151, %c0_152, %c0_153] : memref<4x32x32xf32, #tpu.memory_space<vmem>>, vector<1x32x32xf32>
    %217 = vector.shape_cast %216 : vector<1x32x32xf32> to vector<32x32xf32>
    %cst_154 = arith.constant dense<0.000000e+00> : vector<32x256xf32>
    %218 = tpu.matmul %217, %215, %cst_154 {dimension_numbers = #tpu.dot_dimension_numbers<[1], [0], [0], [1], [0, 0, 1, 1], [], []>} : vector<32x32xf32>, vector<32x256xf32>, vector<32x256xf32> -> vector<32x256xf32>
    %c2_155 = arith.constant 2 : index
    %c0_156 = arith.constant 0 : index
    %c0_157 = arith.constant 0 : index
    %219 = vector.load %arg17[%c2_155, %c0_156, %c0_157] : memref<4x32x1xf32, #tpu.memory_space<vmem>>, vector<1x32x1xf32>
    %220 = vector.shape_cast %219 : vector<1x32x1xf32> to vector<32x1xf32>
    %221 = vector.broadcast %220 : vector<32x1xf32> to vector<32x256xf32>
    %222 = arith.addf %218, %221 : vector<32x256xf32>
    %cst_158 = arith.constant 0.000000e+00 : f32
    %223 = vector.broadcast %cst_158 : f32 to vector<32x256xf32>
    %224 = arith.maximumf %222, %223 : vector<32x256xf32>
    %225 = vector.extract_strided_slice %224 {offsets = [0, 0], sizes = [8, 256], strides = [1, 1]} : vector<32x256xf32> to vector<8x256xf32>
    %226 = vector.extract_strided_slice %224 {offsets = [8, 0], sizes = [8, 256], strides = [1, 1]} : vector<32x256xf32> to vector<8x256xf32>
    %cst_159 = arith.constant dense<0.000000e+00> : vector<8x256xf32>
    %227 = tpu.matmul %226, %1, %cst_159 {dimension_numbers = #tpu.dot_dimension_numbers<[1], [0], [0], [1], [0, 0, 1, 1], [], []>} : vector<8x256xf32>, vector<256x256xf32>, vector<8x256xf32> -> vector<8x256xf32>
    %228 = vector.extract_strided_slice %224 {offsets = [16, 0], sizes = [8, 256], strides = [1, 1]} : vector<32x256xf32> to vector<8x256xf32>
    %cst_160 = arith.constant dense<0.000000e+00> : vector<8x256xf32>
    %229 = tpu.matmul %228, %3, %cst_160 {dimension_numbers = #tpu.dot_dimension_numbers<[1], [0], [0], [1], [0, 0, 1, 1], [], []>} : vector<8x256xf32>, vector<256x256xf32>, vector<8x256xf32> -> vector<8x256xf32>
    %230 = vector.extract_strided_slice %224 {offsets = [24, 0], sizes = [8, 256], strides = [1, 1]} : vector<32x256xf32> to vector<8x256xf32>
    %cst_161 = arith.constant dense<0.000000e+00> : vector<8x256xf32>
    %231 = tpu.matmul %230, %5, %cst_161 {dimension_numbers = #tpu.dot_dimension_numbers<[1], [0], [0], [1], [0, 0, 1, 1], [], []>} : vector<8x256xf32>, vector<256x256xf32>, vector<8x256xf32> -> vector<8x256xf32>
    %232 = tpu.concatenate %225, %227, %229, %231 in 0 : vector<8x256xf32>, vector<8x256xf32>, vector<8x256xf32>, vector<8x256xf32> -> vector<32x256xf32>
    %c2_162 = arith.constant 2 : index
    %c0_163 = arith.constant 0 : index
    %c0_164 = arith.constant 0 : index
    %233 = vector.load %arg7[%c2_162, %c0_163, %c0_164] : memref<4x32x32xf32, #tpu.memory_space<vmem>>, vector<1x32x32xf32>
    %234 = vector.shape_cast %233 : vector<1x32x32xf32> to vector<32x32xf32>
    %cst_165 = arith.constant dense<0.000000e+00> : vector<32x256xf32>
    %235 = tpu.matmul %234, %232, %cst_165 {dimension_numbers = #tpu.dot_dimension_numbers<[1], [0], [0], [1], [0, 0, 1, 1], [], []>} : vector<32x32xf32>, vector<32x256xf32>, vector<32x256xf32> -> vector<32x256xf32>
    %c2_166 = arith.constant 2 : index
    %c0_167 = arith.constant 0 : index
    %c0_168 = arith.constant 0 : index
    %236 = vector.load %arg8[%c2_166, %c0_167, %c0_168] : memref<4x32x4xf32, #tpu.memory_space<vmem>>, vector<1x32x4xf32>
    %237 = vector.shape_cast %236 : vector<1x32x4xf32> to vector<32x4xf32>
    %cst_169 = arith.constant dense<0.000000e+00> : vector<32x256xf32>
    %238 = tpu.matmul %237, %7, %cst_169 {dimension_numbers = #tpu.dot_dimension_numbers<[1], [0], [0], [1], [0, 0, 1, 1], [], []>} : vector<32x4xf32>, vector<4x256xf32>, vector<32x256xf32> -> vector<32x256xf32>
    %239 = arith.addf %235, %238 : vector<32x256xf32>
    %c3 = arith.constant 3 : index
    %c0_170 = arith.constant 0 : index
    %c0_171 = arith.constant 0 : index
    %240 = vector.load %arg9[%c3, %c0_170, %c0_171] : memref<5x32x1xf32, #tpu.memory_space<vmem>>, vector<1x32x1xf32>
    %241 = vector.shape_cast %240 : vector<1x32x1xf32> to vector<32x1xf32>
    %242 = vector.broadcast %241 : vector<32x1xf32> to vector<32x256xf32>
    %243 = arith.addf %239, %242 : vector<32x256xf32>
    %cst_172 = arith.constant 0.000000e+00 : f32
    %244 = vector.broadcast %cst_172 : f32 to vector<32x256xf32>
    %245 = arith.maximumf %243, %244 : vector<32x256xf32>
    %246 = vector.extract_strided_slice %245 {offsets = [0, 0], sizes = [8, 256], strides = [1, 1]} : vector<32x256xf32> to vector<8x256xf32>
    %247 = vector.extract_strided_slice %245 {offsets = [8, 0], sizes = [8, 256], strides = [1, 1]} : vector<32x256xf32> to vector<8x256xf32>
    %cst_173 = arith.constant dense<0.000000e+00> : vector<8x256xf32>
    %248 = tpu.matmul %247, %1, %cst_173 {dimension_numbers = #tpu.dot_dimension_numbers<[1], [0], [0], [1], [0, 0, 1, 1], [], []>} : vector<8x256xf32>, vector<256x256xf32>, vector<8x256xf32> -> vector<8x256xf32>
    %249 = vector.extract_strided_slice %245 {offsets = [16, 0], sizes = [8, 256], strides = [1, 1]} : vector<32x256xf32> to vector<8x256xf32>
    %cst_174 = arith.constant dense<0.000000e+00> : vector<8x256xf32>
    %250 = tpu.matmul %249, %3, %cst_174 {dimension_numbers = #tpu.dot_dimension_numbers<[1], [0], [0], [1], [0, 0, 1, 1], [], []>} : vector<8x256xf32>, vector<256x256xf32>, vector<8x256xf32> -> vector<8x256xf32>
    %251 = vector.extract_strided_slice %245 {offsets = [24, 0], sizes = [8, 256], strides = [1, 1]} : vector<32x256xf32> to vector<8x256xf32>
    %cst_175 = arith.constant dense<0.000000e+00> : vector<8x256xf32>
    %252 = tpu.matmul %251, %5, %cst_175 {dimension_numbers = #tpu.dot_dimension_numbers<[1], [0], [0], [1], [0, 0, 1, 1], [], []>} : vector<8x256xf32>, vector<256x256xf32>, vector<8x256xf32> -> vector<8x256xf32>
    %253 = tpu.concatenate %246, %248, %250, %252 in 0 : vector<8x256xf32>, vector<8x256xf32>, vector<8x256xf32>, vector<8x256xf32> -> vector<32x256xf32>
    %c3_176 = arith.constant 3 : index
    %c0_177 = arith.constant 0 : index
    %c0_178 = arith.constant 0 : index
    %254 = vector.load %arg10[%c3_176, %c0_177, %c0_178] : memref<5x32x32xf32, #tpu.memory_space<vmem>>, vector<1x32x32xf32>
    %255 = vector.shape_cast %254 : vector<1x32x32xf32> to vector<32x32xf32>
    %cst_179 = arith.constant dense<0.000000e+00> : vector<32x256xf32>
    %256 = tpu.matmul %255, %253, %cst_179 {dimension_numbers = #tpu.dot_dimension_numbers<[1], [0], [0], [1], [0, 0, 1, 1], [], []>} : vector<32x32xf32>, vector<32x256xf32>, vector<32x256xf32> -> vector<32x256xf32>
    %c3_180 = arith.constant 3 : index
    %c0_181 = arith.constant 0 : index
    %c0_182 = arith.constant 0 : index
    %257 = vector.load %arg11[%c3_180, %c0_181, %c0_182] : memref<5x32x1xf32, #tpu.memory_space<vmem>>, vector<1x32x1xf32>
    %258 = vector.shape_cast %257 : vector<1x32x1xf32> to vector<32x1xf32>
    %259 = vector.broadcast %258 : vector<32x1xf32> to vector<32x256xf32>
    %260 = arith.addf %256, %259 : vector<32x256xf32>
    %cst_183 = arith.constant 0.000000e+00 : f32
    %261 = vector.broadcast %cst_183 : f32 to vector<32x256xf32>
    %262 = arith.maximumf %260, %261 : vector<32x256xf32>
    %263 = vector.extract_strided_slice %262 {offsets = [0, 0], sizes = [8, 256], strides = [1, 1]} : vector<32x256xf32> to vector<8x256xf32>
    %264 = vector.extract_strided_slice %262 {offsets = [8, 0], sizes = [8, 256], strides = [1, 1]} : vector<32x256xf32> to vector<8x256xf32>
    %cst_184 = arith.constant dense<0.000000e+00> : vector<8x256xf32>
    %265 = tpu.matmul %264, %1, %cst_184 {dimension_numbers = #tpu.dot_dimension_numbers<[1], [0], [0], [1], [0, 0, 1, 1], [], []>} : vector<8x256xf32>, vector<256x256xf32>, vector<8x256xf32> -> vector<8x256xf32>
    %266 = vector.extract_strided_slice %262 {offsets = [16, 0], sizes = [8, 256], strides = [1, 1]} : vector<32x256xf32> to vector<8x256xf32>
    %cst_185 = arith.constant dense<0.000000e+00> : vector<8x256xf32>
    %267 = tpu.matmul %266, %3, %cst_185 {dimension_numbers = #tpu.dot_dimension_numbers<[1], [0], [0], [1], [0, 0, 1, 1], [], []>} : vector<8x256xf32>, vector<256x256xf32>, vector<8x256xf32> -> vector<8x256xf32>
    %268 = vector.extract_strided_slice %262 {offsets = [24, 0], sizes = [8, 256], strides = [1, 1]} : vector<32x256xf32> to vector<8x256xf32>
    %cst_186 = arith.constant dense<0.000000e+00> : vector<8x256xf32>
    %269 = tpu.matmul %268, %5, %cst_186 {dimension_numbers = #tpu.dot_dimension_numbers<[1], [0], [0], [1], [0, 0, 1, 1], [], []>} : vector<8x256xf32>, vector<256x256xf32>, vector<8x256xf32> -> vector<8x256xf32>
    %270 = tpu.concatenate %263, %265, %267, %269 in 0 : vector<8x256xf32>, vector<8x256xf32>, vector<8x256xf32>, vector<8x256xf32> -> vector<32x256xf32>
    %cst_187 = arith.constant dense<0.000000e+00> : vector<32x256xf32>
    %271 = tpu.matmul %270, %6, %cst_187 {dimension_numbers = #tpu.dot_dimension_numbers<[1], [0], [0], [1], [0, 0, 1, 1], [], []>} : vector<32x256xf32>, vector<256x256xf32>, vector<32x256xf32> -> vector<32x256xf32>
    %c2_188 = arith.constant 2 : index
    %c0_189 = arith.constant 0 : index
    %c0_190 = arith.constant 0 : index
    %272 = vector.load %arg13[%c2_188, %c0_189, %c0_190] : memref<4x32x32xf32, #tpu.memory_space<vmem>>, vector<1x32x32xf32>
    %273 = vector.shape_cast %272 : vector<1x32x32xf32> to vector<32x32xf32>
    %cst_191 = arith.constant dense<0.000000e+00> : vector<32x256xf32>
    %274 = tpu.matmul %273, %232, %cst_191 {dimension_numbers = #tpu.dot_dimension_numbers<[1], [0], [0], [1], [0, 0, 1, 1], [], []>} : vector<32x32xf32>, vector<32x256xf32>, vector<32x256xf32> -> vector<32x256xf32>
    %c3_192 = arith.constant 3 : index
    %c0_193 = arith.constant 0 : index
    %c0_194 = arith.constant 0 : index
    %275 = vector.load %arg14[%c3_192, %c0_193, %c0_194] : memref<5x32x32xf32, #tpu.memory_space<vmem>>, vector<1x32x32xf32>
    %276 = vector.shape_cast %275 : vector<1x32x32xf32> to vector<32x32xf32>
    %cst_195 = arith.constant dense<0.000000e+00> : vector<32x256xf32>
    %277 = tpu.matmul %276, %271, %cst_195 {dimension_numbers = #tpu.dot_dimension_numbers<[1], [0], [0], [1], [0, 0, 1, 1], [], []>} : vector<32x32xf32>, vector<32x256xf32>, vector<32x256xf32> -> vector<32x256xf32>
    %278 = arith.addf %274, %277 : vector<32x256xf32>
    %c3_196 = arith.constant 3 : index
    %c0_197 = arith.constant 0 : index
    %c0_198 = arith.constant 0 : index
    %279 = vector.load %arg15[%c3_196, %c0_197, %c0_198] : memref<5x32x1xf32, #tpu.memory_space<vmem>>, vector<1x32x1xf32>
    %280 = vector.shape_cast %279 : vector<1x32x1xf32> to vector<32x1xf32>
    %281 = vector.broadcast %280 : vector<32x1xf32> to vector<32x256xf32>
    %282 = arith.addf %278, %281 : vector<32x256xf32>
    %cst_199 = arith.constant 0.000000e+00 : f32
    %283 = vector.broadcast %cst_199 : f32 to vector<32x256xf32>
    %284 = arith.maximumf %282, %283 : vector<32x256xf32>
    %285 = vector.extract_strided_slice %284 {offsets = [0, 0], sizes = [8, 256], strides = [1, 1]} : vector<32x256xf32> to vector<8x256xf32>
    %286 = vector.extract_strided_slice %284 {offsets = [8, 0], sizes = [8, 256], strides = [1, 1]} : vector<32x256xf32> to vector<8x256xf32>
    %cst_200 = arith.constant dense<0.000000e+00> : vector<8x256xf32>
    %287 = tpu.matmul %286, %1, %cst_200 {dimension_numbers = #tpu.dot_dimension_numbers<[1], [0], [0], [1], [0, 0, 1, 1], [], []>} : vector<8x256xf32>, vector<256x256xf32>, vector<8x256xf32> -> vector<8x256xf32>
    %288 = vector.extract_strided_slice %284 {offsets = [16, 0], sizes = [8, 256], strides = [1, 1]} : vector<32x256xf32> to vector<8x256xf32>
    %cst_201 = arith.constant dense<0.000000e+00> : vector<8x256xf32>
    %289 = tpu.matmul %288, %3, %cst_201 {dimension_numbers = #tpu.dot_dimension_numbers<[1], [0], [0], [1], [0, 0, 1, 1], [], []>} : vector<8x256xf32>, vector<256x256xf32>, vector<8x256xf32> -> vector<8x256xf32>
    %290 = vector.extract_strided_slice %284 {offsets = [24, 0], sizes = [8, 256], strides = [1, 1]} : vector<32x256xf32> to vector<8x256xf32>
    %cst_202 = arith.constant dense<0.000000e+00> : vector<8x256xf32>
    %291 = tpu.matmul %290, %5, %cst_202 {dimension_numbers = #tpu.dot_dimension_numbers<[1], [0], [0], [1], [0, 0, 1, 1], [], []>} : vector<8x256xf32>, vector<256x256xf32>, vector<8x256xf32> -> vector<8x256xf32>
    %292 = tpu.concatenate %285, %287, %289, %291 in 0 : vector<8x256xf32>, vector<8x256xf32>, vector<8x256xf32>, vector<8x256xf32> -> vector<32x256xf32>
    %c3_203 = arith.constant 3 : index
    %c0_204 = arith.constant 0 : index
    %c0_205 = arith.constant 0 : index
    %293 = vector.load %arg16[%c3_203, %c0_204, %c0_205] : memref<4x32x32xf32, #tpu.memory_space<vmem>>, vector<1x32x32xf32>
    %294 = vector.shape_cast %293 : vector<1x32x32xf32> to vector<32x32xf32>
    %cst_206 = arith.constant dense<0.000000e+00> : vector<32x256xf32>
    %295 = tpu.matmul %294, %292, %cst_206 {dimension_numbers = #tpu.dot_dimension_numbers<[1], [0], [0], [1], [0, 0, 1, 1], [], []>} : vector<32x32xf32>, vector<32x256xf32>, vector<32x256xf32> -> vector<32x256xf32>
    %c3_207 = arith.constant 3 : index
    %c0_208 = arith.constant 0 : index
    %c0_209 = arith.constant 0 : index
    %296 = vector.load %arg17[%c3_207, %c0_208, %c0_209] : memref<4x32x1xf32, #tpu.memory_space<vmem>>, vector<1x32x1xf32>
    %297 = vector.shape_cast %296 : vector<1x32x1xf32> to vector<32x1xf32>
    %298 = vector.broadcast %297 : vector<32x1xf32> to vector<32x256xf32>
    %299 = arith.addf %295, %298 : vector<32x256xf32>
    %cst_210 = arith.constant 0.000000e+00 : f32
    %300 = vector.broadcast %cst_210 : f32 to vector<32x256xf32>
    %301 = arith.maximumf %299, %300 : vector<32x256xf32>
    %302 = vector.extract_strided_slice %301 {offsets = [0, 0], sizes = [8, 256], strides = [1, 1]} : vector<32x256xf32> to vector<8x256xf32>
    %303 = vector.extract_strided_slice %301 {offsets = [8, 0], sizes = [8, 256], strides = [1, 1]} : vector<32x256xf32> to vector<8x256xf32>
    %cst_211 = arith.constant dense<0.000000e+00> : vector<8x256xf32>
    %304 = tpu.matmul %303, %1, %cst_211 {dimension_numbers = #tpu.dot_dimension_numbers<[1], [0], [0], [1], [0, 0, 1, 1], [], []>} : vector<8x256xf32>, vector<256x256xf32>, vector<8x256xf32> -> vector<8x256xf32>
    %305 = vector.extract_strided_slice %301 {offsets = [16, 0], sizes = [8, 256], strides = [1, 1]} : vector<32x256xf32> to vector<8x256xf32>
    %cst_212 = arith.constant dense<0.000000e+00> : vector<8x256xf32>
    %306 = tpu.matmul %305, %3, %cst_212 {dimension_numbers = #tpu.dot_dimension_numbers<[1], [0], [0], [1], [0, 0, 1, 1], [], []>} : vector<8x256xf32>, vector<256x256xf32>, vector<8x256xf32> -> vector<8x256xf32>
    %307 = vector.extract_strided_slice %301 {offsets = [24, 0], sizes = [8, 256], strides = [1, 1]} : vector<32x256xf32> to vector<8x256xf32>
    %cst_213 = arith.constant dense<0.000000e+00> : vector<8x256xf32>
    %308 = tpu.matmul %307, %5, %cst_213 {dimension_numbers = #tpu.dot_dimension_numbers<[1], [0], [0], [1], [0, 0, 1, 1], [], []>} : vector<8x256xf32>, vector<256x256xf32>, vector<8x256xf32> -> vector<8x256xf32>
    %309 = tpu.concatenate %302, %304, %306, %308 in 0 : vector<8x256xf32>, vector<8x256xf32>, vector<8x256xf32>, vector<8x256xf32> -> vector<32x256xf32>
    %c3_214 = arith.constant 3 : index
    %c0_215 = arith.constant 0 : index
    %c0_216 = arith.constant 0 : index
    %310 = vector.load %arg7[%c3_214, %c0_215, %c0_216] : memref<4x32x32xf32, #tpu.memory_space<vmem>>, vector<1x32x32xf32>
    %311 = vector.shape_cast %310 : vector<1x32x32xf32> to vector<32x32xf32>
    %cst_217 = arith.constant dense<0.000000e+00> : vector<32x256xf32>
    %312 = tpu.matmul %311, %309, %cst_217 {dimension_numbers = #tpu.dot_dimension_numbers<[1], [0], [0], [1], [0, 0, 1, 1], [], []>} : vector<32x32xf32>, vector<32x256xf32>, vector<32x256xf32> -> vector<32x256xf32>
    %c3_218 = arith.constant 3 : index
    %c0_219 = arith.constant 0 : index
    %c0_220 = arith.constant 0 : index
    %313 = vector.load %arg8[%c3_218, %c0_219, %c0_220] : memref<4x32x4xf32, #tpu.memory_space<vmem>>, vector<1x32x4xf32>
    %314 = vector.shape_cast %313 : vector<1x32x4xf32> to vector<32x4xf32>
    %cst_221 = arith.constant dense<0.000000e+00> : vector<32x256xf32>
    %315 = tpu.matmul %314, %7, %cst_221 {dimension_numbers = #tpu.dot_dimension_numbers<[1], [0], [0], [1], [0, 0, 1, 1], [], []>} : vector<32x4xf32>, vector<4x256xf32>, vector<32x256xf32> -> vector<32x256xf32>
    %316 = arith.addf %312, %315 : vector<32x256xf32>
    %c4 = arith.constant 4 : index
    %c0_222 = arith.constant 0 : index
    %c0_223 = arith.constant 0 : index
    %317 = vector.load %arg9[%c4, %c0_222, %c0_223] : memref<5x32x1xf32, #tpu.memory_space<vmem>>, vector<1x32x1xf32>
    %318 = vector.shape_cast %317 : vector<1x32x1xf32> to vector<32x1xf32>
    %319 = vector.broadcast %318 : vector<32x1xf32> to vector<32x256xf32>
    %320 = arith.addf %316, %319 : vector<32x256xf32>
    %cst_224 = arith.constant 0.000000e+00 : f32
    %321 = vector.broadcast %cst_224 : f32 to vector<32x256xf32>
    %322 = arith.maximumf %320, %321 : vector<32x256xf32>
    %323 = vector.extract_strided_slice %322 {offsets = [0, 0], sizes = [8, 256], strides = [1, 1]} : vector<32x256xf32> to vector<8x256xf32>
    %324 = vector.extract_strided_slice %322 {offsets = [8, 0], sizes = [8, 256], strides = [1, 1]} : vector<32x256xf32> to vector<8x256xf32>
    %cst_225 = arith.constant dense<0.000000e+00> : vector<8x256xf32>
    %325 = tpu.matmul %324, %1, %cst_225 {dimension_numbers = #tpu.dot_dimension_numbers<[1], [0], [0], [1], [0, 0, 1, 1], [], []>} : vector<8x256xf32>, vector<256x256xf32>, vector<8x256xf32> -> vector<8x256xf32>
    %326 = vector.extract_strided_slice %322 {offsets = [16, 0], sizes = [8, 256], strides = [1, 1]} : vector<32x256xf32> to vector<8x256xf32>
    %cst_226 = arith.constant dense<0.000000e+00> : vector<8x256xf32>
    %327 = tpu.matmul %326, %3, %cst_226 {dimension_numbers = #tpu.dot_dimension_numbers<[1], [0], [0], [1], [0, 0, 1, 1], [], []>} : vector<8x256xf32>, vector<256x256xf32>, vector<8x256xf32> -> vector<8x256xf32>
    %328 = vector.extract_strided_slice %322 {offsets = [24, 0], sizes = [8, 256], strides = [1, 1]} : vector<32x256xf32> to vector<8x256xf32>
    %cst_227 = arith.constant dense<0.000000e+00> : vector<8x256xf32>
    %329 = tpu.matmul %328, %5, %cst_227 {dimension_numbers = #tpu.dot_dimension_numbers<[1], [0], [0], [1], [0, 0, 1, 1], [], []>} : vector<8x256xf32>, vector<256x256xf32>, vector<8x256xf32> -> vector<8x256xf32>
    %330 = tpu.concatenate %323, %325, %327, %329 in 0 : vector<8x256xf32>, vector<8x256xf32>, vector<8x256xf32>, vector<8x256xf32> -> vector<32x256xf32>
    %c4_228 = arith.constant 4 : index
    %c0_229 = arith.constant 0 : index
    %c0_230 = arith.constant 0 : index
    %331 = vector.load %arg10[%c4_228, %c0_229, %c0_230] : memref<5x32x32xf32, #tpu.memory_space<vmem>>, vector<1x32x32xf32>
    %332 = vector.shape_cast %331 : vector<1x32x32xf32> to vector<32x32xf32>
    %cst_231 = arith.constant dense<0.000000e+00> : vector<32x256xf32>
    %333 = tpu.matmul %332, %330, %cst_231 {dimension_numbers = #tpu.dot_dimension_numbers<[1], [0], [0], [1], [0, 0, 1, 1], [], []>} : vector<32x32xf32>, vector<32x256xf32>, vector<32x256xf32> -> vector<32x256xf32>
    %c4_232 = arith.constant 4 : index
    %c0_233 = arith.constant 0 : index
    %c0_234 = arith.constant 0 : index
    %334 = vector.load %arg11[%c4_232, %c0_233, %c0_234] : memref<5x32x1xf32, #tpu.memory_space<vmem>>, vector<1x32x1xf32>
    %335 = vector.shape_cast %334 : vector<1x32x1xf32> to vector<32x1xf32>
    %336 = vector.broadcast %335 : vector<32x1xf32> to vector<32x256xf32>
    %337 = arith.addf %333, %336 : vector<32x256xf32>
    %cst_235 = arith.constant 0.000000e+00 : f32
    %338 = vector.broadcast %cst_235 : f32 to vector<32x256xf32>
    %339 = arith.maximumf %337, %338 : vector<32x256xf32>
    %340 = vector.extract_strided_slice %339 {offsets = [0, 0], sizes = [8, 256], strides = [1, 1]} : vector<32x256xf32> to vector<8x256xf32>
    %341 = vector.extract_strided_slice %339 {offsets = [8, 0], sizes = [8, 256], strides = [1, 1]} : vector<32x256xf32> to vector<8x256xf32>
    %cst_236 = arith.constant dense<0.000000e+00> : vector<8x256xf32>
    %342 = tpu.matmul %341, %1, %cst_236 {dimension_numbers = #tpu.dot_dimension_numbers<[1], [0], [0], [1], [0, 0, 1, 1], [], []>} : vector<8x256xf32>, vector<256x256xf32>, vector<8x256xf32> -> vector<8x256xf32>
    %343 = vector.extract_strided_slice %339 {offsets = [16, 0], sizes = [8, 256], strides = [1, 1]} : vector<32x256xf32> to vector<8x256xf32>
    %cst_237 = arith.constant dense<0.000000e+00> : vector<8x256xf32>
    %344 = tpu.matmul %343, %3, %cst_237 {dimension_numbers = #tpu.dot_dimension_numbers<[1], [0], [0], [1], [0, 0, 1, 1], [], []>} : vector<8x256xf32>, vector<256x256xf32>, vector<8x256xf32> -> vector<8x256xf32>
    %345 = vector.extract_strided_slice %339 {offsets = [24, 0], sizes = [8, 256], strides = [1, 1]} : vector<32x256xf32> to vector<8x256xf32>
    %cst_238 = arith.constant dense<0.000000e+00> : vector<8x256xf32>
    %346 = tpu.matmul %345, %5, %cst_238 {dimension_numbers = #tpu.dot_dimension_numbers<[1], [0], [0], [1], [0, 0, 1, 1], [], []>} : vector<8x256xf32>, vector<256x256xf32>, vector<8x256xf32> -> vector<8x256xf32>
    %347 = tpu.concatenate %340, %342, %344, %346 in 0 : vector<8x256xf32>, vector<8x256xf32>, vector<8x256xf32>, vector<8x256xf32> -> vector<32x256xf32>
    %cst_239 = arith.constant dense<0.000000e+00> : vector<32x256xf32>
    %348 = tpu.matmul %347, %6, %cst_239 {dimension_numbers = #tpu.dot_dimension_numbers<[1], [0], [0], [1], [0, 0, 1, 1], [], []>} : vector<32x256xf32>, vector<256x256xf32>, vector<32x256xf32> -> vector<32x256xf32>
    %c3_240 = arith.constant 3 : index
    %c0_241 = arith.constant 0 : index
    %c0_242 = arith.constant 0 : index
    %349 = vector.load %arg13[%c3_240, %c0_241, %c0_242] : memref<4x32x32xf32, #tpu.memory_space<vmem>>, vector<1x32x32xf32>
    %350 = vector.shape_cast %349 : vector<1x32x32xf32> to vector<32x32xf32>
    %cst_243 = arith.constant dense<0.000000e+00> : vector<32x256xf32>
    %351 = tpu.matmul %350, %309, %cst_243 {dimension_numbers = #tpu.dot_dimension_numbers<[1], [0], [0], [1], [0, 0, 1, 1], [], []>} : vector<32x32xf32>, vector<32x256xf32>, vector<32x256xf32> -> vector<32x256xf32>
    %c4_244 = arith.constant 4 : index
    %c0_245 = arith.constant 0 : index
    %c0_246 = arith.constant 0 : index
    %352 = vector.load %arg14[%c4_244, %c0_245, %c0_246] : memref<5x32x32xf32, #tpu.memory_space<vmem>>, vector<1x32x32xf32>
    %353 = vector.shape_cast %352 : vector<1x32x32xf32> to vector<32x32xf32>
    %cst_247 = arith.constant dense<0.000000e+00> : vector<32x256xf32>
    %354 = tpu.matmul %353, %348, %cst_247 {dimension_numbers = #tpu.dot_dimension_numbers<[1], [0], [0], [1], [0, 0, 1, 1], [], []>} : vector<32x32xf32>, vector<32x256xf32>, vector<32x256xf32> -> vector<32x256xf32>
    %355 = arith.addf %351, %354 : vector<32x256xf32>
    %c4_248 = arith.constant 4 : index
    %c0_249 = arith.constant 0 : index
    %c0_250 = arith.constant 0 : index
    %356 = vector.load %arg15[%c4_248, %c0_249, %c0_250] : memref<5x32x1xf32, #tpu.memory_space<vmem>>, vector<1x32x1xf32>
    %357 = vector.shape_cast %356 : vector<1x32x1xf32> to vector<32x1xf32>
    %358 = vector.broadcast %357 : vector<32x1xf32> to vector<32x256xf32>
    %359 = arith.addf %355, %358 : vector<32x256xf32>
    %cst_251 = arith.constant 0.000000e+00 : f32
    %360 = vector.broadcast %cst_251 : f32 to vector<32x256xf32>
    %361 = arith.maximumf %359, %360 : vector<32x256xf32>
    %362 = vector.extract_strided_slice %361 {offsets = [0, 0], sizes = [8, 256], strides = [1, 1]} : vector<32x256xf32> to vector<8x256xf32>
    %363 = vector.extract_strided_slice %361 {offsets = [8, 0], sizes = [8, 256], strides = [1, 1]} : vector<32x256xf32> to vector<8x256xf32>
    %cst_252 = arith.constant dense<0.000000e+00> : vector<8x256xf32>
    %364 = tpu.matmul %363, %1, %cst_252 {dimension_numbers = #tpu.dot_dimension_numbers<[1], [0], [0], [1], [0, 0, 1, 1], [], []>} : vector<8x256xf32>, vector<256x256xf32>, vector<8x256xf32> -> vector<8x256xf32>
    %365 = vector.extract_strided_slice %361 {offsets = [16, 0], sizes = [8, 256], strides = [1, 1]} : vector<32x256xf32> to vector<8x256xf32>
    %cst_253 = arith.constant dense<0.000000e+00> : vector<8x256xf32>
    %366 = tpu.matmul %365, %3, %cst_253 {dimension_numbers = #tpu.dot_dimension_numbers<[1], [0], [0], [1], [0, 0, 1, 1], [], []>} : vector<8x256xf32>, vector<256x256xf32>, vector<8x256xf32> -> vector<8x256xf32>
    %367 = vector.extract_strided_slice %361 {offsets = [24, 0], sizes = [8, 256], strides = [1, 1]} : vector<32x256xf32> to vector<8x256xf32>
    %cst_254 = arith.constant dense<0.000000e+00> : vector<8x256xf32>
    %368 = tpu.matmul %367, %5, %cst_254 {dimension_numbers = #tpu.dot_dimension_numbers<[1], [0], [0], [1], [0, 0, 1, 1], [], []>} : vector<8x256xf32>, vector<256x256xf32>, vector<8x256xf32> -> vector<8x256xf32>
    %369 = tpu.concatenate %362, %364, %366, %368 in 0 : vector<8x256xf32>, vector<8x256xf32>, vector<8x256xf32>, vector<8x256xf32> -> vector<32x256xf32>
    %c0_255 = arith.constant 0 : index
    %c0_256 = arith.constant 0 : index
    %370 = vector.load %arg18[%c0_255, %c0_256] : memref<2x32xf32, #tpu.memory_space<vmem>>, vector<2x32xf32>
    %cst_257 = arith.constant dense<0.000000e+00> : vector<2x256xf32>
    %371 = tpu.matmul %370, %369, %cst_257 {dimension_numbers = #tpu.dot_dimension_numbers<[1], [0], [0], [1], [0, 0, 1, 1], [], []>} : vector<2x32xf32>, vector<32x256xf32>, vector<2x256xf32> -> vector<2x256xf32>
    %c0_258 = arith.constant 0 : index
    %c0_259 = arith.constant 0 : index
    %372 = vector.load %arg19[%c0_258, %c0_259] : memref<2x1xf32, #tpu.memory_space<vmem>>, vector<2x1xf32>
    %373 = vector.broadcast %372 : vector<2x1xf32> to vector<2x256xf32>
    %374 = arith.addf %371, %373 : vector<2x256xf32>
    %c0_260 = arith.constant 0 : index
    %c0_261 = arith.constant 0 : index
    %375 = vector.load %arg3[%c0_260, %c0_261] : memref<256x128xf32, #tpu.memory_space<vmem>>, vector<256x128xf32>
    %cst_262 = arith.constant dense<0.000000e+00> : vector<2x128xf32>
    %376 = tpu.matmul %374, %375, %cst_262 {dimension_numbers = #tpu.dot_dimension_numbers<[1], [0], [0], [1], [0, 0, 1, 1], [], []>} : vector<2x256xf32>, vector<256x128xf32>, vector<2x128xf32> -> vector<2x128xf32>
    %377 = vector.extract_strided_slice %376 {offsets = [0, 0], sizes = [1, 128], strides = [1, 1]} : vector<2x128xf32> to vector<1x128xf32>
    %378 = vector.extract_strided_slice %376 {offsets = [1, 0], sizes = [1, 128], strides = [1, 1]} : vector<2x128xf32> to vector<1x128xf32>
    %cst_263 = arith.constant 1.000000e+00 : f32
    %379 = vector.broadcast %cst_263 : f32 to vector<1x128xf32>
    %380 = arith.addf %378, %379 : vector<1x128xf32>
    %cst_264 = arith.constant 1.000000e+00 : f32
    %381 = vector.broadcast %cst_264 : f32 to vector<1x128xf32>
    %382 = arith.mulf %380, %381 : vector<1x128xf32>
    %c0_265 = arith.constant 0 : index
    %c0_266 = arith.constant 0 : index
    %383 = vector.load %arg5[%c0_265, %c0_266] : memref<1x128xf32, #tpu.memory_space<vmem>>, vector<1x128xf32>
    %384 = arith.mulf %382, %383 : vector<1x128xf32>
    %385 = arith.addf %377, %384 : vector<1x128xf32>
    %cst_267 = arith.constant 0.000000e+00 : f32
    %386 = vector.broadcast %cst_267 : f32 to vector<1x128xf32>
    %387 = arith.subf %386, %385 : vector<1x128xf32>
    %388 = math.exp %387 : vector<1x128xf32>
    %cst_268 = arith.constant 1.000000e+00 : f32
    %389 = vector.broadcast %cst_268 : f32 to vector<1x128xf32>
    %390 = arith.addf %389, %388 : vector<1x128xf32>
    %cst_269 = arith.constant 1.000000e+00 : f32
    %391 = vector.broadcast %cst_269 : f32 to vector<1x128xf32>
    %392 = arith.divf %391, %390 : vector<1x128xf32>
    %393 = math.log %382 : vector<1x128xf32>
    %c0_270 = arith.constant 0 : index
    %c0_271 = arith.constant 0 : index
    %394 = vector.load %arg4[%c0_270, %c0_271] : memref<128x128xf32, #tpu.memory_space<vmem>>, vector<128x128xf32>
    %cst_272 = arith.constant dense<0.000000e+00> : vector<1x128xf32>
    %395 = tpu.matmul %393, %394, %cst_272 {dimension_numbers = #tpu.dot_dimension_numbers<[1], [0], [0], [1], [0, 0, 1, 1], [], []>} : vector<1x128xf32>, vector<128x128xf32>, vector<1x128xf32> -> vector<1x128xf32>
    %cst_273 = arith.constant 22.7030163 : f32
    %396 = vector.broadcast %cst_273 : f32 to vector<1x128xf32>
    %397 = arith.addf %395, %396 : vector<1x128xf32>
    %c0_274 = arith.constant 0 : index
    %c0_275 = arith.constant 0 : index
    %398 = vector.load %arg20[%c0_274, %c0_275] : memref<4x128xf32, #tpu.memory_space<vmem>>, vector<1x128xf32>
    tpu.vector_store %arg20[%c0_274, %c0_275], %377 {strides = array<i32>} : memref<4x128xf32, #tpu.memory_space<vmem>>, vector<1x128xf32>,
    %c1_276 = arith.constant 1 : index
    %c0_277 = arith.constant 0 : index
    %399 = vector.load %arg20[%c1_276, %c0_277] : memref<4x128xf32, #tpu.memory_space<vmem>>, vector<1x128xf32>
    tpu.vector_store %arg20[%c1_276, %c0_277], %382 {strides = array<i32>} : memref<4x128xf32, #tpu.memory_space<vmem>>, vector<1x128xf32>,
    %c2_278 = arith.constant 2 : index
    %c0_279 = arith.constant 0 : index
    %400 = vector.load %arg20[%c2_278, %c0_279] : memref<4x128xf32, #tpu.memory_space<vmem>>, vector<1x128xf32>
    tpu.vector_store %arg20[%c2_278, %c0_279], %392 {strides = array<i32>} : memref<4x128xf32, #tpu.memory_space<vmem>>, vector<1x128xf32>,
    %c3_280 = arith.constant 3 : index
    %c0_281 = arith.constant 0 : index
    %401 = vector.load %arg20[%c3_280, %c0_281] : memref<4x128xf32, #tpu.memory_space<vmem>>, vector<1x128xf32>
    tpu.vector_store %arg20[%c3_280, %c0_281], %397 {strides = array<i32>} : memref<4x128xf32, #tpu.memory_space<vmem>>, vector<1x128xf32>,
    return
  }
}

</mosaic_0001>

<llo_original>
// kernel: _forward_impl.1
$region0: #{_forward_impl.1}
  #allocation0 [shape = 'u32[]', space=smem, size = 0x4, offset = 0x4, fixed_abs, tag = 'smem constant byte address 0x4 - core index']
  #allocation1 [shape = 'u32[144,128]{1,0:T(1,128)}', space=vmem, size = 0x12000, scoped, tag = 'internal scratch']
  %s0 = inlined_call_operand.vmem [shape: f32[4,256], index: 0, kind: input, shape index: {}]
  %s1 = inlined_call_operand.vmem [shape: f32[3,256,256], index: 1, kind: input, shape index: {}]
  %s2 = inlined_call_operand.vmem [shape: f32[256,256], index: 2, kind: input, shape index: {}]
  %s3 = inlined_call_operand.vmem [shape: f32[256,128], index: 3, kind: input, shape index: {}]
  %s4 = inlined_call_operand.vmem [shape: f32[128,128], index: 4, kind: input, shape index: {}]
  %s5 = inlined_call_operand.vmem [shape: f32[1,128], index: 5, kind: input, shape index: {}]
  %s6 = inlined_call_operand.vmem [shape: f32[32,4], index: 6, kind: input, shape index: {}]
  %s7 = inlined_call_operand.vmem [shape: f32[4,32,32], index: 7, kind: input, shape index: {}]
  %s8 = inlined_call_operand.vmem [shape: f32[4,32,4], index: 8, kind: input, shape index: {}]
  %s9 = inlined_call_operand.vmem [shape: f32[5,32,1], index: 9, kind: input, shape index: {}]
  %s10 = inlined_call_operand.vmem [shape: f32[5,32,32], index: 10, kind: input, shape index: {}]
  %s11 = inlined_call_operand.vmem [shape: f32[5,32,1], index: 11, kind: input, shape index: {}]
  %s12 = inlined_call_operand.vmem [shape: f32[32,4], index: 12, kind: input, shape index: {}]
  %s13 = inlined_call_operand.vmem [shape: f32[4,32,32], index: 13, kind: input, shape index: {}]
  %s14 = inlined_call_operand.vmem [shape: f32[5,32,32], index: 14, kind: input, shape index: {}]
  %s15 = inlined_call_operand.vmem [shape: f32[5,32,1], index: 15, kind: input, shape index: {}]
  %s16 = inlined_call_operand.vmem [shape: f32[4,32,32], index: 16, kind: input, shape index: {}]
  %s17 = inlined_call_operand.vmem [shape: f32[4,32,1], index: 17, kind: input, shape index: {}]
  %s18 = inlined_call_operand.vmem [shape: f32[2,32], index: 18, kind: input, shape index: {}]
  %s19 = inlined_call_operand.vmem [shape: f32[2,1], index: 19, kind: input, shape index: {}]
  %s20 = inlined_call_operand.hbm [shape: f32[4,128], index: 20, kind: output, shape index: {}]
  %s21 = sld [smem:[#allocation0]]
  $region90: #{_forward_impl.1} parent=0
    _
  %s23 = ssub.s32 1, %s21
  %s24 = scalar_select 0, %s23, %s21
  $region1: #{_forward_impl.1} parent=0
    #allocation2 [shape = 'u8[2048]{0}', space=vmem, size = 0x800, scoped, tag = 'output window, operand 0, single buffered']
    #allocation3 [shape = 's32[1]{0}', space=sflag, size = 0x4, scoped, tag = 'scoped memory for _forward_impl.1']
    %25 = vsyncpa [#allocation3], 0
    // Predicated region
    $region2: #{_forward_impl.1} parent=1 // pred_check
      _
    $region3: #{_forward_impl.1} parent=1 // pred_check_branch
      %27 = sbr.rel (0) target = $region5
    $region4: #{_forward_impl.1} parent=1 // pred_region
      _
    $region5: #{_forward_impl.1} parent=1 // pred_fallthru
      _
    // Predicated region
    $region6: #{_forward_impl.1} parent=1 // pred_check
      _
    $region7: #{_forward_impl.1} parent=1 // pred_check_branch
      %29 = sbr.rel (0) target = $region9
    $region8: #{_forward_impl.1} parent=1 // pred_region
      _
    $region9: #{_forward_impl.1} parent=1 // pred_fallthru
      _
    // Predicated region
    $region10: #{_forward_impl.1} parent=1 // pred_check
      _
    $region11: #{_forward_impl.1} parent=1 // pred_check_branch
      %31 = sbr.rel (0) target = $region13
    $region12: #{_forward_impl.1} parent=1 // pred_region
      _
    $region13: #{_forward_impl.1} parent=1 // pred_fallthru
      _
    // Predicated region
    $region14: #{_forward_impl.1} parent=1 // pred_check
      _
    $region15: #{_forward_impl.1} parent=1 // pred_check_branch
      %33 = sbr.rel (0) target = $region17
    $region16: #{_forward_impl.1} parent=1 // pred_region
      _
    $region17: #{_forward_impl.1} parent=1 // pred_fallthru
      _
    // Predicated region
    $region18: #{_forward_impl.1} parent=1 // pred_check
      _
    $region19: #{_forward_impl.1} parent=1 // pred_check_branch
      %35 = sbr.rel (0) target = $region21
    $region20: #{_forward_impl.1} parent=1 // pred_region
      _
    $region21: #{_forward_impl.1} parent=1 // pred_fallthru
      _
    // Predicated region
    $region22: #{_forward_impl.1} parent=1 // pred_check
      _
    $region23: #{_forward_impl.1} parent=1 // pred_check_branch
      %37 = sbr.rel (0) target = $region25
    $region24: #{_forward_impl.1} parent=1 // pred_region
      _
    $region25: #{_forward_impl.1} parent=1 // pred_fallthru
      _
    // Predicated region
    $region26: #{_forward_impl.1} parent=1 // pred_check
      _
    $region27: #{_forward_impl.1} parent=1 // pred_check_branch
      %39 = sbr.rel (0) target = $region29
    $region28: #{_forward_impl.1} parent=1 // pred_region
      _
    $region29: #{_forward_impl.1} parent=1 // pred_fallthru
      _
    // Predicated region
    $region30: #{_forward_impl.1} parent=1 // pred_check
      _
    $region31: #{_forward_impl.1} parent=1 // pred_check_branch
      %41 = sbr.rel (0) target = $region33
    $region32: #{_forward_impl.1} parent=1 // pred_region
      _
    $region33: #{_forward_impl.1} parent=1 // pred_fallthru
      _
    // Predicated region
    $region34: #{_forward_impl.1} parent=1 // pred_check
      _
    $region35: #{_forward_impl.1} parent=1 // pred_check_branch
      %43 = sbr.rel (0) target = $region37
    $region36: #{_forward_impl.1} parent=1 // pred_region
      _
    $region37: #{_forward_impl.1} parent=1 // pred_fallthru
      _
    // Predicated region
    $region38: #{_forward_impl.1} parent=1 // pred_check
      _
    $region39: #{_forward_impl.1} parent=1 // pred_check_branch
      %45 = sbr.rel (0) target = $region41
    $region40: #{_forward_impl.1} parent=1 // pred_region
      _
    $region41: #{_forward_impl.1} parent=1 // pred_fallthru
      _
    // Predicated region
    $region42: #{_forward_impl.1} parent=1 // pred_check
      _
    $region43: #{_forward_impl.1} parent=1 // pred_check_branch
      %47 = sbr.rel (0) target = $region45
    $region44: #{_forward_impl.1} parent=1 // pred_region
      _
    $region45: #{_forward_impl.1} parent=1 // pred_fallthru
      _
    // Predicated region
    $region46: #{_forward_impl.1} parent=1 // pred_check
      _
    $region47: #{_forward_impl.1} parent=1 // pred_check_branch
      %49 = sbr.rel (0) target = $region49
    $region48: #{_forward_impl.1} parent=1 // pred_region
      _
    $region49: #{_forward_impl.1} parent=1 // pred_fallthru
      _
    // Predicated region
    $region50: #{_forward_impl.1} parent=1 // pred_check
      _
    $region51: #{_forward_impl.1} parent=1 // pred_check_branch
      %51 = sbr.rel (0) target = $region53
    $region52: #{_forward_impl.1} parent=1 // pred_region
      _
    $region53: #{_forward_impl.1} parent=1 // pred_fallthru
      _
    // Predicated region
    $region54: #{_forward_impl.1} parent=1 // pred_check
      _
    $region55: #{_forward_impl.1} parent=1 // pred_check_branch
      %53 = sbr.rel (0) target = $region57
    $region56: #{_forward_impl.1} parent=1 // pred_region
      _
    $region57: #{_forward_impl.1} parent=1 // pred_fallthru
      _
    // Predicated region
    $region58: #{_forward_impl.1} parent=1 // pred_check
      _
    $region59: #{_forward_impl.1} parent=1 // pred_check_branch
      %55 = sbr.rel (0) target = $region61
    $region60: #{_forward_impl.1} parent=1 // pred_region
      _
    $region61: #{_forward_impl.1} parent=1 // pred_fallthru
      _
    // Predicated region
    $region62: #{_forward_impl.1} parent=1 // pred_check
      _
    $region63: #{_forward_impl.1} parent=1 // pred_check_branch
      %57 = sbr.rel (0) target = $region65
    $region64: #{_forward_impl.1} parent=1 // pred_region
      _
    $region65: #{_forward_impl.1} parent=1 // pred_fallthru
      _
    // Predicated region
    $region66: #{_forward_impl.1} parent=1 // pred_check
      _
    $region67: #{_forward_impl.1} parent=1 // pred_check_branch
      %59 = sbr.rel (0) target = $region69
    $region68: #{_forward_impl.1} parent=1 // pred_region
      _
    $region69: #{_forward_impl.1} parent=1 // pred_fallthru
      _
    // Predicated region
    $region70: #{_forward_impl.1} parent=1 // pred_check
      _
    $region71: #{_forward_impl.1} parent=1 // pred_check_branch
      %61 = sbr.rel (0) target = $region73
    $region72: #{_forward_impl.1} parent=1 // pred_region
      _
    $region73: #{_forward_impl.1} parent=1 // pred_fallthru
      _
    // Predicated region
    $region74: #{_forward_impl.1} parent=1 // pred_check
      _
    $region75: #{_forward_impl.1} parent=1 // pred_check_branch
      %63 = sbr.rel (0) target = $region77
    $region76: #{_forward_impl.1} parent=1 // pred_region
      _
    $region77: #{_forward_impl.1} parent=1 // pred_fallthru
      _
    // Predicated region
    $region78: #{_forward_impl.1} parent=1 // pred_check
      _
    $region79: #{_forward_impl.1} parent=1 // pred_check_branch
      %65 = sbr.rel (0) target = $region81
    $region80: #{_forward_impl.1} parent=1 // pred_region
      _
    $region81: #{_forward_impl.1} parent=1 // pred_fallthru
      _
    %v66 = vld [vmem:[%s1] sm:$0xff]
    %v67 = vld [vmem:[%s1 + $0x8] sm:$0xff]
    %v68 = vld [vmem:[%s1 + $0x10] sm:$0xff]
    %v69 = vld [vmem:[%s1 + $0x18] sm:$0xff]
    %v70 = vld [vmem:[%s1 + $0x20] sm:$0xff]
    %v71 = vld [vmem:[%s1 + $0x28] sm:$0xff]
    %v72 = vld [vmem:[%s1 + $0x30] sm:$0xff]
    %v73 = vld [vmem:[%s1 + $0x38] sm:$0xff]
    %v74 = vld [vmem:[%s1 + $0x40] sm:$0xff]
    %v75 = vld [vmem:[%s1 + $0x48] sm:$0xff]
    %v76 = vld [vmem:[%s1 + $0x50] sm:$0xff]
    %v77 = vld [vmem:[%s1 + $0x58] sm:$0xff]
    %v78 = vld [vmem:[%s1 + $0x60] sm:$0xff]
    %v79 = vld [vmem:[%s1 + $0x68] sm:$0xff]
    %v80 = vld [vmem:[%s1 + $0x70] sm:$0xff]
    %v81 = vld [vmem:[%s1 + $0x78] sm:$0xff]
    %v82 = vld [vmem:[%s1 + $0x80] sm:$0xff]
    %v83 = vld [vmem:[%s1 + $0x88] sm:$0xff]
    %v84 = vld [vmem:[%s1 + $0x90] sm:$0xff]
    %v85 = vld [vmem:[%s1 + $0x98] sm:$0xff]
    %v86 = vld [vmem:[%s1 + $0xa0] sm:$0xff]
    %v87 = vld [vmem:[%s1 + $0xa8] sm:$0xff]
    %v88 = vld [vmem:[%s1 + $0xb0] sm:$0xff]
    %v89 = vld [vmem:[%s1 + $0xb8] sm:$0xff]
    %v90 = vld [vmem:[%s1 + $0xc0] sm:$0xff]
    %v91 = vld [vmem:[%s1 + $0xc8] sm:$0xff]
    %v92 = vld [vmem:[%s1 + $0xd0] sm:$0xff]
    %v93 = vld [vmem:[%s1 + $0xd8] sm:$0xff]
    %v94 = vld [vmem:[%s1 + $0xe0] sm:$0xff]
    %v95 = vld [vmem:[%s1 + $0xe8] sm:$0xff]
    %v96 = vld [vmem:[%s1 + $0xf0] sm:$0xff]
    %v97 = vld [vmem:[%s1 + $0xf8] sm:$0xff]
    %v98 = vld [vmem:[%s1 + $0x100] sm:$0xff]
    %v99 = vld [vmem:[%s1 + $0x108] sm:$0xff]
    %v100 = vld [vmem:[%s1 + $0x110] sm:$0xff]
    %v101 = vld [vmem:[%s1 + $0x118] sm:$0xff]
    %v102 = vld [vmem:[%s1 + $0x120] sm:$0xff]
    %v103 = vld [vmem:[%s1 + $0x128] sm:$0xff]
    %v104 = vld [vmem:[%s1 + $0x130] sm:$0xff]
    %v105 = vld [vmem:[%s1 + $0x138] sm:$0xff]
    %v106 = vld [vmem:[%s1 + $0x140] sm:$0xff]
    %v107 = vld [vmem:[%s1 + $0x148] sm:$0xff]
    %v108 = vld [vmem:[%s1 + $0x150] sm:$0xff]
    %v109 = vld [vmem:[%s1 + $0x158] sm:$0xff]
    %v110 = vld [vmem:[%s1 + $0x160] sm:$0xff]
    %v111 = vld [vmem:[%s1 + $0x168] sm:$0xff]
    %v112 = vld [vmem:[%s1 + $0x170] sm:$0xff]
    %v113 = vld [vmem:[%s1 + $0x178] sm:$0xff]
    %v114 = vld [vmem:[%s1 + $0x180] sm:$0xff]
    %v115 = vld [vmem:[%s1 + $0x188] sm:$0xff]
    %v116 = vld [vmem:[%s1 + $0x190] sm:$0xff]
    %v117 = vld [vmem:[%s1 + $0x198] sm:$0xff]
    %v118 = vld [vmem:[%s1 + $0x1a0] sm:$0xff]
    %v119 = vld [vmem:[%s1 + $0x1a8] sm:$0xff]
    %v120 = vld [vmem:[%s1 + $0x1b0] sm:$0xff]
    %v121 = vld [vmem:[%s1 + $0x1b8] sm:$0xff]
    %v122 = vld [vmem:[%s1 + $0x1c0] sm:$0xff]
    %v123 = vld [vmem:[%s1 + $0x1c8] sm:$0xff]
    %v124 = vld [vmem:[%s1 + $0x1d0] sm:$0xff]
    %v125 = vld [vmem:[%s1 + $0x1d8] sm:$0xff]
    %v126 = vld [vmem:[%s1 + $0x1e0] sm:$0xff]
    %v127 = vld [vmem:[%s1 + $0x1e8] sm:$0xff]
    %v128 = vld [vmem:[%s1 + $0x1f0] sm:$0xff]
    %v129 = vld [vmem:[%s1 + $0x1f8] sm:$0xff]
    %s130 = scalar_lea.vmem %s1, 512
    %v131 = vld [vmem:[%s130] sm:$0xff]
    %v132 = vld [vmem:[%s130 + $0x8] sm:$0xff]
    %v133 = vld [vmem:[%s130 + $0x10] sm:$0xff]
    %v134 = vld [vmem:[%s130 + $0x18] sm:$0xff]
    %v135 = vld [vmem:[%s130 + $0x20] sm:$0xff]
    %v136 = vld [vmem:[%s130 + $0x28] sm:$0xff]
    %v137 = vld [vmem:[%s130 + $0x30] sm:$0xff]
    %v138 = vld [vmem:[%s130 + $0x38] sm:$0xff]
    %v139 = vld [vmem:[%s130 + $0x40] sm:$0xff]
    %v140 = vld [vmem:[%s130 + $0x48] sm:$0xff]
    %v141 = vld [vmem:[%s130 + $0x50] sm:$0xff]
    %v142 = vld [vmem:[%s130 + $0x58] sm:$0xff]
    %v143 = vld [vmem:[%s130 + $0x60] sm:$0xff]
    %v144 = vld [vmem:[%s130 + $0x68] sm:$0xff]
    %v145 = vld [vmem:[%s130 + $0x70] sm:$0xff]
    %v146 = vld [vmem:[%s130 + $0x78] sm:$0xff]
    %v147 = vld [vmem:[%s130 + $0x80] sm:$0xff]
    %v148 = vld [vmem:[%s130 + $0x88] sm:$0xff]
    %v149 = vld [vmem:[%s130 + $0x90] sm:$0xff]
    %v150 = vld [vmem:[%s130 + $0x98] sm:$0xff]
    %v151 = vld [vmem:[%s130 + $0xa0] sm:$0xff]
    %v152 = vld [vmem:[%s130 + $0xa8] sm:$0xff]
    %v153 = vld [vmem:[%s130 + $0xb0] sm:$0xff]
    %v154 = vld [vmem:[%s130 + $0xb8] sm:$0xff]
    %v155 = vld [vmem:[%s130 + $0xc0] sm:$0xff]
    %v156 = vld [vmem:[%s130 + $0xc8] sm:$0xff]
    %v157 = vld [vmem:[%s130 + $0xd0] sm:$0xff]
    %v158 = vld [vmem:[%s130 + $0xd8] sm:$0xff]
    %v159 = vld [vmem:[%s130 + $0xe0] sm:$0xff]
    %v160 = vld [vmem:[%s130 + $0xe8] sm:$0xff]
    %v161 = vld [vmem:[%s130 + $0xf0] sm:$0xff]
    %v162 = vld [vmem:[%s130 + $0xf8] sm:$0xff]
    %v163 = vld [vmem:[%s130 + $0x100] sm:$0xff]
    %v164 = vld [vmem:[%s130 + $0x108] sm:$0xff]
    %v165 = vld [vmem:[%s130 + $0x110] sm:$0xff]
    %v166 = vld [vmem:[%s130 + $0x118] sm:$0xff]
    %v167 = vld [vmem:[%s130 + $0x120] sm:$0xff]
    %v168 = vld [vmem:[%s130 + $0x128] sm:$0xff]
    %v169 = vld [vmem:[%s130 + $0x130] sm:$0xff]
    %v170 = vld [vmem:[%s130 + $0x138] sm:$0xff]
    %v171 = vld [vmem:[%s130 + $0x140] sm:$0xff]
    %v172 = vld [vmem:[%s130 + $0x148] sm:$0xff]
    %v173 = vld [vmem:[%s130 + $0x150] sm:$0xff]
    %v174 = vld [vmem:[%s130 + $0x158] sm:$0xff]
    %v175 = vld [vmem:[%s130 + $0x160] sm:$0xff]
    %v176 = vld [vmem:[%s130 + $0x168] sm:$0xff]
    %v177 = vld [vmem:[%s130 + $0x170] sm:$0xff]
    %v178 = vld [vmem:[%s130 + $0x178] sm:$0xff]
    %v179 = vld [vmem:[%s130 + $0x180] sm:$0xff]
    %v180 = vld [vmem:[%s130 + $0x188] sm:$0xff]
    %v181 = vld [vmem:[%s130 + $0x190] sm:$0xff]
    %v182 = vld [vmem:[%s130 + $0x198] sm:$0xff]
    %v183 = vld [vmem:[%s130 + $0x1a0] sm:$0xff]
    %v184 = vld [vmem:[%s130 + $0x1a8] sm:$0xff]
    %v185 = vld [vmem:[%s130 + $0x1b0] sm:$0xff]
    %v186 = vld [vmem:[%s130 + $0x1b8] sm:$0xff]
    %v187 = vld [vmem:[%s130 + $0x1c0] sm:$0xff]
    %v188 = vld [vmem:[%s130 + $0x1c8] sm:$0xff]
    %v189 = vld [vmem:[%s130 + $0x1d0] sm:$0xff]
    %v190 = vld [vmem:[%s130 + $0x1d8] sm:$0xff]
    %v191 = vld [vmem:[%s130 + $0x1e0] sm:$0xff]
    %v192 = vld [vmem:[%s130 + $0x1e8] sm:$0xff]
    %v193 = vld [vmem:[%s130 + $0x1f0] sm:$0xff]
    %v194 = vld [vmem:[%s130 + $0x1f8] sm:$0xff]
    %s195 = scalar_lea.vmem %s1, 1024
    %v196 = vld [vmem:[%s195] sm:$0xff]
    %v197 = vld [vmem:[%s195 + $0x8] sm:$0xff]
    %v198 = vld [vmem:[%s195 + $0x10] sm:$0xff]
    %v199 = vld [vmem:[%s195 + $0x18] sm:$0xff]
    %v200 = vld [vmem:[%s195 + $0x20] sm:$0xff]
    %v201 = vld [vmem:[%s195 + $0x28] sm:$0xff]
    %v202 = vld [vmem:[%s195 + $0x30] sm:$0xff]
    %v203 = vld [vmem:[%s195 + $0x38] sm:$0xff]
    %v204 = vld [vmem:[%s195 + $0x40] sm:$0xff]
    %v205 = vld [vmem:[%s195 + $0x48] sm:$0xff]
    %v206 = vld [vmem:[%s195 + $0x50] sm:$0xff]
    %v207 = vld [vmem:[%s195 + $0x58] sm:$0xff]
    %v208 = vld [vmem:[%s195 + $0x60] sm:$0xff]
    %v209 = vld [vmem:[%s195 + $0x68] sm:$0xff]
    %v210 = vld [vmem:[%s195 + $0x70] sm:$0xff]
    %v211 = vld [vmem:[%s195 + $0x78] sm:$0xff]
    %v212 = vld [vmem:[%s195 + $0x80] sm:$0xff]
    %v213 = vld [vmem:[%s195 + $0x88] sm:$0xff]
    %v214 = vld [vmem:[%s195 + $0x90] sm:$0xff]
    %v215 = vld [vmem:[%s195 + $0x98] sm:$0xff]
    %v216 = vld [vmem:[%s195 + $0xa0] sm:$0xff]
    %v217 = vld [vmem:[%s195 + $0xa8] sm:$0xff]
    %v218 = vld [vmem:[%s195 + $0xb0] sm:$0xff]
    %v219 = vld [vmem:[%s195 + $0xb8] sm:$0xff]
    %v220 = vld [vmem:[%s195 + $0xc0] sm:$0xff]
    %v221 = vld [vmem:[%s195 + $0xc8] sm:$0xff]
    %v222 = vld [vmem:[%s195 + $0xd0] sm:$0xff]
    %v223 = vld [vmem:[%s195 + $0xd8] sm:$0xff]
    %v224 = vld [vmem:[%s195 + $0xe0] sm:$0xff]
    %v225 = vld [vmem:[%s195 + $0xe8] sm:$0xff]
    %v226 = vld [vmem:[%s195 + $0xf0] sm:$0xff]
    %v227 = vld [vmem:[%s195 + $0xf8] sm:$0xff]
    %v228 = vld [vmem:[%s195 + $0x100] sm:$0xff]
    %v229 = vld [vmem:[%s195 + $0x108] sm:$0xff]
    %v230 = vld [vmem:[%s195 + $0x110] sm:$0xff]
    %v231 = vld [vmem:[%s195 + $0x118] sm:$0xff]
    %v232 = vld [vmem:[%s195 + $0x120] sm:$0xff]
    %v233 = vld [vmem:[%s195 + $0x128] sm:$0xff]
    %v234 = vld [vmem:[%s195 + $0x130] sm:$0xff]
    %v235 = vld [vmem:[%s195 + $0x138] sm:$0xff]
    %v236 = vld [vmem:[%s195 + $0x140] sm:$0xff]
    %v237 = vld [vmem:[%s195 + $0x148] sm:$0xff]
    %v238 = vld [vmem:[%s195 + $0x150] sm:$0xff]
    %v239 = vld [vmem:[%s195 + $0x158] sm:$0xff]
    %v240 = vld [vmem:[%s195 + $0x160] sm:$0xff]
    %v241 = vld [vmem:[%s195 + $0x168] sm:$0xff]
    %v242 = vld [vmem:[%s195 + $0x170] sm:$0xff]
    %v243 = vld [vmem:[%s195 + $0x178] sm:$0xff]
    %v244 = vld [vmem:[%s195 + $0x180] sm:$0xff]
    %v245 = vld [vmem:[%s195 + $0x188] sm:$0xff]
    %v246 = vld [vmem:[%s195 + $0x190] sm:$0xff]
    %v247 = vld [vmem:[%s195 + $0x198] sm:$0xff]
    %v248 = vld [vmem:[%s195 + $0x1a0] sm:$0xff]
    %v249 = vld [vmem:[%s195 + $0x1a8] sm:$0xff]
    %v250 = vld [vmem:[%s195 + $0x1b0] sm:$0xff]
    %v251 = vld [vmem:[%s195 + $0x1b8] sm:$0xff]
    %v252 = vld [vmem:[%s195 + $0x1c0] sm:$0xff]
    %v253 = vld [vmem:[%s195 + $0x1c8] sm:$0xff]
    %v254 = vld [vmem:[%s195 + $0x1d0] sm:$0xff]
    %v255 = vld [vmem:[%s195 + $0x1d8] sm:$0xff]
    %v256 = vld [vmem:[%s195 + $0x1e0] sm:$0xff]
    %v257 = vld [vmem:[%s195 + $0x1e8] sm:$0xff]
    %v258 = vld [vmem:[%s195 + $0x1f0] sm:$0xff]
    %v259 = vld [vmem:[%s195 + $0x1f8] sm:$0xff]
    %v260 = vld [vmem:[%s2] sm:$0xff]
    %v261 = vld [vmem:[%s2 + $0x8] sm:$0xff]
    %v262 = vld [vmem:[%s2 + $0x10] sm:$0xff]
    %v263 = vld [vmem:[%s2 + $0x18] sm:$0xff]
    %v264 = vld [vmem:[%s2 + $0x20] sm:$0xff]
    %v265 = vld [vmem:[%s2 + $0x28] sm:$0xff]
    %v266 = vld [vmem:[%s2 + $0x30] sm:$0xff]
    %v267 = vld [vmem:[%s2 + $0x38] sm:$0xff]
    %v268 = vld [vmem:[%s2 + $0x40] sm:$0xff]
    %v269 = vld [vmem:[%s2 + $0x48] sm:$0xff]
    %v270 = vld [vmem:[%s2 + $0x50] sm:$0xff]
    %v271 = vld [vmem:[%s2 + $0x58] sm:$0xff]
    %v272 = vld [vmem:[%s2 + $0x60] sm:$0xff]
    %v273 = vld [vmem:[%s2 + $0x68] sm:$0xff]
    %v274 = vld [vmem:[%s2 + $0x70] sm:$0xff]
    %v275 = vld [vmem:[%s2 + $0x78] sm:$0xff]
    %v276 = vld [vmem:[%s2 + $0x80] sm:$0xff]
    %v277 = vld [vmem:[%s2 + $0x88] sm:$0xff]
    %v278 = vld [vmem:[%s2 + $0x90] sm:$0xff]
    %v279 = vld [vmem:[%s2 + $0x98] sm:$0xff]
    %v280 = vld [vmem:[%s2 + $0xa0] sm:$0xff]
    %v281 = vld [vmem:[%s2 + $0xa8] sm:$0xff]
    %v282 = vld [vmem:[%s2 + $0xb0] sm:$0xff]
    %v283 = vld [vmem:[%s2 + $0xb8] sm:$0xff]
    %v284 = vld [vmem:[%s2 + $0xc0] sm:$0xff]
    %v285 = vld [vmem:[%s2 + $0xc8] sm:$0xff]
    %v286 = vld [vmem:[%s2 + $0xd0] sm:$0xff]
    %v287 = vld [vmem:[%s2 + $0xd8] sm:$0xff]
    %v288 = vld [vmem:[%s2 + $0xe0] sm:$0xff]
    %v289 = vld [vmem:[%s2 + $0xe8] sm:$0xff]
    %v290 = vld [vmem:[%s2 + $0xf0] sm:$0xff]
    %v291 = vld [vmem:[%s2 + $0xf8] sm:$0xff]
    %v292 = vld [vmem:[%s2 + $0x100] sm:$0xff]
    %v293 = vld [vmem:[%s2 + $0x108] sm:$0xff]
    %v294 = vld [vmem:[%s2 + $0x110] sm:$0xff]
    %v295 = vld [vmem:[%s2 + $0x118] sm:$0xff]
    %v296 = vld [vmem:[%s2 + $0x120] sm:$0xff]
    %v297 = vld [vmem:[%s2 + $0x128] sm:$0xff]
    %v298 = vld [vmem:[%s2 + $0x130] sm:$0xff]
    %v299 = vld [vmem:[%s2 + $0x138] sm:$0xff]
    %v300 = vld [vmem:[%s2 + $0x140] sm:$0xff]
    %v301 = vld [vmem:[%s2 + $0x148] sm:$0xff]
    %v302 = vld [vmem:[%s2 + $0x150] sm:$0xff]
    %v303 = vld [vmem:[%s2 + $0x158] sm:$0xff]
    %v304 = vld [vmem:[%s2 + $0x160] sm:$0xff]
    %v305 = vld [vmem:[%s2 + $0x168] sm:$0xff]
    %v306 = vld [vmem:[%s2 + $0x170] sm:$0xff]
    %v307 = vld [vmem:[%s2 + $0x178] sm:$0xff]
    %v308 = vld [vmem:[%s2 + $0x180] sm:$0xff]
    %v309 = vld [vmem:[%s2 + $0x188] sm:$0xff]
    %v310 = vld [vmem:[%s2 + $0x190] sm:$0xff]
    %v311 = vld [vmem:[%s2 + $0x198] sm:$0xff]
    %v312 = vld [vmem:[%s2 + $0x1a0] sm:$0xff]
    %v313 = vld [vmem:[%s2 + $0x1a8] sm:$0xff]
    %v314 = vld [vmem:[%s2 + $0x1b0] sm:$0xff]
    %v315 = vld [vmem:[%s2 + $0x1b8] sm:$0xff]
    %v316 = vld [vmem:[%s2 + $0x1c0] sm:$0xff]
    %v317 = vld [vmem:[%s2 + $0x1c8] sm:$0xff]
    %v318 = vld [vmem:[%s2 + $0x1d0] sm:$0xff]
    %v319 = vld [vmem:[%s2 + $0x1d8] sm:$0xff]
    %v320 = vld [vmem:[%s2 + $0x1e0] sm:$0xff]
    %v321 = vld [vmem:[%s2 + $0x1e8] sm:$0xff]
    %v322 = vld [vmem:[%s2 + $0x1f0] sm:$0xff]
    %v323 = vld [vmem:[%s2 + $0x1f8] sm:$0xff]
    %v324 = vld [vmem:[%s0] sm:$0xff]
    %v325 = vld [vmem:[%s6] sm:$0xff]
    %v326 = vld [vmem:[%s6 + $0x8] sm:$0xff]
    %v327 = vld [vmem:[%s6 + $0x10] sm:$0xff]
    %v328 = vld [vmem:[%s6 + $0x18] sm:$0xff]
    %v329 = vld [vmem:[%s9] sm:$0xff]
    %v330 = vld [vmem:[%s9 + $0x8] sm:$0xff]
    %v331 = vld [vmem:[%s9 + $0x10] sm:$0xff]
    %v332 = vld [vmem:[%s9 + $0x18] sm:$0xff]
    %334 = vset.pattern.permute.xlu0 0
    %335 = vperm.xlu0 %334, %v329
    %v336 = vpop.permute.xlu0 %335
    %339 = vset.pattern.permute.xlu0 0
    %340 = vperm.xlu0 %339, %v330
    %v341 = vpop.permute.xlu0 %340
    %344 = vset.pattern.permute.xlu0 0
    %345 = vperm.xlu0 %344, %v331
    %v346 = vpop.permute.xlu0 %345
    %349 = vset.pattern.permute.xlu0 0
    %350 = vperm.xlu0 %349, %v332
    %v351 = vpop.permute.xlu0 %350
    %v354 = vcombine.high %v324, %v324
    %vm355 = vcmask 31744
    %v357 = vsel %vm355, %v325, 0
    %v360 = vsel %vm355, %v326, 0
    %v363 = vsel %vm355, %v327, 0
    %v366 = vsel %vm355, %v328, 0
    %vm368 = vcmask 1043456
    %v369 = vsel %vm368, %v324, 0
    %v371 = vsel %vm368, %v354, 0
    %373 = vmatprep.subr.mxu0 %v371
    %374 = vmatpush1.msra.mxu0 %v369
    %375 = vmatprep.subr.mxu0 0.0
    %376 = vmatpush1.msra.mxu0 0.0
    %377 = vmatprep.subr.mxu0 0.0
    %378 = vmatpush1.msra.mxu0 0.0
    %379 = vmatprep.subr.mxu0 0.0
    %380 = vmatpush1.msra.mxu0 0.0
    %381 = vmatprep.subr.mxu0 0.0
    %382 = vmatpush1.msra.mxu0 0.0
    %383 = vmatprep.subr.mxu0 0.0
    %384 = vmatpush1.msra.mxu0 0.0
    %385 = vmatprep.subr.mxu0 0.0
    %386 = vmatpush1.msra.mxu0 0.0
    %387 = vmatprep.subr.mxu0 0.0
    %388 = vmatpush1.msra.mxu0 0.0
    %389 = vmatprep.subr.mxu0 0.0
    %390 = vmatpush1.msra.mxu0 0.0
    %391 = vmatprep.subr.mxu0 0.0
    %392 = vmatpush1.msra.mxu0 0.0
    %393 = vmatprep.subr.mxu0 0.0
    %394 = vmatpush1.msra.mxu0 0.0
    %395 = vmatprep.subr.mxu0 0.0
    %396 = vmatpush1.msra.mxu0 0.0
    %397 = vmatprep.subr.mxu0 0.0
    %398 = vmatpush1.msra.mxu0 0.0
    %399 = vmatprep.subr.mxu0 0.0
    %400 = vmatpush1.msra.mxu0 0.0
    %401 = vmatprep.subr.mxu0 0.0
    %402 = vmatpush1.msra.mxu0 0.0
    %403 = vmatprep.subr.mxu0 0.0
    %404 = vmatpush1.msra.mxu0 0.0
    %405 = vmatprep.subr.mxu0 0.0
    %406 = vmatpush1.msra.mxu0 0.0
    %407 = vmatprep.subr.mxu0 0.0
    %408 = vmatpush1.msra.mxu0 0.0
    %409 = vmatprep.subr.mxu0 0.0
    %410 = vmatpush1.msra.mxu0 0.0
    %411 = vmatprep.subr.mxu0 0.0
    %412 = vmatpush1.msra.mxu0 0.0
    %413 = vmatprep.subr.mxu0 0.0
    %414 = vmatpush1.msra.mxu0 0.0
    %415 = vmatprep.subr.mxu0 0.0
    %416 = vmatpush1.msra.mxu0 0.0
    %417 = vmatprep.subr.mxu0 0.0
    %418 = vmatpush1.msra.mxu0 0.0
    %419 = vmatprep.subr.mxu0 0.0
    %420 = vmatpush1.msra.mxu0 0.0
    %421 = vmatprep.subr.mxu0 0.0
    %422 = vmatpush1.msra.mxu0 0.0
    %423 = vmatprep.subr.mxu0 0.0
    %424 = vmatpush1.msra.mxu0 0.0
    %425 = vmatprep.subr.mxu0 0.0
    %426 = vmatpush1.msra.mxu0 0.0
    %427 = vmatprep.subr.mxu0 0.0
    %428 = vmatpush1.msra.mxu0 0.0
    %429 = vmatprep.subr.mxu0 0.0
    %430 = vmatpush1.msra.mxu0 0.0
    %431 = vmatprep.subr.mxu0 0.0
    %432 = vmatpush1.msra.mxu0 0.0
    %433 = vmatprep.subr.mxu0 0.0
    %434 = vmatpush1.msra.mxu0 0.0
    %435 = vmatprep.subr.mxu0 0.0
    %436 = vmatpush1.msra.mxu0 0.0
    %437 = vmatprep.mubr.f32.mxu0 0.0
    %438 = vmatmul.mubr.f32.gmra.mrb[0].mxu0 %v357
    %v439 = vpop.f32.mrb[0].mxu0
    %v440 = vadd.f32 %v336, %v439
    %v441 = vpop.f32.mrb[0].mxu0
    %v442 = vadd.f32 %v336, %v441
    %443 = vmatprep.mubr.f32.mxu0 0.0
    %444 = vmatmul.mubr.f32.gmra.mrb[0].mxu0 %v360
    %v445 = vpop.f32.mrb[0].mxu0
    %v446 = vadd.f32 %v341, %v445
    %v447 = vpop.f32.mrb[0].mxu0
    %v448 = vadd.f32 %v341, %v447
    %449 = vmatprep.mubr.f32.mxu0 0.0
    %450 = vmatmul.mubr.f32.gmra.mrb[0].mxu0 %v363
    %v451 = vpop.f32.mrb[0].mxu0
    %v452 = vadd.f32 %v346, %v451
    %v453 = vpop.f32.mrb[0].mxu0
    %v454 = vadd.f32 %v346, %v453
    %455 = vmatprep.mubr.f32.mxu0 0.0
    %456 = vmatmul.mubr.f32.gmra.mrb[0].mxu0 %v366
    %v457 = vpop.f32.mrb[0].mxu0
    %v458 = vadd.f32 %v351, %v457
    %v459 = vpop.f32.mrb[0].mxu0
    %v460 = vadd.f32 %v351, %v459
    %461 = vdwg.mxu0
    %v462 = vmax.f32 %v440, 0.0
    %v463 = vmax.f32 %v442, 0.0
    %v464 = vmax.f32 %v446, 0.0
    %v465 = vmax.f32 %v448, 0.0
    %v466 = vmax.f32 %v452, 0.0
    %v467 = vmax.f32 %v454, 0.0
    %v468 = vmax.f32 %v458, 0.0
    %v469 = vmax.f32 %v460, 0.0
    %470 = vmatprep.subr.mxu0 %v67
    %471 = vmatpush1.msra.mxu0 %v66
    %472 = vmatprep.subr.mxu0 %v69
    %473 = vmatpush1.msra.mxu0 %v68
    %474 = vmatprep.subr.mxu0 %v71
    %475 = vmatpush1.msra.mxu0 %v70
    %476 = vmatprep.subr.mxu0 %v73
    %477 = vmatpush1.msra.mxu0 %v72
    %478 = vmatprep.subr.mxu0 %v75
    %479 = vmatpush1.msra.mxu0 %v74
    %480 = vmatprep.subr.mxu0 %v77
    %481 = vmatpush1.msra.mxu0 %v76
    %482 = vmatprep.subr.mxu0 %v79
    %483 = vmatpush1.msra.mxu0 %v78
    %484 = vmatprep.subr.mxu0 %v81
    %485 = vmatpush1.msra.mxu0 %v80
    %486 = vmatprep.subr.mxu0 %v83
    %487 = vmatpush1.msra.mxu0 %v82
    %488 = vmatprep.subr.mxu0 %v85
    %489 = vmatpush1.msra.mxu0 %v84
    %490 = vmatprep.subr.mxu0 %v87
    %491 = vmatpush1.msra.mxu0 %v86
    %492 = vmatprep.subr.mxu0 %v89
    %493 = vmatpush1.msra.mxu0 %v88
    %494 = vmatprep.subr.mxu0 %v91
    %495 = vmatpush1.msra.mxu0 %v90
    %496 = vmatprep.subr.mxu0 %v93
    %497 = vmatpush1.msra.mxu0 %v92
    %498 = vmatprep.subr.mxu0 %v95
    %499 = vmatpush1.msra.mxu0 %v94
    %500 = vmatprep.subr.mxu0 %v97
    %501 = vmatpush1.msra.mxu0 %v96
    %502 = vmatprep.subr.mxu0 %v99
    %503 = vmatpush1.msra.mxu0 %v98
    %504 = vmatprep.subr.mxu0 %v101
    %505 = vmatpush1.msra.mxu0 %v100
    %506 = vmatprep.subr.mxu0 %v103
    %507 = vmatpush1.msra.mxu0 %v102
    %508 = vmatprep.subr.mxu0 %v105
    %509 = vmatpush1.msra.mxu0 %v104
    %510 = vmatprep.subr.mxu0 %v107
    %511 = vmatpush1.msra.mxu0 %v106
    %512 = vmatprep.subr.mxu0 %v109
    %513 = vmatpush1.msra.mxu0 %v108
    %514 = vmatprep.subr.mxu0 %v111
    %515 = vmatpush1.msra.mxu0 %v110
    %516 = vmatprep.subr.mxu0 %v113
    %517 = vmatpush1.msra.mxu0 %v112
    %518 = vmatprep.subr.mxu0 %v115
    %519 = vmatpush1.msra.mxu0 %v114
    %520 = vmatprep.subr.mxu0 %v117
    %521 = vmatpush1.msra.mxu0 %v116
    %522 = vmatprep.subr.mxu0 %v119
    %523 = vmatpush1.msra.mxu0 %v118
    %524 = vmatprep.subr.mxu0 %v121
    %525 = vmatpush1.msra.mxu0 %v120
    %526 = vmatprep.subr.mxu0 %v123
    %527 = vmatpush1.msra.mxu0 %v122
    %528 = vmatprep.subr.mxu0 %v125
    %529 = vmatpush1.msra.mxu0 %v124
    %530 = vmatprep.subr.mxu0 %v127
    %531 = vmatpush1.msra.mxu0 %v126
    %532 = vmatprep.subr.mxu0 %v129
    %533 = vmatpush1.msra.mxu0 %v128
    %534 = vmatprep.mubr.f32.mxu0 %v465
    %535 = vmatmul.mubr.f32.gmra.mrb[0].mxu0 %v464
    %v536 = vpop.f32.mrb[0].mxu0
    %v537 = vadd.f32 0.0, %v536
    %v538 = vpop.f32.mrb[0].mxu0
    %v539 = vadd.f32 0.0, %v538
    %540 = vdwg.mxu0
    %541 = vmatprep.subr.mxu0 %v132
    %542 = vmatpush1.msra.mxu0 %v131
    %543 = vmatprep.subr.mxu0 %v134
    %544 = vmatpush1.msra.mxu0 %v133
    %545 = vmatprep.subr.mxu0 %v136
    %546 = vmatpush1.msra.mxu0 %v135
    %547 = vmatprep.subr.mxu0 %v138
    %548 = vmatpush1.msra.mxu0 %v137
    %549 = vmatprep.subr.mxu0 %v140
    %550 = vmatpush1.msra.mxu0 %v139
    %551 = vmatprep.subr.mxu0 %v142
    %552 = vmatpush1.msra.mxu0 %v141
    %553 = vmatprep.subr.mxu0 %v144
    %554 = vmatpush1.msra.mxu0 %v143
    %555 = vmatprep.subr.mxu0 %v146
    %556 = vmatpush1.msra.mxu0 %v145
    %557 = vmatprep.subr.mxu0 %v148
    %558 = vmatpush1.msra.mxu0 %v147
    %559 = vmatprep.subr.mxu0 %v150
    %560 = vmatpush1.msra.mxu0 %v149
    %561 = vmatprep.subr.mxu0 %v152
    %562 = vmatpush1.msra.mxu0 %v151
    %563 = vmatprep.subr.mxu0 %v154
    %564 = vmatpush1.msra.mxu0 %v153
    %565 = vmatprep.subr.mxu0 %v156
    %566 = vmatpush1.msra.mxu0 %v155
    %567 = vmatprep.subr.mxu0 %v158
    %568 = vmatpush1.msra.mxu0 %v157
    %569 = vmatprep.subr.mxu0 %v160
    %570 = vmatpush1.msra.mxu0 %v159
    %571 = vmatprep.subr.mxu0 %v162
    %572 = vmatpush1.msra.mxu0 %v161
    %573 = vmatprep.subr.mxu0 %v164
    %574 = vmatpush1.msra.mxu0 %v163
    %575 = vmatprep.subr.mxu0 %v166
    %576 = vmatpush1.msra.mxu0 %v165
    %577 = vmatprep.subr.mxu0 %v168
    %578 = vmatpush1.msra.mxu0 %v167
    %579 = vmatprep.subr.mxu0 %v170
    %580 = vmatpush1.msra.mxu0 %v169
    %581 = vmatprep.subr.mxu0 %v172
    %582 = vmatpush1.msra.mxu0 %v171
    %583 = vmatprep.subr.mxu0 %v174
    %584 = vmatpush1.msra.mxu0 %v173
    %585 = vmatprep.subr.mxu0 %v176
    %586 = vmatpush1.msra.mxu0 %v175
    %587 = vmatprep.subr.mxu0 %v178
    %588 = vmatpush1.msra.mxu0 %v177
    %589 = vmatprep.subr.mxu0 %v180
    %590 = vmatpush1.msra.mxu0 %v179
    %591 = vmatprep.subr.mxu0 %v182
    %592 = vmatpush1.msra.mxu0 %v181
    %593 = vmatprep.subr.mxu0 %v184
    %594 = vmatpush1.msra.mxu0 %v183
    %595 = vmatprep.subr.mxu0 %v186
    %596 = vmatpush1.msra.mxu0 %v185
    %597 = vmatprep.subr.mxu0 %v188
    %598 = vmatpush1.msra.mxu0 %v187
    %599 = vmatprep.subr.mxu0 %v190
    %600 = vmatpush1.msra.mxu0 %v189
    %601 = vmatprep.subr.mxu0 %v192
    %602 = vmatpush1.msra.mxu0 %v191
    %603 = vmatprep.subr.mxu0 %v194
    %604 = vmatpush1.msra.mxu0 %v193
    %605 = vmatprep.mubr.f32.mxu0 %v467
    %606 = vmatmul.mubr.f32.gmra.mrb[0].mxu0 %v466
    %v607 = vpop.f32.mrb[0].mxu0
    %v608 = vadd.f32 0.0, %v607
    %v609 = vpop.f32.mrb[0].mxu0
    %v610 = vadd.f32 0.0, %v609
    %611 = vdwg.mxu0
    %612 = vmatprep.subr.mxu0 %v197
    %613 = vmatpush1.msra.mxu0 %v196
    %614 = vmatprep.subr.mxu0 %v199
    %615 = vmatpush1.msra.mxu0 %v198
    %616 = vmatprep.subr.mxu0 %v201
    %617 = vmatpush1.msra.mxu0 %v200
    %618 = vmatprep.subr.mxu0 %v203
    %619 = vmatpush1.msra.mxu0 %v202
    %620 = vmatprep.subr.mxu0 %v205
    %621 = vmatpush1.msra.mxu0 %v204
    %622 = vmatprep.subr.mxu0 %v207
    %623 = vmatpush1.msra.mxu0 %v206
    %624 = vmatprep.subr.mxu0 %v209
    %625 = vmatpush1.msra.mxu0 %v208
    %626 = vmatprep.subr.mxu0 %v211
    %627 = vmatpush1.msra.mxu0 %v210
    %628 = vmatprep.subr.mxu0 %v213
    %629 = vmatpush1.msra.mxu0 %v212
    %630 = vmatprep.subr.mxu0 %v215
    %631 = vmatpush1.msra.mxu0 %v214
    %632 = vmatprep.subr.mxu0 %v217
    %633 = vmatpush1.msra.mxu0 %v216
    %634 = vmatprep.subr.mxu0 %v219
    %635 = vmatpush1.msra.mxu0 %v218
    %636 = vmatprep.subr.mxu0 %v221
    %637 = vmatpush1.msra.mxu0 %v220
    %638 = vmatprep.subr.mxu0 %v223
    %639 = vmatpush1.msra.mxu0 %v222
    %640 = vmatprep.subr.mxu0 %v225
    %641 = vmatpush1.msra.mxu0 %v224
    %642 = vmatprep.subr.mxu0 %v227
    %643 = vmatpush1.msra.mxu0 %v226
    %644 = vmatprep.subr.mxu0 %v229
    %645 = vmatpush1.msra.mxu0 %v228
    %646 = vmatprep.subr.mxu0 %v231
    %647 = vmatpush1.msra.mxu0 %v230
    %648 = vmatprep.subr.mxu0 %v233
    %649 = vmatpush1.msra.mxu0 %v232
    %650 = vmatprep.subr.mxu0 %v235
    %651 = vmatpush1.msra.mxu0 %v234
    %652 = vmatprep.subr.mxu0 %v237
    %653 = vmatpush1.msra.mxu0 %v236
    %654 = vmatprep.subr.mxu0 %v239
    %655 = vmatpush1.msra.mxu0 %v238
    %656 = vmatprep.subr.mxu0 %v241
    %657 = vmatpush1.msra.mxu0 %v240
    %658 = vmatprep.subr.mxu0 %v243
    %659 = vmatpush1.msra.mxu0 %v242
    %660 = vmatprep.subr.mxu0 %v245
    %661 = vmatpush1.msra.mxu0 %v244
    %662 = vmatprep.subr.mxu0 %v247
    %663 = vmatpush1.msra.mxu0 %v246
    %664 = vmatprep.subr.mxu0 %v249
    %665 = vmatpush1.msra.mxu0 %v248
    %666 = vmatprep.subr.mxu0 %v251
    %667 = vmatpush1.msra.mxu0 %v250
    %668 = vmatprep.subr.mxu0 %v253
    %669 = vmatpush1.msra.mxu0 %v252
    %670 = vmatprep.subr.mxu0 %v255
    %671 = vmatpush1.msra.mxu0 %v254
    %672 = vmatprep.subr.mxu0 %v257
    %673 = vmatpush1.msra.mxu0 %v256
    %674 = vmatprep.subr.mxu0 %v259
    %675 = vmatpush1.msra.mxu0 %v258
    %676 = vmatprep.mubr.f32.mxu0 %v469
    %677 = vmatmul.mubr.f32.gmra.mrb[0].mxu0 %v468
    %v678 = vpop.f32.mrb[0].mxu0
    %v679 = vadd.f32 0.0, %v678
    %v680 = vpop.f32.mrb[0].mxu0
    %v681 = vadd.f32 0.0, %v680
    %682 = vdwg.mxu0
    %v683 = vld [vmem:[%s10] sm:$0xff]
    %v684 = vld [vmem:[%s10 + $0x8] sm:$0xff]
    %v685 = vld [vmem:[%s10 + $0x10] sm:$0xff]
    %v686 = vld [vmem:[%s10 + $0x18] sm:$0xff]
    %v687 = vld [vmem:[%s11] sm:$0xff]
    %v688 = vld [vmem:[%s11 + $0x8] sm:$0xff]
    %v689 = vld [vmem:[%s11 + $0x10] sm:$0xff]
    %v690 = vld [vmem:[%s11 + $0x18] sm:$0xff]
    %692 = vset.pattern.permute.xlu0 0
    %693 = vperm.xlu0 %692, %v687
    %v694 = vpop.permute.xlu0 %693
    %697 = vset.pattern.permute.xlu0 0
    %698 = vperm.xlu0 %697, %v688
    %v699 = vpop.permute.xlu0 %698
    %702 = vset.pattern.permute.xlu0 0
    %703 = vperm.xlu0 %702, %v689
    %v704 = vpop.permute.xlu0 %703
    %707 = vset.pattern.permute.xlu0 0
    %708 = vperm.xlu0 %707, %v690
    %v709 = vpop.permute.xlu0 %708
    %vm711 = vcmask 261120
    %v713 = vsel %vm711, %v683, 0
    %v716 = vsel %vm711, %v684, 0
    %v719 = vsel %vm711, %v685, 0
    %v722 = vsel %vm711, %v686, 0
    %724 = vmatprep.subr.mxu0 %v463
    %725 = vmatpush1.msra.mxu0 %v462
    %726 = vmatprep.subr.mxu0 %v539
    %727 = vmatpush1.msra.mxu0 %v537
    %728 = vmatprep.subr.mxu0 %v610
    %729 = vmatpush1.msra.mxu0 %v608
    %730 = vmatprep.subr.mxu0 %v681
    %731 = vmatpush1.msra.mxu0 %v679
    %732 = vmatprep.subr.mxu0 0.0
    %733 = vmatpush1.msra.mxu0 0.0
    %734 = vmatprep.subr.mxu0 0.0
    %735 = vmatpush1.msra.mxu0 0.0
    %736 = vmatprep.subr.mxu0 0.0
    %737 = vmatpush1.msra.mxu0 0.0
    %738 = vmatprep.subr.mxu0 0.0
    %739 = vmatpush1.msra.mxu0 0.0
    %740 = vmatprep.subr.mxu0 0.0
    %741 = vmatpush1.msra.mxu0 0.0
    %742 = vmatprep.subr.mxu0 0.0
    %743 = vmatpush1.msra.mxu0 0.0
    %744 = vmatprep.subr.mxu0 0.0
    %745 = vmatpush1.msra.mxu0 0.0
    %746 = vmatprep.subr.mxu0 0.0
    %747 = vmatpush1.msra.mxu0 0.0
    %748 = vmatprep.subr.mxu0 0.0
    %749 = vmatpush1.msra.mxu0 0.0
    %750 = vmatprep.subr.mxu0 0.0
    %751 = vmatpush1.msra.mxu0 0.0
    %752 = vmatprep.subr.mxu0 0.0
    %753 = vmatpush1.msra.mxu0 0.0
    %754 = vmatprep.subr.mxu0 0.0
    %755 = vmatpush1.msra.mxu0 0.0
    %756 = vmatprep.subr.mxu0 0.0
    %757 = vmatpush1.msra.mxu0 0.0
    %758 = vmatprep.subr.mxu0 0.0
    %759 = vmatpush1.msra.mxu0 0.0
    %760 = vmatprep.subr.mxu0 0.0
    %761 = vmatpush1.msra.mxu0 0.0
    %762 = vmatprep.subr.mxu0 0.0
    %763 = vmatpush1.msra.mxu0 0.0
    %764 = vmatprep.subr.mxu0 0.0
    %765 = vmatpush1.msra.mxu0 0.0
    %766 = vmatprep.subr.mxu0 0.0
    %767 = vmatpush1.msra.mxu0 0.0
    %768 = vmatprep.subr.mxu0 0.0
    %769 = vmatpush1.msra.mxu0 0.0
    %770 = vmatprep.subr.mxu0 0.0
    %771 = vmatpush1.msra.mxu0 0.0
    %772 = vmatprep.subr.mxu0 0.0
    %773 = vmatpush1.msra.mxu0 0.0
    %774 = vmatprep.subr.mxu0 0.0
    %775 = vmatpush1.msra.mxu0 0.0
    %776 = vmatprep.subr.mxu0 0.0
    %777 = vmatpush1.msra.mxu0 0.0
    %778 = vmatprep.subr.mxu0 0.0
    %779 = vmatpush1.msra.mxu0 0.0
    %780 = vmatprep.subr.mxu0 0.0
    %781 = vmatpush1.msra.mxu0 0.0
    %782 = vmatprep.subr.mxu0 0.0
    %783 = vmatpush1.msra.mxu0 0.0
    %784 = vmatprep.subr.mxu0 0.0
    %785 = vmatpush1.msra.mxu0 0.0
    %786 = vmatprep.subr.mxu0 0.0
    %787 = vmatpush1.msra.mxu0 0.0
    %788 = vmatprep.mubr.f32.mxu0 0.0
    %789 = vmatmul.mubr.f32.gmra.mrb[0].mxu0 %v713
    %v790 = vpop.f32.mrb[0].mxu0
    %v791 = vadd.f32 %v694, %v790
    %v792 = vpop.f32.mrb[0].mxu0
    %v793 = vadd.f32 %v694, %v792
    %794 = vmatprep.mubr.f32.mxu0 0.0
    %795 = vmatmul.mubr.f32.gmra.mrb[0].mxu0 %v716
    %v796 = vpop.f32.mrb[0].mxu0
    %v797 = vadd.f32 %v699, %v796
    %v798 = vpop.f32.mrb[0].mxu0
    %v799 = vadd.f32 %v699, %v798
    %800 = vmatprep.mubr.f32.mxu0 0.0
    %801 = vmatmul.mubr.f32.gmra.mrb[0].mxu0 %v719
    %v802 = vpop.f32.mrb[0].mxu0
    %v803 = vadd.f32 %v704, %v802
    %v804 = vpop.f32.mrb[0].mxu0
    %v805 = vadd.f32 %v704, %v804
    %806 = vmatprep.mubr.f32.mxu0 0.0
    %807 = vmatmul.mubr.f32.gmra.mrb[0].mxu0 %v722
    %v808 = vpop.f32.mrb[0].mxu0
    %v809 = vadd.f32 %v709, %v808
    %v810 = vpop.f32.mrb[0].mxu0
    %v811 = vadd.f32 %v709, %v810
    %812 = vdwg.mxu0
    %v813 = vmax.f32 %v791, 0.0
    %v814 = vmax.f32 %v793, 0.0
    %v815 = vmax.f32 %v797, 0.0
    %v816 = vmax.f32 %v799, 0.0
    %v817 = vmax.f32 %v803, 0.0
    %v818 = vmax.f32 %v805, 0.0
    %v819 = vmax.f32 %v809, 0.0
    %v820 = vmax.f32 %v811, 0.0
    %821 = vmatprep.subr.mxu0 %v67
    %822 = vmatpush1.msra.mxu0 %v66
    %823 = vmatprep.subr.mxu0 %v69
    %824 = vmatpush1.msra.mxu0 %v68
    %825 = vmatprep.subr.mxu0 %v71
    %826 = vmatpush1.msra.mxu0 %v70
    %827 = vmatprep.subr.mxu0 %v73
    %828 = vmatpush1.msra.mxu0 %v72
    %829 = vmatprep.subr.mxu0 %v75
    %830 = vmatpush1.msra.mxu0 %v74
    %831 = vmatprep.subr.mxu0 %v77
    %832 = vmatpush1.msra.mxu0 %v76
    %833 = vmatprep.subr.mxu0 %v79
    %834 = vmatpush1.msra.mxu0 %v78
    %835 = vmatprep.subr.mxu0 %v81
    %836 = vmatpush1.msra.mxu0 %v80
    %837 = vmatprep.subr.mxu0 %v83
    %838 = vmatpush1.msra.mxu0 %v82
    %839 = vmatprep.subr.mxu0 %v85
    %840 = vmatpush1.msra.mxu0 %v84
    %841 = vmatprep.subr.mxu0 %v87
    %842 = vmatpush1.msra.mxu0 %v86
    %843 = vmatprep.subr.mxu0 %v89
    %844 = vmatpush1.msra.mxu0 %v88
    %845 = vmatprep.subr.mxu0 %v91
    %846 = vmatpush1.msra.mxu0 %v90
    %847 = vmatprep.subr.mxu0 %v93
    %848 = vmatpush1.msra.mxu0 %v92
    %849 = vmatprep.subr.mxu0 %v95
    %850 = vmatpush1.msra.mxu0 %v94
    %851 = vmatprep.subr.mxu0 %v97
    %852 = vmatpush1.msra.mxu0 %v96
    %853 = vmatprep.subr.mxu0 %v99
    %854 = vmatpush1.msra.mxu0 %v98
    %855 = vmatprep.subr.mxu0 %v101
    %856 = vmatpush1.msra.mxu0 %v100
    %857 = vmatprep.subr.mxu0 %v103
    %858 = vmatpush1.msra.mxu0 %v102
    %859 = vmatprep.subr.mxu0 %v105
    %860 = vmatpush1.msra.mxu0 %v104
    %861 = vmatprep.subr.mxu0 %v107
    %862 = vmatpush1.msra.mxu0 %v106
    %863 = vmatprep.subr.mxu0 %v109
    %864 = vmatpush1.msra.mxu0 %v108
    %865 = vmatprep.subr.mxu0 %v111
    %866 = vmatpush1.msra.mxu0 %v110
    %867 = vmatprep.subr.mxu0 %v113
    %868 = vmatpush1.msra.mxu0 %v112
    %869 = vmatprep.subr.mxu0 %v115
    %870 = vmatpush1.msra.mxu0 %v114
    %871 = vmatprep.subr.mxu0 %v117
    %872 = vmatpush1.msra.mxu0 %v116
    %873 = vmatprep.subr.mxu0 %v119
    %874 = vmatpush1.msra.mxu0 %v118
    %875 = vmatprep.subr.mxu0 %v121
    %876 = vmatpush1.msra.mxu0 %v120
    %877 = vmatprep.subr.mxu0 %v123
    %878 = vmatpush1.msra.mxu0 %v122
    %879 = vmatprep.subr.mxu0 %v125
    %880 = vmatpush1.msra.mxu0 %v124
    %881 = vmatprep.subr.mxu0 %v127
    %882 = vmatpush1.msra.mxu0 %v126
    %883 = vmatprep.subr.mxu0 %v129
    %884 = vmatpush1.msra.mxu0 %v128
    %885 = vmatprep.mubr.f32.mxu0 %v816
    %886 = vmatmul.mubr.f32.gmra.mrb[0].mxu0 %v815
    %v887 = vpop.f32.mrb[0].mxu0
    %v888 = vadd.f32 0.0, %v887
    %v889 = vpop.f32.mrb[0].mxu0
    %v890 = vadd.f32 0.0, %v889
    %891 = vdwg.mxu0
    %892 = vmatprep.subr.mxu0 %v132
    %893 = vmatpush1.msra.mxu0 %v131
    %894 = vmatprep.subr.mxu0 %v134
    %895 = vmatpush1.msra.mxu0 %v133
    %896 = vmatprep.subr.mxu0 %v136
    %897 = vmatpush1.msra.mxu0 %v135
    %898 = vmatprep.subr.mxu0 %v138
    %899 = vmatpush1.msra.mxu0 %v137
    %900 = vmatprep.subr.mxu0 %v140
    %901 = vmatpush1.msra.mxu0 %v139
    %902 = vmatprep.subr.mxu0 %v142
    %903 = vmatpush1.msra.mxu0 %v141
    %904 = vmatprep.subr.mxu0 %v144
    %905 = vmatpush1.msra.mxu0 %v143
    %906 = vmatprep.subr.mxu0 %v146
    %907 = vmatpush1.msra.mxu0 %v145
    %908 = vmatprep.subr.mxu0 %v148
    %909 = vmatpush1.msra.mxu0 %v147
    %910 = vmatprep.subr.mxu0 %v150
    %911 = vmatpush1.msra.mxu0 %v149
    %912 = vmatprep.subr.mxu0 %v152
    %913 = vmatpush1.msra.mxu0 %v151
    %914 = vmatprep.subr.mxu0 %v154
    %915 = vmatpush1.msra.mxu0 %v153
    %916 = vmatprep.subr.mxu0 %v156
    %917 = vmatpush1.msra.mxu0 %v155
    %918 = vmatprep.subr.mxu0 %v158
    %919 = vmatpush1.msra.mxu0 %v157
    %920 = vmatprep.subr.mxu0 %v160
    %921 = vmatpush1.msra.mxu0 %v159
    %922 = vmatprep.subr.mxu0 %v162
    %923 = vmatpush1.msra.mxu0 %v161
    %924 = vmatprep.subr.mxu0 %v164
    %925 = vmatpush1.msra.mxu0 %v163
    %926 = vmatprep.subr.mxu0 %v166
    %927 = vmatpush1.msra.mxu0 %v165
    %928 = vmatprep.subr.mxu0 %v168
    %929 = vmatpush1.msra.mxu0 %v167
    %930 = vmatprep.subr.mxu0 %v170
    %931 = vmatpush1.msra.mxu0 %v169
    %932 = vmatprep.subr.mxu0 %v172
    %933 = vmatpush1.msra.mxu0 %v171
    %934 = vmatprep.subr.mxu0 %v174
    %935 = vmatpush1.msra.mxu0 %v173
    %936 = vmatprep.subr.mxu0 %v176
    %937 = vmatpush1.msra.mxu0 %v175
    %938 = vmatprep.subr.mxu0 %v178
    %939 = vmatpush1.msra.mxu0 %v177
    %940 = vmatprep.subr.mxu0 %v180
    %941 = vmatpush1.msra.mxu0 %v179
    %942 = vmatprep.subr.mxu0 %v182
    %943 = vmatpush1.msra.mxu0 %v181
    %944 = vmatprep.subr.mxu0 %v184
    %945 = vmatpush1.msra.mxu0 %v183
    %946 = vmatprep.subr.mxu0 %v186
    %947 = vmatpush1.msra.mxu0 %v185
    %948 = vmatprep.subr.mxu0 %v188
    %949 = vmatpush1.msra.mxu0 %v187
    %950 = vmatprep.subr.mxu0 %v190
    %951 = vmatpush1.msra.mxu0 %v189
    %952 = vmatprep.subr.mxu0 %v192
    %953 = vmatpush1.msra.mxu0 %v191
    %954 = vmatprep.subr.mxu0 %v194
    %955 = vmatpush1.msra.mxu0 %v193
    %956 = vmatprep.mubr.f32.mxu0 %v818
    %957 = vmatmul.mubr.f32.gmra.mrb[0].mxu0 %v817
    %v958 = vpop.f32.mrb[0].mxu0
    %v959 = vadd.f32 0.0, %v958
    %v960 = vpop.f32.mrb[0].mxu0
    %v961 = vadd.f32 0.0, %v960
    %962 = vdwg.mxu0
    %963 = vmatprep.subr.mxu0 %v197
    %964 = vmatpush1.msra.mxu0 %v196
    %965 = vmatprep.subr.mxu0 %v199
    %966 = vmatpush1.msra.mxu0 %v198
    %967 = vmatprep.subr.mxu0 %v201
    %968 = vmatpush1.msra.mxu0 %v200
    %969 = vmatprep.subr.mxu0 %v203
    %970 = vmatpush1.msra.mxu0 %v202
    %971 = vmatprep.subr.mxu0 %v205
    %972 = vmatpush1.msra.mxu0 %v204
    %973 = vmatprep.subr.mxu0 %v207
    %974 = vmatpush1.msra.mxu0 %v206
    %975 = vmatprep.subr.mxu0 %v209
    %976 = vmatpush1.msra.mxu0 %v208
    %977 = vmatprep.subr.mxu0 %v211
    %978 = vmatpush1.msra.mxu0 %v210
    %979 = vmatprep.subr.mxu0 %v213
    %980 = vmatpush1.msra.mxu0 %v212
    %981 = vmatprep.subr.mxu0 %v215
    %982 = vmatpush1.msra.mxu0 %v214
    %983 = vmatprep.subr.mxu0 %v217
    %984 = vmatpush1.msra.mxu0 %v216
    %985 = vmatprep.subr.mxu0 %v219
    %986 = vmatpush1.msra.mxu0 %v218
    %987 = vmatprep.subr.mxu0 %v221
    %988 = vmatpush1.msra.mxu0 %v220
    %989 = vmatprep.subr.mxu0 %v223
    %990 = vmatpush1.msra.mxu0 %v222
    %991 = vmatprep.subr.mxu0 %v225
    %992 = vmatpush1.msra.mxu0 %v224
    %993 = vmatprep.subr.mxu0 %v227
    %994 = vmatpush1.msra.mxu0 %v226
    %995 = vmatprep.subr.mxu0 %v229
    %996 = vmatpush1.msra.mxu0 %v228
    %997 = vmatprep.subr.mxu0 %v231
    %998 = vmatpush1.msra.mxu0 %v230
    %999 = vmatprep.subr.mxu0 %v233
    %1000 = vmatpush1.msra.mxu0 %v232
    %1001 = vmatprep.subr.mxu0 %v235
    %1002 = vmatpush1.msra.mxu0 %v234
    %1003 = vmatprep.subr.mxu0 %v237
    %1004 = vmatpush1.msra.mxu0 %v236
    %1005 = vmatprep.subr.mxu0 %v239
    %1006 = vmatpush1.msra.mxu0 %v238
    %1007 = vmatprep.subr.mxu0 %v241
    %1008 = vmatpush1.msra.mxu0 %v240
    %1009 = vmatprep.subr.mxu0 %v243
    %1010 = vmatpush1.msra.mxu0 %v242
    %1011 = vmatprep.subr.mxu0 %v245
    %1012 = vmatpush1.msra.mxu0 %v244
    %1013 = vmatprep.subr.mxu0 %v247
    %1014 = vmatpush1.msra.mxu0 %v246
    %1015 = vmatprep.subr.mxu0 %v249
    %1016 = vmatpush1.msra.mxu0 %v248
    %1017 = vmatprep.subr.mxu0 %v251
    %1018 = vmatpush1.msra.mxu0 %v250
    %1019 = vmatprep.subr.mxu0 %v253
    %1020 = vmatpush1.msra.mxu0 %v252
    %1021 = vmatprep.subr.mxu0 %v255
    %1022 = vmatpush1.msra.mxu0 %v254
    %1023 = vmatprep.subr.mxu0 %v257
    %1024 = vmatpush1.msra.mxu0 %v256
    %1025 = vmatprep.subr.mxu0 %v259
    %1026 = vmatpush1.msra.mxu0 %v258
    %1027 = vmatprep.mubr.f32.mxu0 %v820
    %1028 = vmatmul.mubr.f32.gmra.mrb[0].mxu0 %v819
    %v1029 = vpop.f32.mrb[0].mxu0
    %v1030 = vadd.f32 0.0, %v1029
    %v1031 = vpop.f32.mrb[0].mxu0
    %v1032 = vadd.f32 0.0, %v1031
    %1033 = vdwg.mxu0
    %1034 = vmatprep.subr.mxu0 %v261
    %1035 = vmatpush1.msra.mxu0 %v260
    %1036 = vmatprep.subr.mxu0 %v263
    %1037 = vmatpush1.msra.mxu0 %v262
    %1038 = vmatprep.subr.mxu0 %v265
    %1039 = vmatpush1.msra.mxu0 %v264
    %1040 = vmatprep.subr.mxu0 %v267
    %1041 = vmatpush1.msra.mxu0 %v266
    %1042 = vmatprep.subr.mxu0 %v269
    %1043 = vmatpush1.msra.mxu0 %v268
    %1044 = vmatprep.subr.mxu0 %v271
    %1045 = vmatpush1.msra.mxu0 %v270
    %1046 = vmatprep.subr.mxu0 %v273
    %1047 = vmatpush1.msra.mxu0 %v272
    %1048 = vmatprep.subr.mxu0 %v275
    %1049 = vmatpush1.msra.mxu0 %v274
    %1050 = vmatprep.subr.mxu0 %v277
    %1051 = vmatpush1.msra.mxu0 %v276
    %1052 = vmatprep.subr.mxu0 %v279
    %1053 = vmatpush1.msra.mxu0 %v278
    %1054 = vmatprep.subr.mxu0 %v281
    %1055 = vmatpush1.msra.mxu0 %v280
    %1056 = vmatprep.subr.mxu0 %v283
    %1057 = vmatpush1.msra.mxu0 %v282
    %1058 = vmatprep.subr.mxu0 %v285
    %1059 = vmatpush1.msra.mxu0 %v284
    %1060 = vmatprep.subr.mxu0 %v287
    %1061 = vmatpush1.msra.mxu0 %v286
    %1062 = vmatprep.subr.mxu0 %v289
    %1063 = vmatpush1.msra.mxu0 %v288
    %1064 = vmatprep.subr.mxu0 %v291
    %1065 = vmatpush1.msra.mxu0 %v290
    %1066 = vmatprep.subr.mxu0 %v293
    %1067 = vmatpush1.msra.mxu0 %v292
    %1068 = vmatprep.subr.mxu0 %v295
    %1069 = vmatpush1.msra.mxu0 %v294
    %1070 = vmatprep.subr.mxu0 %v297
    %1071 = vmatpush1.msra.mxu0 %v296
    %1072 = vmatprep.subr.mxu0 %v299
    %1073 = vmatpush1.msra.mxu0 %v298
    %1074 = vmatprep.subr.mxu0 %v301
    %1075 = vmatpush1.msra.mxu0 %v300
    %1076 = vmatprep.subr.mxu0 %v303
    %1077 = vmatpush1.msra.mxu0 %v302
    %1078 = vmatprep.subr.mxu0 %v305
    %1079 = vmatpush1.msra.mxu0 %v304
    %1080 = vmatprep.subr.mxu0 %v307
    %1081 = vmatpush1.msra.mxu0 %v306
    %1082 = vmatprep.subr.mxu0 %v309
    %1083 = vmatpush1.msra.mxu0 %v308
    %1084 = vmatprep.subr.mxu0 %v311
    %1085 = vmatpush1.msra.mxu0 %v310
    %1086 = vmatprep.subr.mxu0 %v313
    %1087 = vmatpush1.msra.mxu0 %v312
    %1088 = vmatprep.subr.mxu0 %v315
    %1089 = vmatpush1.msra.mxu0 %v314
    %1090 = vmatprep.subr.mxu0 %v317
    %1091 = vmatpush1.msra.mxu0 %v316
    %1092 = vmatprep.subr.mxu0 %v319
    %1093 = vmatpush1.msra.mxu0 %v318
    %1094 = vmatprep.subr.mxu0 %v321
    %1095 = vmatpush1.msra.mxu0 %v320
    %1096 = vmatprep.subr.mxu0 %v323
    %1097 = vmatpush1.msra.mxu0 %v322
    %1098 = vmatprep.mubr.f32.mxu0 %v814
    %1099 = vmatmul.mubr.f32.gmra.mrb[0].mxu0 %v813
    %v1100 = vpop.f32.mrb[0].mxu0
    %v1101 = vadd.f32 0.0, %v1100
    %v1102 = vpop.f32.mrb[0].mxu0
    %v1103 = vadd.f32 0.0, %v1102
    %1104 = vmatprep.mubr.f32.mxu0 %v890
    %1105 = vmatmul.mubr.f32.gmra.mrb[0].mxu0 %v888
    %v1106 = vpop.f32.mrb[0].mxu0
    %v1107 = vadd.f32 0.0, %v1106
    %v1108 = vpop.f32.mrb[0].mxu0
    %v1109 = vadd.f32 0.0, %v1108
    %1110 = vmatprep.mubr.f32.mxu0 %v961
    %1111 = vmatmul.mubr.f32.gmra.mrb[0].mxu0 %v959
    %v1112 = vpop.f32.mrb[0].mxu0
    %v1113 = vadd.f32 0.0, %v1112
    %v1114 = vpop.f32.mrb[0].mxu0
    %v1115 = vadd.f32 0.0, %v1114
    %1116 = vmatprep.mubr.f32.mxu0 %v1032
    %1117 = vmatmul.mubr.f32.gmra.mrb[0].mxu0 %v1030
    %v1118 = vpop.f32.mrb[0].mxu0
    %v1119 = vadd.f32 0.0, %v1118
    %v1120 = vpop.f32.mrb[0].mxu0
    %v1121 = vadd.f32 0.0, %v1120
    %1122 = vdwg.mxu0
    %v1123 = vld [vmem:[%s12] sm:$0xff]
    %v1124 = vld [vmem:[%s12 + $0x8] sm:$0xff]
    %v1125 = vld [vmem:[%s12 + $0x10] sm:$0xff]
    %v1126 = vld [vmem:[%s12 + $0x18] sm:$0xff]
    %v1127 = vld [vmem:[%s14] sm:$0xff]
    %v1128 = vld [vmem:[%s14 + $0x8] sm:$0xff]
    %v1129 = vld [vmem:[%s14 + $0x10] sm:$0xff]
    %v1130 = vld [vmem:[%s14 + $0x18] sm:$0xff]
    %v1132 = vsel %vm711, %v1127, 0
    %v1135 = vsel %vm711, %v1128, 0
    %v1138 = vsel %vm711, %v1129, 0
    %v1141 = vsel %vm711, %v1130, 0
    %1143 = vmatprep.subr.mxu0 %v1103
    %1144 = vmatpush1.msra.mxu0 %v1101
    %1145 = vmatprep.subr.mxu0 %v1109
    %1146 = vmatpush1.msra.mxu0 %v1107
    %1147 = vmatprep.subr.mxu0 %v1115
    %1148 = vmatpush1.msra.mxu0 %v1113
    %1149 = vmatprep.subr.mxu0 %v1121
    %1150 = vmatpush1.msra.mxu0 %v1119
    %1151 = vmatprep.subr.mxu0 0.0
    %1152 = vmatpush1.msra.mxu0 0.0
    %1153 = vmatprep.subr.mxu0 0.0
    %1154 = vmatpush1.msra.mxu0 0.0
    %1155 = vmatprep.subr.mxu0 0.0
    %1156 = vmatpush1.msra.mxu0 0.0
    %1157 = vmatprep.subr.mxu0 0.0
    %1158 = vmatpush1.msra.mxu0 0.0
    %1159 = vmatprep.subr.mxu0 0.0
    %1160 = vmatpush1.msra.mxu0 0.0
    %1161 = vmatprep.subr.mxu0 0.0
    %1162 = vmatpush1.msra.mxu0 0.0
    %1163 = vmatprep.subr.mxu0 0.0
    %1164 = vmatpush1.msra.mxu0 0.0
    %1165 = vmatprep.subr.mxu0 0.0
    %1166 = vmatpush1.msra.mxu0 0.0
    %1167 = vmatprep.subr.mxu0 0.0
    %1168 = vmatpush1.msra.mxu0 0.0
    %1169 = vmatprep.subr.mxu0 0.0
    %1170 = vmatpush1.msra.mxu0 0.0
    %1171 = vmatprep.subr.mxu0 0.0
    %1172 = vmatpush1.msra.mxu0 0.0
    %1173 = vmatprep.subr.mxu0 0.0
    %1174 = vmatpush1.msra.mxu0 0.0
    %1175 = vmatprep.subr.mxu0 0.0
    %1176 = vmatpush1.msra.mxu0 0.0
    %1177 = vmatprep.subr.mxu0 0.0
    %1178 = vmatpush1.msra.mxu0 0.0
    %1179 = vmatprep.subr.mxu0 0.0
    %1180 = vmatpush1.msra.mxu0 0.0
    %1181 = vmatprep.subr.mxu0 0.0
    %1182 = vmatpush1.msra.mxu0 0.0
    %1183 = vmatprep.subr.mxu0 0.0
    %1184 = vmatpush1.msra.mxu0 0.0
    %1185 = vmatprep.subr.mxu0 0.0
    %1186 = vmatpush1.msra.mxu0 0.0
    %1187 = vmatprep.subr.mxu0 0.0
    %1188 = vmatpush1.msra.mxu0 0.0
    %1189 = vmatprep.subr.mxu0 0.0
    %1190 = vmatpush1.msra.mxu0 0.0
    %1191 = vmatprep.subr.mxu0 0.0
    %1192 = vmatpush1.msra.mxu0 0.0
    %1193 = vmatprep.subr.mxu0 0.0
    %1194 = vmatpush1.msra.mxu0 0.0
    %1195 = vmatprep.subr.mxu0 0.0
    %1196 = vmatpush1.msra.mxu0 0.0
    %1197 = vmatprep.subr.mxu0 0.0
    %1198 = vmatpush1.msra.mxu0 0.0
    %1199 = vmatprep.subr.mxu0 0.0
    %1200 = vmatpush1.msra.mxu0 0.0
    %1201 = vmatprep.subr.mxu0 0.0
    %1202 = vmatpush1.msra.mxu0 0.0
    %1203 = vmatprep.subr.mxu0 0.0
    %1204 = vmatpush1.msra.mxu0 0.0
    %1205 = vmatprep.subr.mxu0 0.0
    %1206 = vmatpush1.msra.mxu0 0.0
    %1207 = vmatprep.mubr.f32.mxu0 0.0
    %1208 = vmatmul.mubr.f32.gmra.mrb[0].mxu0 %v1132
    %v1209 = vpop.f32.mrb[0].mxu0
    %v1210 = vadd.f32 0.0, %v1209
    %v1211 = vpop.f32.mrb[0].mxu0
    %v1212 = vadd.f32 0.0, %v1211
    %1213 = vmatprep.mubr.f32.mxu0 0.0
    %1214 = vmatmul.mubr.f32.gmra.mrb[0].mxu0 %v1135
    %v1215 = vpop.f32.mrb[0].mxu0
    %v1216 = vadd.f32 0.0, %v1215
    %v1217 = vpop.f32.mrb[0].mxu0
    %v1218 = vadd.f32 0.0, %v1217
    %1219 = vmatprep.mubr.f32.mxu0 0.0
    %1220 = vmatmul.mubr.f32.gmra.mrb[0].mxu0 %v1138
    %v1221 = vpop.f32.mrb[0].mxu0
    %v1222 = vadd.f32 0.0, %v1221
    %v1223 = vpop.f32.mrb[0].mxu0
    %v1224 = vadd.f32 0.0, %v1223
    %1225 = vmatprep.mubr.f32.mxu0 0.0
    %1226 = vmatmul.mubr.f32.gmra.mrb[0].mxu0 %v1141
    %v1227 = vpop.f32.mrb[0].mxu0
    %v1228 = vadd.f32 0.0, %v1227
    %v1229 = vpop.f32.mrb[0].mxu0
    %v1230 = vadd.f32 0.0, %v1229
    %1231 = vdwg.mxu0
    %v1233 = vsel %vm355, %v1123, 0
    %v1236 = vsel %vm355, %v1124, 0
    %v1239 = vsel %vm355, %v1125, 0
    %v1242 = vsel %vm355, %v1126, 0
    %1244 = vmatprep.subr.mxu0 %v371
    %1245 = vmatpush1.msra.mxu0 %v369
    %1246 = vmatprep.subr.mxu0 0.0
    %1247 = vmatpush1.msra.mxu0 0.0
    %1248 = vmatprep.subr.mxu0 0.0
    %1249 = vmatpush1.msra.mxu0 0.0
    %1250 = vmatprep.subr.mxu0 0.0
    %1251 = vmatpush1.msra.mxu0 0.0
    %1252 = vmatprep.subr.mxu0 0.0
    %1253 = vmatpush1.msra.mxu0 0.0
    %1254 = vmatprep.subr.mxu0 0.0
    %1255 = vmatpush1.msra.mxu0 0.0
    %1256 = vmatprep.subr.mxu0 0.0
    %1257 = vmatpush1.msra.mxu0 0.0
    %1258 = vmatprep.subr.mxu0 0.0
    %1259 = vmatpush1.msra.mxu0 0.0
    %1260 = vmatprep.subr.mxu0 0.0
    %1261 = vmatpush1.msra.mxu0 0.0
    %1262 = vmatprep.subr.mxu0 0.0
    %1263 = vmatpush1.msra.mxu0 0.0
    %1264 = vmatprep.subr.mxu0 0.0
    %1265 = vmatpush1.msra.mxu0 0.0
    %1266 = vmatprep.subr.mxu0 0.0
    %1267 = vmatpush1.msra.mxu0 0.0
    %1268 = vmatprep.subr.mxu0 0.0
    %1269 = vmatpush1.msra.mxu0 0.0
    %1270 = vmatprep.subr.mxu0 0.0
    %1271 = vmatpush1.msra.mxu0 0.0
    %1272 = vmatprep.subr.mxu0 0.0
    %1273 = vmatpush1.msra.mxu0 0.0
    %1274 = vmatprep.subr.mxu0 0.0
    %1275 = vmatpush1.msra.mxu0 0.0
    %1276 = vmatprep.subr.mxu0 0.0
    %1277 = vmatpush1.msra.mxu0 0.0
    %1278 = vmatprep.subr.mxu0 0.0
    %1279 = vmatpush1.msra.mxu0 0.0
    %1280 = vmatprep.subr.mxu0 0.0
    %1281 = vmatpush1.msra.mxu0 0.0
    %1282 = vmatprep.subr.mxu0 0.0
    %1283 = vmatpush1.msra.mxu0 0.0
    %1284 = vmatprep.subr.mxu0 0.0
    %1285 = vmatpush1.msra.mxu0 0.0
    %1286 = vmatprep.subr.mxu0 0.0
    %1287 = vmatpush1.msra.mxu0 0.0
    %1288 = vmatprep.subr.mxu0 0.0
    %1289 = vmatpush1.msra.mxu0 0.0
    %1290 = vmatprep.subr.mxu0 0.0
    %1291 = vmatpush1.msra.mxu0 0.0
    %1292 = vmatprep.subr.mxu0 0.0
    %1293 = vmatpush1.msra.mxu0 0.0
    %1294 = vmatprep.subr.mxu0 0.0
    %1295 = vmatpush1.msra.mxu0 0.0
    %1296 = vmatprep.subr.mxu0 0.0
    %1297 = vmatpush1.msra.mxu0 0.0
    %1298 = vmatprep.subr.mxu0 0.0
    %1299 = vmatpush1.msra.mxu0 0.0
    %1300 = vmatprep.subr.mxu0 0.0
    %1301 = vmatpush1.msra.mxu0 0.0
    %1302 = vmatprep.subr.mxu0 0.0
    %1303 = vmatpush1.msra.mxu0 0.0
    %1304 = vmatprep.subr.mxu0 0.0
    %1305 = vmatpush1.msra.mxu0 0.0
    %1306 = vmatprep.subr.mxu0 0.0
    %1307 = vmatpush1.msra.mxu0 0.0
    %1308 = vmatprep.mubr.f32.mxu0 0.0
    %1309 = vmatmul.mubr.f32.gmra.mrb[0].mxu0 %v1233
    %v1310 = vpop.f32.mrb[0].mxu0
    %v1311 = vadd.f32 %v1210, %v1310
    %v1312 = vpop.f32.mrb[0].mxu0
    %v1313 = vadd.f32 %v1212, %v1312
    %1314 = vmatprep.mubr.f32.mxu0 0.0
    %1315 = vmatmul.mubr.f32.gmra.mrb[0].mxu0 %v1236
    %v1316 = vpop.f32.mrb[0].mxu0
    %v1317 = vadd.f32 %v1216, %v1316
    %v1318 = vpop.f32.mrb[0].mxu0
    %v1319 = vadd.f32 %v1218, %v1318
    %1320 = vmatprep.mubr.f32.mxu0 0.0
    %1321 = vmatmul.mubr.f32.gmra.mrb[0].mxu0 %v1239
    %v1322 = vpop.f32.mrb[0].mxu0
    %v1323 = vadd.f32 %v1222, %v1322
    %v1324 = vpop.f32.mrb[0].mxu0
    %v1325 = vadd.f32 %v1224, %v1324
    %1326 = vmatprep.mubr.f32.mxu0 0.0
    %1327 = vmatmul.mubr.f32.gmra.mrb[0].mxu0 %v1242
    %v1328 = vpop.f32.mrb[0].mxu0
    %v1329 = vadd.f32 %v1228, %v1328
    %v1330 = vpop.f32.mrb[0].mxu0
    %v1331 = vadd.f32 %v1230, %v1330
    %1332 = vdwg.mxu0
    %v1333 = vld [vmem:[%s15] sm:$0xff]
    %v1334 = vld [vmem:[%s15 + $0x8] sm:$0xff]
    %v1335 = vld [vmem:[%s15 + $0x10] sm:$0xff]
    %v1336 = vld [vmem:[%s15 + $0x18] sm:$0xff]
    %1338 = vset.pattern.permute.xlu0 0
    %1339 = vperm.xlu0 %1338, %v1333
    %v1340 = vpop.permute.xlu0 %1339
    %1343 = vset.pattern.permute.xlu0 0
    %1344 = vperm.xlu0 %1343, %v1334
    %v1345 = vpop.permute.xlu0 %1344
    %1348 = vset.pattern.permute.xlu0 0
    %1349 = vperm.xlu0 %1348, %v1335
    %v1350 = vpop.permute.xlu0 %1349
    %1353 = vset.pattern.permute.xlu0 0
    %1354 = vperm.xlu0 %1353, %v1336
    %v1355 = vpop.permute.xlu0 %1354
    %v1357 = vadd.f32 %v1311, %v1340
    %v1358 = vadd.f32 %v1313, %v1340
    %v1359 = vadd.f32 %v1317, %v1345
    %v1360 = vadd.f32 %v1319, %v1345
    %v1361 = vadd.f32 %v1323, %v1350
    %v1362 = vadd.f32 %v1325, %v1350
    %v1363 = vadd.f32 %v1329, %v1355
    %v1364 = vadd.f32 %v1331, %v1355
    %v1365 = vmax.f32 %v1357, 0.0
    %v1366 = vmax.f32 %v1358, 0.0
    %v1367 = vmax.f32 %v1359, 0.0
    %v1368 = vmax.f32 %v1360, 0.0
    %v1369 = vmax.f32 %v1361, 0.0
    %v1370 = vmax.f32 %v1362, 0.0
    %v1371 = vmax.f32 %v1363, 0.0
    %v1372 = vmax.f32 %v1364, 0.0
    %1373 = vmatprep.subr.mxu0 %v67
    %1374 = vmatpush1.msra.mxu0 %v66
    %1375 = vmatprep.subr.mxu0 %v69
    %1376 = vmatpush1.msra.mxu0 %v68
    %1377 = vmatprep.subr.mxu0 %v71
    %1378 = vmatpush1.msra.mxu0 %v70
    %1379 = vmatprep.subr.mxu0 %v73
    %1380 = vmatpush1.msra.mxu0 %v72
    %1381 = vmatprep.subr.mxu0 %v75
    %1382 = vmatpush1.msra.mxu0 %v74
    %1383 = vmatprep.subr.mxu0 %v77
    %1384 = vmatpush1.msra.mxu0 %v76
    %1385 = vmatprep.subr.mxu0 %v79
    %1386 = vmatpush1.msra.mxu0 %v78
    %1387 = vmatprep.subr.mxu0 %v81
    %1388 = vmatpush1.msra.mxu0 %v80
    %1389 = vmatprep.subr.mxu0 %v83
    %1390 = vmatpush1.msra.mxu0 %v82
    %1391 = vmatprep.subr.mxu0 %v85
    %1392 = vmatpush1.msra.mxu0 %v84
    %1393 = vmatprep.subr.mxu0 %v87
    %1394 = vmatpush1.msra.mxu0 %v86
    %1395 = vmatprep.subr.mxu0 %v89
    %1396 = vmatpush1.msra.mxu0 %v88
    %1397 = vmatprep.subr.mxu0 %v91
    %1398 = vmatpush1.msra.mxu0 %v90
    %1399 = vmatprep.subr.mxu0 %v93
    %1400 = vmatpush1.msra.mxu0 %v92
    %1401 = vmatprep.subr.mxu0 %v95
    %1402 = vmatpush1.msra.mxu0 %v94
    %1403 = vmatprep.subr.mxu0 %v97
    %1404 = vmatpush1.msra.mxu0 %v96
    %1405 = vmatprep.subr.mxu0 %v99
    %1406 = vmatpush1.msra.mxu0 %v98
    %1407 = vmatprep.subr.mxu0 %v101
    %1408 = vmatpush1.msra.mxu0 %v100
    %1409 = vmatprep.subr.mxu0 %v103
    %1410 = vmatpush1.msra.mxu0 %v102
    %1411 = vmatprep.subr.mxu0 %v105
    %1412 = vmatpush1.msra.mxu0 %v104
    %1413 = vmatprep.subr.mxu0 %v107
    %1414 = vmatpush1.msra.mxu0 %v106
    %1415 = vmatprep.subr.mxu0 %v109
    %1416 = vmatpush1.msra.mxu0 %v108
    %1417 = vmatprep.subr.mxu0 %v111
    %1418 = vmatpush1.msra.mxu0 %v110
    %1419 = vmatprep.subr.mxu0 %v113
    %1420 = vmatpush1.msra.mxu0 %v112
    %1421 = vmatprep.subr.mxu0 %v115
    %1422 = vmatpush1.msra.mxu0 %v114
    %1423 = vmatprep.subr.mxu0 %v117
    %1424 = vmatpush1.msra.mxu0 %v116
    %1425 = vmatprep.subr.mxu0 %v119
    %1426 = vmatpush1.msra.mxu0 %v118
    %1427 = vmatprep.subr.mxu0 %v121
    %1428 = vmatpush1.msra.mxu0 %v120
    %1429 = vmatprep.subr.mxu0 %v123
    %1430 = vmatpush1.msra.mxu0 %v122
    %1431 = vmatprep.subr.mxu0 %v125
    %1432 = vmatpush1.msra.mxu0 %v124
    %1433 = vmatprep.subr.mxu0 %v127
    %1434 = vmatpush1.msra.mxu0 %v126
    %1435 = vmatprep.subr.mxu0 %v129
    %1436 = vmatpush1.msra.mxu0 %v128
    %1437 = vmatprep.mubr.f32.mxu0 %v1368
    %1438 = vmatmul.mubr.f32.gmra.mrb[0].mxu0 %v1367
    %v1439 = vpop.f32.mrb[0].mxu0
    %v1440 = vadd.f32 0.0, %v1439
    %v1441 = vpop.f32.mrb[0].mxu0
    %v1442 = vadd.f32 0.0, %v1441
    %1443 = vdwg.mxu0
    %1444 = vmatprep.subr.mxu0 %v132
    %1445 = vmatpush1.msra.mxu0 %v131
    %1446 = vmatprep.subr.mxu0 %v134
    %1447 = vmatpush1.msra.mxu0 %v133
    %1448 = vmatprep.subr.mxu0 %v136
    %1449 = vmatpush1.msra.mxu0 %v135
    %1450 = vmatprep.subr.mxu0 %v138
    %1451 = vmatpush1.msra.mxu0 %v137
    %1452 = vmatprep.subr.mxu0 %v140
    %1453 = vmatpush1.msra.mxu0 %v139
    %1454 = vmatprep.subr.mxu0 %v142
    %1455 = vmatpush1.msra.mxu0 %v141
    %1456 = vmatprep.subr.mxu0 %v144
    %1457 = vmatpush1.msra.mxu0 %v143
    %1458 = vmatprep.subr.mxu0 %v146
    %1459 = vmatpush1.msra.mxu0 %v145
    %1460 = vmatprep.subr.mxu0 %v148
    %1461 = vmatpush1.msra.mxu0 %v147
    %1462 = vmatprep.subr.mxu0 %v150
    %1463 = vmatpush1.msra.mxu0 %v149
    %1464 = vmatprep.subr.mxu0 %v152
    %1465 = vmatpush1.msra.mxu0 %v151
    %1466 = vmatprep.subr.mxu0 %v154
    %1467 = vmatpush1.msra.mxu0 %v153
    %1468 = vmatprep.subr.mxu0 %v156
    %1469 = vmatpush1.msra.mxu0 %v155
    %1470 = vmatprep.subr.mxu0 %v158
    %1471 = vmatpush1.msra.mxu0 %v157
    %1472 = vmatprep.subr.mxu0 %v160
    %1473 = vmatpush1.msra.mxu0 %v159
    %1474 = vmatprep.subr.mxu0 %v162
    %1475 = vmatpush1.msra.mxu0 %v161
    %1476 = vmatprep.subr.mxu0 %v164
    %1477 = vmatpush1.msra.mxu0 %v163
    %1478 = vmatprep.subr.mxu0 %v166
    %1479 = vmatpush1.msra.mxu0 %v165
    %1480 = vmatprep.subr.mxu0 %v168
    %1481 = vmatpush1.msra.mxu0 %v167
    %1482 = vmatprep.subr.mxu0 %v170
    %1483 = vmatpush1.msra.mxu0 %v169
    %1484 = vmatprep.subr.mxu0 %v172
    %1485 = vmatpush1.msra.mxu0 %v171
    %1486 = vmatprep.subr.mxu0 %v174
    %1487 = vmatpush1.msra.mxu0 %v173
    %1488 = vmatprep.subr.mxu0 %v176
    %1489 = vmatpush1.msra.mxu0 %v175
    %1490 = vmatprep.subr.mxu0 %v178
    %1491 = vmatpush1.msra.mxu0 %v177
    %1492 = vmatprep.subr.mxu0 %v180
    %1493 = vmatpush1.msra.mxu0 %v179
    %1494 = vmatprep.subr.mxu0 %v182
    %1495 = vmatpush1.msra.mxu0 %v181
    %1496 = vmatprep.subr.mxu0 %v184
    %1497 = vmatpush1.msra.mxu0 %v183
    %1498 = vmatprep.subr.mxu0 %v186
    %1499 = vmatpush1.msra.mxu0 %v185
    %1500 = vmatprep.subr.mxu0 %v188
    %1501 = vmatpush1.msra.mxu0 %v187
    %1502 = vmatprep.subr.mxu0 %v190
    %1503 = vmatpush1.msra.mxu0 %v189
    %1504 = vmatprep.subr.mxu0 %v192
    %1505 = vmatpush1.msra.mxu0 %v191
    %1506 = vmatprep.subr.mxu0 %v194
    %1507 = vmatpush1.msra.mxu0 %v193
    %1508 = vmatprep.mubr.f32.mxu0 %v1370
    %1509 = vmatmul.mubr.f32.gmra.mrb[0].mxu0 %v1369
    %v1510 = vpop.f32.mrb[0].mxu0
    %v1511 = vadd.f32 0.0, %v1510
    %v1512 = vpop.f32.mrb[0].mxu0
    %v1513 = vadd.f32 0.0, %v1512
    %1514 = vdwg.mxu0
    %1515 = vmatprep.subr.mxu0 %v197
    %1516 = vmatpush1.msra.mxu0 %v196
    %1517 = vmatprep.subr.mxu0 %v199
    %1518 = vmatpush1.msra.mxu0 %v198
    %1519 = vmatprep.subr.mxu0 %v201
    %1520 = vmatpush1.msra.mxu0 %v200
    %1521 = vmatprep.subr.mxu0 %v203
    %1522 = vmatpush1.msra.mxu0 %v202
    %1523 = vmatprep.subr.mxu0 %v205
    %1524 = vmatpush1.msra.mxu0 %v204
    %1525 = vmatprep.subr.mxu0 %v207
    %1526 = vmatpush1.msra.mxu0 %v206
    %1527 = vmatprep.subr.mxu0 %v209
    %1528 = vmatpush1.msra.mxu0 %v208
    %1529 = vmatprep.subr.mxu0 %v211
    %1530 = vmatpush1.msra.mxu0 %v210
    %1531 = vmatprep.subr.mxu0 %v213
    %1532 = vmatpush1.msra.mxu0 %v212
    %1533 = vmatprep.subr.mxu0 %v215
    %1534 = vmatpush1.msra.mxu0 %v214
    %1535 = vmatprep.subr.mxu0 %v217
    %1536 = vmatpush1.msra.mxu0 %v216
    %1537 = vmatprep.subr.mxu0 %v219
    %1538 = vmatpush1.msra.mxu0 %v218
    %1539 = vmatprep.subr.mxu0 %v221
    %1540 = vmatpush1.msra.mxu0 %v220
    %1541 = vmatprep.subr.mxu0 %v223
    %1542 = vmatpush1.msra.mxu0 %v222
    %1543 = vmatprep.subr.mxu0 %v225
    %1544 = vmatpush1.msra.mxu0 %v224
    %1545 = vmatprep.subr.mxu0 %v227
    %1546 = vmatpush1.msra.mxu0 %v226
    %1547 = vmatprep.subr.mxu0 %v229
    %1548 = vmatpush1.msra.mxu0 %v228
    %1549 = vmatprep.subr.mxu0 %v231
    %1550 = vmatpush1.msra.mxu0 %v230
    %1551 = vmatprep.subr.mxu0 %v233
    %1552 = vmatpush1.msra.mxu0 %v232
    %1553 = vmatprep.subr.mxu0 %v235
    %1554 = vmatpush1.msra.mxu0 %v234
    %1555 = vmatprep.subr.mxu0 %v237
    %1556 = vmatpush1.msra.mxu0 %v236
    %1557 = vmatprep.subr.mxu0 %v239
    %1558 = vmatpush1.msra.mxu0 %v238
    %1559 = vmatprep.subr.mxu0 %v241
    %1560 = vmatpush1.msra.mxu0 %v240
    %1561 = vmatprep.subr.mxu0 %v243
    %1562 = vmatpush1.msra.mxu0 %v242
    %1563 = vmatprep.subr.mxu0 %v245
    %1564 = vmatpush1.msra.mxu0 %v244
    %1565 = vmatprep.subr.mxu0 %v247
    %1566 = vmatpush1.msra.mxu0 %v246
    %1567 = vmatprep.subr.mxu0 %v249
    %1568 = vmatpush1.msra.mxu0 %v248
    %1569 = vmatprep.subr.mxu0 %v251
    %1570 = vmatpush1.msra.mxu0 %v250
    %1571 = vmatprep.subr.mxu0 %v253
    %1572 = vmatpush1.msra.mxu0 %v252
    %1573 = vmatprep.subr.mxu0 %v255
    %1574 = vmatpush1.msra.mxu0 %v254
    %1575 = vmatprep.subr.mxu0 %v257
    %1576 = vmatpush1.msra.mxu0 %v256
    %1577 = vmatprep.subr.mxu0 %v259
    %1578 = vmatpush1.msra.mxu0 %v258
    %1579 = vmatprep.mubr.f32.mxu0 %v1372
    %1580 = vmatmul.mubr.f32.gmra.mrb[0].mxu0 %v1371
    %v1581 = vpop.f32.mrb[0].mxu0
    %v1582 = vadd.f32 0.0, %v1581
    %v1583 = vpop.f32.mrb[0].mxu0
    %v1584 = vadd.f32 0.0, %v1583
    %1585 = vdwg.mxu0
    %v1586 = vld [vmem:[%s16] sm:$0xff]
    %v1587 = vld [vmem:[%s16 + $0x8] sm:$0xff]
    %v1588 = vld [vmem:[%s16 + $0x10] sm:$0xff]
    %v1589 = vld [vmem:[%s16 + $0x18] sm:$0xff]
    %v1590 = vld [vmem:[%s17] sm:$0xff]
    %v1591 = vld [vmem:[%s17 + $0x8] sm:$0xff]
    %v1592 = vld [vmem:[%s17 + $0x10] sm:$0xff]
    %v1593 = vld [vmem:[%s17 + $0x18] sm:$0xff]
    %1595 = vset.pattern.permute.xlu0 0
    %1596 = vperm.xlu0 %1595, %v1590
    %v1597 = vpop.permute.xlu0 %1596
    %1600 = vset.pattern.permute.xlu0 0
    %1601 = vperm.xlu0 %1600, %v1591
    %v1602 = vpop.permute.xlu0 %1601
    %1605 = vset.pattern.permute.xlu0 0
    %1606 = vperm.xlu0 %1605, %v1592
    %v1607 = vpop.permute.xlu0 %1606
    %1610 = vset.pattern.permute.xlu0 0
    %1611 = vperm.xlu0 %1610, %v1593
    %v1612 = vpop.permute.xlu0 %1611
    %v1615 = vsel %vm711, %v1586, 0
    %v1618 = vsel %vm711, %v1587, 0
    %v1621 = vsel %vm711, %v1588, 0
    %v1624 = vsel %vm711, %v1589, 0
    %1626 = vmatprep.subr.mxu0 %v1366
    %1627 = vmatpush1.msra.mxu0 %v1365
    %1628 = vmatprep.subr.mxu0 %v1442
    %1629 = vmatpush1.msra.mxu0 %v1440
    %1630 = vmatprep.subr.mxu0 %v1513
    %1631 = vmatpush1.msra.mxu0 %v1511
    %1632 = vmatprep.subr.mxu0 %v1584
    %1633 = vmatpush1.msra.mxu0 %v1582
    %1634 = vmatprep.subr.mxu0 0.0
    %1635 = vmatpush1.msra.mxu0 0.0
    %1636 = vmatprep.subr.mxu0 0.0
    %1637 = vmatpush1.msra.mxu0 0.0
    %1638 = vmatprep.subr.mxu0 0.0
    %1639 = vmatpush1.msra.mxu0 0.0
    %1640 = vmatprep.subr.mxu0 0.0
    %1641 = vmatpush1.msra.mxu0 0.0
    %1642 = vmatprep.subr.mxu0 0.0
    %1643 = vmatpush1.msra.mxu0 0.0
    %1644 = vmatprep.subr.mxu0 0.0
    %1645 = vmatpush1.msra.mxu0 0.0
    %1646 = vmatprep.subr.mxu0 0.0
    %1647 = vmatpush1.msra.mxu0 0.0
    %1648 = vmatprep.subr.mxu0 0.0
    %1649 = vmatpush1.msra.mxu0 0.0
    %1650 = vmatprep.subr.mxu0 0.0
    %1651 = vmatpush1.msra.mxu0 0.0
    %1652 = vmatprep.subr.mxu0 0.0
    %1653 = vmatpush1.msra.mxu0 0.0
    %1654 = vmatprep.subr.mxu0 0.0
    %1655 = vmatpush1.msra.mxu0 0.0
    %1656 = vmatprep.subr.mxu0 0.0
    %1657 = vmatpush1.msra.mxu0 0.0
    %1658 = vmatprep.subr.mxu0 0.0
    %1659 = vmatpush1.msra.mxu0 0.0
    %1660 = vmatprep.subr.mxu0 0.0
    %1661 = vmatpush1.msra.mxu0 0.0
    %1662 = vmatprep.subr.mxu0 0.0
    %1663 = vmatpush1.msra.mxu0 0.0
    %1664 = vmatprep.subr.mxu0 0.0
    %1665 = vmatpush1.msra.mxu0 0.0
    %1666 = vmatprep.subr.mxu0 0.0
    %1667 = vmatpush1.msra.mxu0 0.0
    %1668 = vmatprep.subr.mxu0 0.0
    %1669 = vmatpush1.msra.mxu0 0.0
    %1670 = vmatprep.subr.mxu0 0.0
    %1671 = vmatpush1.msra.mxu0 0.0
    %1672 = vmatprep.subr.mxu0 0.0
    %1673 = vmatpush1.msra.mxu0 0.0
    %1674 = vmatprep.subr.mxu0 0.0
    %1675 = vmatpush1.msra.mxu0 0.0
    %1676 = vmatprep.subr.mxu0 0.0
    %1677 = vmatpush1.msra.mxu0 0.0
    %1678 = vmatprep.subr.mxu0 0.0
    %1679 = vmatpush1.msra.mxu0 0.0
    %1680 = vmatprep.subr.mxu0 0.0
    %1681 = vmatpush1.msra.mxu0 0.0
    %1682 = vmatprep.subr.mxu0 0.0
    %1683 = vmatpush1.msra.mxu0 0.0
    %1684 = vmatprep.subr.mxu0 0.0
    %1685 = vmatpush1.msra.mxu0 0.0
    %1686 = vmatprep.subr.mxu0 0.0
    %1687 = vmatpush1.msra.mxu0 0.0
    %1688 = vmatprep.subr.mxu0 0.0
    %1689 = vmatpush1.msra.mxu0 0.0
    %1690 = vmatprep.mubr.f32.mxu0 0.0
    %1691 = vmatmul.mubr.f32.gmra.mrb[0].mxu0 %v1615
    %v1692 = vpop.f32.mrb[0].mxu0
    %v1693 = vadd.f32 %v1597, %v1692
    %v1694 = vpop.f32.mrb[0].mxu0
    %v1695 = vadd.f32 %v1597, %v1694
    %1696 = vmatprep.mubr.f32.mxu0 0.0
    %1697 = vmatmul.mubr.f32.gmra.mrb[0].mxu0 %v1618
    %v1698 = vpop.f32.mrb[0].mxu0
    %v1699 = vadd.f32 %v1602, %v1698
    %v1700 = vpop.f32.mrb[0].mxu0
    %v1701 = vadd.f32 %v1602, %v1700
    %1702 = vmatprep.mubr.f32.mxu0 0.0
    %1703 = vmatmul.mubr.f32.gmra.mrb[0].mxu0 %v1621
    %v1704 = vpop.f32.mrb[0].mxu0
    %v1705 = vadd.f32 %v1607, %v1704
    %v1706 = vpop.f32.mrb[0].mxu0
    %v1707 = vadd.f32 %v1607, %v1706
    %1708 = vmatprep.mubr.f32.mxu0 0.0
    %1709 = vmatmul.mubr.f32.gmra.mrb[0].mxu0 %v1624
    %v1710 = vpop.f32.mrb[0].mxu0
    %v1711 = vadd.f32 %v1612, %v1710
    %v1712 = vpop.f32.mrb[0].mxu0
    %v1713 = vadd.f32 %v1612, %v1712
    %1714 = vdwg.mxu0
    %v1715 = vmax.f32 %v1693, 0.0
    %v1716 = vmax.f32 %v1695, 0.0
    %v1717 = vmax.f32 %v1699, 0.0
    %v1718 = vmax.f32 %v1701, 0.0
    %v1719 = vmax.f32 %v1705, 0.0
    %v1720 = vmax.f32 %v1707, 0.0
    %v1721 = vmax.f32 %v1711, 0.0
    %v1722 = vmax.f32 %v1713, 0.0
    %1723 = vmatprep.subr.mxu0 %v67
    %1724 = vmatpush1.msra.mxu0 %v66
    %1725 = vmatprep.subr.mxu0 %v69
    %1726 = vmatpush1.msra.mxu0 %v68
    %1727 = vmatprep.subr.mxu0 %v71
    %1728 = vmatpush1.msra.mxu0 %v70
    %1729 = vmatprep.subr.mxu0 %v73
    %1730 = vmatpush1.msra.mxu0 %v72
    %1731 = vmatprep.subr.mxu0 %v75
    %1732 = vmatpush1.msra.mxu0 %v74
    %1733 = vmatprep.subr.mxu0 %v77
    %1734 = vmatpush1.msra.mxu0 %v76
    %1735 = vmatprep.subr.mxu0 %v79
    %1736 = vmatpush1.msra.mxu0 %v78
    %1737 = vmatprep.subr.mxu0 %v81
    %1738 = vmatpush1.msra.mxu0 %v80
    %1739 = vmatprep.subr.mxu0 %v83
    %1740 = vmatpush1.msra.mxu0 %v82
    %1741 = vmatprep.subr.mxu0 %v85
    %1742 = vmatpush1.msra.mxu0 %v84
    %1743 = vmatprep.subr.mxu0 %v87
    %1744 = vmatpush1.msra.mxu0 %v86
    %1745 = vmatprep.subr.mxu0 %v89
    %1746 = vmatpush1.msra.mxu0 %v88
    %1747 = vmatprep.subr.mxu0 %v91
    %1748 = vmatpush1.msra.mxu0 %v90
    %1749 = vmatprep.subr.mxu0 %v93
    %1750 = vmatpush1.msra.mxu0 %v92
    %1751 = vmatprep.subr.mxu0 %v95
    %1752 = vmatpush1.msra.mxu0 %v94
    %1753 = vmatprep.subr.mxu0 %v97
    %1754 = vmatpush1.msra.mxu0 %v96
    %1755 = vmatprep.subr.mxu0 %v99
    %1756 = vmatpush1.msra.mxu0 %v98
    %1757 = vmatprep.subr.mxu0 %v101
    %1758 = vmatpush1.msra.mxu0 %v100
    %1759 = vmatprep.subr.mxu0 %v103
    %1760 = vmatpush1.msra.mxu0 %v102
    %1761 = vmatprep.subr.mxu0 %v105
    %1762 = vmatpush1.msra.mxu0 %v104
    %1763 = vmatprep.subr.mxu0 %v107
    %1764 = vmatpush1.msra.mxu0 %v106
    %1765 = vmatprep.subr.mxu0 %v109
    %1766 = vmatpush1.msra.mxu0 %v108
    %1767 = vmatprep.subr.mxu0 %v111
    %1768 = vmatpush1.msra.mxu0 %v110
    %1769 = vmatprep.subr.mxu0 %v113
    %1770 = vmatpush1.msra.mxu0 %v112
    %1771 = vmatprep.subr.mxu0 %v115
    %1772 = vmatpush1.msra.mxu0 %v114
    %1773 = vmatprep.subr.mxu0 %v117
    %1774 = vmatpush1.msra.mxu0 %v116
    %1775 = vmatprep.subr.mxu0 %v119
    %1776 = vmatpush1.msra.mxu0 %v118
    %1777 = vmatprep.subr.mxu0 %v121
    %1778 = vmatpush1.msra.mxu0 %v120
    %1779 = vmatprep.subr.mxu0 %v123
    %1780 = vmatpush1.msra.mxu0 %v122
    %1781 = vmatprep.subr.mxu0 %v125
    %1782 = vmatpush1.msra.mxu0 %v124
    %1783 = vmatprep.subr.mxu0 %v127
    %1784 = vmatpush1.msra.mxu0 %v126
    %1785 = vmatprep.subr.mxu0 %v129
    %1786 = vmatpush1.msra.mxu0 %v128
    %1787 = vmatprep.mubr.f32.mxu0 %v1718
    %1788 = vmatmul.mubr.f32.gmra.mrb[0].mxu0 %v1717
    %v1789 = vpop.f32.mrb[0].mxu0
    %v1790 = vadd.f32 0.0, %v1789
    %v1791 = vpop.f32.mrb[0].mxu0
    %v1792 = vadd.f32 0.0, %v1791
    %1793 = vdwg.mxu0
    %1794 = vmatprep.subr.mxu0 %v132
    %1795 = vmatpush1.msra.mxu0 %v131
    %1796 = vmatprep.subr.mxu0 %v134
    %1797 = vmatpush1.msra.mxu0 %v133
    %1798 = vmatprep.subr.mxu0 %v136
    %1799 = vmatpush1.msra.mxu0 %v135
    %1800 = vmatprep.subr.mxu0 %v138
    %1801 = vmatpush1.msra.mxu0 %v137
    %1802 = vmatprep.subr.mxu0 %v140
    %1803 = vmatpush1.msra.mxu0 %v139
    %1804 = vmatprep.subr.mxu0 %v142
    %1805 = vmatpush1.msra.mxu0 %v141
    %1806 = vmatprep.subr.mxu0 %v144
    %1807 = vmatpush1.msra.mxu0 %v143
    %1808 = vmatprep.subr.mxu0 %v146
    %1809 = vmatpush1.msra.mxu0 %v145
    %1810 = vmatprep.subr.mxu0 %v148
    %1811 = vmatpush1.msra.mxu0 %v147
    %1812 = vmatprep.subr.mxu0 %v150
    %1813 = vmatpush1.msra.mxu0 %v149
    %1814 = vmatprep.subr.mxu0 %v152
    %1815 = vmatpush1.msra.mxu0 %v151
    %1816 = vmatprep.subr.mxu0 %v154
    %1817 = vmatpush1.msra.mxu0 %v153
    %1818 = vmatprep.subr.mxu0 %v156
    %1819 = vmatpush1.msra.mxu0 %v155
    %1820 = vmatprep.subr.mxu0 %v158
    %1821 = vmatpush1.msra.mxu0 %v157
    %1822 = vmatprep.subr.mxu0 %v160
    %1823 = vmatpush1.msra.mxu0 %v159
    %1824 = vmatprep.subr.mxu0 %v162
    %1825 = vmatpush1.msra.mxu0 %v161
    %1826 = vmatprep.subr.mxu0 %v164
    %1827 = vmatpush1.msra.mxu0 %v163
    %1828 = vmatprep.subr.mxu0 %v166
    %1829 = vmatpush1.msra.mxu0 %v165
    %1830 = vmatprep.subr.mxu0 %v168
    %1831 = vmatpush1.msra.mxu0 %v167
    %1832 = vmatprep.subr.mxu0 %v170
    %1833 = vmatpush1.msra.mxu0 %v169
    %1834 = vmatprep.subr.mxu0 %v172
    %1835 = vmatpush1.msra.mxu0 %v171
    %1836 = vmatprep.subr.mxu0 %v174
    %1837 = vmatpush1.msra.mxu0 %v173
    %1838 = vmatprep.subr.mxu0 %v176
    %1839 = vmatpush1.msra.mxu0 %v175
    %1840 = vmatprep.subr.mxu0 %v178
    %1841 = vmatpush1.msra.mxu0 %v177
    %1842 = vmatprep.subr.mxu0 %v180
    %1843 = vmatpush1.msra.mxu0 %v179
    %1844 = vmatprep.subr.mxu0 %v182
    %1845 = vmatpush1.msra.mxu0 %v181
    %1846 = vmatprep.subr.mxu0 %v184
    %1847 = vmatpush1.msra.mxu0 %v183
    %1848 = vmatprep.subr.mxu0 %v186
    %1849 = vmatpush1.msra.mxu0 %v185
    %1850 = vmatprep.subr.mxu0 %v188
    %1851 = vmatpush1.msra.mxu0 %v187
    %1852 = vmatprep.subr.mxu0 %v190
    %1853 = vmatpush1.msra.mxu0 %v189
    %1854 = vmatprep.subr.mxu0 %v192
    %1855 = vmatpush1.msra.mxu0 %v191
    %1856 = vmatprep.subr.mxu0 %v194
    %1857 = vmatpush1.msra.mxu0 %v193
    %1858 = vmatprep.mubr.f32.mxu0 %v1720
    %1859 = vmatmul.mubr.f32.gmra.mrb[0].mxu0 %v1719
    %v1860 = vpop.f32.mrb[0].mxu0
    %v1861 = vadd.f32 0.0, %v1860
    %v1862 = vpop.f32.mrb[0].mxu0
    %v1863 = vadd.f32 0.0, %v1862
    %1864 = vdwg.mxu0
    %1865 = vmatprep.subr.mxu0 %v197
    %1866 = vmatpush1.msra.mxu0 %v196
    %1867 = vmatprep.subr.mxu0 %v199
    %1868 = vmatpush1.msra.mxu0 %v198
    %1869 = vmatprep.subr.mxu0 %v201
    %1870 = vmatpush1.msra.mxu0 %v200
    %1871 = vmatprep.subr.mxu0 %v203
    %1872 = vmatpush1.msra.mxu0 %v202
    %1873 = vmatprep.subr.mxu0 %v205
    %1874 = vmatpush1.msra.mxu0 %v204
    %1875 = vmatprep.subr.mxu0 %v207
    %1876 = vmatpush1.msra.mxu0 %v206
    %1877 = vmatprep.subr.mxu0 %v209
    %1878 = vmatpush1.msra.mxu0 %v208
    %1879 = vmatprep.subr.mxu0 %v211
    %1880 = vmatpush1.msra.mxu0 %v210
    %1881 = vmatprep.subr.mxu0 %v213
    %1882 = vmatpush1.msra.mxu0 %v212
    %1883 = vmatprep.subr.mxu0 %v215
    %1884 = vmatpush1.msra.mxu0 %v214
    %1885 = vmatprep.subr.mxu0 %v217
    %1886 = vmatpush1.msra.mxu0 %v216
    %1887 = vmatprep.subr.mxu0 %v219
    %1888 = vmatpush1.msra.mxu0 %v218
    %1889 = vmatprep.subr.mxu0 %v221
    %1890 = vmatpush1.msra.mxu0 %v220
    %1891 = vmatprep.subr.mxu0 %v223
    %1892 = vmatpush1.msra.mxu0 %v222
    %1893 = vmatprep.subr.mxu0 %v225
    %1894 = vmatpush1.msra.mxu0 %v224
    %1895 = vmatprep.subr.mxu0 %v227
    %1896 = vmatpush1.msra.mxu0 %v226
    %1897 = vmatprep.subr.mxu0 %v229
    %1898 = vmatpush1.msra.mxu0 %v228
    %1899 = vmatprep.subr.mxu0 %v231
    %1900 = vmatpush1.msra.mxu0 %v230
    %1901 = vmatprep.subr.mxu0 %v233
    %1902 = vmatpush1.msra.mxu0 %v232
    %1903 = vmatprep.subr.mxu0 %v235
    %1904 = vmatpush1.msra.mxu0 %v234
    %1905 = vmatprep.subr.mxu0 %v237
    %1906 = vmatpush1.msra.mxu0 %v236
    %1907 = vmatprep.subr.mxu0 %v239
    %1908 = vmatpush1.msra.mxu0 %v238
    %1909 = vmatprep.subr.mxu0 %v241
    %1910 = vmatpush1.msra.mxu0 %v240
    %1911 = vmatprep.subr.mxu0 %v243
    %1912 = vmatpush1.msra.mxu0 %v242
    %1913 = vmatprep.subr.mxu0 %v245
    %1914 = vmatpush1.msra.mxu0 %v244
    %1915 = vmatprep.subr.mxu0 %v247
    %1916 = vmatpush1.msra.mxu0 %v246
    %1917 = vmatprep.subr.mxu0 %v249
    %1918 = vmatpush1.msra.mxu0 %v248
    %1919 = vmatprep.subr.mxu0 %v251
    %1920 = vmatpush1.msra.mxu0 %v250
    %1921 = vmatprep.subr.mxu0 %v253
    %1922 = vmatpush1.msra.mxu0 %v252
    %1923 = vmatprep.subr.mxu0 %v255
    %1924 = vmatpush1.msra.mxu0 %v254
    %1925 = vmatprep.subr.mxu0 %v257
    %1926 = vmatpush1.msra.mxu0 %v256
    %1927 = vmatprep.subr.mxu0 %v259
    %1928 = vmatpush1.msra.mxu0 %v258
    %1929 = vmatprep.mubr.f32.mxu0 %v1722
    %1930 = vmatmul.mubr.f32.gmra.mrb[0].mxu0 %v1721
    %v1931 = vpop.f32.mrb[0].mxu0
    %v1932 = vadd.f32 0.0, %v1931
    %v1933 = vpop.f32.mrb[0].mxu0
    %v1934 = vadd.f32 0.0, %v1933
    %1935 = vdwg.mxu0
    %v1936 = vld [vmem:[%s7] sm:$0xff]
    %v1937 = vld [vmem:[%s7 + $0x8] sm:$0xff]
    %v1938 = vld [vmem:[%s7 + $0x10] sm:$0xff]
    %v1939 = vld [vmem:[%s7 + $0x18] sm:$0xff]
    %v1940 = vld [vmem:[%s8] sm:$0xff]
    %v1941 = vld [vmem:[%s8 + $0x8] sm:$0xff]
    %v1942 = vld [vmem:[%s8 + $0x10] sm:$0xff]
    %v1943 = vld [vmem:[%s8 + $0x18] sm:$0xff]
    %v1945 = vsel %vm355, %v1940, 0
    %v1948 = vsel %vm355, %v1941, 0
    %v1951 = vsel %vm355, %v1942, 0
    %v1954 = vsel %vm355, %v1943, 0
    %1956 = vmatprep.subr.mxu0 %v371
    %1957 = vmatpush1.msra.mxu0 %v369
    %1958 = vmatprep.subr.mxu0 0.0
    %1959 = vmatpush1.msra.mxu0 0.0
    %1960 = vmatprep.subr.mxu0 0.0
    %1961 = vmatpush1.msra.mxu0 0.0
    %1962 = vmatprep.subr.mxu0 0.0
    %1963 = vmatpush1.msra.mxu0 0.0
    %1964 = vmatprep.subr.mxu0 0.0
    %1965 = vmatpush1.msra.mxu0 0.0
    %1966 = vmatprep.subr.mxu0 0.0
    %1967 = vmatpush1.msra.mxu0 0.0
    %1968 = vmatprep.subr.mxu0 0.0
    %1969 = vmatpush1.msra.mxu0 0.0
    %1970 = vmatprep.subr.mxu0 0.0
    %1971 = vmatpush1.msra.mxu0 0.0
    %1972 = vmatprep.subr.mxu0 0.0
    %1973 = vmatpush1.msra.mxu0 0.0
    %1974 = vmatprep.subr.mxu0 0.0
    %1975 = vmatpush1.msra.mxu0 0.0
    %1976 = vmatprep.subr.mxu0 0.0
    %1977 = vmatpush1.msra.mxu0 0.0
    %1978 = vmatprep.subr.mxu0 0.0
    %1979 = vmatpush1.msra.mxu0 0.0
    %1980 = vmatprep.subr.mxu0 0.0
    %1981 = vmatpush1.msra.mxu0 0.0
    %1982 = vmatprep.subr.mxu0 0.0
    %1983 = vmatpush1.msra.mxu0 0.0
    %1984 = vmatprep.subr.mxu0 0.0
    %1985 = vmatpush1.msra.mxu0 0.0
    %1986 = vmatprep.subr.mxu0 0.0
    %1987 = vmatpush1.msra.mxu0 0.0
    %1988 = vmatprep.subr.mxu0 0.0
    %1989 = vmatpush1.msra.mxu0 0.0
    %1990 = vmatprep.subr.mxu0 0.0
    %1991 = vmatpush1.msra.mxu0 0.0
    %1992 = vmatprep.subr.mxu0 0.0
    %1993 = vmatpush1.msra.mxu0 0.0
    %1994 = vmatprep.subr.mxu0 0.0
    %1995 = vmatpush1.msra.mxu0 0.0
    %1996 = vmatprep.subr.mxu0 0.0
    %1997 = vmatpush1.msra.mxu0 0.0
    %1998 = vmatprep.subr.mxu0 0.0
    %1999 = vmatpush1.msra.mxu0 0.0
    %2000 = vmatprep.subr.mxu0 0.0
    %2001 = vmatpush1.msra.mxu0 0.0
    %2002 = vmatprep.subr.mxu0 0.0
    %2003 = vmatpush1.msra.mxu0 0.0
    %2004 = vmatprep.subr.mxu0 0.0
    %2005 = vmatpush1.msra.mxu0 0.0
    %2006 = vmatprep.subr.mxu0 0.0
    %2007 = vmatpush1.msra.mxu0 0.0
    %2008 = vmatprep.subr.mxu0 0.0
    %2009 = vmatpush1.msra.mxu0 0.0
    %2010 = vmatprep.subr.mxu0 0.0
    %2011 = vmatpush1.msra.mxu0 0.0
    %2012 = vmatprep.subr.mxu0 0.0
    %2013 = vmatpush1.msra.mxu0 0.0
    %2014 = vmatprep.subr.mxu0 0.0
    %2015 = vmatpush1.msra.mxu0 0.0
    %2016 = vmatprep.subr.mxu0 0.0
    %2017 = vmatpush1.msra.mxu0 0.0
    %2018 = vmatprep.subr.mxu0 0.0
    %2019 = vmatpush1.msra.mxu0 0.0
    %2020 = vmatprep.mubr.f32.mxu0 0.0
    %2021 = vmatmul.mubr.f32.gmra.mrb[0].mxu0 %v1945
    %v2022 = vpop.f32.mrb[0].mxu0
    %v2023 = vadd.f32 0.0, %v2022
    %v2024 = vpop.f32.mrb[0].mxu0
    %v2025 = vadd.f32 0.0, %v2024
    %2026 = vmatprep.mubr.f32.mxu0 0.0
    %2027 = vmatmul.mubr.f32.gmra.mrb[0].mxu0 %v1948
    %v2028 = vpop.f32.mrb[0].mxu0
    %v2029 = vadd.f32 0.0, %v2028
    %v2030 = vpop.f32.mrb[0].mxu0
    %v2031 = vadd.f32 0.0, %v2030
    %2032 = vmatprep.mubr.f32.mxu0 0.0
    %2033 = vmatmul.mubr.f32.gmra.mrb[0].mxu0 %v1951
    %v2034 = vpop.f32.mrb[0].mxu0
    %v2035 = vadd.f32 0.0, %v2034
    %v2036 = vpop.f32.mrb[0].mxu0
    %v2037 = vadd.f32 0.0, %v2036
    %2038 = vmatprep.mubr.f32.mxu0 0.0
    %2039 = vmatmul.mubr.f32.gmra.mrb[0].mxu0 %v1954
    %v2040 = vpop.f32.mrb[0].mxu0
    %v2041 = vadd.f32 0.0, %v2040
    %v2042 = vpop.f32.mrb[0].mxu0
    %v2043 = vadd.f32 0.0, %v2042
    %2044 = vdwg.mxu0
    %v2046 = vsel %vm711, %v1936, 0
    %v2049 = vsel %vm711, %v1937, 0
    %v2052 = vsel %vm711, %v1938, 0
    %v2055 = vsel %vm711, %v1939, 0
    %2057 = vmatprep.subr.mxu0 %v1716
    %2058 = vmatpush1.msra.mxu0 %v1715
    %2059 = vmatprep.subr.mxu0 %v1792
    %2060 = vmatpush1.msra.mxu0 %v1790
    %2061 = vmatprep.subr.mxu0 %v1863
    %2062 = vmatpush1.msra.mxu0 %v1861
    %2063 = vmatprep.subr.mxu0 %v1934
    %2064 = vmatpush1.msra.mxu0 %v1932
    %2065 = vmatprep.subr.mxu0 0.0
    %2066 = vmatpush1.msra.mxu0 0.0
    %2067 = vmatprep.subr.mxu0 0.0
    %2068 = vmatpush1.msra.mxu0 0.0
    %2069 = vmatprep.subr.mxu0 0.0
    %2070 = vmatpush1.msra.mxu0 0.0
    %2071 = vmatprep.subr.mxu0 0.0
    %2072 = vmatpush1.msra.mxu0 0.0
    %2073 = vmatprep.subr.mxu0 0.0
    %2074 = vmatpush1.msra.mxu0 0.0
    %2075 = vmatprep.subr.mxu0 0.0
    %2076 = vmatpush1.msra.mxu0 0.0
    %2077 = vmatprep.subr.mxu0 0.0
    %2078 = vmatpush1.msra.mxu0 0.0
    %2079 = vmatprep.subr.mxu0 0.0
    %2080 = vmatpush1.msra.mxu0 0.0
    %2081 = vmatprep.subr.mxu0 0.0
    %2082 = vmatpush1.msra.mxu0 0.0
    %2083 = vmatprep.subr.mxu0 0.0
    %2084 = vmatpush1.msra.mxu0 0.0
    %2085 = vmatprep.subr.mxu0 0.0
    %2086 = vmatpush1.msra.mxu0 0.0
    %2087 = vmatprep.subr.mxu0 0.0
    %2088 = vmatpush1.msra.mxu0 0.0
    %2089 = vmatprep.subr.mxu0 0.0
    %2090 = vmatpush1.msra.mxu0 0.0
    %2091 = vmatprep.subr.mxu0 0.0
    %2092 = vmatpush1.msra.mxu0 0.0
    %2093 = vmatprep.subr.mxu0 0.0
    %2094 = vmatpush1.msra.mxu0 0.0
    %2095 = vmatprep.subr.mxu0 0.0
    %2096 = vmatpush1.msra.mxu0 0.0
    %2097 = vmatprep.subr.mxu0 0.0
    %2098 = vmatpush1.msra.mxu0 0.0
    %2099 = vmatprep.subr.mxu0 0.0
    %2100 = vmatpush1.msra.mxu0 0.0
    %2101 = vmatprep.subr.mxu0 0.0
    %2102 = vmatpush1.msra.mxu0 0.0
    %2103 = vmatprep.subr.mxu0 0.0
    %2104 = vmatpush1.msra.mxu0 0.0
    %2105 = vmatprep.subr.mxu0 0.0
    %2106 = vmatpush1.msra.mxu0 0.0
    %2107 = vmatprep.subr.mxu0 0.0
    %2108 = vmatpush1.msra.mxu0 0.0
    %2109 = vmatprep.subr.mxu0 0.0
    %2110 = vmatpush1.msra.mxu0 0.0
    %2111 = vmatprep.subr.mxu0 0.0
    %2112 = vmatpush1.msra.mxu0 0.0
    %2113 = vmatprep.subr.mxu0 0.0
    %2114 = vmatpush1.msra.mxu0 0.0
    %2115 = vmatprep.subr.mxu0 0.0
    %2116 = vmatpush1.msra.mxu0 0.0
    %2117 = vmatprep.subr.mxu0 0.0
    %2118 = vmatpush1.msra.mxu0 0.0
    %2119 = vmatprep.subr.mxu0 0.0
    %2120 = vmatpush1.msra.mxu0 0.0
    %2121 = vmatprep.mubr.f32.mxu0 0.0
    %2122 = vmatmul.mubr.f32.gmra.mrb[0].mxu0 %v2046
    %v2123 = vpop.f32.mrb[0].mxu0
    %v2124 = vadd.f32 %v2023, %v2123
    %v2125 = vpop.f32.mrb[0].mxu0
    %v2126 = vadd.f32 %v2025, %v2125
    %2127 = vmatprep.mubr.f32.mxu0 0.0
    %2128 = vmatmul.mubr.f32.gmra.mrb[0].mxu0 %v2049
    %v2129 = vpop.f32.mrb[0].mxu0
    %v2130 = vadd.f32 %v2029, %v2129
    %v2131 = vpop.f32.mrb[0].mxu0
    %v2132 = vadd.f32 %v2031, %v2131
    %2133 = vmatprep.mubr.f32.mxu0 0.0
    %2134 = vmatmul.mubr.f32.gmra.mrb[0].mxu0 %v2052
    %v2135 = vpop.f32.mrb[0].mxu0
    %v2136 = vadd.f32 %v2035, %v2135
    %v2137 = vpop.f32.mrb[0].mxu0
    %v2138 = vadd.f32 %v2037, %v2137
    %2139 = vmatprep.mubr.f32.mxu0 0.0
    %2140 = vmatmul.mubr.f32.gmra.mrb[0].mxu0 %v2055
    %v2141 = vpop.f32.mrb[0].mxu0
    %v2142 = vadd.f32 %v2041, %v2141
    %v2143 = vpop.f32.mrb[0].mxu0
    %v2144 = vadd.f32 %v2043, %v2143
    %2145 = vdwg.mxu0
    %s2146 = scalar_lea.vmem %s9, 32
    %v2147 = vld [vmem:[%s2146] sm:$0xff]
    %v2148 = vld [vmem:[%s2146 + $0x8] sm:$0xff]
    %v2149 = vld [vmem:[%s2146 + $0x10] sm:$0xff]
    %v2150 = vld [vmem:[%s2146 + $0x18] sm:$0xff]
    %2152 = vset.pattern.permute.xlu0 0
    %2153 = vperm.xlu0 %2152, %v2147
    %v2154 = vpop.permute.xlu0 %2153
    %2157 = vset.pattern.permute.xlu0 0
    %2158 = vperm.xlu0 %2157, %v2148
    %v2159 = vpop.permute.xlu0 %2158
    %2162 = vset.pattern.permute.xlu0 0
    %2163 = vperm.xlu0 %2162, %v2149
    %v2164 = vpop.permute.xlu0 %2163
    %2167 = vset.pattern.permute.xlu0 0
    %2168 = vperm.xlu0 %2167, %v2150
    %v2169 = vpop.permute.xlu0 %2168
    %v2171 = vadd.f32 %v2124, %v2154
    %v2172 = vadd.f32 %v2126, %v2154
    %v2173 = vadd.f32 %v2130, %v2159
    %v2174 = vadd.f32 %v2132, %v2159
    %v2175 = vadd.f32 %v2136, %v2164
    %v2176 = vadd.f32 %v2138, %v2164
    %v2177 = vadd.f32 %v2142, %v2169
    %v2178 = vadd.f32 %v2144, %v2169
    %v2179 = vmax.f32 %v2171, 0.0
    %v2180 = vmax.f32 %v2172, 0.0
    %v2181 = vmax.f32 %v2173, 0.0
    %v2182 = vmax.f32 %v2174, 0.0
    %v2183 = vmax.f32 %v2175, 0.0
    %v2184 = vmax.f32 %v2176, 0.0
    %v2185 = vmax.f32 %v2177, 0.0
    %v2186 = vmax.f32 %v2178, 0.0
    %2187 = vmatprep.subr.mxu0 %v67
    %2188 = vmatpush1.msra.mxu0 %v66
    %2189 = vmatprep.subr.mxu0 %v69
    %2190 = vmatpush1.msra.mxu0 %v68
    %2191 = vmatprep.subr.mxu0 %v71
    %2192 = vmatpush1.msra.mxu0 %v70
    %2193 = vmatprep.subr.mxu0 %v73
    %2194 = vmatpush1.msra.mxu0 %v72
    %2195 = vmatprep.subr.mxu0 %v75
    %2196 = vmatpush1.msra.mxu0 %v74
    %2197 = vmatprep.subr.mxu0 %v77
    %2198 = vmatpush1.msra.mxu0 %v76
    %2199 = vmatprep.subr.mxu0 %v79
    %2200 = vmatpush1.msra.mxu0 %v78
    %2201 = vmatprep.subr.mxu0 %v81
    %2202 = vmatpush1.msra.mxu0 %v80
    %2203 = vmatprep.subr.mxu0 %v83
    %2204 = vmatpush1.msra.mxu0 %v82
    %2205 = vmatprep.subr.mxu0 %v85
    %2206 = vmatpush1.msra.mxu0 %v84
    %2207 = vmatprep.subr.mxu0 %v87
    %2208 = vmatpush1.msra.mxu0 %v86
    %2209 = vmatprep.subr.mxu0 %v89
    %2210 = vmatpush1.msra.mxu0 %v88
    %2211 = vmatprep.subr.mxu0 %v91
    %2212 = vmatpush1.msra.mxu0 %v90
    %2213 = vmatprep.subr.mxu0 %v93
    %2214 = vmatpush1.msra.mxu0 %v92
    %2215 = vmatprep.subr.mxu0 %v95
    %2216 = vmatpush1.msra.mxu0 %v94
    %2217 = vmatprep.subr.mxu0 %v97
    %2218 = vmatpush1.msra.mxu0 %v96
    %2219 = vmatprep.subr.mxu0 %v99
    %2220 = vmatpush1.msra.mxu0 %v98
    %2221 = vmatprep.subr.mxu0 %v101
    %2222 = vmatpush1.msra.mxu0 %v100
    %2223 = vmatprep.subr.mxu0 %v103
    %2224 = vmatpush1.msra.mxu0 %v102
    %2225 = vmatprep.subr.mxu0 %v105
    %2226 = vmatpush1.msra.mxu0 %v104
    %2227 = vmatprep.subr.mxu0 %v107
    %2228 = vmatpush1.msra.mxu0 %v106
    %2229 = vmatprep.subr.mxu0 %v109
    %2230 = vmatpush1.msra.mxu0 %v108
    %2231 = vmatprep.subr.mxu0 %v111
    %2232 = vmatpush1.msra.mxu0 %v110
    %2233 = vmatprep.subr.mxu0 %v113
    %2234 = vmatpush1.msra.mxu0 %v112
    %2235 = vmatprep.subr.mxu0 %v115
    %2236 = vmatpush1.msra.mxu0 %v114
    %2237 = vmatprep.subr.mxu0 %v117
    %2238 = vmatpush1.msra.mxu0 %v116
    %2239 = vmatprep.subr.mxu0 %v119
    %2240 = vmatpush1.msra.mxu0 %v118
    %2241 = vmatprep.subr.mxu0 %v121
    %2242 = vmatpush1.msra.mxu0 %v120
    %2243 = vmatprep.subr.mxu0 %v123
    %2244 = vmatpush1.msra.mxu0 %v122
    %2245 = vmatprep.subr.mxu0 %v125
    %2246 = vmatpush1.msra.mxu0 %v124
    %2247 = vmatprep.subr.mxu0 %v127
    %2248 = vmatpush1.msra.mxu0 %v126
    %2249 = vmatprep.subr.mxu0 %v129
    %2250 = vmatpush1.msra.mxu0 %v128
    %2251 = vmatprep.mubr.f32.mxu0 %v2182
    %2252 = vmatmul.mubr.f32.gmra.mrb[0].mxu0 %v2181
    %v2253 = vpop.f32.mrb[0].mxu0
    %v2254 = vadd.f32 0.0, %v2253
    %v2255 = vpop.f32.mrb[0].mxu0
    %v2256 = vadd.f32 0.0, %v2255
    %2257 = vdwg.mxu0
    %2258 = vmatprep.subr.mxu0 %v132
    %2259 = vmatpush1.msra.mxu0 %v131
    %2260 = vmatprep.subr.mxu0 %v134
    %2261 = vmatpush1.msra.mxu0 %v133
    %2262 = vmatprep.subr.mxu0 %v136
    %2263 = vmatpush1.msra.mxu0 %v135
    %2264 = vmatprep.subr.mxu0 %v138
    %2265 = vmatpush1.msra.mxu0 %v137
    %2266 = vmatprep.subr.mxu0 %v140
    %2267 = vmatpush1.msra.mxu0 %v139
    %2268 = vmatprep.subr.mxu0 %v142
    %2269 = vmatpush1.msra.mxu0 %v141
    %2270 = vmatprep.subr.mxu0 %v144
    %2271 = vmatpush1.msra.mxu0 %v143
    %2272 = vmatprep.subr.mxu0 %v146
    %2273 = vmatpush1.msra.mxu0 %v145
    %2274 = vmatprep.subr.mxu0 %v148
    %2275 = vmatpush1.msra.mxu0 %v147
    %2276 = vmatprep.subr.mxu0 %v150
    %2277 = vmatpush1.msra.mxu0 %v149
    %2278 = vmatprep.subr.mxu0 %v152
    %2279 = vmatpush1.msra.mxu0 %v151
    %2280 = vmatprep.subr.mxu0 %v154
    %2281 = vmatpush1.msra.mxu0 %v153
    %2282 = vmatprep.subr.mxu0 %v156
    %2283 = vmatpush1.msra.mxu0 %v155
    %2284 = vmatprep.subr.mxu0 %v158
    %2285 = vmatpush1.msra.mxu0 %v157
    %2286 = vmatprep.subr.mxu0 %v160
    %2287 = vmatpush1.msra.mxu0 %v159
    %2288 = vmatprep.subr.mxu0 %v162
    %2289 = vmatpush1.msra.mxu0 %v161
    %2290 = vmatprep.subr.mxu0 %v164
    %2291 = vmatpush1.msra.mxu0 %v163
    %2292 = vmatprep.subr.mxu0 %v166
    %2293 = vmatpush1.msra.mxu0 %v165
    %2294 = vmatprep.subr.mxu0 %v168
    %2295 = vmatpush1.msra.mxu0 %v167
    %2296 = vmatprep.subr.mxu0 %v170
    %2297 = vmatpush1.msra.mxu0 %v169
    %2298 = vmatprep.subr.mxu0 %v172
    %2299 = vmatpush1.msra.mxu0 %v171
    %2300 = vmatprep.subr.mxu0 %v174
    %2301 = vmatpush1.msra.mxu0 %v173
    %2302 = vmatprep.subr.mxu0 %v176
    %2303 = vmatpush1.msra.mxu0 %v175
    %2304 = vmatprep.subr.mxu0 %v178
    %2305 = vmatpush1.msra.mxu0 %v177
    %2306 = vmatprep.subr.mxu0 %v180
    %2307 = vmatpush1.msra.mxu0 %v179
    %2308 = vmatprep.subr.mxu0 %v182
    %2309 = vmatpush1.msra.mxu0 %v181
    %2310 = vmatprep.subr.mxu0 %v184
    %2311 = vmatpush1.msra.mxu0 %v183
    %2312 = vmatprep.subr.mxu0 %v186
    %2313 = vmatpush1.msra.mxu0 %v185
    %2314 = vmatprep.subr.mxu0 %v188
    %2315 = vmatpush1.msra.mxu0 %v187
    %2316 = vmatprep.subr.mxu0 %v190
    %2317 = vmatpush1.msra.mxu0 %v189
    %2318 = vmatprep.subr.mxu0 %v192
    %2319 = vmatpush1.msra.mxu0 %v191
    %2320 = vmatprep.subr.mxu0 %v194
    %2321 = vmatpush1.msra.mxu0 %v193
    %2322 = vmatprep.mubr.f32.mxu0 %v2184
    %2323 = vmatmul.mubr.f32.gmra.mrb[0].mxu0 %v2183
    %v2324 = vpop.f32.mrb[0].mxu0
    %v2325 = vadd.f32 0.0, %v2324
    %v2326 = vpop.f32.mrb[0].mxu0
    %v2327 = vadd.f32 0.0, %v2326
    %2328 = vdwg.mxu0
    %2329 = vmatprep.subr.mxu0 %v197
    %2330 = vmatpush1.msra.mxu0 %v196
    %2331 = vmatprep.subr.mxu0 %v199
    %2332 = vmatpush1.msra.mxu0 %v198
    %2333 = vmatprep.subr.mxu0 %v201
    %2334 = vmatpush1.msra.mxu0 %v200
    %2335 = vmatprep.subr.mxu0 %v203
    %2336 = vmatpush1.msra.mxu0 %v202
    %2337 = vmatprep.subr.mxu0 %v205
    %2338 = vmatpush1.msra.mxu0 %v204
    %2339 = vmatprep.subr.mxu0 %v207
    %2340 = vmatpush1.msra.mxu0 %v206
    %2341 = vmatprep.subr.mxu0 %v209
    %2342 = vmatpush1.msra.mxu0 %v208
    %2343 = vmatprep.subr.mxu0 %v211
    %2344 = vmatpush1.msra.mxu0 %v210
    %2345 = vmatprep.subr.mxu0 %v213
    %2346 = vmatpush1.msra.mxu0 %v212
    %2347 = vmatprep.subr.mxu0 %v215
    %2348 = vmatpush1.msra.mxu0 %v214
    %2349 = vmatprep.subr.mxu0 %v217
    %2350 = vmatpush1.msra.mxu0 %v216
    %2351 = vmatprep.subr.mxu0 %v219
    %2352 = vmatpush1.msra.mxu0 %v218
    %2353 = vmatprep.subr.mxu0 %v221
    %2354 = vmatpush1.msra.mxu0 %v220
    %2355 = vmatprep.subr.mxu0 %v223
    %2356 = vmatpush1.msra.mxu0 %v222
    %2357 = vmatprep.subr.mxu0 %v225
    %2358 = vmatpush1.msra.mxu0 %v224
    %2359 = vmatprep.subr.mxu0 %v227
    %2360 = vmatpush1.msra.mxu0 %v226
    %2361 = vmatprep.subr.mxu0 %v229
    %2362 = vmatpush1.msra.mxu0 %v228
    %2363 = vmatprep.subr.mxu0 %v231
    %2364 = vmatpush1.msra.mxu0 %v230
    %2365 = vmatprep.subr.mxu0 %v233
    %2366 = vmatpush1.msra.mxu0 %v232
    %2367 = vmatprep.subr.mxu0 %v235
    %2368 = vmatpush1.msra.mxu0 %v234
    %2369 = vmatprep.subr.mxu0 %v237
    %2370 = vmatpush1.msra.mxu0 %v236
    %2371 = vmatprep.subr.mxu0 %v239
    %2372 = vmatpush1.msra.mxu0 %v238
    %2373 = vmatprep.subr.mxu0 %v241
    %2374 = vmatpush1.msra.mxu0 %v240
    %2375 = vmatprep.subr.mxu0 %v243
    %2376 = vmatpush1.msra.mxu0 %v242
    %2377 = vmatprep.subr.mxu0 %v245
    %2378 = vmatpush1.msra.mxu0 %v244
    %2379 = vmatprep.subr.mxu0 %v247
    %2380 = vmatpush1.msra.mxu0 %v246
    %2381 = vmatprep.subr.mxu0 %v249
    %2382 = vmatpush1.msra.mxu0 %v248
    %2383 = vmatprep.subr.mxu0 %v251
    %2384 = vmatpush1.msra.mxu0 %v250
    %2385 = vmatprep.subr.mxu0 %v253
    %2386 = vmatpush1.msra.mxu0 %v252
    %2387 = vmatprep.subr.mxu0 %v255
    %2388 = vmatpush1.msra.mxu0 %v254
    %2389 = vmatprep.subr.mxu0 %v257
    %2390 = vmatpush1.msra.mxu0 %v256
    %2391 = vmatprep.subr.mxu0 %v259
    %2392 = vmatpush1.msra.mxu0 %v258
    %2393 = vmatprep.mubr.f32.mxu0 %v2186
    %2394 = vmatmul.mubr.f32.gmra.mrb[0].mxu0 %v2185
    %v2395 = vpop.f32.mrb[0].mxu0
    %v2396 = vadd.f32 0.0, %v2395
    %v2397 = vpop.f32.mrb[0].mxu0
    %v2398 = vadd.f32 0.0, %v2397
    %2399 = vdwg.mxu0
    %s2400 = scalar_lea.vmem %s10, 32
    %v2401 = vld [vmem:[%s2400] sm:$0xff]
    %v2402 = vld [vmem:[%s2400 + $0x8] sm:$0xff]
    %v2403 = vld [vmem:[%s2400 + $0x10] sm:$0xff]
    %v2404 = vld [vmem:[%s2400 + $0x18] sm:$0xff]
    %s2405 = scalar_lea.vmem %s11, 32
    %v2406 = vld [vmem:[%s2405] sm:$0xff]
    %v2407 = vld [vmem:[%s2405 + $0x8] sm:$0xff]
    %v2408 = vld [vmem:[%s2405 + $0x10] sm:$0xff]
    %v2409 = vld [vmem:[%s2405 + $0x18] sm:$0xff]
    %2411 = vset.pattern.permute.xlu0 0
    %2412 = vperm.xlu0 %2411, %v2406
    %v2413 = vpop.permute.xlu0 %2412
    %2416 = vset.pattern.permute.xlu0 0
    %2417 = vperm.xlu0 %2416, %v2407
    %v2418 = vpop.permute.xlu0 %2417
    %2421 = vset.pattern.permute.xlu0 0
    %2422 = vperm.xlu0 %2421, %v2408
    %v2423 = vpop.permute.xlu0 %2422
    %2426 = vset.pattern.permute.xlu0 0
    %2427 = vperm.xlu0 %2426, %v2409
    %v2428 = vpop.permute.xlu0 %2427
    %v2431 = vsel %vm711, %v2401, 0
    %v2434 = vsel %vm711, %v2402, 0
    %v2437 = vsel %vm711, %v2403, 0
    %v2440 = vsel %vm711, %v2404, 0
    %2442 = vmatprep.subr.mxu0 %v2180
    %2443 = vmatpush1.msra.mxu0 %v2179
    %2444 = vmatprep.subr.mxu0 %v2256
    %2445 = vmatpush1.msra.mxu0 %v2254
    %2446 = vmatprep.subr.mxu0 %v2327
    %2447 = vmatpush1.msra.mxu0 %v2325
    %2448 = vmatprep.subr.mxu0 %v2398
    %2449 = vmatpush1.msra.mxu0 %v2396
    %2450 = vmatprep.subr.mxu0 0.0
    %2451 = vmatpush1.msra.mxu0 0.0
    %2452 = vmatprep.subr.mxu0 0.0
    %2453 = vmatpush1.msra.mxu0 0.0
    %2454 = vmatprep.subr.mxu0 0.0
    %2455 = vmatpush1.msra.mxu0 0.0
    %2456 = vmatprep.subr.mxu0 0.0
    %2457 = vmatpush1.msra.mxu0 0.0
    %2458 = vmatprep.subr.mxu0 0.0
    %2459 = vmatpush1.msra.mxu0 0.0
    %2460 = vmatprep.subr.mxu0 0.0
    %2461 = vmatpush1.msra.mxu0 0.0
    %2462 = vmatprep.subr.mxu0 0.0
    %2463 = vmatpush1.msra.mxu0 0.0
    %2464 = vmatprep.subr.mxu0 0.0
    %2465 = vmatpush1.msra.mxu0 0.0
    %2466 = vmatprep.subr.mxu0 0.0
    %2467 = vmatpush1.msra.mxu0 0.0
    %2468 = vmatprep.subr.mxu0 0.0
    %2469 = vmatpush1.msra.mxu0 0.0
    %2470 = vmatprep.subr.mxu0 0.0
    %2471 = vmatpush1.msra.mxu0 0.0
    %2472 = vmatprep.subr.mxu0 0.0
    %2473 = vmatpush1.msra.mxu0 0.0
    %2474 = vmatprep.subr.mxu0 0.0
    %2475 = vmatpush1.msra.mxu0 0.0
    %2476 = vmatprep.subr.mxu0 0.0
    %2477 = vmatpush1.msra.mxu0 0.0
    %2478 = vmatprep.subr.mxu0 0.0
    %2479 = vmatpush1.msra.mxu0 0.0
    %2480 = vmatprep.subr.mxu0 0.0
    %2481 = vmatpush1.msra.mxu0 0.0
    %2482 = vmatprep.subr.mxu0 0.0
    %2483 = vmatpush1.msra.mxu0 0.0
    %2484 = vmatprep.subr.mxu0 0.0
    %2485 = vmatpush1.msra.mxu0 0.0
    %2486 = vmatprep.subr.mxu0 0.0
    %2487 = vmatpush1.msra.mxu0 0.0
    %2488 = vmatprep.subr.mxu0 0.0
    %2489 = vmatpush1.msra.mxu0 0.0
    %2490 = vmatprep.subr.mxu0 0.0
    %2491 = vmatpush1.msra.mxu0 0.0
    %2492 = vmatprep.subr.mxu0 0.0
    %2493 = vmatpush1.msra.mxu0 0.0
    %2494 = vmatprep.subr.mxu0 0.0
    %2495 = vmatpush1.msra.mxu0 0.0
    %2496 = vmatprep.subr.mxu0 0.0
    %2497 = vmatpush1.msra.mxu0 0.0
    %2498 = vmatprep.subr.mxu0 0.0
    %2499 = vmatpush1.msra.mxu0 0.0
    %2500 = vmatprep.subr.mxu0 0.0
    %2501 = vmatpush1.msra.mxu0 0.0
    %2502 = vmatprep.subr.mxu0 0.0
    %2503 = vmatpush1.msra.mxu0 0.0
    %2504 = vmatprep.subr.mxu0 0.0
    %2505 = vmatpush1.msra.mxu0 0.0
    %2506 = vmatprep.mubr.f32.mxu0 0.0
    %2507 = vmatmul.mubr.f32.gmra.mrb[0].mxu0 %v2431
    %v2508 = vpop.f32.mrb[0].mxu0
    %v2509 = vadd.f32 %v2413, %v2508
    %v2510 = vpop.f32.mrb[0].mxu0
    %v2511 = vadd.f32 %v2413, %v2510
    %2512 = vmatprep.mubr.f32.mxu0 0.0
    %2513 = vmatmul.mubr.f32.gmra.mrb[0].mxu0 %v2434
    %v2514 = vpop.f32.mrb[0].mxu0
    %v2515 = vadd.f32 %v2418, %v2514
    %v2516 = vpop.f32.mrb[0].mxu0
    %v2517 = vadd.f32 %v2418, %v2516
    %2518 = vmatprep.mubr.f32.mxu0 0.0
    %2519 = vmatmul.mubr.f32.gmra.mrb[0].mxu0 %v2437
    %v2520 = vpop.f32.mrb[0].mxu0
    %v2521 = vadd.f32 %v2423, %v2520
    %v2522 = vpop.f32.mrb[0].mxu0
    %v2523 = vadd.f32 %v2423, %v2522
    %2524 = vmatprep.mubr.f32.mxu0 0.0
    %2525 = vmatmul.mubr.f32.gmra.mrb[0].mxu0 %v2440
    %v2526 = vpop.f32.mrb[0].mxu0
    %v2527 = vadd.f32 %v2428, %v2526
    %v2528 = vpop.f32.mrb[0].mxu0
    %v2529 = vadd.f32 %v2428, %v2528
    %2530 = vdwg.mxu0
    %v2531 = vmax.f32 %v2509, 0.0
    %v2532 = vmax.f32 %v2511, 0.0
    %v2533 = vmax.f32 %v2515, 0.0
    %v2534 = vmax.f32 %v2517, 0.0
    %v2535 = vmax.f32 %v2521, 0.0
    %v2536 = vmax.f32 %v2523, 0.0
    %v2537 = vmax.f32 %v2527, 0.0
    %v2538 = vmax.f32 %v2529, 0.0
    %2539 = vmatprep.subr.mxu0 %v67
    %2540 = vmatpush1.msra.mxu0 %v66
    %2541 = vmatprep.subr.mxu0 %v69
    %2542 = vmatpush1.msra.mxu0 %v68
    %2543 = vmatprep.subr.mxu0 %v71
    %2544 = vmatpush1.msra.mxu0 %v70
    %2545 = vmatprep.subr.mxu0 %v73
    %2546 = vmatpush1.msra.mxu0 %v72
    %2547 = vmatprep.subr.mxu0 %v75
    %2548 = vmatpush1.msra.mxu0 %v74
    %2549 = vmatprep.subr.mxu0 %v77
    %2550 = vmatpush1.msra.mxu0 %v76
    %2551 = vmatprep.subr.mxu0 %v79
    %2552 = vmatpush1.msra.mxu0 %v78
    %2553 = vmatprep.subr.mxu0 %v81
    %2554 = vmatpush1.msra.mxu0 %v80
    %2555 = vmatprep.subr.mxu0 %v83
    %2556 = vmatpush1.msra.mxu0 %v82
    %2557 = vmatprep.subr.mxu0 %v85
    %2558 = vmatpush1.msra.mxu0 %v84
    %2559 = vmatprep.subr.mxu0 %v87
    %2560 = vmatpush1.msra.mxu0 %v86
    %2561 = vmatprep.subr.mxu0 %v89
    %2562 = vmatpush1.msra.mxu0 %v88
    %2563 = vmatprep.subr.mxu0 %v91
    %2564 = vmatpush1.msra.mxu0 %v90
    %2565 = vmatprep.subr.mxu0 %v93
    %2566 = vmatpush1.msra.mxu0 %v92
    %2567 = vmatprep.subr.mxu0 %v95
    %2568 = vmatpush1.msra.mxu0 %v94
    %2569 = vmatprep.subr.mxu0 %v97
    %2570 = vmatpush1.msra.mxu0 %v96
    %2571 = vmatprep.subr.mxu0 %v99
    %2572 = vmatpush1.msra.mxu0 %v98
    %2573 = vmatprep.subr.mxu0 %v101
    %2574 = vmatpush1.msra.mxu0 %v100
    %2575 = vmatprep.subr.mxu0 %v103
    %2576 = vmatpush1.msra.mxu0 %v102
    %2577 = vmatprep.subr.mxu0 %v105
    %2578 = vmatpush1.msra.mxu0 %v104
    %2579 = vmatprep.subr.mxu0 %v107
    %2580 = vmatpush1.msra.mxu0 %v106
    %2581 = vmatprep.subr.mxu0 %v109
    %2582 = vmatpush1.msra.mxu0 %v108
    %2583 = vmatprep.subr.mxu0 %v111
    %2584 = vmatpush1.msra.mxu0 %v110
    %2585 = vmatprep.subr.mxu0 %v113
    %2586 = vmatpush1.msra.mxu0 %v112
    %2587 = vmatprep.subr.mxu0 %v115
    %2588 = vmatpush1.msra.mxu0 %v114
    %2589 = vmatprep.subr.mxu0 %v117
    %2590 = vmatpush1.msra.mxu0 %v116
    %2591 = vmatprep.subr.mxu0 %v119
    %2592 = vmatpush1.msra.mxu0 %v118
    %2593 = vmatprep.subr.mxu0 %v121
    %2594 = vmatpush1.msra.mxu0 %v120
    %2595 = vmatprep.subr.mxu0 %v123
    %2596 = vmatpush1.msra.mxu0 %v122
    %2597 = vmatprep.subr.mxu0 %v125
    %2598 = vmatpush1.msra.mxu0 %v124
    %2599 = vmatprep.subr.mxu0 %v127
    %2600 = vmatpush1.msra.mxu0 %v126
    %2601 = vmatprep.subr.mxu0 %v129
    %2602 = vmatpush1.msra.mxu0 %v128
    %2603 = vmatprep.mubr.f32.mxu0 %v2534
    %2604 = vmatmul.mubr.f32.gmra.mrb[0].mxu0 %v2533
    %v2605 = vpop.f32.mrb[0].mxu0
    %v2606 = vadd.f32 0.0, %v2605
    %v2607 = vpop.f32.mrb[0].mxu0
    %v2608 = vadd.f32 0.0, %v2607
    %2609 = vdwg.mxu0
    %2610 = vmatprep.subr.mxu0 %v132
    %2611 = vmatpush1.msra.mxu0 %v131
    %2612 = vmatprep.subr.mxu0 %v134
    %2613 = vmatpush1.msra.mxu0 %v133
    %2614 = vmatprep.subr.mxu0 %v136
    %2615 = vmatpush1.msra.mxu0 %v135
    %2616 = vmatprep.subr.mxu0 %v138
    %2617 = vmatpush1.msra.mxu0 %v137
    %2618 = vmatprep.subr.mxu0 %v140
    %2619 = vmatpush1.msra.mxu0 %v139
    %2620 = vmatprep.subr.mxu0 %v142
    %2621 = vmatpush1.msra.mxu0 %v141
    %2622 = vmatprep.subr.mxu0 %v144
    %2623 = vmatpush1.msra.mxu0 %v143
    %2624 = vmatprep.subr.mxu0 %v146
    %2625 = vmatpush1.msra.mxu0 %v145
    %2626 = vmatprep.subr.mxu0 %v148
    %2627 = vmatpush1.msra.mxu0 %v147
    %2628 = vmatprep.subr.mxu0 %v150
    %2629 = vmatpush1.msra.mxu0 %v149
    %2630 = vmatprep.subr.mxu0 %v152
    %2631 = vmatpush1.msra.mxu0 %v151
    %2632 = vmatprep.subr.mxu0 %v154
    %2633 = vmatpush1.msra.mxu0 %v153
    %2634 = vmatprep.subr.mxu0 %v156
    %2635 = vmatpush1.msra.mxu0 %v155
    %2636 = vmatprep.subr.mxu0 %v158
    %2637 = vmatpush1.msra.mxu0 %v157
    %2638 = vmatprep.subr.mxu0 %v160
    %2639 = vmatpush1.msra.mxu0 %v159
    %2640 = vmatprep.subr.mxu0 %v162
    %2641 = vmatpush1.msra.mxu0 %v161
    %2642 = vmatprep.subr.mxu0 %v164
    %2643 = vmatpush1.msra.mxu0 %v163
    %2644 = vmatprep.subr.mxu0 %v166
    %2645 = vmatpush1.msra.mxu0 %v165
    %2646 = vmatprep.subr.mxu0 %v168
    %2647 = vmatpush1.msra.mxu0 %v167
    %2648 = vmatprep.subr.mxu0 %v170
    %2649 = vmatpush1.msra.mxu0 %v169
    %2650 = vmatprep.subr.mxu0 %v172
    %2651 = vmatpush1.msra.mxu0 %v171
    %2652 = vmatprep.subr.mxu0 %v174
    %2653 = vmatpush1.msra.mxu0 %v173
    %2654 = vmatprep.subr.mxu0 %v176
    %2655 = vmatpush1.msra.mxu0 %v175
    %2656 = vmatprep.subr.mxu0 %v178
    %2657 = vmatpush1.msra.mxu0 %v177
    %2658 = vmatprep.subr.mxu0 %v180
    %2659 = vmatpush1.msra.mxu0 %v179
    %2660 = vmatprep.subr.mxu0 %v182
    %2661 = vmatpush1.msra.mxu0 %v181
    %2662 = vmatprep.subr.mxu0 %v184
    %2663 = vmatpush1.msra.mxu0 %v183
    %2664 = vmatprep.subr.mxu0 %v186
    %2665 = vmatpush1.msra.mxu0 %v185
    %2666 = vmatprep.subr.mxu0 %v188
    %2667 = vmatpush1.msra.mxu0 %v187
    %2668 = vmatprep.subr.mxu0 %v190
    %2669 = vmatpush1.msra.mxu0 %v189
    %2670 = vmatprep.subr.mxu0 %v192
    %2671 = vmatpush1.msra.mxu0 %v191
    %2672 = vmatprep.subr.mxu0 %v194
    %2673 = vmatpush1.msra.mxu0 %v193
    %2674 = vmatprep.mubr.f32.mxu0 %v2536
    %2675 = vmatmul.mubr.f32.gmra.mrb[0].mxu0 %v2535
    %v2676 = vpop.f32.mrb[0].mxu0
    %v2677 = vadd.f32 0.0, %v2676
    %v2678 = vpop.f32.mrb[0].mxu0
    %v2679 = vadd.f32 0.0, %v2678
    %2680 = vdwg.mxu0
    %2681 = vmatprep.subr.mxu0 %v197
    %2682 = vmatpush1.msra.mxu0 %v196
    %2683 = vmatprep.subr.mxu0 %v199
    %2684 = vmatpush1.msra.mxu0 %v198
    %2685 = vmatprep.subr.mxu0 %v201
    %2686 = vmatpush1.msra.mxu0 %v200
    %2687 = vmatprep.subr.mxu0 %v203
    %2688 = vmatpush1.msra.mxu0 %v202
    %2689 = vmatprep.subr.mxu0 %v205
    %2690 = vmatpush1.msra.mxu0 %v204
    %2691 = vmatprep.subr.mxu0 %v207
    %2692 = vmatpush1.msra.mxu0 %v206
    %2693 = vmatprep.subr.mxu0 %v209
    %2694 = vmatpush1.msra.mxu0 %v208
    %2695 = vmatprep.subr.mxu0 %v211
    %2696 = vmatpush1.msra.mxu0 %v210
    %2697 = vmatprep.subr.mxu0 %v213
    %2698 = vmatpush1.msra.mxu0 %v212
    %2699 = vmatprep.subr.mxu0 %v215
    %2700 = vmatpush1.msra.mxu0 %v214
    %2701 = vmatprep.subr.mxu0 %v217
    %2702 = vmatpush1.msra.mxu0 %v216
    %2703 = vmatprep.subr.mxu0 %v219
    %2704 = vmatpush1.msra.mxu0 %v218
    %2705 = vmatprep.subr.mxu0 %v221
    %2706 = vmatpush1.msra.mxu0 %v220
    %2707 = vmatprep.subr.mxu0 %v223
    %2708 = vmatpush1.msra.mxu0 %v222
    %2709 = vmatprep.subr.mxu0 %v225
    %2710 = vmatpush1.msra.mxu0 %v224
    %2711 = vmatprep.subr.mxu0 %v227
    %2712 = vmatpush1.msra.mxu0 %v226
    %2713 = vmatprep.subr.mxu0 %v229
    %2714 = vmatpush1.msra.mxu0 %v228
    %2715 = vmatprep.subr.mxu0 %v231
    %2716 = vmatpush1.msra.mxu0 %v230
    %2717 = vmatprep.subr.mxu0 %v233
    %2718 = vmatpush1.msra.mxu0 %v232
    %2719 = vmatprep.subr.mxu0 %v235
    %2720 = vmatpush1.msra.mxu0 %v234
    %2721 = vmatprep.subr.mxu0 %v237
    %2722 = vmatpush1.msra.mxu0 %v236
    %2723 = vmatprep.subr.mxu0 %v239
    %2724 = vmatpush1.msra.mxu0 %v238
    %2725 = vmatprep.subr.mxu0 %v241
    %2726 = vmatpush1.msra.mxu0 %v240
    %2727 = vmatprep.subr.mxu0 %v243
    %2728 = vmatpush1.msra.mxu0 %v242
    %2729 = vmatprep.subr.mxu0 %v245
    %2730 = vmatpush1.msra.mxu0 %v244
    %2731 = vmatprep.subr.mxu0 %v247
    %2732 = vmatpush1.msra.mxu0 %v246
    %2733 = vmatprep.subr.mxu0 %v249
    %2734 = vmatpush1.msra.mxu0 %v248
    %2735 = vmatprep.subr.mxu0 %v251
    %2736 = vmatpush1.msra.mxu0 %v250
    %2737 = vmatprep.subr.mxu0 %v253
    %2738 = vmatpush1.msra.mxu0 %v252
    %2739 = vmatprep.subr.mxu0 %v255
    %2740 = vmatpush1.msra.mxu0 %v254
    %2741 = vmatprep.subr.mxu0 %v257
    %2742 = vmatpush1.msra.mxu0 %v256
    %2743 = vmatprep.subr.mxu0 %v259
    %2744 = vmatpush1.msra.mxu0 %v258
    %2745 = vmatprep.mubr.f32.mxu0 %v2538
    %2746 = vmatmul.mubr.f32.gmra.mrb[0].mxu0 %v2537
    %v2747 = vpop.f32.mrb[0].mxu0
    %v2748 = vadd.f32 0.0, %v2747
    %v2749 = vpop.f32.mrb[0].mxu0
    %v2750 = vadd.f32 0.0, %v2749
    %2751 = vdwg.mxu0
    %2752 = vmatprep.subr.mxu0 %v261
    %2753 = vmatpush1.msra.mxu0 %v260
    %2754 = vmatprep.subr.mxu0 %v263
    %2755 = vmatpush1.msra.mxu0 %v262
    %2756 = vmatprep.subr.mxu0 %v265
    %2757 = vmatpush1.msra.mxu0 %v264
    %2758 = vmatprep.subr.mxu0 %v267
    %2759 = vmatpush1.msra.mxu0 %v266
    %2760 = vmatprep.subr.mxu0 %v269
    %2761 = vmatpush1.msra.mxu0 %v268
    %2762 = vmatprep.subr.mxu0 %v271
    %2763 = vmatpush1.msra.mxu0 %v270
    %2764 = vmatprep.subr.mxu0 %v273
    %2765 = vmatpush1.msra.mxu0 %v272
    %2766 = vmatprep.subr.mxu0 %v275
    %2767 = vmatpush1.msra.mxu0 %v274
    %2768 = vmatprep.subr.mxu0 %v277
    %2769 = vmatpush1.msra.mxu0 %v276
    %2770 = vmatprep.subr.mxu0 %v279
    %2771 = vmatpush1.msra.mxu0 %v278
    %2772 = vmatprep.subr.mxu0 %v281
    %2773 = vmatpush1.msra.mxu0 %v280
    %2774 = vmatprep.subr.mxu0 %v283
    %2775 = vmatpush1.msra.mxu0 %v282
    %2776 = vmatprep.subr.mxu0 %v285
    %2777 = vmatpush1.msra.mxu0 %v284
    %2778 = vmatprep.subr.mxu0 %v287
    %2779 = vmatpush1.msra.mxu0 %v286
    %2780 = vmatprep.subr.mxu0 %v289
    %2781 = vmatpush1.msra.mxu0 %v288
    %2782 = vmatprep.subr.mxu0 %v291
    %2783 = vmatpush1.msra.mxu0 %v290
    %2784 = vmatprep.subr.mxu0 %v293
    %2785 = vmatpush1.msra.mxu0 %v292
    %2786 = vmatprep.subr.mxu0 %v295
    %2787 = vmatpush1.msra.mxu0 %v294
    %2788 = vmatprep.subr.mxu0 %v297
    %2789 = vmatpush1.msra.mxu0 %v296
    %2790 = vmatprep.subr.mxu0 %v299
    %2791 = vmatpush1.msra.mxu0 %v298
    %2792 = vmatprep.subr.mxu0 %v301
    %2793 = vmatpush1.msra.mxu0 %v300
    %2794 = vmatprep.subr.mxu0 %v303
    %2795 = vmatpush1.msra.mxu0 %v302
    %2796 = vmatprep.subr.mxu0 %v305
    %2797 = vmatpush1.msra.mxu0 %v304
    %2798 = vmatprep.subr.mxu0 %v307
    %2799 = vmatpush1.msra.mxu0 %v306
    %2800 = vmatprep.subr.mxu0 %v309
    %2801 = vmatpush1.msra.mxu0 %v308
    %2802 = vmatprep.subr.mxu0 %v311
    %2803 = vmatpush1.msra.mxu0 %v310
    %2804 = vmatprep.subr.mxu0 %v313
    %2805 = vmatpush1.msra.mxu0 %v312
    %2806 = vmatprep.subr.mxu0 %v315
    %2807 = vmatpush1.msra.mxu0 %v314
    %2808 = vmatprep.subr.mxu0 %v317
    %2809 = vmatpush1.msra.mxu0 %v316
    %2810 = vmatprep.subr.mxu0 %v319
    %2811 = vmatpush1.msra.mxu0 %v318
    %2812 = vmatprep.subr.mxu0 %v321
    %2813 = vmatpush1.msra.mxu0 %v320
    %2814 = vmatprep.subr.mxu0 %v323
    %2815 = vmatpush1.msra.mxu0 %v322
    %2816 = vmatprep.mubr.f32.mxu0 %v2532
    %2817 = vmatmul.mubr.f32.gmra.mrb[0].mxu0 %v2531
    %v2818 = vpop.f32.mrb[0].mxu0
    %v2819 = vadd.f32 0.0, %v2818
    %v2820 = vpop.f32.mrb[0].mxu0
    %v2821 = vadd.f32 0.0, %v2820
    %2822 = vmatprep.mubr.f32.mxu0 %v2608
    %2823 = vmatmul.mubr.f32.gmra.mrb[0].mxu0 %v2606
    %v2824 = vpop.f32.mrb[0].mxu0
    %v2825 = vadd.f32 0.0, %v2824
    %v2826 = vpop.f32.mrb[0].mxu0
    %v2827 = vadd.f32 0.0, %v2826
    %2828 = vmatprep.mubr.f32.mxu0 %v2679
    %2829 = vmatmul.mubr.f32.gmra.mrb[0].mxu0 %v2677
    %v2830 = vpop.f32.mrb[0].mxu0
    %v2831 = vadd.f32 0.0, %v2830
    %v2832 = vpop.f32.mrb[0].mxu0
    %v2833 = vadd.f32 0.0, %v2832
    %2834 = vmatprep.mubr.f32.mxu0 %v2750
    %2835 = vmatmul.mubr.f32.gmra.mrb[0].mxu0 %v2748
    %v2836 = vpop.f32.mrb[0].mxu0
    %v2837 = vadd.f32 0.0, %v2836
    %v2838 = vpop.f32.mrb[0].mxu0
    %v2839 = vadd.f32 0.0, %v2838
    %2840 = vdwg.mxu0
    %v2841 = vld [vmem:[%s13] sm:$0xff]
    %v2842 = vld [vmem:[%s13 + $0x8] sm:$0xff]
    %v2843 = vld [vmem:[%s13 + $0x10] sm:$0xff]
    %v2844 = vld [vmem:[%s13 + $0x18] sm:$0xff]
    %s2845 = scalar_lea.vmem %s14, 32
    %v2846 = vld [vmem:[%s2845] sm:$0xff]
    %v2847 = vld [vmem:[%s2845 + $0x8] sm:$0xff]
    %v2848 = vld [vmem:[%s2845 + $0x10] sm:$0xff]
    %v2849 = vld [vmem:[%s2845 + $0x18] sm:$0xff]
    %v2851 = vsel %vm711, %v2846, 0
    %v2854 = vsel %vm711, %v2847, 0
    %v2857 = vsel %vm711, %v2848, 0
    %v2860 = vsel %vm711, %v2849, 0
    %2862 = vmatprep.subr.mxu0 %v2821
    %2863 = vmatpush1.msra.mxu0 %v2819
    %2864 = vmatprep.subr.mxu0 %v2827
    %2865 = vmatpush1.msra.mxu0 %v2825
    %2866 = vmatprep.subr.mxu0 %v2833
    %2867 = vmatpush1.msra.mxu0 %v2831
    %2868 = vmatprep.subr.mxu0 %v2839
    %2869 = vmatpush1.msra.mxu0 %v2837
    %2870 = vmatprep.subr.mxu0 0.0
    %2871 = vmatpush1.msra.mxu0 0.0
    %2872 = vmatprep.subr.mxu0 0.0
    %2873 = vmatpush1.msra.mxu0 0.0
    %2874 = vmatprep.subr.mxu0 0.0
    %2875 = vmatpush1.msra.mxu0 0.0
    %2876 = vmatprep.subr.mxu0 0.0
    %2877 = vmatpush1.msra.mxu0 0.0
    %2878 = vmatprep.subr.mxu0 0.0
    %2879 = vmatpush1.msra.mxu0 0.0
    %2880 = vmatprep.subr.mxu0 0.0
    %2881 = vmatpush1.msra.mxu0 0.0
    %2882 = vmatprep.subr.mxu0 0.0
    %2883 = vmatpush1.msra.mxu0 0.0
    %2884 = vmatprep.subr.mxu0 0.0
    %2885 = vmatpush1.msra.mxu0 0.0
    %2886 = vmatprep.subr.mxu0 0.0
    %2887 = vmatpush1.msra.mxu0 0.0
    %2888 = vmatprep.subr.mxu0 0.0
    %2889 = vmatpush1.msra.mxu0 0.0
    %2890 = vmatprep.subr.mxu0 0.0
    %2891 = vmatpush1.msra.mxu0 0.0
    %2892 = vmatprep.subr.mxu0 0.0
    %2893 = vmatpush1.msra.mxu0 0.0
    %2894 = vmatprep.subr.mxu0 0.0
    %2895 = vmatpush1.msra.mxu0 0.0
    %2896 = vmatprep.subr.mxu0 0.0
    %2897 = vmatpush1.msra.mxu0 0.0
    %2898 = vmatprep.subr.mxu0 0.0
    %2899 = vmatpush1.msra.mxu0 0.0
    %2900 = vmatprep.subr.mxu0 0.0
    %2901 = vmatpush1.msra.mxu0 0.0
    %2902 = vmatprep.subr.mxu0 0.0
    %2903 = vmatpush1.msra.mxu0 0.0
    %2904 = vmatprep.subr.mxu0 0.0
    %2905 = vmatpush1.msra.mxu0 0.0
    %2906 = vmatprep.subr.mxu0 0.0
    %2907 = vmatpush1.msra.mxu0 0.0
    %2908 = vmatprep.subr.mxu0 0.0
    %2909 = vmatpush1.msra.mxu0 0.0
    %2910 = vmatprep.subr.mxu0 0.0
    %2911 = vmatpush1.msra.mxu0 0.0
    %2912 = vmatprep.subr.mxu0 0.0
    %2913 = vmatpush1.msra.mxu0 0.0
    %2914 = vmatprep.subr.mxu0 0.0
    %2915 = vmatpush1.msra.mxu0 0.0
    %2916 = vmatprep.subr.mxu0 0.0
    %2917 = vmatpush1.msra.mxu0 0.0
    %2918 = vmatprep.subr.mxu0 0.0
    %2919 = vmatpush1.msra.mxu0 0.0
    %2920 = vmatprep.subr.mxu0 0.0
    %2921 = vmatpush1.msra.mxu0 0.0
    %2922 = vmatprep.subr.mxu0 0.0
    %2923 = vmatpush1.msra.mxu0 0.0
    %2924 = vmatprep.subr.mxu0 0.0
    %2925 = vmatpush1.msra.mxu0 0.0
    %2926 = vmatprep.mubr.f32.mxu0 0.0
    %2927 = vmatmul.mubr.f32.gmra.mrb[0].mxu0 %v2851
    %v2928 = vpop.f32.mrb[0].mxu0
    %v2929 = vadd.f32 0.0, %v2928
    %v2930 = vpop.f32.mrb[0].mxu0
    %v2931 = vadd.f32 0.0, %v2930
    %2932 = vmatprep.mubr.f32.mxu0 0.0
    %2933 = vmatmul.mubr.f32.gmra.mrb[0].mxu0 %v2854
    %v2934 = vpop.f32.mrb[0].mxu0
    %v2935 = vadd.f32 0.0, %v2934
    %v2936 = vpop.f32.mrb[0].mxu0
    %v2937 = vadd.f32 0.0, %v2936
    %2938 = vmatprep.mubr.f32.mxu0 0.0
    %2939 = vmatmul.mubr.f32.gmra.mrb[0].mxu0 %v2857
    %v2940 = vpop.f32.mrb[0].mxu0
    %v2941 = vadd.f32 0.0, %v2940
    %v2942 = vpop.f32.mrb[0].mxu0
    %v2943 = vadd.f32 0.0, %v2942
    %2944 = vmatprep.mubr.f32.mxu0 0.0
    %2945 = vmatmul.mubr.f32.gmra.mrb[0].mxu0 %v2860
    %v2946 = vpop.f32.mrb[0].mxu0
    %v2947 = vadd.f32 0.0, %v2946
    %v2948 = vpop.f32.mrb[0].mxu0
    %v2949 = vadd.f32 0.0, %v2948
    %2950 = vdwg.mxu0
    %v2952 = vsel %vm711, %v2841, 0
    %v2955 = vsel %vm711, %v2842, 0
    %v2958 = vsel %vm711, %v2843, 0
    %v2961 = vsel %vm711, %v2844, 0
    %2963 = vmatprep.subr.mxu0 %v1716
    %2964 = vmatpush1.msra.mxu0 %v1715
    %2965 = vmatprep.subr.mxu0 %v1792
    %2966 = vmatpush1.msra.mxu0 %v1790
    %2967 = vmatprep.subr.mxu0 %v1863
    %2968 = vmatpush1.msra.mxu0 %v1861
    %2969 = vmatprep.subr.mxu0 %v1934
    %2970 = vmatpush1.msra.mxu0 %v1932
    %2971 = vmatprep.subr.mxu0 0.0
    %2972 = vmatpush1.msra.mxu0 0.0
    %2973 = vmatprep.subr.mxu0 0.0
    %2974 = vmatpush1.msra.mxu0 0.0
    %2975 = vmatprep.subr.mxu0 0.0
    %2976 = vmatpush1.msra.mxu0 0.0
    %2977 = vmatprep.subr.mxu0 0.0
    %2978 = vmatpush1.msra.mxu0 0.0
    %2979 = vmatprep.subr.mxu0 0.0
    %2980 = vmatpush1.msra.mxu0 0.0
    %2981 = vmatprep.subr.mxu0 0.0
    %2982 = vmatpush1.msra.mxu0 0.0
    %2983 = vmatprep.subr.mxu0 0.0
    %2984 = vmatpush1.msra.mxu0 0.0
    %2985 = vmatprep.subr.mxu0 0.0
    %2986 = vmatpush1.msra.mxu0 0.0
    %2987 = vmatprep.subr.mxu0 0.0
    %2988 = vmatpush1.msra.mxu0 0.0
    %2989 = vmatprep.subr.mxu0 0.0
    %2990 = vmatpush1.msra.mxu0 0.0
    %2991 = vmatprep.subr.mxu0 0.0
    %2992 = vmatpush1.msra.mxu0 0.0
    %2993 = vmatprep.subr.mxu0 0.0
    %2994 = vmatpush1.msra.mxu0 0.0
    %2995 = vmatprep.subr.mxu0 0.0
    %2996 = vmatpush1.msra.mxu0 0.0
    %2997 = vmatprep.subr.mxu0 0.0
    %2998 = vmatpush1.msra.mxu0 0.0
    %2999 = vmatprep.subr.mxu0 0.0
    %3000 = vmatpush1.msra.mxu0 0.0
    %3001 = vmatprep.subr.mxu0 0.0
    %3002 = vmatpush1.msra.mxu0 0.0
    %3003 = vmatprep.subr.mxu0 0.0
    %3004 = vmatpush1.msra.mxu0 0.0
    %3005 = vmatprep.subr.mxu0 0.0
    %3006 = vmatpush1.msra.mxu0 0.0
    %3007 = vmatprep.subr.mxu0 0.0
    %3008 = vmatpush1.msra.mxu0 0.0
    %3009 = vmatprep.subr.mxu0 0.0
    %3010 = vmatpush1.msra.mxu0 0.0
    %3011 = vmatprep.subr.mxu0 0.0
    %3012 = vmatpush1.msra.mxu0 0.0
    %3013 = vmatprep.subr.mxu0 0.0
    %3014 = vmatpush1.msra.mxu0 0.0
    %3015 = vmatprep.subr.mxu0 0.0
    %3016 = vmatpush1.msra.mxu0 0.0
    %3017 = vmatprep.subr.mxu0 0.0
    %3018 = vmatpush1.msra.mxu0 0.0
    %3019 = vmatprep.subr.mxu0 0.0
    %3020 = vmatpush1.msra.mxu0 0.0
    %3021 = vmatprep.subr.mxu0 0.0
    %3022 = vmatpush1.msra.mxu0 0.0
    %3023 = vmatprep.subr.mxu0 0.0
    %3024 = vmatpush1.msra.mxu0 0.0
    %3025 = vmatprep.subr.mxu0 0.0
    %3026 = vmatpush1.msra.mxu0 0.0
    %3027 = vmatprep.mubr.f32.mxu0 0.0
    %3028 = vmatmul.mubr.f32.gmra.mrb[0].mxu0 %v2952
    %v3029 = vpop.f32.mrb[0].mxu0
    %v3030 = vadd.f32 %v2929, %v3029
    %v3031 = vpop.f32.mrb[0].mxu0
    %v3032 = vadd.f32 %v2931, %v3031
    %3033 = vmatprep.mubr.f32.mxu0 0.0
    %3034 = vmatmul.mubr.f32.gmra.mrb[0].mxu0 %v2955
    %v3035 = vpop.f32.mrb[0].mxu0
    %v3036 = vadd.f32 %v2935, %v3035
    %v3037 = vpop.f32.mrb[0].mxu0
    %v3038 = vadd.f32 %v2937, %v3037
    %3039 = vmatprep.mubr.f32.mxu0 0.0
    %3040 = vmatmul.mubr.f32.gmra.mrb[0].mxu0 %v2958
    %v3041 = vpop.f32.mrb[0].mxu0
    %v3042 = vadd.f32 %v2941, %v3041
    %v3043 = vpop.f32.mrb[0].mxu0
    %v3044 = vadd.f32 %v2943, %v3043
    %3045 = vmatprep.mubr.f32.mxu0 0.0
    %3046 = vmatmul.mubr.f32.gmra.mrb[0].mxu0 %v2961
    %v3047 = vpop.f32.mrb[0].mxu0
    %v3048 = vadd.f32 %v2947, %v3047
    %v3049 = vpop.f32.mrb[0].mxu0
    %v3050 = vadd.f32 %v2949, %v3049
    %3051 = vdwg.mxu0
    %s3052 = scalar_lea.vmem %s15, 32
    %v3053 = vld [vmem:[%s3052] sm:$0xff]
    %v3054 = vld [vmem:[%s3052 + $0x8] sm:$0xff]
    %v3055 = vld [vmem:[%s3052 + $0x10] sm:$0xff]
    %v3056 = vld [vmem:[%s3052 + $0x18] sm:$0xff]
    %3058 = vset.pattern.permute.xlu0 0
    %3059 = vperm.xlu0 %3058, %v3053
    %v3060 = vpop.permute.xlu0 %3059
    %3063 = vset.pattern.permute.xlu0 0
    %3064 = vperm.xlu0 %3063, %v3054
    %v3065 = vpop.permute.xlu0 %3064
    %3068 = vset.pattern.permute.xlu0 0
    %3069 = vperm.xlu0 %3068, %v3055
    %v3070 = vpop.permute.xlu0 %3069
    %3073 = vset.pattern.permute.xlu0 0
    %3074 = vperm.xlu0 %3073, %v3056
    %v3075 = vpop.permute.xlu0 %3074
    %v3077 = vadd.f32 %v3030, %v3060
    %v3078 = vadd.f32 %v3032, %v3060
    %v3079 = vadd.f32 %v3036, %v3065
    %v3080 = vadd.f32 %v3038, %v3065
    %v3081 = vadd.f32 %v3042, %v3070
    %v3082 = vadd.f32 %v3044, %v3070
    %v3083 = vadd.f32 %v3048, %v3075
    %v3084 = vadd.f32 %v3050, %v3075
    %v3085 = vmax.f32 %v3077, 0.0
    %v3086 = vmax.f32 %v3078, 0.0
    %v3087 = vmax.f32 %v3079, 0.0
    %v3088 = vmax.f32 %v3080, 0.0
    %v3089 = vmax.f32 %v3081, 0.0
    %v3090 = vmax.f32 %v3082, 0.0
    %v3091 = vmax.f32 %v3083, 0.0
    %v3092 = vmax.f32 %v3084, 0.0
    %3093 = vmatprep.subr.mxu0 %v67
    %3094 = vmatpush1.msra.mxu0 %v66
    %3095 = vmatprep.subr.mxu0 %v69
    %3096 = vmatpush1.msra.mxu0 %v68
    %3097 = vmatprep.subr.mxu0 %v71
    %3098 = vmatpush1.msra.mxu0 %v70
    %3099 = vmatprep.subr.mxu0 %v73
    %3100 = vmatpush1.msra.mxu0 %v72
    %3101 = vmatprep.subr.mxu0 %v75
    %3102 = vmatpush1.msra.mxu0 %v74
    %3103 = vmatprep.subr.mxu0 %v77
    %3104 = vmatpush1.msra.mxu0 %v76
    %3105 = vmatprep.subr.mxu0 %v79
    %3106 = vmatpush1.msra.mxu0 %v78
    %3107 = vmatprep.subr.mxu0 %v81
    %3108 = vmatpush1.msra.mxu0 %v80
    %3109 = vmatprep.subr.mxu0 %v83
    %3110 = vmatpush1.msra.mxu0 %v82
    %3111 = vmatprep.subr.mxu0 %v85
    %3112 = vmatpush1.msra.mxu0 %v84
    %3113 = vmatprep.subr.mxu0 %v87
    %3114 = vmatpush1.msra.mxu0 %v86
    %3115 = vmatprep.subr.mxu0 %v89
    %3116 = vmatpush1.msra.mxu0 %v88
    %3117 = vmatprep.subr.mxu0 %v91
    %3118 = vmatpush1.msra.mxu0 %v90
    %3119 = vmatprep.subr.mxu0 %v93
    %3120 = vmatpush1.msra.mxu0 %v92
    %3121 = vmatprep.subr.mxu0 %v95
    %3122 = vmatpush1.msra.mxu0 %v94
    %3123 = vmatprep.subr.mxu0 %v97
    %3124 = vmatpush1.msra.mxu0 %v96
    %3125 = vmatprep.subr.mxu0 %v99
    %3126 = vmatpush1.msra.mxu0 %v98
    %3127 = vmatprep.subr.mxu0 %v101
    %3128 = vmatpush1.msra.mxu0 %v100
    %3129 = vmatprep.subr.mxu0 %v103
    %3130 = vmatpush1.msra.mxu0 %v102
    %3131 = vmatprep.subr.mxu0 %v105
    %3132 = vmatpush1.msra.mxu0 %v104
    %3133 = vmatprep.subr.mxu0 %v107
    %3134 = vmatpush1.msra.mxu0 %v106
    %3135 = vmatprep.subr.mxu0 %v109
    %3136 = vmatpush1.msra.mxu0 %v108
    %3137 = vmatprep.subr.mxu0 %v111
    %3138 = vmatpush1.msra.mxu0 %v110
    %3139 = vmatprep.subr.mxu0 %v113
    %3140 = vmatpush1.msra.mxu0 %v112
    %3141 = vmatprep.subr.mxu0 %v115
    %3142 = vmatpush1.msra.mxu0 %v114
    %3143 = vmatprep.subr.mxu0 %v117
    %3144 = vmatpush1.msra.mxu0 %v116
    %3145 = vmatprep.subr.mxu0 %v119
    %3146 = vmatpush1.msra.mxu0 %v118
    %3147 = vmatprep.subr.mxu0 %v121
    %3148 = vmatpush1.msra.mxu0 %v120
    %3149 = vmatprep.subr.mxu0 %v123
    %3150 = vmatpush1.msra.mxu0 %v122
    %3151 = vmatprep.subr.mxu0 %v125
    %3152 = vmatpush1.msra.mxu0 %v124
    %3153 = vmatprep.subr.mxu0 %v127
    %3154 = vmatpush1.msra.mxu0 %v126
    %3155 = vmatprep.subr.mxu0 %v129
    %3156 = vmatpush1.msra.mxu0 %v128
    %3157 = vmatprep.mubr.f32.mxu0 %v3088
    %3158 = vmatmul.mubr.f32.gmra.mrb[0].mxu0 %v3087
    %v3159 = vpop.f32.mrb[0].mxu0
    %v3160 = vadd.f32 0.0, %v3159
    %v3161 = vpop.f32.mrb[0].mxu0
    %v3162 = vadd.f32 0.0, %v3161
    %3163 = vdwg.mxu0
    %3164 = vmatprep.subr.mxu0 %v132
    %3165 = vmatpush1.msra.mxu0 %v131
    %3166 = vmatprep.subr.mxu0 %v134
    %3167 = vmatpush1.msra.mxu0 %v133
    %3168 = vmatprep.subr.mxu0 %v136
    %3169 = vmatpush1.msra.mxu0 %v135
    %3170 = vmatprep.subr.mxu0 %v138
    %3171 = vmatpush1.msra.mxu0 %v137
    %3172 = vmatprep.subr.mxu0 %v140
    %3173 = vmatpush1.msra.mxu0 %v139
    %3174 = vmatprep.subr.mxu0 %v142
    %3175 = vmatpush1.msra.mxu0 %v141
    %3176 = vmatprep.subr.mxu0 %v144
    %3177 = vmatpush1.msra.mxu0 %v143
    %3178 = vmatprep.subr.mxu0 %v146
    %3179 = vmatpush1.msra.mxu0 %v145
    %3180 = vmatprep.subr.mxu0 %v148
    %3181 = vmatpush1.msra.mxu0 %v147
    %3182 = vmatprep.subr.mxu0 %v150
    %3183 = vmatpush1.msra.mxu0 %v149
    %3184 = vmatprep.subr.mxu0 %v152
    %3185 = vmatpush1.msra.mxu0 %v151
    %3186 = vmatprep.subr.mxu0 %v154
    %3187 = vmatpush1.msra.mxu0 %v153
    %3188 = vmatprep.subr.mxu0 %v156
    %3189 = vmatpush1.msra.mxu0 %v155
    %3190 = vmatprep.subr.mxu0 %v158
    %3191 = vmatpush1.msra.mxu0 %v157
    %3192 = vmatprep.subr.mxu0 %v160
    %3193 = vmatpush1.msra.mxu0 %v159
    %3194 = vmatprep.subr.mxu0 %v162
    %3195 = vmatpush1.msra.mxu0 %v161
    %3196 = vmatprep.subr.mxu0 %v164
    %3197 = vmatpush1.msra.mxu0 %v163
    %3198 = vmatprep.subr.mxu0 %v166
    %3199 = vmatpush1.msra.mxu0 %v165
    %3200 = vmatprep.subr.mxu0 %v168
    %3201 = vmatpush1.msra.mxu0 %v167
    %3202 = vmatprep.subr.mxu0 %v170
    %3203 = vmatpush1.msra.mxu0 %v169
    %3204 = vmatprep.subr.mxu0 %v172
    %3205 = vmatpush1.msra.mxu0 %v171
    %3206 = vmatprep.subr.mxu0 %v174
    %3207 = vmatpush1.msra.mxu0 %v173
    %3208 = vmatprep.subr.mxu0 %v176
    %3209 = vmatpush1.msra.mxu0 %v175
    %3210 = vmatprep.subr.mxu0 %v178
    %3211 = vmatpush1.msra.mxu0 %v177
    %3212 = vmatprep.subr.mxu0 %v180
    %3213 = vmatpush1.msra.mxu0 %v179
    %3214 = vmatprep.subr.mxu0 %v182
    %3215 = vmatpush1.msra.mxu0 %v181
    %3216 = vmatprep.subr.mxu0 %v184
    %3217 = vmatpush1.msra.mxu0 %v183
    %3218 = vmatprep.subr.mxu0 %v186
    %3219 = vmatpush1.msra.mxu0 %v185
    %3220 = vmatprep.subr.mxu0 %v188
    %3221 = vmatpush1.msra.mxu0 %v187
    %3222 = vmatprep.subr.mxu0 %v190
    %3223 = vmatpush1.msra.mxu0 %v189
    %3224 = vmatprep.subr.mxu0 %v192
    %3225 = vmatpush1.msra.mxu0 %v191
    %3226 = vmatprep.subr.mxu0 %v194
    %3227 = vmatpush1.msra.mxu0 %v193
    %3228 = vmatprep.mubr.f32.mxu0 %v3090
    %3229 = vmatmul.mubr.f32.gmra.mrb[0].mxu0 %v3089
    %v3230 = vpop.f32.mrb[0].mxu0
    %v3231 = vadd.f32 0.0, %v3230
    %v3232 = vpop.f32.mrb[0].mxu0
    %v3233 = vadd.f32 0.0, %v3232
    %3234 = vdwg.mxu0
    %3235 = vmatprep.subr.mxu0 %v197
    %3236 = vmatpush1.msra.mxu0 %v196
    %3237 = vmatprep.subr.mxu0 %v199
    %3238 = vmatpush1.msra.mxu0 %v198
    %3239 = vmatprep.subr.mxu0 %v201
    %3240 = vmatpush1.msra.mxu0 %v200
    %3241 = vmatprep.subr.mxu0 %v203
    %3242 = vmatpush1.msra.mxu0 %v202
    %3243 = vmatprep.subr.mxu0 %v205
    %3244 = vmatpush1.msra.mxu0 %v204
    %3245 = vmatprep.subr.mxu0 %v207
    %3246 = vmatpush1.msra.mxu0 %v206
    %3247 = vmatprep.subr.mxu0 %v209
    %3248 = vmatpush1.msra.mxu0 %v208
    %3249 = vmatprep.subr.mxu0 %v211
    %3250 = vmatpush1.msra.mxu0 %v210
    %3251 = vmatprep.subr.mxu0 %v213
    %3252 = vmatpush1.msra.mxu0 %v212
    %3253 = vmatprep.subr.mxu0 %v215
    %3254 = vmatpush1.msra.mxu0 %v214
    %3255 = vmatprep.subr.mxu0 %v217
    %3256 = vmatpush1.msra.mxu0 %v216
    %3257 = vmatprep.subr.mxu0 %v219
    %3258 = vmatpush1.msra.mxu0 %v218
    %3259 = vmatprep.subr.mxu0 %v221
    %3260 = vmatpush1.msra.mxu0 %v220
    %3261 = vmatprep.subr.mxu0 %v223
    %3262 = vmatpush1.msra.mxu0 %v222
    %3263 = vmatprep.subr.mxu0 %v225
    %3264 = vmatpush1.msra.mxu0 %v224
    %3265 = vmatprep.subr.mxu0 %v227
    %3266 = vmatpush1.msra.mxu0 %v226
    %3267 = vmatprep.subr.mxu0 %v229
    %3268 = vmatpush1.msra.mxu0 %v228
    %3269 = vmatprep.subr.mxu0 %v231
    %3270 = vmatpush1.msra.mxu0 %v230
    %3271 = vmatprep.subr.mxu0 %v233
    %3272 = vmatpush1.msra.mxu0 %v232
    %3273 = vmatprep.subr.mxu0 %v235
    %3274 = vmatpush1.msra.mxu0 %v234
    %3275 = vmatprep.subr.mxu0 %v237
    %3276 = vmatpush1.msra.mxu0 %v236
    %3277 = vmatprep.subr.mxu0 %v239
    %3278 = vmatpush1.msra.mxu0 %v238
    %3279 = vmatprep.subr.mxu0 %v241
    %3280 = vmatpush1.msra.mxu0 %v240
    %3281 = vmatprep.subr.mxu0 %v243
    %3282 = vmatpush1.msra.mxu0 %v242
    %3283 = vmatprep.subr.mxu0 %v245
    %3284 = vmatpush1.msra.mxu0 %v244
    %3285 = vmatprep.subr.mxu0 %v247
    %3286 = vmatpush1.msra.mxu0 %v246
    %3287 = vmatprep.subr.mxu0 %v249
    %3288 = vmatpush1.msra.mxu0 %v248
    %3289 = vmatprep.subr.mxu0 %v251
    %3290 = vmatpush1.msra.mxu0 %v250
    %3291 = vmatprep.subr.mxu0 %v253
    %3292 = vmatpush1.msra.mxu0 %v252
    %3293 = vmatprep.subr.mxu0 %v255
    %3294 = vmatpush1.msra.mxu0 %v254
    %3295 = vmatprep.subr.mxu0 %v257
    %3296 = vmatpush1.msra.mxu0 %v256
    %3297 = vmatprep.subr.mxu0 %v259
    %3298 = vmatpush1.msra.mxu0 %v258
    %3299 = vmatprep.mubr.f32.mxu0 %v3092
    %3300 = vmatmul.mubr.f32.gmra.mrb[0].mxu0 %v3091
    %v3301 = vpop.f32.mrb[0].mxu0
    %v3302 = vadd.f32 0.0, %v3301
    %v3303 = vpop.f32.mrb[0].mxu0
    %v3304 = vadd.f32 0.0, %v3303
    %3305 = vdwg.mxu0
    %s3306 = scalar_lea.vmem %s16, 32
    %v3307 = vld [vmem:[%s3306] sm:$0xff]
    %v3308 = vld [vmem:[%s3306 + $0x8] sm:$0xff]
    %v3309 = vld [vmem:[%s3306 + $0x10] sm:$0xff]
    %v3310 = vld [vmem:[%s3306 + $0x18] sm:$0xff]
    %s3311 = scalar_lea.vmem %s17, 32
    %v3312 = vld [vmem:[%s3311] sm:$0xff]
    %v3313 = vld [vmem:[%s3311 + $0x8] sm:$0xff]
    %v3314 = vld [vmem:[%s3311 + $0x10] sm:$0xff]
    %v3315 = vld [vmem:[%s3311 + $0x18] sm:$0xff]
    %3317 = vset.pattern.permute.xlu0 0
    %3318 = vperm.xlu0 %3317, %v3312
    %v3319 = vpop.permute.xlu0 %3318
    %3322 = vset.pattern.permute.xlu0 0
    %3323 = vperm.xlu0 %3322, %v3313
    %v3324 = vpop.permute.xlu0 %3323
    %3327 = vset.pattern.permute.xlu0 0
    %3328 = vperm.xlu0 %3327, %v3314
    %v3329 = vpop.permute.xlu0 %3328
    %3332 = vset.pattern.permute.xlu0 0
    %3333 = vperm.xlu0 %3332, %v3315
    %v3334 = vpop.permute.xlu0 %3333
    %v3337 = vsel %vm711, %v3307, 0
    %v3340 = vsel %vm711, %v3308, 0
    %v3343 = vsel %vm711, %v3309, 0
    %v3346 = vsel %vm711, %v3310, 0
    %3348 = vmatprep.subr.mxu0 %v3086
    %3349 = vmatpush1.msra.mxu0 %v3085
    %3350 = vmatprep.subr.mxu0 %v3162
    %3351 = vmatpush1.msra.mxu0 %v3160
    %3352 = vmatprep.subr.mxu0 %v3233
    %3353 = vmatpush1.msra.mxu0 %v3231
    %3354 = vmatprep.subr.mxu0 %v3304
    %3355 = vmatpush1.msra.mxu0 %v3302
    %3356 = vmatprep.subr.mxu0 0.0
    %3357 = vmatpush1.msra.mxu0 0.0
    %3358 = vmatprep.subr.mxu0 0.0
    %3359 = vmatpush1.msra.mxu0 0.0
    %3360 = vmatprep.subr.mxu0 0.0
    %3361 = vmatpush1.msra.mxu0 0.0
    %3362 = vmatprep.subr.mxu0 0.0
    %3363 = vmatpush1.msra.mxu0 0.0
    %3364 = vmatprep.subr.mxu0 0.0
    %3365 = vmatpush1.msra.mxu0 0.0
    %3366 = vmatprep.subr.mxu0 0.0
    %3367 = vmatpush1.msra.mxu0 0.0
    %3368 = vmatprep.subr.mxu0 0.0
    %3369 = vmatpush1.msra.mxu0 0.0
    %3370 = vmatprep.subr.mxu0 0.0
    %3371 = vmatpush1.msra.mxu0 0.0
    %3372 = vmatprep.subr.mxu0 0.0
    %3373 = vmatpush1.msra.mxu0 0.0
    %3374 = vmatprep.subr.mxu0 0.0
    %3375 = vmatpush1.msra.mxu0 0.0
    %3376 = vmatprep.subr.mxu0 0.0
    %3377 = vmatpush1.msra.mxu0 0.0
    %3378 = vmatprep.subr.mxu0 0.0
    %3379 = vmatpush1.msra.mxu0 0.0
    %3380 = vmatprep.subr.mxu0 0.0
    %3381 = vmatpush1.msra.mxu0 0.0
    %3382 = vmatprep.subr.mxu0 0.0
    %3383 = vmatpush1.msra.mxu0 0.0
    %3384 = vmatprep.subr.mxu0 0.0
    %3385 = vmatpush1.msra.mxu0 0.0
    %3386 = vmatprep.subr.mxu0 0.0
    %3387 = vmatpush1.msra.mxu0 0.0
    %3388 = vmatprep.subr.mxu0 0.0
    %3389 = vmatpush1.msra.mxu0 0.0
    %3390 = vmatprep.subr.mxu0 0.0
    %3391 = vmatpush1.msra.mxu0 0.0
    %3392 = vmatprep.subr.mxu0 0.0
    %3393 = vmatpush1.msra.mxu0 0.0
    %3394 = vmatprep.subr.mxu0 0.0
    %3395 = vmatpush1.msra.mxu0 0.0
    %3396 = vmatprep.subr.mxu0 0.0
    %3397 = vmatpush1.msra.mxu0 0.0
    %3398 = vmatprep.subr.mxu0 0.0
    %3399 = vmatpush1.msra.mxu0 0.0
    %3400 = vmatprep.subr.mxu0 0.0
    %3401 = vmatpush1.msra.mxu0 0.0
    %3402 = vmatprep.subr.mxu0 0.0
    %3403 = vmatpush1.msra.mxu0 0.0
    %3404 = vmatprep.subr.mxu0 0.0
    %3405 = vmatpush1.msra.mxu0 0.0
    %3406 = vmatprep.subr.mxu0 0.0
    %3407 = vmatpush1.msra.mxu0 0.0
    %3408 = vmatprep.subr.mxu0 0.0
    %3409 = vmatpush1.msra.mxu0 0.0
    %3410 = vmatprep.subr.mxu0 0.0
    %3411 = vmatpush1.msra.mxu0 0.0
    %3412 = vmatprep.mubr.f32.mxu0 0.0
    %3413 = vmatmul.mubr.f32.gmra.mrb[0].mxu0 %v3337
    %v3414 = vpop.f32.mrb[0].mxu0
    %v3415 = vadd.f32 %v3319, %v3414
    %v3416 = vpop.f32.mrb[0].mxu0
    %v3417 = vadd.f32 %v3319, %v3416
    %3418 = vmatprep.mubr.f32.mxu0 0.0
    %3419 = vmatmul.mubr.f32.gmra.mrb[0].mxu0 %v3340
    %v3420 = vpop.f32.mrb[0].mxu0
    %v3421 = vadd.f32 %v3324, %v3420
    %v3422 = vpop.f32.mrb[0].mxu0
    %v3423 = vadd.f32 %v3324, %v3422
    %3424 = vmatprep.mubr.f32.mxu0 0.0
    %3425 = vmatmul.mubr.f32.gmra.mrb[0].mxu0 %v3343
    %v3426 = vpop.f32.mrb[0].mxu0
    %v3427 = vadd.f32 %v3329, %v3426
    %v3428 = vpop.f32.mrb[0].mxu0
    %v3429 = vadd.f32 %v3329, %v3428
    %3430 = vmatprep.mubr.f32.mxu0 0.0
    %3431 = vmatmul.mubr.f32.gmra.mrb[0].mxu0 %v3346
    %v3432 = vpop.f32.mrb[0].mxu0
    %v3433 = vadd.f32 %v3334, %v3432
    %v3434 = vpop.f32.mrb[0].mxu0
    %v3435 = vadd.f32 %v3334, %v3434
    %3436 = vdwg.mxu0
    %v3437 = vmax.f32 %v3415, 0.0
    %v3438 = vmax.f32 %v3417, 0.0
    %v3439 = vmax.f32 %v3421, 0.0
    %v3440 = vmax.f32 %v3423, 0.0
    %v3441 = vmax.f32 %v3427, 0.0
    %v3442 = vmax.f32 %v3429, 0.0
    %v3443 = vmax.f32 %v3433, 0.0
    %v3444 = vmax.f32 %v3435, 0.0
    %3445 = vmatprep.subr.mxu0 %v67
    %3446 = vmatpush1.msra.mxu0 %v66
    %3447 = vmatprep.subr.mxu0 %v69
    %3448 = vmatpush1.msra.mxu0 %v68
    %3449 = vmatprep.subr.mxu0 %v71
    %3450 = vmatpush1.msra.mxu0 %v70
    %3451 = vmatprep.subr.mxu0 %v73
    %3452 = vmatpush1.msra.mxu0 %v72
    %3453 = vmatprep.subr.mxu0 %v75
    %3454 = vmatpush1.msra.mxu0 %v74
    %3455 = vmatprep.subr.mxu0 %v77
    %3456 = vmatpush1.msra.mxu0 %v76
    %3457 = vmatprep.subr.mxu0 %v79
    %3458 = vmatpush1.msra.mxu0 %v78
    %3459 = vmatprep.subr.mxu0 %v81
    %3460 = vmatpush1.msra.mxu0 %v80
    %3461 = vmatprep.subr.mxu0 %v83
    %3462 = vmatpush1.msra.mxu0 %v82
    %3463 = vmatprep.subr.mxu0 %v85
    %3464 = vmatpush1.msra.mxu0 %v84
    %3465 = vmatprep.subr.mxu0 %v87
    %3466 = vmatpush1.msra.mxu0 %v86
    %3467 = vmatprep.subr.mxu0 %v89
    %3468 = vmatpush1.msra.mxu0 %v88
    %3469 = vmatprep.subr.mxu0 %v91
    %3470 = vmatpush1.msra.mxu0 %v90
    %3471 = vmatprep.subr.mxu0 %v93
    %3472 = vmatpush1.msra.mxu0 %v92
    %3473 = vmatprep.subr.mxu0 %v95
    %3474 = vmatpush1.msra.mxu0 %v94
    %3475 = vmatprep.subr.mxu0 %v97
    %3476 = vmatpush1.msra.mxu0 %v96
    %3477 = vmatprep.subr.mxu0 %v99
    %3478 = vmatpush1.msra.mxu0 %v98
    %3479 = vmatprep.subr.mxu0 %v101
    %3480 = vmatpush1.msra.mxu0 %v100
    %3481 = vmatprep.subr.mxu0 %v103
    %3482 = vmatpush1.msra.mxu0 %v102
    %3483 = vmatprep.subr.mxu0 %v105
    %3484 = vmatpush1.msra.mxu0 %v104
    %3485 = vmatprep.subr.mxu0 %v107
    %3486 = vmatpush1.msra.mxu0 %v106
    %3487 = vmatprep.subr.mxu0 %v109
    %3488 = vmatpush1.msra.mxu0 %v108
    %3489 = vmatprep.subr.mxu0 %v111
    %3490 = vmatpush1.msra.mxu0 %v110
    %3491 = vmatprep.subr.mxu0 %v113
    %3492 = vmatpush1.msra.mxu0 %v112
    %3493 = vmatprep.subr.mxu0 %v115
    %3494 = vmatpush1.msra.mxu0 %v114
    %3495 = vmatprep.subr.mxu0 %v117
    %3496 = vmatpush1.msra.mxu0 %v116
    %3497 = vmatprep.subr.mxu0 %v119
    %3498 = vmatpush1.msra.mxu0 %v118
    %3499 = vmatprep.subr.mxu0 %v121
    %3500 = vmatpush1.msra.mxu0 %v120
    %3501 = vmatprep.subr.mxu0 %v123
    %3502 = vmatpush1.msra.mxu0 %v122
    %3503 = vmatprep.subr.mxu0 %v125
    %3504 = vmatpush1.msra.mxu0 %v124
    %3505 = vmatprep.subr.mxu0 %v127
    %3506 = vmatpush1.msra.mxu0 %v126
    %3507 = vmatprep.subr.mxu0 %v129
    %3508 = vmatpush1.msra.mxu0 %v128
    %3509 = vmatprep.mubr.f32.mxu0 %v3440
    %3510 = vmatmul.mubr.f32.gmra.mrb[0].mxu0 %v3439
    %v3511 = vpop.f32.mrb[0].mxu0
    %v3512 = vadd.f32 0.0, %v3511
    %v3513 = vpop.f32.mrb[0].mxu0
    %v3514 = vadd.f32 0.0, %v3513
    %3515 = vdwg.mxu0
    %3516 = vmatprep.subr.mxu0 %v132
    %3517 = vmatpush1.msra.mxu0 %v131
    %3518 = vmatprep.subr.mxu0 %v134
    %3519 = vmatpush1.msra.mxu0 %v133
    %3520 = vmatprep.subr.mxu0 %v136
    %3521 = vmatpush1.msra.mxu0 %v135
    %3522 = vmatprep.subr.mxu0 %v138
    %3523 = vmatpush1.msra.mxu0 %v137
    %3524 = vmatprep.subr.mxu0 %v140
    %3525 = vmatpush1.msra.mxu0 %v139
    %3526 = vmatprep.subr.mxu0 %v142
    %3527 = vmatpush1.msra.mxu0 %v141
    %3528 = vmatprep.subr.mxu0 %v144
    %3529 = vmatpush1.msra.mxu0 %v143
    %3530 = vmatprep.subr.mxu0 %v146
    %3531 = vmatpush1.msra.mxu0 %v145
    %3532 = vmatprep.subr.mxu0 %v148
    %3533 = vmatpush1.msra.mxu0 %v147
    %3534 = vmatprep.subr.mxu0 %v150
    %3535 = vmatpush1.msra.mxu0 %v149
    %3536 = vmatprep.subr.mxu0 %v152
    %3537 = vmatpush1.msra.mxu0 %v151
    %3538 = vmatprep.subr.mxu0 %v154
    %3539 = vmatpush1.msra.mxu0 %v153
    %3540 = vmatprep.subr.mxu0 %v156
    %3541 = vmatpush1.msra.mxu0 %v155
    %3542 = vmatprep.subr.mxu0 %v158
    %3543 = vmatpush1.msra.mxu0 %v157
    %3544 = vmatprep.subr.mxu0 %v160
    %3545 = vmatpush1.msra.mxu0 %v159
    %3546 = vmatprep.subr.mxu0 %v162
    %3547 = vmatpush1.msra.mxu0 %v161
    %3548 = vmatprep.subr.mxu0 %v164
    %3549 = vmatpush1.msra.mxu0 %v163
    %3550 = vmatprep.subr.mxu0 %v166
    %3551 = vmatpush1.msra.mxu0 %v165
    %3552 = vmatprep.subr.mxu0 %v168
    %3553 = vmatpush1.msra.mxu0 %v167
    %3554 = vmatprep.subr.mxu0 %v170
    %3555 = vmatpush1.msra.mxu0 %v169
    %3556 = vmatprep.subr.mxu0 %v172
    %3557 = vmatpush1.msra.mxu0 %v171
    %3558 = vmatprep.subr.mxu0 %v174
    %3559 = vmatpush1.msra.mxu0 %v173
    %3560 = vmatprep.subr.mxu0 %v176
    %3561 = vmatpush1.msra.mxu0 %v175
    %3562 = vmatprep.subr.mxu0 %v178
    %3563 = vmatpush1.msra.mxu0 %v177
    %3564 = vmatprep.subr.mxu0 %v180
    %3565 = vmatpush1.msra.mxu0 %v179
    %3566 = vmatprep.subr.mxu0 %v182
    %3567 = vmatpush1.msra.mxu0 %v181
    %3568 = vmatprep.subr.mxu0 %v184
    %3569 = vmatpush1.msra.mxu0 %v183
    %3570 = vmatprep.subr.mxu0 %v186
    %3571 = vmatpush1.msra.mxu0 %v185
    %3572 = vmatprep.subr.mxu0 %v188
    %3573 = vmatpush1.msra.mxu0 %v187
    %3574 = vmatprep.subr.mxu0 %v190
    %3575 = vmatpush1.msra.mxu0 %v189
    %3576 = vmatprep.subr.mxu0 %v192
    %3577 = vmatpush1.msra.mxu0 %v191
    %3578 = vmatprep.subr.mxu0 %v194
    %3579 = vmatpush1.msra.mxu0 %v193
    %3580 = vmatprep.mubr.f32.mxu0 %v3442
    %3581 = vmatmul.mubr.f32.gmra.mrb[0].mxu0 %v3441
    %v3582 = vpop.f32.mrb[0].mxu0
    %v3583 = vadd.f32 0.0, %v3582
    %v3584 = vpop.f32.mrb[0].mxu0
    %v3585 = vadd.f32 0.0, %v3584
    %3586 = vdwg.mxu0
    %3587 = vmatprep.subr.mxu0 %v197
    %3588 = vmatpush1.msra.mxu0 %v196
    %3589 = vmatprep.subr.mxu0 %v199
    %3590 = vmatpush1.msra.mxu0 %v198
    %3591 = vmatprep.subr.mxu0 %v201
    %3592 = vmatpush1.msra.mxu0 %v200
    %3593 = vmatprep.subr.mxu0 %v203
    %3594 = vmatpush1.msra.mxu0 %v202
    %3595 = vmatprep.subr.mxu0 %v205
    %3596 = vmatpush1.msra.mxu0 %v204
    %3597 = vmatprep.subr.mxu0 %v207
    %3598 = vmatpush1.msra.mxu0 %v206
    %3599 = vmatprep.subr.mxu0 %v209
    %3600 = vmatpush1.msra.mxu0 %v208
    %3601 = vmatprep.subr.mxu0 %v211
    %3602 = vmatpush1.msra.mxu0 %v210
    %3603 = vmatprep.subr.mxu0 %v213
    %3604 = vmatpush1.msra.mxu0 %v212
    %3605 = vmatprep.subr.mxu0 %v215
    %3606 = vmatpush1.msra.mxu0 %v214
    %3607 = vmatprep.subr.mxu0 %v217
    %3608 = vmatpush1.msra.mxu0 %v216
    %3609 = vmatprep.subr.mxu0 %v219
    %3610 = vmatpush1.msra.mxu0 %v218
    %3611 = vmatprep.subr.mxu0 %v221
    %3612 = vmatpush1.msra.mxu0 %v220
    %3613 = vmatprep.subr.mxu0 %v223
    %3614 = vmatpush1.msra.mxu0 %v222
    %3615 = vmatprep.subr.mxu0 %v225
    %3616 = vmatpush1.msra.mxu0 %v224
    %3617 = vmatprep.subr.mxu0 %v227
    %3618 = vmatpush1.msra.mxu0 %v226
    %3619 = vmatprep.subr.mxu0 %v229
    %3620 = vmatpush1.msra.mxu0 %v228
    %3621 = vmatprep.subr.mxu0 %v231
    %3622 = vmatpush1.msra.mxu0 %v230
    %3623 = vmatprep.subr.mxu0 %v233
    %3624 = vmatpush1.msra.mxu0 %v232
    %3625 = vmatprep.subr.mxu0 %v235
    %3626 = vmatpush1.msra.mxu0 %v234
    %3627 = vmatprep.subr.mxu0 %v237
    %3628 = vmatpush1.msra.mxu0 %v236
    %3629 = vmatprep.subr.mxu0 %v239
    %3630 = vmatpush1.msra.mxu0 %v238
    %3631 = vmatprep.subr.mxu0 %v241
    %3632 = vmatpush1.msra.mxu0 %v240
    %3633 = vmatprep.subr.mxu0 %v243
    %3634 = vmatpush1.msra.mxu0 %v242
    %3635 = vmatprep.subr.mxu0 %v245
    %3636 = vmatpush1.msra.mxu0 %v244
    %3637 = vmatprep.subr.mxu0 %v247
    %3638 = vmatpush1.msra.mxu0 %v246
    %3639 = vmatprep.subr.mxu0 %v249
    %3640 = vmatpush1.msra.mxu0 %v248
    %3641 = vmatprep.subr.mxu0 %v251
    %3642 = vmatpush1.msra.mxu0 %v250
    %3643 = vmatprep.subr.mxu0 %v253
    %3644 = vmatpush1.msra.mxu0 %v252
    %3645 = vmatprep.subr.mxu0 %v255
    %3646 = vmatpush1.msra.mxu0 %v254
    %3647 = vmatprep.subr.mxu0 %v257
    %3648 = vmatpush1.msra.mxu0 %v256
    %3649 = vmatprep.subr.mxu0 %v259
    %3650 = vmatpush1.msra.mxu0 %v258
    %3651 = vmatprep.mubr.f32.mxu0 %v3444
    %3652 = vmatmul.mubr.f32.gmra.mrb[0].mxu0 %v3443
    %v3653 = vpop.f32.mrb[0].mxu0
    %v3654 = vadd.f32 0.0, %v3653
    %v3655 = vpop.f32.mrb[0].mxu0
    %v3656 = vadd.f32 0.0, %v3655
    %3657 = vdwg.mxu0
    %s3658 = scalar_lea.vmem %s7, 32
    %v3659 = vld [vmem:[%s3658] sm:$0xff]
    %v3660 = vld [vmem:[%s3658 + $0x8] sm:$0xff]
    %v3661 = vld [vmem:[%s3658 + $0x10] sm:$0xff]
    %v3662 = vld [vmem:[%s3658 + $0x18] sm:$0xff]
    %s3663 = scalar_lea.vmem %s8, 32
    %v3664 = vld [vmem:[%s3663] sm:$0xff]
    %v3665 = vld [vmem:[%s3663 + $0x8] sm:$0xff]
    %v3666 = vld [vmem:[%s3663 + $0x10] sm:$0xff]
    %v3667 = vld [vmem:[%s3663 + $0x18] sm:$0xff]
    %v3669 = vsel %vm355, %v3664, 0
    %v3672 = vsel %vm355, %v3665, 0
    %v3675 = vsel %vm355, %v3666, 0
    %v3678 = vsel %vm355, %v3667, 0
    %3680 = vmatprep.subr.mxu0 %v371
    %3681 = vmatpush1.msra.mxu0 %v369
    %3682 = vmatprep.subr.mxu0 0.0
    %3683 = vmatpush1.msra.mxu0 0.0
    %3684 = vmatprep.subr.mxu0 0.0
    %3685 = vmatpush1.msra.mxu0 0.0
    %3686 = vmatprep.subr.mxu0 0.0
    %3687 = vmatpush1.msra.mxu0 0.0
    %3688 = vmatprep.subr.mxu0 0.0
    %3689 = vmatpush1.msra.mxu0 0.0
    %3690 = vmatprep.subr.mxu0 0.0
    %3691 = vmatpush1.msra.mxu0 0.0
    %3692 = vmatprep.subr.mxu0 0.0
    %3693 = vmatpush1.msra.mxu0 0.0
    %3694 = vmatprep.subr.mxu0 0.0
    %3695 = vmatpush1.msra.mxu0 0.0
    %3696 = vmatprep.subr.mxu0 0.0
    %3697 = vmatpush1.msra.mxu0 0.0
    %3698 = vmatprep.subr.mxu0 0.0
    %3699 = vmatpush1.msra.mxu0 0.0
    %3700 = vmatprep.subr.mxu0 0.0
    %3701 = vmatpush1.msra.mxu0 0.0
    %3702 = vmatprep.subr.mxu0 0.0
    %3703 = vmatpush1.msra.mxu0 0.0
    %3704 = vmatprep.subr.mxu0 0.0
    %3705 = vmatpush1.msra.mxu0 0.0
    %3706 = vmatprep.subr.mxu0 0.0
    %3707 = vmatpush1.msra.mxu0 0.0
    %3708 = vmatprep.subr.mxu0 0.0
    %3709 = vmatpush1.msra.mxu0 0.0
    %3710 = vmatprep.subr.mxu0 0.0
    %3711 = vmatpush1.msra.mxu0 0.0
    %3712 = vmatprep.subr.mxu0 0.0
    %3713 = vmatpush1.msra.mxu0 0.0
    %3714 = vmatprep.subr.mxu0 0.0
    %3715 = vmatpush1.msra.mxu0 0.0
    %3716 = vmatprep.subr.mxu0 0.0
    %3717 = vmatpush1.msra.mxu0 0.0
    %3718 = vmatprep.subr.mxu0 0.0
    %3719 = vmatpush1.msra.mxu0 0.0
    %3720 = vmatprep.subr.mxu0 0.0
    %3721 = vmatpush1.msra.mxu0 0.0
    %3722 = vmatprep.subr.mxu0 0.0
    %3723 = vmatpush1.msra.mxu0 0.0
    %3724 = vmatprep.subr.mxu0 0.0
    %3725 = vmatpush1.msra.mxu0 0.0
    %3726 = vmatprep.subr.mxu0 0.0
    %3727 = vmatpush1.msra.mxu0 0.0
    %3728 = vmatprep.subr.mxu0 0.0
    %3729 = vmatpush1.msra.mxu0 0.0
    %3730 = vmatprep.subr.mxu0 0.0
    %3731 = vmatpush1.msra.mxu0 0.0
    %3732 = vmatprep.subr.mxu0 0.0
    %3733 = vmatpush1.msra.mxu0 0.0
    %3734 = vmatprep.subr.mxu0 0.0
    %3735 = vmatpush1.msra.mxu0 0.0
    %3736 = vmatprep.subr.mxu0 0.0
    %3737 = vmatpush1.msra.mxu0 0.0
    %3738 = vmatprep.subr.mxu0 0.0
    %3739 = vmatpush1.msra.mxu0 0.0
    %3740 = vmatprep.subr.mxu0 0.0
    %3741 = vmatpush1.msra.mxu0 0.0
    %3742 = vmatprep.subr.mxu0 0.0
    %3743 = vmatpush1.msra.mxu0 0.0
    %3744 = vmatprep.mubr.f32.mxu0 0.0
    %3745 = vmatmul.mubr.f32.gmra.mrb[0].mxu0 %v3669
    %v3746 = vpop.f32.mrb[0].mxu0
    %v3747 = vadd.f32 0.0, %v3746
    %v3748 = vpop.f32.mrb[0].mxu0
    %v3749 = vadd.f32 0.0, %v3748
    %3750 = vmatprep.mubr.f32.mxu0 0.0
    %3751 = vmatmul.mubr.f32.gmra.mrb[0].mxu0 %v3672
    %v3752 = vpop.f32.mrb[0].mxu0
    %v3753 = vadd.f32 0.0, %v3752
    %v3754 = vpop.f32.mrb[0].mxu0
    %v3755 = vadd.f32 0.0, %v3754
    %3756 = vmatprep.mubr.f32.mxu0 0.0
    %3757 = vmatmul.mubr.f32.gmra.mrb[0].mxu0 %v3675
    %v3758 = vpop.f32.mrb[0].mxu0
    %v3759 = vadd.f32 0.0, %v3758
    %v3760 = vpop.f32.mrb[0].mxu0
    %v3761 = vadd.f32 0.0, %v3760
    %3762 = vmatprep.mubr.f32.mxu0 0.0
    %3763 = vmatmul.mubr.f32.gmra.mrb[0].mxu0 %v3678
    %v3764 = vpop.f32.mrb[0].mxu0
    %v3765 = vadd.f32 0.0, %v3764
    %v3766 = vpop.f32.mrb[0].mxu0
    %v3767 = vadd.f32 0.0, %v3766
    %3768 = vdwg.mxu0
    %v3770 = vsel %vm711, %v3659, 0
    %v3773 = vsel %vm711, %v3660, 0
    %v3776 = vsel %vm711, %v3661, 0
    %v3779 = vsel %vm711, %v3662, 0
    %3781 = vmatprep.subr.mxu0 %v3438
    %3782 = vmatpush1.msra.mxu0 %v3437
    %3783 = vmatprep.subr.mxu0 %v3514
    %3784 = vmatpush1.msra.mxu0 %v3512
    %3785 = vmatprep.subr.mxu0 %v3585
    %3786 = vmatpush1.msra.mxu0 %v3583
    %3787 = vmatprep.subr.mxu0 %v3656
    %3788 = vmatpush1.msra.mxu0 %v3654
    %3789 = vmatprep.subr.mxu0 0.0
    %3790 = vmatpush1.msra.mxu0 0.0
    %3791 = vmatprep.subr.mxu0 0.0
    %3792 = vmatpush1.msra.mxu0 0.0
    %3793 = vmatprep.subr.mxu0 0.0
    %3794 = vmatpush1.msra.mxu0 0.0
    %3795 = vmatprep.subr.mxu0 0.0
    %3796 = vmatpush1.msra.mxu0 0.0
    %3797 = vmatprep.subr.mxu0 0.0
    %3798 = vmatpush1.msra.mxu0 0.0
    %3799 = vmatprep.subr.mxu0 0.0
    %3800 = vmatpush1.msra.mxu0 0.0
    %3801 = vmatprep.subr.mxu0 0.0
    %3802 = vmatpush1.msra.mxu0 0.0
    %3803 = vmatprep.subr.mxu0 0.0
    %3804 = vmatpush1.msra.mxu0 0.0
    %3805 = vmatprep.subr.mxu0 0.0
    %3806 = vmatpush1.msra.mxu0 0.0
    %3807 = vmatprep.subr.mxu0 0.0
    %3808 = vmatpush1.msra.mxu0 0.0
    %3809 = vmatprep.subr.mxu0 0.0
    %3810 = vmatpush1.msra.mxu0 0.0
    %3811 = vmatprep.subr.mxu0 0.0
    %3812 = vmatpush1.msra.mxu0 0.0
    %3813 = vmatprep.subr.mxu0 0.0
    %3814 = vmatpush1.msra.mxu0 0.0
    %3815 = vmatprep.subr.mxu0 0.0
    %3816 = vmatpush1.msra.mxu0 0.0
    %3817 = vmatprep.subr.mxu0 0.0
    %3818 = vmatpush1.msra.mxu0 0.0
    %3819 = vmatprep.subr.mxu0 0.0
    %3820 = vmatpush1.msra.mxu0 0.0
    %3821 = vmatprep.subr.mxu0 0.0
    %3822 = vmatpush1.msra.mxu0 0.0
    %3823 = vmatprep.subr.mxu0 0.0
    %3824 = vmatpush1.msra.mxu0 0.0
    %3825 = vmatprep.subr.mxu0 0.0
    %3826 = vmatpush1.msra.mxu0 0.0
    %3827 = vmatprep.subr.mxu0 0.0
    %3828 = vmatpush1.msra.mxu0 0.0
    %3829 = vmatprep.subr.mxu0 0.0
    %3830 = vmatpush1.msra.mxu0 0.0
    %3831 = vmatprep.subr.mxu0 0.0
    %3832 = vmatpush1.msra.mxu0 0.0
    %3833 = vmatprep.subr.mxu0 0.0
    %3834 = vmatpush1.msra.mxu0 0.0
    %3835 = vmatprep.subr.mxu0 0.0
    %3836 = vmatpush1.msra.mxu0 0.0
    %3837 = vmatprep.subr.mxu0 0.0
    %3838 = vmatpush1.msra.mxu0 0.0
    %3839 = vmatprep.subr.mxu0 0.0
    %3840 = vmatpush1.msra.mxu0 0.0
    %3841 = vmatprep.subr.mxu0 0.0
    %3842 = vmatpush1.msra.mxu0 0.0
    %3843 = vmatprep.subr.mxu0 0.0
    %3844 = vmatpush1.msra.mxu0 0.0
    %3845 = vmatprep.mubr.f32.mxu0 0.0
    %3846 = vmatmul.mubr.f32.gmra.mrb[0].mxu0 %v3770
    %v3847 = vpop.f32.mrb[0].mxu0
    %v3848 = vadd.f32 %v3747, %v3847
    %v3849 = vpop.f32.mrb[0].mxu0
    %v3850 = vadd.f32 %v3749, %v3849
    %3851 = vmatprep.mubr.f32.mxu0 0.0
    %3852 = vmatmul.mubr.f32.gmra.mrb[0].mxu0 %v3773
    %v3853 = vpop.f32.mrb[0].mxu0
    %v3854 = vadd.f32 %v3753, %v3853
    %v3855 = vpop.f32.mrb[0].mxu0
    %v3856 = vadd.f32 %v3755, %v3855
    %3857 = vmatprep.mubr.f32.mxu0 0.0
    %3858 = vmatmul.mubr.f32.gmra.mrb[0].mxu0 %v3776
    %v3859 = vpop.f32.mrb[0].mxu0
    %v3860 = vadd.f32 %v3759, %v3859
    %v3861 = vpop.f32.mrb[0].mxu0
    %v3862 = vadd.f32 %v3761, %v3861
    %3863 = vmatprep.mubr.f32.mxu0 0.0
    %3864 = vmatmul.mubr.f32.gmra.mrb[0].mxu0 %v3779
    %v3865 = vpop.f32.mrb[0].mxu0
    %v3866 = vadd.f32 %v3765, %v3865
    %v3867 = vpop.f32.mrb[0].mxu0
    %v3868 = vadd.f32 %v3767, %v3867
    %3869 = vdwg.mxu0
    %s3870 = scalar_lea.vmem %s9, 64
    %v3871 = vld [vmem:[%s3870] sm:$0xff]
    %v3872 = vld [vmem:[%s3870 + $0x8] sm:$0xff]
    %v3873 = vld [vmem:[%s3870 + $0x10] sm:$0xff]
    %v3874 = vld [vmem:[%s3870 + $0x18] sm:$0xff]
    %3876 = vset.pattern.permute.xlu0 0
    %3877 = vperm.xlu0 %3876, %v3871
    %v3878 = vpop.permute.xlu0 %3877
    %3881 = vset.pattern.permute.xlu0 0
    %3882 = vperm.xlu0 %3881, %v3872
    %v3883 = vpop.permute.xlu0 %3882
    %3886 = vset.pattern.permute.xlu0 0
    %3887 = vperm.xlu0 %3886, %v3873
    %v3888 = vpop.permute.xlu0 %3887
    %3891 = vset.pattern.permute.xlu0 0
    %3892 = vperm.xlu0 %3891, %v3874
    %v3893 = vpop.permute.xlu0 %3892
    %v3895 = vadd.f32 %v3848, %v3878
    %v3896 = vadd.f32 %v3850, %v3878
    %v3897 = vadd.f32 %v3854, %v3883
    %v3898 = vadd.f32 %v3856, %v3883
    %v3899 = vadd.f32 %v3860, %v3888
    %v3900 = vadd.f32 %v3862, %v3888
    %v3901 = vadd.f32 %v3866, %v3893
    %v3902 = vadd.f32 %v3868, %v3893
    %v3903 = vmax.f32 %v3895, 0.0
    %v3904 = vmax.f32 %v3896, 0.0
    %v3905 = vmax.f32 %v3897, 0.0
    %v3906 = vmax.f32 %v3898, 0.0
    %v3907 = vmax.f32 %v3899, 0.0
    %v3908 = vmax.f32 %v3900, 0.0
    %v3909 = vmax.f32 %v3901, 0.0
    %v3910 = vmax.f32 %v3902, 0.0
    %3911 = vmatprep.subr.mxu0 %v67
    %3912 = vmatpush1.msra.mxu0 %v66
    %3913 = vmatprep.subr.mxu0 %v69
    %3914 = vmatpush1.msra.mxu0 %v68
    %3915 = vmatprep.subr.mxu0 %v71
    %3916 = vmatpush1.msra.mxu0 %v70
    %3917 = vmatprep.subr.mxu0 %v73
    %3918 = vmatpush1.msra.mxu0 %v72
    %3919 = vmatprep.subr.mxu0 %v75
    %3920 = vmatpush1.msra.mxu0 %v74
    %3921 = vmatprep.subr.mxu0 %v77
    %3922 = vmatpush1.msra.mxu0 %v76
    %3923 = vmatprep.subr.mxu0 %v79
    %3924 = vmatpush1.msra.mxu0 %v78
    %3925 = vmatprep.subr.mxu0 %v81
    %3926 = vmatpush1.msra.mxu0 %v80
    %3927 = vmatprep.subr.mxu0 %v83
    %3928 = vmatpush1.msra.mxu0 %v82
    %3929 = vmatprep.subr.mxu0 %v85
    %3930 = vmatpush1.msra.mxu0 %v84
    %3931 = vmatprep.subr.mxu0 %v87
    %3932 = vmatpush1.msra.mxu0 %v86
    %3933 = vmatprep.subr.mxu0 %v89
    %3934 = vmatpush1.msra.mxu0 %v88
    %3935 = vmatprep.subr.mxu0 %v91
    %3936 = vmatpush1.msra.mxu0 %v90
    %3937 = vmatprep.subr.mxu0 %v93
    %3938 = vmatpush1.msra.mxu0 %v92
    %3939 = vmatprep.subr.mxu0 %v95
    %3940 = vmatpush1.msra.mxu0 %v94
    %3941 = vmatprep.subr.mxu0 %v97
    %3942 = vmatpush1.msra.mxu0 %v96
    %3943 = vmatprep.subr.mxu0 %v99
    %3944 = vmatpush1.msra.mxu0 %v98
    %3945 = vmatprep.subr.mxu0 %v101
    %3946 = vmatpush1.msra.mxu0 %v100
    %3947 = vmatprep.subr.mxu0 %v103
    %3948 = vmatpush1.msra.mxu0 %v102
    %3949 = vmatprep.subr.mxu0 %v105
    %3950 = vmatpush1.msra.mxu0 %v104
    %3951 = vmatprep.subr.mxu0 %v107
    %3952 = vmatpush1.msra.mxu0 %v106
    %3953 = vmatprep.subr.mxu0 %v109
    %3954 = vmatpush1.msra.mxu0 %v108
    %3955 = vmatprep.subr.mxu0 %v111
    %3956 = vmatpush1.msra.mxu0 %v110
    %3957 = vmatprep.subr.mxu0 %v113
    %3958 = vmatpush1.msra.mxu0 %v112
    %3959 = vmatprep.subr.mxu0 %v115
    %3960 = vmatpush1.msra.mxu0 %v114
    %3961 = vmatprep.subr.mxu0 %v117
    %3962 = vmatpush1.msra.mxu0 %v116
    %3963 = vmatprep.subr.mxu0 %v119
    %3964 = vmatpush1.msra.mxu0 %v118
    %3965 = vmatprep.subr.mxu0 %v121
    %3966 = vmatpush1.msra.mxu0 %v120
    %3967 = vmatprep.subr.mxu0 %v123
    %3968 = vmatpush1.msra.mxu0 %v122
    %3969 = vmatprep.subr.mxu0 %v125
    %3970 = vmatpush1.msra.mxu0 %v124
    %3971 = vmatprep.subr.mxu0 %v127
    %3972 = vmatpush1.msra.mxu0 %v126
    %3973 = vmatprep.subr.mxu0 %v129
    %3974 = vmatpush1.msra.mxu0 %v128
    %3975 = vmatprep.mubr.f32.mxu0 %v3906
    %3976 = vmatmul.mubr.f32.gmra.mrb[0].mxu0 %v3905
    %v3977 = vpop.f32.mrb[0].mxu0
    %v3978 = vadd.f32 0.0, %v3977
    %v3979 = vpop.f32.mrb[0].mxu0
    %v3980 = vadd.f32 0.0, %v3979
    %3981 = vdwg.mxu0
    %3982 = vmatprep.subr.mxu0 %v132
    %3983 = vmatpush1.msra.mxu0 %v131
    %3984 = vmatprep.subr.mxu0 %v134
    %3985 = vmatpush1.msra.mxu0 %v133
    %3986 = vmatprep.subr.mxu0 %v136
    %3987 = vmatpush1.msra.mxu0 %v135
    %3988 = vmatprep.subr.mxu0 %v138
    %3989 = vmatpush1.msra.mxu0 %v137
    %3990 = vmatprep.subr.mxu0 %v140
    %3991 = vmatpush1.msra.mxu0 %v139
    %3992 = vmatprep.subr.mxu0 %v142
    %3993 = vmatpush1.msra.mxu0 %v141
    %3994 = vmatprep.subr.mxu0 %v144
    %3995 = vmatpush1.msra.mxu0 %v143
    %3996 = vmatprep.subr.mxu0 %v146
    %3997 = vmatpush1.msra.mxu0 %v145
    %3998 = vmatprep.subr.mxu0 %v148
    %3999 = vmatpush1.msra.mxu0 %v147
    %4000 = vmatprep.subr.mxu0 %v150
    %4001 = vmatpush1.msra.mxu0 %v149
    %4002 = vmatprep.subr.mxu0 %v152
    %4003 = vmatpush1.msra.mxu0 %v151
    %4004 = vmatprep.subr.mxu0 %v154
    %4005 = vmatpush1.msra.mxu0 %v153
    %4006 = vmatprep.subr.mxu0 %v156
    %4007 = vmatpush1.msra.mxu0 %v155
    %4008 = vmatprep.subr.mxu0 %v158
    %4009 = vmatpush1.msra.mxu0 %v157
    %4010 = vmatprep.subr.mxu0 %v160
    %4011 = vmatpush1.msra.mxu0 %v159
    %4012 = vmatprep.subr.mxu0 %v162
    %4013 = vmatpush1.msra.mxu0 %v161
    %4014 = vmatprep.subr.mxu0 %v164
    %4015 = vmatpush1.msra.mxu0 %v163
    %4016 = vmatprep.subr.mxu0 %v166
    %4017 = vmatpush1.msra.mxu0 %v165
    %4018 = vmatprep.subr.mxu0 %v168
    %4019 = vmatpush1.msra.mxu0 %v167
    %4020 = vmatprep.subr.mxu0 %v170
    %4021 = vmatpush1.msra.mxu0 %v169
    %4022 = vmatprep.subr.mxu0 %v172
    %4023 = vmatpush1.msra.mxu0 %v171
    %4024 = vmatprep.subr.mxu0 %v174
    %4025 = vmatpush1.msra.mxu0 %v173
    %4026 = vmatprep.subr.mxu0 %v176
    %4027 = vmatpush1.msra.mxu0 %v175
    %4028 = vmatprep.subr.mxu0 %v178
    %4029 = vmatpush1.msra.mxu0 %v177
    %4030 = vmatprep.subr.mxu0 %v180
    %4031 = vmatpush1.msra.mxu0 %v179
    %4032 = vmatprep.subr.mxu0 %v182
    %4033 = vmatpush1.msra.mxu0 %v181
    %4034 = vmatprep.subr.mxu0 %v184
    %4035 = vmatpush1.msra.mxu0 %v183
    %4036 = vmatprep.subr.mxu0 %v186
    %4037 = vmatpush1.msra.mxu0 %v185
    %4038 = vmatprep.subr.mxu0 %v188
    %4039 = vmatpush1.msra.mxu0 %v187
    %4040 = vmatprep.subr.mxu0 %v190
    %4041 = vmatpush1.msra.mxu0 %v189
    %4042 = vmatprep.subr.mxu0 %v192
    %4043 = vmatpush1.msra.mxu0 %v191
    %4044 = vmatprep.subr.mxu0 %v194
    %4045 = vmatpush1.msra.mxu0 %v193
    %4046 = vmatprep.mubr.f32.mxu0 %v3908
    %4047 = vmatmul.mubr.f32.gmra.mrb[0].mxu0 %v3907
    %v4048 = vpop.f32.mrb[0].mxu0
    %v4049 = vadd.f32 0.0, %v4048
    %v4050 = vpop.f32.mrb[0].mxu0
    %v4051 = vadd.f32 0.0, %v4050
    %4052 = vdwg.mxu0
    %4053 = vmatprep.subr.mxu0 %v197
    %4054 = vmatpush1.msra.mxu0 %v196
    %4055 = vmatprep.subr.mxu0 %v199
    %4056 = vmatpush1.msra.mxu0 %v198
    %4057 = vmatprep.subr.mxu0 %v201
    %4058 = vmatpush1.msra.mxu0 %v200
    %4059 = vmatprep.subr.mxu0 %v203
    %4060 = vmatpush1.msra.mxu0 %v202
    %4061 = vmatprep.subr.mxu0 %v205
    %4062 = vmatpush1.msra.mxu0 %v204
    %4063 = vmatprep.subr.mxu0 %v207
    %4064 = vmatpush1.msra.mxu0 %v206
    %4065 = vmatprep.subr.mxu0 %v209
    %4066 = vmatpush1.msra.mxu0 %v208
    %4067 = vmatprep.subr.mxu0 %v211
    %4068 = vmatpush1.msra.mxu0 %v210
    %4069 = vmatprep.subr.mxu0 %v213
    %4070 = vmatpush1.msra.mxu0 %v212
    %4071 = vmatprep.subr.mxu0 %v215
    %4072 = vmatpush1.msra.mxu0 %v214
    %4073 = vmatprep.subr.mxu0 %v217
    %4074 = vmatpush1.msra.mxu0 %v216
    %4075 = vmatprep.subr.mxu0 %v219
    %4076 = vmatpush1.msra.mxu0 %v218
    %4077 = vmatprep.subr.mxu0 %v221
    %4078 = vmatpush1.msra.mxu0 %v220
    %4079 = vmatprep.subr.mxu0 %v223
    %4080 = vmatpush1.msra.mxu0 %v222
    %4081 = vmatprep.subr.mxu0 %v225
    %4082 = vmatpush1.msra.mxu0 %v224
    %4083 = vmatprep.subr.mxu0 %v227
    %4084 = vmatpush1.msra.mxu0 %v226
    %4085 = vmatprep.subr.mxu0 %v229
    %4086 = vmatpush1.msra.mxu0 %v228
    %4087 = vmatprep.subr.mxu0 %v231
    %4088 = vmatpush1.msra.mxu0 %v230
    %4089 = vmatprep.subr.mxu0 %v233
    %4090 = vmatpush1.msra.mxu0 %v232
    %4091 = vmatprep.subr.mxu0 %v235
    %4092 = vmatpush1.msra.mxu0 %v234
    %4093 = vmatprep.subr.mxu0 %v237
    %4094 = vmatpush1.msra.mxu0 %v236
    %4095 = vmatprep.subr.mxu0 %v239
    %4096 = vmatpush1.msra.mxu0 %v238
    %4097 = vmatprep.subr.mxu0 %v241
    %4098 = vmatpush1.msra.mxu0 %v240
    %4099 = vmatprep.subr.mxu0 %v243
    %4100 = vmatpush1.msra.mxu0 %v242
    %4101 = vmatprep.subr.mxu0 %v245
    %4102 = vmatpush1.msra.mxu0 %v244
    %4103 = vmatprep.subr.mxu0 %v247
    %4104 = vmatpush1.msra.mxu0 %v246
    %4105 = vmatprep.subr.mxu0 %v249
    %4106 = vmatpush1.msra.mxu0 %v248
    %4107 = vmatprep.subr.mxu0 %v251
    %4108 = vmatpush1.msra.mxu0 %v250
    %4109 = vmatprep.subr.mxu0 %v253
    %4110 = vmatpush1.msra.mxu0 %v252
    %4111 = vmatprep.subr.mxu0 %v255
    %4112 = vmatpush1.msra.mxu0 %v254
    %4113 = vmatprep.subr.mxu0 %v257
    %4114 = vmatpush1.msra.mxu0 %v256
    %4115 = vmatprep.subr.mxu0 %v259
    %4116 = vmatpush1.msra.mxu0 %v258
    %4117 = vmatprep.mubr.f32.mxu0 %v3910
    %4118 = vmatmul.mubr.f32.gmra.mrb[0].mxu0 %v3909
    %v4119 = vpop.f32.mrb[0].mxu0
    %v4120 = vadd.f32 0.0, %v4119
    %v4121 = vpop.f32.mrb[0].mxu0
    %v4122 = vadd.f32 0.0, %v4121
    %4123 = vdwg.mxu0
    %s4124 = scalar_lea.vmem %s10, 64
    %v4125 = vld [vmem:[%s4124] sm:$0xff]
    %v4126 = vld [vmem:[%s4124 + $0x8] sm:$0xff]
    %v4127 = vld [vmem:[%s4124 + $0x10] sm:$0xff]
    %v4128 = vld [vmem:[%s4124 + $0x18] sm:$0xff]
    %s4129 = scalar_lea.vmem %s11, 64
    %v4130 = vld [vmem:[%s4129] sm:$0xff]
    %v4131 = vld [vmem:[%s4129 + $0x8] sm:$0xff]
    %v4132 = vld [vmem:[%s4129 + $0x10] sm:$0xff]
    %v4133 = vld [vmem:[%s4129 + $0x18] sm:$0xff]
    %4135 = vset.pattern.permute.xlu0 0
    %4136 = vperm.xlu0 %4135, %v4130
    %v4137 = vpop.permute.xlu0 %4136
    %4140 = vset.pattern.permute.xlu0 0
    %4141 = vperm.xlu0 %4140, %v4131
    %v4142 = vpop.permute.xlu0 %4141
    %4145 = vset.pattern.permute.xlu0 0
    %4146 = vperm.xlu0 %4145, %v4132
    %v4147 = vpop.permute.xlu0 %4146
    %4150 = vset.pattern.permute.xlu0 0
    %4151 = vperm.xlu0 %4150, %v4133
    %v4152 = vpop.permute.xlu0 %4151
    %v4155 = vsel %vm711, %v4125, 0
    %v4158 = vsel %vm711, %v4126, 0
    %v4161 = vsel %vm711, %v4127, 0
    %v4164 = vsel %vm711, %v4128, 0
    %4166 = vmatprep.subr.mxu0 %v3904
    %4167 = vmatpush1.msra.mxu0 %v3903
    %4168 = vmatprep.subr.mxu0 %v3980
    %4169 = vmatpush1.msra.mxu0 %v3978
    %4170 = vmatprep.subr.mxu0 %v4051
    %4171 = vmatpush1.msra.mxu0 %v4049
    %4172 = vmatprep.subr.mxu0 %v4122
    %4173 = vmatpush1.msra.mxu0 %v4120
    %4174 = vmatprep.subr.mxu0 0.0
    %4175 = vmatpush1.msra.mxu0 0.0
    %4176 = vmatprep.subr.mxu0 0.0
    %4177 = vmatpush1.msra.mxu0 0.0
    %4178 = vmatprep.subr.mxu0 0.0
    %4179 = vmatpush1.msra.mxu0 0.0
    %4180 = vmatprep.subr.mxu0 0.0
    %4181 = vmatpush1.msra.mxu0 0.0
    %4182 = vmatprep.subr.mxu0 0.0
    %4183 = vmatpush1.msra.mxu0 0.0
    %4184 = vmatprep.subr.mxu0 0.0
    %4185 = vmatpush1.msra.mxu0 0.0
    %4186 = vmatprep.subr.mxu0 0.0
    %4187 = vmatpush1.msra.mxu0 0.0
    %4188 = vmatprep.subr.mxu0 0.0
    %4189 = vmatpush1.msra.mxu0 0.0
    %4190 = vmatprep.subr.mxu0 0.0
    %4191 = vmatpush1.msra.mxu0 0.0
    %4192 = vmatprep.subr.mxu0 0.0
    %4193 = vmatpush1.msra.mxu0 0.0
    %4194 = vmatprep.subr.mxu0 0.0
    %4195 = vmatpush1.msra.mxu0 0.0
    %4196 = vmatprep.subr.mxu0 0.0
    %4197 = vmatpush1.msra.mxu0 0.0
    %4198 = vmatprep.subr.mxu0 0.0
    %4199 = vmatpush1.msra.mxu0 0.0
    %4200 = vmatprep.subr.mxu0 0.0
    %4201 = vmatpush1.msra.mxu0 0.0
    %4202 = vmatprep.subr.mxu0 0.0
    %4203 = vmatpush1.msra.mxu0 0.0
    %4204 = vmatprep.subr.mxu0 0.0
    %4205 = vmatpush1.msra.mxu0 0.0
    %4206 = vmatprep.subr.mxu0 0.0
    %4207 = vmatpush1.msra.mxu0 0.0
    %4208 = vmatprep.subr.mxu0 0.0
    %4209 = vmatpush1.msra.mxu0 0.0
    %4210 = vmatprep.subr.mxu0 0.0
    %4211 = vmatpush1.msra.mxu0 0.0
    %4212 = vmatprep.subr.mxu0 0.0
    %4213 = vmatpush1.msra.mxu0 0.0
    %4214 = vmatprep.subr.mxu0 0.0
    %4215 = vmatpush1.msra.mxu0 0.0
    %4216 = vmatprep.subr.mxu0 0.0
    %4217 = vmatpush1.msra.mxu0 0.0
    %4218 = vmatprep.subr.mxu0 0.0
    %4219 = vmatpush1.msra.mxu0 0.0
    %4220 = vmatprep.subr.mxu0 0.0
    %4221 = vmatpush1.msra.mxu0 0.0
    %4222 = vmatprep.subr.mxu0 0.0
    %4223 = vmatpush1.msra.mxu0 0.0
    %4224 = vmatprep.subr.mxu0 0.0
    %4225 = vmatpush1.msra.mxu0 0.0
    %4226 = vmatprep.subr.mxu0 0.0
    %4227 = vmatpush1.msra.mxu0 0.0
    %4228 = vmatprep.subr.mxu0 0.0
    %4229 = vmatpush1.msra.mxu0 0.0
    %4230 = vmatprep.mubr.f32.mxu0 0.0
    %4231 = vmatmul.mubr.f32.gmra.mrb[0].mxu0 %v4155
    %v4232 = vpop.f32.mrb[0].mxu0
    %v4233 = vadd.f32 %v4137, %v4232
    %v4234 = vpop.f32.mrb[0].mxu0
    %v4235 = vadd.f32 %v4137, %v4234
    %4236 = vmatprep.mubr.f32.mxu0 0.0
    %4237 = vmatmul.mubr.f32.gmra.mrb[0].mxu0 %v4158
    %v4238 = vpop.f32.mrb[0].mxu0
    %v4239 = vadd.f32 %v4142, %v4238
    %v4240 = vpop.f32.mrb[0].mxu0
    %v4241 = vadd.f32 %v4142, %v4240
    %4242 = vmatprep.mubr.f32.mxu0 0.0
    %4243 = vmatmul.mubr.f32.gmra.mrb[0].mxu0 %v4161
    %v4244 = vpop.f32.mrb[0].mxu0
    %v4245 = vadd.f32 %v4147, %v4244
    %v4246 = vpop.f32.mrb[0].mxu0
    %v4247 = vadd.f32 %v4147, %v4246
    %4248 = vmatprep.mubr.f32.mxu0 0.0
    %4249 = vmatmul.mubr.f32.gmra.mrb[0].mxu0 %v4164
    %v4250 = vpop.f32.mrb[0].mxu0
    %v4251 = vadd.f32 %v4152, %v4250
    %v4252 = vpop.f32.mrb[0].mxu0
    %v4253 = vadd.f32 %v4152, %v4252
    %4254 = vdwg.mxu0
    %v4255 = vmax.f32 %v4233, 0.0
    %v4256 = vmax.f32 %v4235, 0.0
    %v4257 = vmax.f32 %v4239, 0.0
    %v4258 = vmax.f32 %v4241, 0.0
    %v4259 = vmax.f32 %v4245, 0.0
    %v4260 = vmax.f32 %v4247, 0.0
    %v4261 = vmax.f32 %v4251, 0.0
    %v4262 = vmax.f32 %v4253, 0.0
    %4263 = vmatprep.subr.mxu0 %v67
    %4264 = vmatpush1.msra.mxu0 %v66
    %4265 = vmatprep.subr.mxu0 %v69
    %4266 = vmatpush1.msra.mxu0 %v68
    %4267 = vmatprep.subr.mxu0 %v71
    %4268 = vmatpush1.msra.mxu0 %v70
    %4269 = vmatprep.subr.mxu0 %v73
    %4270 = vmatpush1.msra.mxu0 %v72
    %4271 = vmatprep.subr.mxu0 %v75
    %4272 = vmatpush1.msra.mxu0 %v74
    %4273 = vmatprep.subr.mxu0 %v77
    %4274 = vmatpush1.msra.mxu0 %v76
    %4275 = vmatprep.subr.mxu0 %v79
    %4276 = vmatpush1.msra.mxu0 %v78
    %4277 = vmatprep.subr.mxu0 %v81
    %4278 = vmatpush1.msra.mxu0 %v80
    %4279 = vmatprep.subr.mxu0 %v83
    %4280 = vmatpush1.msra.mxu0 %v82
    %4281 = vmatprep.subr.mxu0 %v85
    %4282 = vmatpush1.msra.mxu0 %v84
    %4283 = vmatprep.subr.mxu0 %v87
    %4284 = vmatpush1.msra.mxu0 %v86
    %4285 = vmatprep.subr.mxu0 %v89
    %4286 = vmatpush1.msra.mxu0 %v88
    %4287 = vmatprep.subr.mxu0 %v91
    %4288 = vmatpush1.msra.mxu0 %v90
    %4289 = vmatprep.subr.mxu0 %v93
    %4290 = vmatpush1.msra.mxu0 %v92
    %4291 = vmatprep.subr.mxu0 %v95
    %4292 = vmatpush1.msra.mxu0 %v94
    %4293 = vmatprep.subr.mxu0 %v97
    %4294 = vmatpush1.msra.mxu0 %v96
    %4295 = vmatprep.subr.mxu0 %v99
    %4296 = vmatpush1.msra.mxu0 %v98
    %4297 = vmatprep.subr.mxu0 %v101
    %4298 = vmatpush1.msra.mxu0 %v100
    %4299 = vmatprep.subr.mxu0 %v103
    %4300 = vmatpush1.msra.mxu0 %v102
    %4301 = vmatprep.subr.mxu0 %v105
    %4302 = vmatpush1.msra.mxu0 %v104
    %4303 = vmatprep.subr.mxu0 %v107
    %4304 = vmatpush1.msra.mxu0 %v106
    %4305 = vmatprep.subr.mxu0 %v109
    %4306 = vmatpush1.msra.mxu0 %v108
    %4307 = vmatprep.subr.mxu0 %v111
    %4308 = vmatpush1.msra.mxu0 %v110
    %4309 = vmatprep.subr.mxu0 %v113
    %4310 = vmatpush1.msra.mxu0 %v112
    %4311 = vmatprep.subr.mxu0 %v115
    %4312 = vmatpush1.msra.mxu0 %v114
    %4313 = vmatprep.subr.mxu0 %v117
    %4314 = vmatpush1.msra.mxu0 %v116
    %4315 = vmatprep.subr.mxu0 %v119
    %4316 = vmatpush1.msra.mxu0 %v118
    %4317 = vmatprep.subr.mxu0 %v121
    %4318 = vmatpush1.msra.mxu0 %v120
    %4319 = vmatprep.subr.mxu0 %v123
    %4320 = vmatpush1.msra.mxu0 %v122
    %4321 = vmatprep.subr.mxu0 %v125
    %4322 = vmatpush1.msra.mxu0 %v124
    %4323 = vmatprep.subr.mxu0 %v127
    %4324 = vmatpush1.msra.mxu0 %v126
    %4325 = vmatprep.subr.mxu0 %v129
    %4326 = vmatpush1.msra.mxu0 %v128
    %4327 = vmatprep.mubr.f32.mxu0 %v4258
    %4328 = vmatmul.mubr.f32.gmra.mrb[0].mxu0 %v4257
    %v4329 = vpop.f32.mrb[0].mxu0
    %v4330 = vadd.f32 0.0, %v4329
    %v4331 = vpop.f32.mrb[0].mxu0
    %v4332 = vadd.f32 0.0, %v4331
    %4333 = vdwg.mxu0
    %4334 = vmatprep.subr.mxu0 %v132
    %4335 = vmatpush1.msra.mxu0 %v131
    %4336 = vmatprep.subr.mxu0 %v134
    %4337 = vmatpush1.msra.mxu0 %v133
    %4338 = vmatprep.subr.mxu0 %v136
    %4339 = vmatpush1.msra.mxu0 %v135
    %4340 = vmatprep.subr.mxu0 %v138
    %4341 = vmatpush1.msra.mxu0 %v137
    %4342 = vmatprep.subr.mxu0 %v140
    %4343 = vmatpush1.msra.mxu0 %v139
    %4344 = vmatprep.subr.mxu0 %v142
    %4345 = vmatpush1.msra.mxu0 %v141
    %4346 = vmatprep.subr.mxu0 %v144
    %4347 = vmatpush1.msra.mxu0 %v143
    %4348 = vmatprep.subr.mxu0 %v146
    %4349 = vmatpush1.msra.mxu0 %v145
    %4350 = vmatprep.subr.mxu0 %v148
    %4351 = vmatpush1.msra.mxu0 %v147
    %4352 = vmatprep.subr.mxu0 %v150
    %4353 = vmatpush1.msra.mxu0 %v149
    %4354 = vmatprep.subr.mxu0 %v152
    %4355 = vmatpush1.msra.mxu0 %v151
    %4356 = vmatprep.subr.mxu0 %v154
    %4357 = vmatpush1.msra.mxu0 %v153
    %4358 = vmatprep.subr.mxu0 %v156
    %4359 = vmatpush1.msra.mxu0 %v155
    %4360 = vmatprep.subr.mxu0 %v158
    %4361 = vmatpush1.msra.mxu0 %v157
    %4362 = vmatprep.subr.mxu0 %v160
    %4363 = vmatpush1.msra.mxu0 %v159
    %4364 = vmatprep.subr.mxu0 %v162
    %4365 = vmatpush1.msra.mxu0 %v161
    %4366 = vmatprep.subr.mxu0 %v164
    %4367 = vmatpush1.msra.mxu0 %v163
    %4368 = vmatprep.subr.mxu0 %v166
    %4369 = vmatpush1.msra.mxu0 %v165
    %4370 = vmatprep.subr.mxu0 %v168
    %4371 = vmatpush1.msra.mxu0 %v167
    %4372 = vmatprep.subr.mxu0 %v170
    %4373 = vmatpush1.msra.mxu0 %v169
    %4374 = vmatprep.subr.mxu0 %v172
    %4375 = vmatpush1.msra.mxu0 %v171
    %4376 = vmatprep.subr.mxu0 %v174
    %4377 = vmatpush1.msra.mxu0 %v173
    %4378 = vmatprep.subr.mxu0 %v176
    %4379 = vmatpush1.msra.mxu0 %v175
    %4380 = vmatprep.subr.mxu0 %v178
    %4381 = vmatpush1.msra.mxu0 %v177
    %4382 = vmatprep.subr.mxu0 %v180
    %4383 = vmatpush1.msra.mxu0 %v179
    %4384 = vmatprep.subr.mxu0 %v182
    %4385 = vmatpush1.msra.mxu0 %v181
    %4386 = vmatprep.subr.mxu0 %v184
    %4387 = vmatpush1.msra.mxu0 %v183
    %4388 = vmatprep.subr.mxu0 %v186
    %4389 = vmatpush1.msra.mxu0 %v185
    %4390 = vmatprep.subr.mxu0 %v188
    %4391 = vmatpush1.msra.mxu0 %v187
    %4392 = vmatprep.subr.mxu0 %v190
    %4393 = vmatpush1.msra.mxu0 %v189
    %4394 = vmatprep.subr.mxu0 %v192
    %4395 = vmatpush1.msra.mxu0 %v191
    %4396 = vmatprep.subr.mxu0 %v194
    %4397 = vmatpush1.msra.mxu0 %v193
    %4398 = vmatprep.mubr.f32.mxu0 %v4260
    %4399 = vmatmul.mubr.f32.gmra.mrb[0].mxu0 %v4259
    %v4400 = vpop.f32.mrb[0].mxu0
    %v4401 = vadd.f32 0.0, %v4400
    %v4402 = vpop.f32.mrb[0].mxu0
    %v4403 = vadd.f32 0.0, %v4402
    %4404 = vdwg.mxu0
    %4405 = vmatprep.subr.mxu0 %v197
    %4406 = vmatpush1.msra.mxu0 %v196
    %4407 = vmatprep.subr.mxu0 %v199
    %4408 = vmatpush1.msra.mxu0 %v198
    %4409 = vmatprep.subr.mxu0 %v201
    %4410 = vmatpush1.msra.mxu0 %v200
    %4411 = vmatprep.subr.mxu0 %v203
    %4412 = vmatpush1.msra.mxu0 %v202
    %4413 = vmatprep.subr.mxu0 %v205
    %4414 = vmatpush1.msra.mxu0 %v204
    %4415 = vmatprep.subr.mxu0 %v207
    %4416 = vmatpush1.msra.mxu0 %v206
    %4417 = vmatprep.subr.mxu0 %v209
    %4418 = vmatpush1.msra.mxu0 %v208
    %4419 = vmatprep.subr.mxu0 %v211
    %4420 = vmatpush1.msra.mxu0 %v210
    %4421 = vmatprep.subr.mxu0 %v213
    %4422 = vmatpush1.msra.mxu0 %v212
    %4423 = vmatprep.subr.mxu0 %v215
    %4424 = vmatpush1.msra.mxu0 %v214
    %4425 = vmatprep.subr.mxu0 %v217
    %4426 = vmatpush1.msra.mxu0 %v216
    %4427 = vmatprep.subr.mxu0 %v219
    %4428 = vmatpush1.msra.mxu0 %v218
    %4429 = vmatprep.subr.mxu0 %v221
    %4430 = vmatpush1.msra.mxu0 %v220
    %4431 = vmatprep.subr.mxu0 %v223
    %4432 = vmatpush1.msra.mxu0 %v222
    %4433 = vmatprep.subr.mxu0 %v225
    %4434 = vmatpush1.msra.mxu0 %v224
    %4435 = vmatprep.subr.mxu0 %v227
    %4436 = vmatpush1.msra.mxu0 %v226
    %4437 = vmatprep.subr.mxu0 %v229
    %4438 = vmatpush1.msra.mxu0 %v228
    %4439 = vmatprep.subr.mxu0 %v231
    %4440 = vmatpush1.msra.mxu0 %v230
    %4441 = vmatprep.subr.mxu0 %v233
    %4442 = vmatpush1.msra.mxu0 %v232
    %4443 = vmatprep.subr.mxu0 %v235
    %4444 = vmatpush1.msra.mxu0 %v234
    %4445 = vmatprep.subr.mxu0 %v237
    %4446 = vmatpush1.msra.mxu0 %v236
    %4447 = vmatprep.subr.mxu0 %v239
    %4448 = vmatpush1.msra.mxu0 %v238
    %4449 = vmatprep.subr.mxu0 %v241
    %4450 = vmatpush1.msra.mxu0 %v240
    %4451 = vmatprep.subr.mxu0 %v243
    %4452 = vmatpush1.msra.mxu0 %v242
    %4453 = vmatprep.subr.mxu0 %v245
    %4454 = vmatpush1.msra.mxu0 %v244
    %4455 = vmatprep.subr.mxu0 %v247
    %4456 = vmatpush1.msra.mxu0 %v246
    %4457 = vmatprep.subr.mxu0 %v249
    %4458 = vmatpush1.msra.mxu0 %v248
    %4459 = vmatprep.subr.mxu0 %v251
    %4460 = vmatpush1.msra.mxu0 %v250
    %4461 = vmatprep.subr.mxu0 %v253
    %4462 = vmatpush1.msra.mxu0 %v252
    %4463 = vmatprep.subr.mxu0 %v255
    %4464 = vmatpush1.msra.mxu0 %v254
    %4465 = vmatprep.subr.mxu0 %v257
    %4466 = vmatpush1.msra.mxu0 %v256
    %4467 = vmatprep.subr.mxu0 %v259
    %4468 = vmatpush1.msra.mxu0 %v258
    %4469 = vmatprep.mubr.f32.mxu0 %v4262
    %4470 = vmatmul.mubr.f32.gmra.mrb[0].mxu0 %v4261
    %v4471 = vpop.f32.mrb[0].mxu0
    %v4472 = vadd.f32 0.0, %v4471
    %v4473 = vpop.f32.mrb[0].mxu0
    %v4474 = vadd.f32 0.0, %v4473
    %4475 = vdwg.mxu0
    %4476 = vmatprep.subr.mxu0 %v261
    %4477 = vmatpush1.msra.mxu0 %v260
    %4478 = vmatprep.subr.mxu0 %v263
    %4479 = vmatpush1.msra.mxu0 %v262
    %4480 = vmatprep.subr.mxu0 %v265
    %4481 = vmatpush1.msra.mxu0 %v264
    %4482 = vmatprep.subr.mxu0 %v267
    %4483 = vmatpush1.msra.mxu0 %v266
    %4484 = vmatprep.subr.mxu0 %v269
    %4485 = vmatpush1.msra.mxu0 %v268
    %4486 = vmatprep.subr.mxu0 %v271
    %4487 = vmatpush1.msra.mxu0 %v270
    %4488 = vmatprep.subr.mxu0 %v273
    %4489 = vmatpush1.msra.mxu0 %v272
    %4490 = vmatprep.subr.mxu0 %v275
    %4491 = vmatpush1.msra.mxu0 %v274
    %4492 = vmatprep.subr.mxu0 %v277
    %4493 = vmatpush1.msra.mxu0 %v276
    %4494 = vmatprep.subr.mxu0 %v279
    %4495 = vmatpush1.msra.mxu0 %v278
    %4496 = vmatprep.subr.mxu0 %v281
    %4497 = vmatpush1.msra.mxu0 %v280
    %4498 = vmatprep.subr.mxu0 %v283
    %4499 = vmatpush1.msra.mxu0 %v282
    %4500 = vmatprep.subr.mxu0 %v285
    %4501 = vmatpush1.msra.mxu0 %v284
    %4502 = vmatprep.subr.mxu0 %v287
    %4503 = vmatpush1.msra.mxu0 %v286
    %4504 = vmatprep.subr.mxu0 %v289
    %4505 = vmatpush1.msra.mxu0 %v288
    %4506 = vmatprep.subr.mxu0 %v291
    %4507 = vmatpush1.msra.mxu0 %v290
    %4508 = vmatprep.subr.mxu0 %v293
    %4509 = vmatpush1.msra.mxu0 %v292
    %4510 = vmatprep.subr.mxu0 %v295
    %4511 = vmatpush1.msra.mxu0 %v294
    %4512 = vmatprep.subr.mxu0 %v297
    %4513 = vmatpush1.msra.mxu0 %v296
    %4514 = vmatprep.subr.mxu0 %v299
    %4515 = vmatpush1.msra.mxu0 %v298
    %4516 = vmatprep.subr.mxu0 %v301
    %4517 = vmatpush1.msra.mxu0 %v300
    %4518 = vmatprep.subr.mxu0 %v303
    %4519 = vmatpush1.msra.mxu0 %v302
    %4520 = vmatprep.subr.mxu0 %v305
    %4521 = vmatpush1.msra.mxu0 %v304
    %4522 = vmatprep.subr.mxu0 %v307
    %4523 = vmatpush1.msra.mxu0 %v306
    %4524 = vmatprep.subr.mxu0 %v309
    %4525 = vmatpush1.msra.mxu0 %v308
    %4526 = vmatprep.subr.mxu0 %v311
    %4527 = vmatpush1.msra.mxu0 %v310
    %4528 = vmatprep.subr.mxu0 %v313
    %4529 = vmatpush1.msra.mxu0 %v312
    %4530 = vmatprep.subr.mxu0 %v315
    %4531 = vmatpush1.msra.mxu0 %v314
    %4532 = vmatprep.subr.mxu0 %v317
    %4533 = vmatpush1.msra.mxu0 %v316
    %4534 = vmatprep.subr.mxu0 %v319
    %4535 = vmatpush1.msra.mxu0 %v318
    %4536 = vmatprep.subr.mxu0 %v321
    %4537 = vmatpush1.msra.mxu0 %v320
    %4538 = vmatprep.subr.mxu0 %v323
    %4539 = vmatpush1.msra.mxu0 %v322
    %4540 = vmatprep.mubr.f32.mxu0 %v4256
    %4541 = vmatmul.mubr.f32.gmra.mrb[0].mxu0 %v4255
    %v4542 = vpop.f32.mrb[0].mxu0
    %v4543 = vadd.f32 0.0, %v4542
    %v4544 = vpop.f32.mrb[0].mxu0
    %v4545 = vadd.f32 0.0, %v4544
    %4546 = vmatprep.mubr.f32.mxu0 %v4332
    %4547 = vmatmul.mubr.f32.gmra.mrb[0].mxu0 %v4330
    %v4548 = vpop.f32.mrb[0].mxu0
    %v4549 = vadd.f32 0.0, %v4548
    %v4550 = vpop.f32.mrb[0].mxu0
    %v4551 = vadd.f32 0.0, %v4550
    %4552 = vmatprep.mubr.f32.mxu0 %v4403
    %4553 = vmatmul.mubr.f32.gmra.mrb[0].mxu0 %v4401
    %v4554 = vpop.f32.mrb[0].mxu0
    %v4555 = vadd.f32 0.0, %v4554
    %v4556 = vpop.f32.mrb[0].mxu0
    %v4557 = vadd.f32 0.0, %v4556
    %4558 = vmatprep.mubr.f32.mxu0 %v4474
    %4559 = vmatmul.mubr.f32.gmra.mrb[0].mxu0 %v4472
    %v4560 = vpop.f32.mrb[0].mxu0
    %v4561 = vadd.f32 0.0, %v4560
    %v4562 = vpop.f32.mrb[0].mxu0
    %v4563 = vadd.f32 0.0, %v4562
    %4564 = vdwg.mxu0
    %s4565 = scalar_lea.vmem %s13, 32
    %v4566 = vld [vmem:[%s4565] sm:$0xff]
    %v4567 = vld [vmem:[%s4565 + $0x8] sm:$0xff]
    %v4568 = vld [vmem:[%s4565 + $0x10] sm:$0xff]
    %v4569 = vld [vmem:[%s4565 + $0x18] sm:$0xff]
    %s4570 = scalar_lea.vmem %s14, 64
    %v4571 = vld [vmem:[%s4570] sm:$0xff]
    %v4572 = vld [vmem:[%s4570 + $0x8] sm:$0xff]
    %v4573 = vld [vmem:[%s4570 + $0x10] sm:$0xff]
    %v4574 = vld [vmem:[%s4570 + $0x18] sm:$0xff]
    %v4576 = vsel %vm711, %v4571, 0
    %v4579 = vsel %vm711, %v4572, 0
    %v4582 = vsel %vm711, %v4573, 0
    %v4585 = vsel %vm711, %v4574, 0
    %4587 = vmatprep.subr.mxu0 %v4545
    %4588 = vmatpush1.msra.mxu0 %v4543
    %4589 = vmatprep.subr.mxu0 %v4551
    %4590 = vmatpush1.msra.mxu0 %v4549
    %4591 = vmatprep.subr.mxu0 %v4557
    %4592 = vmatpush1.msra.mxu0 %v4555
    %4593 = vmatprep.subr.mxu0 %v4563
    %4594 = vmatpush1.msra.mxu0 %v4561
    %4595 = vmatprep.subr.mxu0 0.0
    %4596 = vmatpush1.msra.mxu0 0.0
    %4597 = vmatprep.subr.mxu0 0.0
    %4598 = vmatpush1.msra.mxu0 0.0
    %4599 = vmatprep.subr.mxu0 0.0
    %4600 = vmatpush1.msra.mxu0 0.0
    %4601 = vmatprep.subr.mxu0 0.0
    %4602 = vmatpush1.msra.mxu0 0.0
    %4603 = vmatprep.subr.mxu0 0.0
    %4604 = vmatpush1.msra.mxu0 0.0
    %4605 = vmatprep.subr.mxu0 0.0
    %4606 = vmatpush1.msra.mxu0 0.0
    %4607 = vmatprep.subr.mxu0 0.0
    %4608 = vmatpush1.msra.mxu0 0.0
    %4609 = vmatprep.subr.mxu0 0.0
    %4610 = vmatpush1.msra.mxu0 0.0
    %4611 = vmatprep.subr.mxu0 0.0
    %4612 = vmatpush1.msra.mxu0 0.0
    %4613 = vmatprep.subr.mxu0 0.0
    %4614 = vmatpush1.msra.mxu0 0.0
    %4615 = vmatprep.subr.mxu0 0.0
    %4616 = vmatpush1.msra.mxu0 0.0
    %4617 = vmatprep.subr.mxu0 0.0
    %4618 = vmatpush1.msra.mxu0 0.0
    %4619 = vmatprep.subr.mxu0 0.0
    %4620 = vmatpush1.msra.mxu0 0.0
    %4621 = vmatprep.subr.mxu0 0.0
    %4622 = vmatpush1.msra.mxu0 0.0
    %4623 = vmatprep.subr.mxu0 0.0
    %4624 = vmatpush1.msra.mxu0 0.0
    %4625 = vmatprep.subr.mxu0 0.0
    %4626 = vmatpush1.msra.mxu0 0.0
    %4627 = vmatprep.subr.mxu0 0.0
    %4628 = vmatpush1.msra.mxu0 0.0
    %4629 = vmatprep.subr.mxu0 0.0
    %4630 = vmatpush1.msra.mxu0 0.0
    %4631 = vmatprep.subr.mxu0 0.0
    %4632 = vmatpush1.msra.mxu0 0.0
    %4633 = vmatprep.subr.mxu0 0.0
    %4634 = vmatpush1.msra.mxu0 0.0
    %4635 = vmatprep.subr.mxu0 0.0
    %4636 = vmatpush1.msra.mxu0 0.0
    %4637 = vmatprep.subr.mxu0 0.0
    %4638 = vmatpush1.msra.mxu0 0.0
    %4639 = vmatprep.subr.mxu0 0.0
    %4640 = vmatpush1.msra.mxu0 0.0
    %4641 = vmatprep.subr.mxu0 0.0
    %4642 = vmatpush1.msra.mxu0 0.0
    %4643 = vmatprep.subr.mxu0 0.0
    %4644 = vmatpush1.msra.mxu0 0.0
    %4645 = vmatprep.subr.mxu0 0.0
    %4646 = vmatpush1.msra.mxu0 0.0
    %4647 = vmatprep.subr.mxu0 0.0
    %4648 = vmatpush1.msra.mxu0 0.0
    %4649 = vmatprep.subr.mxu0 0.0
    %4650 = vmatpush1.msra.mxu0 0.0
    %4651 = vmatprep.mubr.f32.mxu0 0.0
    %4652 = vmatmul.mubr.f32.gmra.mrb[0].mxu0 %v4576
    %v4653 = vpop.f32.mrb[0].mxu0
    %v4654 = vadd.f32 0.0, %v4653
    %v4655 = vpop.f32.mrb[0].mxu0
    %v4656 = vadd.f32 0.0, %v4655
    %4657 = vmatprep.mubr.f32.mxu0 0.0
    %4658 = vmatmul.mubr.f32.gmra.mrb[0].mxu0 %v4579
    %v4659 = vpop.f32.mrb[0].mxu0
    %v4660 = vadd.f32 0.0, %v4659
    %v4661 = vpop.f32.mrb[0].mxu0
    %v4662 = vadd.f32 0.0, %v4661
    %4663 = vmatprep.mubr.f32.mxu0 0.0
    %4664 = vmatmul.mubr.f32.gmra.mrb[0].mxu0 %v4582
    %v4665 = vpop.f32.mrb[0].mxu0
    %v4666 = vadd.f32 0.0, %v4665
    %v4667 = vpop.f32.mrb[0].mxu0
    %v4668 = vadd.f32 0.0, %v4667
    %4669 = vmatprep.mubr.f32.mxu0 0.0
    %4670 = vmatmul.mubr.f32.gmra.mrb[0].mxu0 %v4585
    %v4671 = vpop.f32.mrb[0].mxu0
    %v4672 = vadd.f32 0.0, %v4671
    %v4673 = vpop.f32.mrb[0].mxu0
    %v4674 = vadd.f32 0.0, %v4673
    %4675 = vdwg.mxu0
    %v4677 = vsel %vm711, %v4566, 0
    %v4680 = vsel %vm711, %v4567, 0
    %v4683 = vsel %vm711, %v4568, 0
    %v4686 = vsel %vm711, %v4569, 0
    %4688 = vmatprep.subr.mxu0 %v3438
    %4689 = vmatpush1.msra.mxu0 %v3437
    %4690 = vmatprep.subr.mxu0 %v3514
    %4691 = vmatpush1.msra.mxu0 %v3512
    %4692 = vmatprep.subr.mxu0 %v3585
    %4693 = vmatpush1.msra.mxu0 %v3583
    %4694 = vmatprep.subr.mxu0 %v3656
    %4695 = vmatpush1.msra.mxu0 %v3654
    %4696 = vmatprep.subr.mxu0 0.0
    %4697 = vmatpush1.msra.mxu0 0.0
    %4698 = vmatprep.subr.mxu0 0.0
    %4699 = vmatpush1.msra.mxu0 0.0
    %4700 = vmatprep.subr.mxu0 0.0
    %4701 = vmatpush1.msra.mxu0 0.0
    %4702 = vmatprep.subr.mxu0 0.0
    %4703 = vmatpush1.msra.mxu0 0.0
    %4704 = vmatprep.subr.mxu0 0.0
    %4705 = vmatpush1.msra.mxu0 0.0
    %4706 = vmatprep.subr.mxu0 0.0
    %4707 = vmatpush1.msra.mxu0 0.0
    %4708 = vmatprep.subr.mxu0 0.0
    %4709 = vmatpush1.msra.mxu0 0.0
    %4710 = vmatprep.subr.mxu0 0.0
    %4711 = vmatpush1.msra.mxu0 0.0
    %4712 = vmatprep.subr.mxu0 0.0
    %4713 = vmatpush1.msra.mxu0 0.0
    %4714 = vmatprep.subr.mxu0 0.0
    %4715 = vmatpush1.msra.mxu0 0.0
    %4716 = vmatprep.subr.mxu0 0.0
    %4717 = vmatpush1.msra.mxu0 0.0
    %4718 = vmatprep.subr.mxu0 0.0
    %4719 = vmatpush1.msra.mxu0 0.0
    %4720 = vmatprep.subr.mxu0 0.0
    %4721 = vmatpush1.msra.mxu0 0.0
    %4722 = vmatprep.subr.mxu0 0.0
    %4723 = vmatpush1.msra.mxu0 0.0
    %4724 = vmatprep.subr.mxu0 0.0
    %4725 = vmatpush1.msra.mxu0 0.0
    %4726 = vmatprep.subr.mxu0 0.0
    %4727 = vmatpush1.msra.mxu0 0.0
    %4728 = vmatprep.subr.mxu0 0.0
    %4729 = vmatpush1.msra.mxu0 0.0
    %4730 = vmatprep.subr.mxu0 0.0
    %4731 = vmatpush1.msra.mxu0 0.0
    %4732 = vmatprep.subr.mxu0 0.0
    %4733 = vmatpush1.msra.mxu0 0.0
    %4734 = vmatprep.subr.mxu0 0.0
    %4735 = vmatpush1.msra.mxu0 0.0
    %4736 = vmatprep.subr.mxu0 0.0
    %4737 = vmatpush1.msra.mxu0 0.0
    %4738 = vmatprep.subr.mxu0 0.0
    %4739 = vmatpush1.msra.mxu0 0.0
    %4740 = vmatprep.subr.mxu0 0.0
    %4741 = vmatpush1.msra.mxu0 0.0
    %4742 = vmatprep.subr.mxu0 0.0
    %4743 = vmatpush1.msra.mxu0 0.0
    %4744 = vmatprep.subr.mxu0 0.0
    %4745 = vmatpush1.msra.mxu0 0.0
    %4746 = vmatprep.subr.mxu0 0.0
    %4747 = vmatpush1.msra.mxu0 0.0
    %4748 = vmatprep.subr.mxu0 0.0
    %4749 = vmatpush1.msra.mxu0 0.0
    %4750 = vmatprep.subr.mxu0 0.0
    %4751 = vmatpush1.msra.mxu0 0.0
    %4752 = vmatprep.mubr.f32.mxu0 0.0
    %4753 = vmatmul.mubr.f32.gmra.mrb[0].mxu0 %v4677
    %v4754 = vpop.f32.mrb[0].mxu0
    %v4755 = vadd.f32 %v4654, %v4754
    %v4756 = vpop.f32.mrb[0].mxu0
    %v4757 = vadd.f32 %v4656, %v4756
    %4758 = vmatprep.mubr.f32.mxu0 0.0
    %4759 = vmatmul.mubr.f32.gmra.mrb[0].mxu0 %v4680
    %v4760 = vpop.f32.mrb[0].mxu0
    %v4761 = vadd.f32 %v4660, %v4760
    %v4762 = vpop.f32.mrb[0].mxu0
    %v4763 = vadd.f32 %v4662, %v4762
    %4764 = vmatprep.mubr.f32.mxu0 0.0
    %4765 = vmatmul.mubr.f32.gmra.mrb[0].mxu0 %v4683
    %v4766 = vpop.f32.mrb[0].mxu0
    %v4767 = vadd.f32 %v4666, %v4766
    %v4768 = vpop.f32.mrb[0].mxu0
    %v4769 = vadd.f32 %v4668, %v4768
    %4770 = vmatprep.mubr.f32.mxu0 0.0
    %4771 = vmatmul.mubr.f32.gmra.mrb[0].mxu0 %v4686
    %v4772 = vpop.f32.mrb[0].mxu0
    %v4773 = vadd.f32 %v4672, %v4772
    %v4774 = vpop.f32.mrb[0].mxu0
    %v4775 = vadd.f32 %v4674, %v4774
    %4776 = vdwg.mxu0
    %s4777 = scalar_lea.vmem %s15, 64
    %v4778 = vld [vmem:[%s4777] sm:$0xff]
    %v4779 = vld [vmem:[%s4777 + $0x8] sm:$0xff]
    %v4780 = vld [vmem:[%s4777 + $0x10] sm:$0xff]
    %v4781 = vld [vmem:[%s4777 + $0x18] sm:$0xff]
    %4783 = vset.pattern.permute.xlu0 0
    %4784 = vperm.xlu0 %4783, %v4778
    %v4785 = vpop.permute.xlu0 %4784
    %4788 = vset.pattern.permute.xlu0 0
    %4789 = vperm.xlu0 %4788, %v4779
    %v4790 = vpop.permute.xlu0 %4789
    %4793 = vset.pattern.permute.xlu0 0
    %4794 = vperm.xlu0 %4793, %v4780
    %v4795 = vpop.permute.xlu0 %4794
    %4798 = vset.pattern.permute.xlu0 0
    %4799 = vperm.xlu0 %4798, %v4781
    %v4800 = vpop.permute.xlu0 %4799
    %v4802 = vadd.f32 %v4755, %v4785
    %v4803 = vadd.f32 %v4757, %v4785
    %v4804 = vadd.f32 %v4761, %v4790
    %v4805 = vadd.f32 %v4763, %v4790
    %v4806 = vadd.f32 %v4767, %v4795
    %v4807 = vadd.f32 %v4769, %v4795
    %v4808 = vadd.f32 %v4773, %v4800
    %v4809 = vadd.f32 %v4775, %v4800
    %v4810 = vmax.f32 %v4802, 0.0
    %v4811 = vmax.f32 %v4803, 0.0
    %v4812 = vmax.f32 %v4804, 0.0
    %v4813 = vmax.f32 %v4805, 0.0
    %v4814 = vmax.f32 %v4806, 0.0
    %v4815 = vmax.f32 %v4807, 0.0
    %v4816 = vmax.f32 %v4808, 0.0
    %v4817 = vmax.f32 %v4809, 0.0
    %4818 = vmatprep.subr.mxu0 %v67
    %4819 = vmatpush1.msra.mxu0 %v66
    %4820 = vmatprep.subr.mxu0 %v69
    %4821 = vmatpush1.msra.mxu0 %v68
    %4822 = vmatprep.subr.mxu0 %v71
    %4823 = vmatpush1.msra.mxu0 %v70
    %4824 = vmatprep.subr.mxu0 %v73
    %4825 = vmatpush1.msra.mxu0 %v72
    %4826 = vmatprep.subr.mxu0 %v75
    %4827 = vmatpush1.msra.mxu0 %v74
    %4828 = vmatprep.subr.mxu0 %v77
    %4829 = vmatpush1.msra.mxu0 %v76
    %4830 = vmatprep.subr.mxu0 %v79
    %4831 = vmatpush1.msra.mxu0 %v78
    %4832 = vmatprep.subr.mxu0 %v81
    %4833 = vmatpush1.msra.mxu0 %v80
    %4834 = vmatprep.subr.mxu0 %v83
    %4835 = vmatpush1.msra.mxu0 %v82
    %4836 = vmatprep.subr.mxu0 %v85
    %4837 = vmatpush1.msra.mxu0 %v84
    %4838 = vmatprep.subr.mxu0 %v87
    %4839 = vmatpush1.msra.mxu0 %v86
    %4840 = vmatprep.subr.mxu0 %v89
    %4841 = vmatpush1.msra.mxu0 %v88
    %4842 = vmatprep.subr.mxu0 %v91
    %4843 = vmatpush1.msra.mxu0 %v90
    %4844 = vmatprep.subr.mxu0 %v93
    %4845 = vmatpush1.msra.mxu0 %v92
    %4846 = vmatprep.subr.mxu0 %v95
    %4847 = vmatpush1.msra.mxu0 %v94
    %4848 = vmatprep.subr.mxu0 %v97
    %4849 = vmatpush1.msra.mxu0 %v96
    %4850 = vmatprep.subr.mxu0 %v99
    %4851 = vmatpush1.msra.mxu0 %v98
    %4852 = vmatprep.subr.mxu0 %v101
    %4853 = vmatpush1.msra.mxu0 %v100
    %4854 = vmatprep.subr.mxu0 %v103
    %4855 = vmatpush1.msra.mxu0 %v102
    %4856 = vmatprep.subr.mxu0 %v105
    %4857 = vmatpush1.msra.mxu0 %v104
    %4858 = vmatprep.subr.mxu0 %v107
    %4859 = vmatpush1.msra.mxu0 %v106
    %4860 = vmatprep.subr.mxu0 %v109
    %4861 = vmatpush1.msra.mxu0 %v108
    %4862 = vmatprep.subr.mxu0 %v111
    %4863 = vmatpush1.msra.mxu0 %v110
    %4864 = vmatprep.subr.mxu0 %v113
    %4865 = vmatpush1.msra.mxu0 %v112
    %4866 = vmatprep.subr.mxu0 %v115
    %4867 = vmatpush1.msra.mxu0 %v114
    %4868 = vmatprep.subr.mxu0 %v117
    %4869 = vmatpush1.msra.mxu0 %v116
    %4870 = vmatprep.subr.mxu0 %v119
    %4871 = vmatpush1.msra.mxu0 %v118
    %4872 = vmatprep.subr.mxu0 %v121
    %4873 = vmatpush1.msra.mxu0 %v120
    %4874 = vmatprep.subr.mxu0 %v123
    %4875 = vmatpush1.msra.mxu0 %v122
    %4876 = vmatprep.subr.mxu0 %v125
    %4877 = vmatpush1.msra.mxu0 %v124
    %4878 = vmatprep.subr.mxu0 %v127
    %4879 = vmatpush1.msra.mxu0 %v126
    %4880 = vmatprep.subr.mxu0 %v129
    %4881 = vmatpush1.msra.mxu0 %v128
    %4882 = vmatprep.mubr.f32.mxu0 %v4813
    %4883 = vmatmul.mubr.f32.gmra.mrb[0].mxu0 %v4812
    %v4884 = vpop.f32.mrb[0].mxu0
    %v4885 = vadd.f32 0.0, %v4884
    %v4886 = vpop.f32.mrb[0].mxu0
    %v4887 = vadd.f32 0.0, %v4886
    %4888 = vdwg.mxu0
    %4889 = vmatprep.subr.mxu0 %v132
    %4890 = vmatpush1.msra.mxu0 %v131
    %4891 = vmatprep.subr.mxu0 %v134
    %4892 = vmatpush1.msra.mxu0 %v133
    %4893 = vmatprep.subr.mxu0 %v136
    %4894 = vmatpush1.msra.mxu0 %v135
    %4895 = vmatprep.subr.mxu0 %v138
    %4896 = vmatpush1.msra.mxu0 %v137
    %4897 = vmatprep.subr.mxu0 %v140
    %4898 = vmatpush1.msra.mxu0 %v139
    %4899 = vmatprep.subr.mxu0 %v142
    %4900 = vmatpush1.msra.mxu0 %v141
    %4901 = vmatprep.subr.mxu0 %v144
    %4902 = vmatpush1.msra.mxu0 %v143
    %4903 = vmatprep.subr.mxu0 %v146
    %4904 = vmatpush1.msra.mxu0 %v145
    %4905 = vmatprep.subr.mxu0 %v148
    %4906 = vmatpush1.msra.mxu0 %v147
    %4907 = vmatprep.subr.mxu0 %v150
    %4908 = vmatpush1.msra.mxu0 %v149
    %4909 = vmatprep.subr.mxu0 %v152
    %4910 = vmatpush1.msra.mxu0 %v151
    %4911 = vmatprep.subr.mxu0 %v154
    %4912 = vmatpush1.msra.mxu0 %v153
    %4913 = vmatprep.subr.mxu0 %v156
    %4914 = vmatpush1.msra.mxu0 %v155
    %4915 = vmatprep.subr.mxu0 %v158
    %4916 = vmatpush1.msra.mxu0 %v157
    %4917 = vmatprep.subr.mxu0 %v160
    %4918 = vmatpush1.msra.mxu0 %v159
    %4919 = vmatprep.subr.mxu0 %v162
    %4920 = vmatpush1.msra.mxu0 %v161
    %4921 = vmatprep.subr.mxu0 %v164
    %4922 = vmatpush1.msra.mxu0 %v163
    %4923 = vmatprep.subr.mxu0 %v166
    %4924 = vmatpush1.msra.mxu0 %v165
    %4925 = vmatprep.subr.mxu0 %v168
    %4926 = vmatpush1.msra.mxu0 %v167
    %4927 = vmatprep.subr.mxu0 %v170
    %4928 = vmatpush1.msra.mxu0 %v169
    %4929 = vmatprep.subr.mxu0 %v172
    %4930 = vmatpush1.msra.mxu0 %v171
    %4931 = vmatprep.subr.mxu0 %v174
    %4932 = vmatpush1.msra.mxu0 %v173
    %4933 = vmatprep.subr.mxu0 %v176
    %4934 = vmatpush1.msra.mxu0 %v175
    %4935 = vmatprep.subr.mxu0 %v178
    %4936 = vmatpush1.msra.mxu0 %v177
    %4937 = vmatprep.subr.mxu0 %v180
    %4938 = vmatpush1.msra.mxu0 %v179
    %4939 = vmatprep.subr.mxu0 %v182
    %4940 = vmatpush1.msra.mxu0 %v181
    %4941 = vmatprep.subr.mxu0 %v184
    %4942 = vmatpush1.msra.mxu0 %v183
    %4943 = vmatprep.subr.mxu0 %v186
    %4944 = vmatpush1.msra.mxu0 %v185
    %4945 = vmatprep.subr.mxu0 %v188
    %4946 = vmatpush1.msra.mxu0 %v187
    %4947 = vmatprep.subr.mxu0 %v190
    %4948 = vmatpush1.msra.mxu0 %v189
    %4949 = vmatprep.subr.mxu0 %v192
    %4950 = vmatpush1.msra.mxu0 %v191
    %4951 = vmatprep.subr.mxu0 %v194
    %4952 = vmatpush1.msra.mxu0 %v193
    %4953 = vmatprep.mubr.f32.mxu0 %v4815
    %4954 = vmatmul.mubr.f32.gmra.mrb[0].mxu0 %v4814
    %v4955 = vpop.f32.mrb[0].mxu0
    %v4956 = vadd.f32 0.0, %v4955
    %v4957 = vpop.f32.mrb[0].mxu0
    %v4958 = vadd.f32 0.0, %v4957
    %4959 = vdwg.mxu0
    %4960 = vmatprep.subr.mxu0 %v197
    %4961 = vmatpush1.msra.mxu0 %v196
    %4962 = vmatprep.subr.mxu0 %v199
    %4963 = vmatpush1.msra.mxu0 %v198
    %4964 = vmatprep.subr.mxu0 %v201
    %4965 = vmatpush1.msra.mxu0 %v200
    %4966 = vmatprep.subr.mxu0 %v203
    %4967 = vmatpush1.msra.mxu0 %v202
    %4968 = vmatprep.subr.mxu0 %v205
    %4969 = vmatpush1.msra.mxu0 %v204
    %4970 = vmatprep.subr.mxu0 %v207
    %4971 = vmatpush1.msra.mxu0 %v206
    %4972 = vmatprep.subr.mxu0 %v209
    %4973 = vmatpush1.msra.mxu0 %v208
    %4974 = vmatprep.subr.mxu0 %v211
    %4975 = vmatpush1.msra.mxu0 %v210
    %4976 = vmatprep.subr.mxu0 %v213
    %4977 = vmatpush1.msra.mxu0 %v212
    %4978 = vmatprep.subr.mxu0 %v215
    %4979 = vmatpush1.msra.mxu0 %v214
    %4980 = vmatprep.subr.mxu0 %v217
    %4981 = vmatpush1.msra.mxu0 %v216
    %4982 = vmatprep.subr.mxu0 %v219
    %4983 = vmatpush1.msra.mxu0 %v218
    %4984 = vmatprep.subr.mxu0 %v221
    %4985 = vmatpush1.msra.mxu0 %v220
    %4986 = vmatprep.subr.mxu0 %v223
    %4987 = vmatpush1.msra.mxu0 %v222
    %4988 = vmatprep.subr.mxu0 %v225
    %4989 = vmatpush1.msra.mxu0 %v224
    %4990 = vmatprep.subr.mxu0 %v227
    %4991 = vmatpush1.msra.mxu0 %v226
    %4992 = vmatprep.subr.mxu0 %v229
    %4993 = vmatpush1.msra.mxu0 %v228
    %4994 = vmatprep.subr.mxu0 %v231
    %4995 = vmatpush1.msra.mxu0 %v230
    %4996 = vmatprep.subr.mxu0 %v233
    %4997 = vmatpush1.msra.mxu0 %v232
    %4998 = vmatprep.subr.mxu0 %v235
    %4999 = vmatpush1.msra.mxu0 %v234
    %5000 = vmatprep.subr.mxu0 %v237
    %5001 = vmatpush1.msra.mxu0 %v236
    %5002 = vmatprep.subr.mxu0 %v239
    %5003 = vmatpush1.msra.mxu0 %v238
    %5004 = vmatprep.subr.mxu0 %v241
    %5005 = vmatpush1.msra.mxu0 %v240
    %5006 = vmatprep.subr.mxu0 %v243
    %5007 = vmatpush1.msra.mxu0 %v242
    %5008 = vmatprep.subr.mxu0 %v245
    %5009 = vmatpush1.msra.mxu0 %v244
    %5010 = vmatprep.subr.mxu0 %v247
    %5011 = vmatpush1.msra.mxu0 %v246
    %5012 = vmatprep.subr.mxu0 %v249
    %5013 = vmatpush1.msra.mxu0 %v248
    %5014 = vmatprep.subr.mxu0 %v251
    %5015 = vmatpush1.msra.mxu0 %v250
    %5016 = vmatprep.subr.mxu0 %v253
    %5017 = vmatpush1.msra.mxu0 %v252
    %5018 = vmatprep.subr.mxu0 %v255
    %5019 = vmatpush1.msra.mxu0 %v254
    %5020 = vmatprep.subr.mxu0 %v257
    %5021 = vmatpush1.msra.mxu0 %v256
    %5022 = vmatprep.subr.mxu0 %v259
    %5023 = vmatpush1.msra.mxu0 %v258
    %5024 = vmatprep.mubr.f32.mxu0 %v4817
    %5025 = vmatmul.mubr.f32.gmra.mrb[0].mxu0 %v4816
    %v5026 = vpop.f32.mrb[0].mxu0
    %v5027 = vadd.f32 0.0, %v5026
    %v5028 = vpop.f32.mrb[0].mxu0
    %v5029 = vadd.f32 0.0, %v5028
    %5030 = vdwg.mxu0
    %s5031 = scalar_lea.vmem %s16, 64
    %v5032 = vld [vmem:[%s5031] sm:$0xff]
    %v5033 = vld [vmem:[%s5031 + $0x8] sm:$0xff]
    %v5034 = vld [vmem:[%s5031 + $0x10] sm:$0xff]
    %v5035 = vld [vmem:[%s5031 + $0x18] sm:$0xff]
    %s5036 = scalar_lea.vmem %s17, 64
    %v5037 = vld [vmem:[%s5036] sm:$0xff]
    %v5038 = vld [vmem:[%s5036 + $0x8] sm:$0xff]
    %v5039 = vld [vmem:[%s5036 + $0x10] sm:$0xff]
    %v5040 = vld [vmem:[%s5036 + $0x18] sm:$0xff]
    %5042 = vset.pattern.permute.xlu0 0
    %5043 = vperm.xlu0 %5042, %v5037
    %v5044 = vpop.permute.xlu0 %5043
    %5047 = vset.pattern.permute.xlu0 0
    %5048 = vperm.xlu0 %5047, %v5038
    %v5049 = vpop.permute.xlu0 %5048
    %5052 = vset.pattern.permute.xlu0 0
    %5053 = vperm.xlu0 %5052, %v5039
    %v5054 = vpop.permute.xlu0 %5053
    %5057 = vset.pattern.permute.xlu0 0
    %5058 = vperm.xlu0 %5057, %v5040
    %v5059 = vpop.permute.xlu0 %5058
    %v5062 = vsel %vm711, %v5032, 0
    %v5065 = vsel %vm711, %v5033, 0
    %v5068 = vsel %vm711, %v5034, 0
    %v5071 = vsel %vm711, %v5035, 0
    %5073 = vmatprep.subr.mxu0 %v4811
    %5074 = vmatpush1.msra.mxu0 %v4810
    %5075 = vmatprep.subr.mxu0 %v4887
    %5076 = vmatpush1.msra.mxu0 %v4885
    %5077 = vmatprep.subr.mxu0 %v4958
    %5078 = vmatpush1.msra.mxu0 %v4956
    %5079 = vmatprep.subr.mxu0 %v5029
    %5080 = vmatpush1.msra.mxu0 %v5027
    %5081 = vmatprep.subr.mxu0 0.0
    %5082 = vmatpush1.msra.mxu0 0.0
    %5083 = vmatprep.subr.mxu0 0.0
    %5084 = vmatpush1.msra.mxu0 0.0
    %5085 = vmatprep.subr.mxu0 0.0
    %5086 = vmatpush1.msra.mxu0 0.0
    %5087 = vmatprep.subr.mxu0 0.0
    %5088 = vmatpush1.msra.mxu0 0.0
    %5089 = vmatprep.subr.mxu0 0.0
    %5090 = vmatpush1.msra.mxu0 0.0
    %5091 = vmatprep.subr.mxu0 0.0
    %5092 = vmatpush1.msra.mxu0 0.0
    %5093 = vmatprep.subr.mxu0 0.0
    %5094 = vmatpush1.msra.mxu0 0.0
    %5095 = vmatprep.subr.mxu0 0.0
    %5096 = vmatpush1.msra.mxu0 0.0
    %5097 = vmatprep.subr.mxu0 0.0
    %5098 = vmatpush1.msra.mxu0 0.0
    %5099 = vmatprep.subr.mxu0 0.0
    %5100 = vmatpush1.msra.mxu0 0.0
    %5101 = vmatprep.subr.mxu0 0.0
    %5102 = vmatpush1.msra.mxu0 0.0
    %5103 = vmatprep.subr.mxu0 0.0
    %5104 = vmatpush1.msra.mxu0 0.0
    %5105 = vmatprep.subr.mxu0 0.0
    %5106 = vmatpush1.msra.mxu0 0.0
    %5107 = vmatprep.subr.mxu0 0.0
    %5108 = vmatpush1.msra.mxu0 0.0
    %5109 = vmatprep.subr.mxu0 0.0
    %5110 = vmatpush1.msra.mxu0 0.0
    %5111 = vmatprep.subr.mxu0 0.0
    %5112 = vmatpush1.msra.mxu0 0.0
    %5113 = vmatprep.subr.mxu0 0.0
    %5114 = vmatpush1.msra.mxu0 0.0
    %5115 = vmatprep.subr.mxu0 0.0
    %5116 = vmatpush1.msra.mxu0 0.0
    %5117 = vmatprep.subr.mxu0 0.0
    %5118 = vmatpush1.msra.mxu0 0.0
    %5119 = vmatprep.subr.mxu0 0.0
    %5120 = vmatpush1.msra.mxu0 0.0
    %5121 = vmatprep.subr.mxu0 0.0
    %5122 = vmatpush1.msra.mxu0 0.0
    %5123 = vmatprep.subr.mxu0 0.0
    %5124 = vmatpush1.msra.mxu0 0.0
    %5125 = vmatprep.subr.mxu0 0.0
    %5126 = vmatpush1.msra.mxu0 0.0
    %5127 = vmatprep.subr.mxu0 0.0
    %5128 = vmatpush1.msra.mxu0 0.0
    %5129 = vmatprep.subr.mxu0 0.0
    %5130 = vmatpush1.msra.mxu0 0.0
    %5131 = vmatprep.subr.mxu0 0.0
    %5132 = vmatpush1.msra.mxu0 0.0
    %5133 = vmatprep.subr.mxu0 0.0
    %5134 = vmatpush1.msra.mxu0 0.0
    %5135 = vmatprep.subr.mxu0 0.0
    %5136 = vmatpush1.msra.mxu0 0.0
    %5137 = vmatprep.mubr.f32.mxu0 0.0
    %5138 = vmatmul.mubr.f32.gmra.mrb[0].mxu0 %v5062
    %v5139 = vpop.f32.mrb[0].mxu0
    %v5140 = vadd.f32 %v5044, %v5139
    %v5141 = vpop.f32.mrb[0].mxu0
    %v5142 = vadd.f32 %v5044, %v5141
    %5143 = vmatprep.mubr.f32.mxu0 0.0
    %5144 = vmatmul.mubr.f32.gmra.mrb[0].mxu0 %v5065
    %v5145 = vpop.f32.mrb[0].mxu0
    %v5146 = vadd.f32 %v5049, %v5145
    %v5147 = vpop.f32.mrb[0].mxu0
    %v5148 = vadd.f32 %v5049, %v5147
    %5149 = vmatprep.mubr.f32.mxu0 0.0
    %5150 = vmatmul.mubr.f32.gmra.mrb[0].mxu0 %v5068
    %v5151 = vpop.f32.mrb[0].mxu0
    %v5152 = vadd.f32 %v5054, %v5151
    %v5153 = vpop.f32.mrb[0].mxu0
    %v5154 = vadd.f32 %v5054, %v5153
    %5155 = vmatprep.mubr.f32.mxu0 0.0
    %5156 = vmatmul.mubr.f32.gmra.mrb[0].mxu0 %v5071
    %v5157 = vpop.f32.mrb[0].mxu0
    %v5158 = vadd.f32 %v5059, %v5157
    %v5159 = vpop.f32.mrb[0].mxu0
    %v5160 = vadd.f32 %v5059, %v5159
    %5161 = vdwg.mxu0
    %v5162 = vmax.f32 %v5140, 0.0
    %v5163 = vmax.f32 %v5142, 0.0
    %v5164 = vmax.f32 %v5146, 0.0
    %v5165 = vmax.f32 %v5148, 0.0
    %v5166 = vmax.f32 %v5152, 0.0
    %v5167 = vmax.f32 %v5154, 0.0
    %v5168 = vmax.f32 %v5158, 0.0
    %v5169 = vmax.f32 %v5160, 0.0
    %5170 = vmatprep.subr.mxu0 %v67
    %5171 = vmatpush1.msra.mxu0 %v66
    %5172 = vmatprep.subr.mxu0 %v69
    %5173 = vmatpush1.msra.mxu0 %v68
    %5174 = vmatprep.subr.mxu0 %v71
    %5175 = vmatpush1.msra.mxu0 %v70
    %5176 = vmatprep.subr.mxu0 %v73
    %5177 = vmatpush1.msra.mxu0 %v72
    %5178 = vmatprep.subr.mxu0 %v75
    %5179 = vmatpush1.msra.mxu0 %v74
    %5180 = vmatprep.subr.mxu0 %v77
    %5181 = vmatpush1.msra.mxu0 %v76
    %5182 = vmatprep.subr.mxu0 %v79
    %5183 = vmatpush1.msra.mxu0 %v78
    %5184 = vmatprep.subr.mxu0 %v81
    %5185 = vmatpush1.msra.mxu0 %v80
    %5186 = vmatprep.subr.mxu0 %v83
    %5187 = vmatpush1.msra.mxu0 %v82
    %5188 = vmatprep.subr.mxu0 %v85
    %5189 = vmatpush1.msra.mxu0 %v84
    %5190 = vmatprep.subr.mxu0 %v87
    %5191 = vmatpush1.msra.mxu0 %v86
    %5192 = vmatprep.subr.mxu0 %v89
    %5193 = vmatpush1.msra.mxu0 %v88
    %5194 = vmatprep.subr.mxu0 %v91
    %5195 = vmatpush1.msra.mxu0 %v90
    %5196 = vmatprep.subr.mxu0 %v93
    %5197 = vmatpush1.msra.mxu0 %v92
    %5198 = vmatprep.subr.mxu0 %v95
    %5199 = vmatpush1.msra.mxu0 %v94
    %5200 = vmatprep.subr.mxu0 %v97
    %5201 = vmatpush1.msra.mxu0 %v96
    %5202 = vmatprep.subr.mxu0 %v99
    %5203 = vmatpush1.msra.mxu0 %v98
    %5204 = vmatprep.subr.mxu0 %v101
    %5205 = vmatpush1.msra.mxu0 %v100
    %5206 = vmatprep.subr.mxu0 %v103
    %5207 = vmatpush1.msra.mxu0 %v102
    %5208 = vmatprep.subr.mxu0 %v105
    %5209 = vmatpush1.msra.mxu0 %v104
    %5210 = vmatprep.subr.mxu0 %v107
    %5211 = vmatpush1.msra.mxu0 %v106
    %5212 = vmatprep.subr.mxu0 %v109
    %5213 = vmatpush1.msra.mxu0 %v108
    %5214 = vmatprep.subr.mxu0 %v111
    %5215 = vmatpush1.msra.mxu0 %v110
    %5216 = vmatprep.subr.mxu0 %v113
    %5217 = vmatpush1.msra.mxu0 %v112
    %5218 = vmatprep.subr.mxu0 %v115
    %5219 = vmatpush1.msra.mxu0 %v114
    %5220 = vmatprep.subr.mxu0 %v117
    %5221 = vmatpush1.msra.mxu0 %v116
    %5222 = vmatprep.subr.mxu0 %v119
    %5223 = vmatpush1.msra.mxu0 %v118
    %5224 = vmatprep.subr.mxu0 %v121
    %5225 = vmatpush1.msra.mxu0 %v120
    %5226 = vmatprep.subr.mxu0 %v123
    %5227 = vmatpush1.msra.mxu0 %v122
    %5228 = vmatprep.subr.mxu0 %v125
    %5229 = vmatpush1.msra.mxu0 %v124
    %5230 = vmatprep.subr.mxu0 %v127
    %5231 = vmatpush1.msra.mxu0 %v126
    %5232 = vmatprep.subr.mxu0 %v129
    %5233 = vmatpush1.msra.mxu0 %v128
    %5234 = vmatprep.mubr.f32.mxu0 %v5165
    %5235 = vmatmul.mubr.f32.gmra.mrb[0].mxu0 %v5164
    %v5236 = vpop.f32.mrb[0].mxu0
    %v5237 = vadd.f32 0.0, %v5236
    %v5238 = vpop.f32.mrb[0].mxu0
    %v5239 = vadd.f32 0.0, %v5238
    %5240 = vdwg.mxu0
    %5241 = vmatprep.subr.mxu0 %v132
    %5242 = vmatpush1.msra.mxu0 %v131
    %5243 = vmatprep.subr.mxu0 %v134
    %5244 = vmatpush1.msra.mxu0 %v133
    %5245 = vmatprep.subr.mxu0 %v136
    %5246 = vmatpush1.msra.mxu0 %v135
    %5247 = vmatprep.subr.mxu0 %v138
    %5248 = vmatpush1.msra.mxu0 %v137
    %5249 = vmatprep.subr.mxu0 %v140
    %5250 = vmatpush1.msra.mxu0 %v139
    %5251 = vmatprep.subr.mxu0 %v142
    %5252 = vmatpush1.msra.mxu0 %v141
    %5253 = vmatprep.subr.mxu0 %v144
    %5254 = vmatpush1.msra.mxu0 %v143
    %5255 = vmatprep.subr.mxu0 %v146
    %5256 = vmatpush1.msra.mxu0 %v145
    %5257 = vmatprep.subr.mxu0 %v148
    %5258 = vmatpush1.msra.mxu0 %v147
    %5259 = vmatprep.subr.mxu0 %v150
    %5260 = vmatpush1.msra.mxu0 %v149
    %5261 = vmatprep.subr.mxu0 %v152
    %5262 = vmatpush1.msra.mxu0 %v151
    %5263 = vmatprep.subr.mxu0 %v154
    %5264 = vmatpush1.msra.mxu0 %v153
    %5265 = vmatprep.subr.mxu0 %v156
    %5266 = vmatpush1.msra.mxu0 %v155
    %5267 = vmatprep.subr.mxu0 %v158
    %5268 = vmatpush1.msra.mxu0 %v157
    %5269 = vmatprep.subr.mxu0 %v160
    %5270 = vmatpush1.msra.mxu0 %v159
    %5271 = vmatprep.subr.mxu0 %v162
    %5272 = vmatpush1.msra.mxu0 %v161
    %5273 = vmatprep.subr.mxu0 %v164
    %5274 = vmatpush1.msra.mxu0 %v163
    %5275 = vmatprep.subr.mxu0 %v166
    %5276 = vmatpush1.msra.mxu0 %v165
    %5277 = vmatprep.subr.mxu0 %v168
    %5278 = vmatpush1.msra.mxu0 %v167
    %5279 = vmatprep.subr.mxu0 %v170
    %5280 = vmatpush1.msra.mxu0 %v169
    %5281 = vmatprep.subr.mxu0 %v172
    %5282 = vmatpush1.msra.mxu0 %v171
    %5283 = vmatprep.subr.mxu0 %v174
    %5284 = vmatpush1.msra.mxu0 %v173
    %5285 = vmatprep.subr.mxu0 %v176
    %5286 = vmatpush1.msra.mxu0 %v175
    %5287 = vmatprep.subr.mxu0 %v178
    %5288 = vmatpush1.msra.mxu0 %v177
    %5289 = vmatprep.subr.mxu0 %v180
    %5290 = vmatpush1.msra.mxu0 %v179
    %5291 = vmatprep.subr.mxu0 %v182
    %5292 = vmatpush1.msra.mxu0 %v181
    %5293 = vmatprep.subr.mxu0 %v184
    %5294 = vmatpush1.msra.mxu0 %v183
    %5295 = vmatprep.subr.mxu0 %v186
    %5296 = vmatpush1.msra.mxu0 %v185
    %5297 = vmatprep.subr.mxu0 %v188
    %5298 = vmatpush1.msra.mxu0 %v187
    %5299 = vmatprep.subr.mxu0 %v190
    %5300 = vmatpush1.msra.mxu0 %v189
    %5301 = vmatprep.subr.mxu0 %v192
    %5302 = vmatpush1.msra.mxu0 %v191
    %5303 = vmatprep.subr.mxu0 %v194
    %5304 = vmatpush1.msra.mxu0 %v193
    %5305 = vmatprep.mubr.f32.mxu0 %v5167
    %5306 = vmatmul.mubr.f32.gmra.mrb[0].mxu0 %v5166
    %v5307 = vpop.f32.mrb[0].mxu0
    %v5308 = vadd.f32 0.0, %v5307
    %v5309 = vpop.f32.mrb[0].mxu0
    %v5310 = vadd.f32 0.0, %v5309
    %5311 = vdwg.mxu0
    %5312 = vmatprep.subr.mxu0 %v197
    %5313 = vmatpush1.msra.mxu0 %v196
    %5314 = vmatprep.subr.mxu0 %v199
    %5315 = vmatpush1.msra.mxu0 %v198
    %5316 = vmatprep.subr.mxu0 %v201
    %5317 = vmatpush1.msra.mxu0 %v200
    %5318 = vmatprep.subr.mxu0 %v203
    %5319 = vmatpush1.msra.mxu0 %v202
    %5320 = vmatprep.subr.mxu0 %v205
    %5321 = vmatpush1.msra.mxu0 %v204
    %5322 = vmatprep.subr.mxu0 %v207
    %5323 = vmatpush1.msra.mxu0 %v206
    %5324 = vmatprep.subr.mxu0 %v209
    %5325 = vmatpush1.msra.mxu0 %v208
    %5326 = vmatprep.subr.mxu0 %v211
    %5327 = vmatpush1.msra.mxu0 %v210
    %5328 = vmatprep.subr.mxu0 %v213
    %5329 = vmatpush1.msra.mxu0 %v212
    %5330 = vmatprep.subr.mxu0 %v215
    %5331 = vmatpush1.msra.mxu0 %v214
    %5332 = vmatprep.subr.mxu0 %v217
    %5333 = vmatpush1.msra.mxu0 %v216
    %5334 = vmatprep.subr.mxu0 %v219
    %5335 = vmatpush1.msra.mxu0 %v218
    %5336 = vmatprep.subr.mxu0 %v221
    %5337 = vmatpush1.msra.mxu0 %v220
    %5338 = vmatprep.subr.mxu0 %v223
    %5339 = vmatpush1.msra.mxu0 %v222
    %5340 = vmatprep.subr.mxu0 %v225
    %5341 = vmatpush1.msra.mxu0 %v224
    %5342 = vmatprep.subr.mxu0 %v227
    %5343 = vmatpush1.msra.mxu0 %v226
    %5344 = vmatprep.subr.mxu0 %v229
    %5345 = vmatpush1.msra.mxu0 %v228
    %5346 = vmatprep.subr.mxu0 %v231
    %5347 = vmatpush1.msra.mxu0 %v230
    %5348 = vmatprep.subr.mxu0 %v233
    %5349 = vmatpush1.msra.mxu0 %v232
    %5350 = vmatprep.subr.mxu0 %v235
    %5351 = vmatpush1.msra.mxu0 %v234
    %5352 = vmatprep.subr.mxu0 %v237
    %5353 = vmatpush1.msra.mxu0 %v236
    %5354 = vmatprep.subr.mxu0 %v239
    %5355 = vmatpush1.msra.mxu0 %v238
    %5356 = vmatprep.subr.mxu0 %v241
    %5357 = vmatpush1.msra.mxu0 %v240
    %5358 = vmatprep.subr.mxu0 %v243
    %5359 = vmatpush1.msra.mxu0 %v242
    %5360 = vmatprep.subr.mxu0 %v245
    %5361 = vmatpush1.msra.mxu0 %v244
    %5362 = vmatprep.subr.mxu0 %v247
    %5363 = vmatpush1.msra.mxu0 %v246
    %5364 = vmatprep.subr.mxu0 %v249
    %5365 = vmatpush1.msra.mxu0 %v248
    %5366 = vmatprep.subr.mxu0 %v251
    %5367 = vmatpush1.msra.mxu0 %v250
    %5368 = vmatprep.subr.mxu0 %v253
    %5369 = vmatpush1.msra.mxu0 %v252
    %5370 = vmatprep.subr.mxu0 %v255
    %5371 = vmatpush1.msra.mxu0 %v254
    %5372 = vmatprep.subr.mxu0 %v257
    %5373 = vmatpush1.msra.mxu0 %v256
    %5374 = vmatprep.subr.mxu0 %v259
    %5375 = vmatpush1.msra.mxu0 %v258
    %5376 = vmatprep.mubr.f32.mxu0 %v5169
    %5377 = vmatmul.mubr.f32.gmra.mrb[0].mxu0 %v5168
    %v5378 = vpop.f32.mrb[0].mxu0
    %v5379 = vadd.f32 0.0, %v5378
    %v5380 = vpop.f32.mrb[0].mxu0
    %v5381 = vadd.f32 0.0, %v5380
    %5382 = vdwg.mxu0
    %s5383 = scalar_lea.vmem %s7, 64
    %v5384 = vld [vmem:[%s5383] sm:$0xff]
    %v5385 = vld [vmem:[%s5383 + $0x8] sm:$0xff]
    %v5386 = vld [vmem:[%s5383 + $0x10] sm:$0xff]
    %v5387 = vld [vmem:[%s5383 + $0x18] sm:$0xff]
    %s5388 = scalar_lea.vmem %s8, 64
    %v5389 = vld [vmem:[%s5388] sm:$0xff]
    %v5390 = vld [vmem:[%s5388 + $0x8] sm:$0xff]
    %v5391 = vld [vmem:[%s5388 + $0x10] sm:$0xff]
    %v5392 = vld [vmem:[%s5388 + $0x18] sm:$0xff]
    %v5394 = vsel %vm355, %v5389, 0
    %v5397 = vsel %vm355, %v5390, 0
    %v5400 = vsel %vm355, %v5391, 0
    %v5403 = vsel %vm355, %v5392, 0
    %5405 = vmatprep.subr.mxu0 %v371
    %5406 = vmatpush1.msra.mxu0 %v369
    %5407 = vmatprep.subr.mxu0 0.0
    %5408 = vmatpush1.msra.mxu0 0.0
    %5409 = vmatprep.subr.mxu0 0.0
    %5410 = vmatpush1.msra.mxu0 0.0
    %5411 = vmatprep.subr.mxu0 0.0
    %5412 = vmatpush1.msra.mxu0 0.0
    %5413 = vmatprep.subr.mxu0 0.0
    %5414 = vmatpush1.msra.mxu0 0.0
    %5415 = vmatprep.subr.mxu0 0.0
    %5416 = vmatpush1.msra.mxu0 0.0
    %5417 = vmatprep.subr.mxu0 0.0
    %5418 = vmatpush1.msra.mxu0 0.0
    %5419 = vmatprep.subr.mxu0 0.0
    %5420 = vmatpush1.msra.mxu0 0.0
    %5421 = vmatprep.subr.mxu0 0.0
    %5422 = vmatpush1.msra.mxu0 0.0
    %5423 = vmatprep.subr.mxu0 0.0
    %5424 = vmatpush1.msra.mxu0 0.0
    %5425 = vmatprep.subr.mxu0 0.0
    %5426 = vmatpush1.msra.mxu0 0.0
    %5427 = vmatprep.subr.mxu0 0.0
    %5428 = vmatpush1.msra.mxu0 0.0
    %5429 = vmatprep.subr.mxu0 0.0
    %5430 = vmatpush1.msra.mxu0 0.0
    %5431 = vmatprep.subr.mxu0 0.0
    %5432 = vmatpush1.msra.mxu0 0.0
    %5433 = vmatprep.subr.mxu0 0.0
    %5434 = vmatpush1.msra.mxu0 0.0
    %5435 = vmatprep.subr.mxu0 0.0
    %5436 = vmatpush1.msra.mxu0 0.0
    %5437 = vmatprep.subr.mxu0 0.0
    %5438 = vmatpush1.msra.mxu0 0.0
    %5439 = vmatprep.subr.mxu0 0.0
    %5440 = vmatpush1.msra.mxu0 0.0
    %5441 = vmatprep.subr.mxu0 0.0
    %5442 = vmatpush1.msra.mxu0 0.0
    %5443 = vmatprep.subr.mxu0 0.0
    %5444 = vmatpush1.msra.mxu0 0.0
    %5445 = vmatprep.subr.mxu0 0.0
    %5446 = vmatpush1.msra.mxu0 0.0
    %5447 = vmatprep.subr.mxu0 0.0
    %5448 = vmatpush1.msra.mxu0 0.0
    %5449 = vmatprep.subr.mxu0 0.0
    %5450 = vmatpush1.msra.mxu0 0.0
    %5451 = vmatprep.subr.mxu0 0.0
    %5452 = vmatpush1.msra.mxu0 0.0
    %5453 = vmatprep.subr.mxu0 0.0
    %5454 = vmatpush1.msra.mxu0 0.0
    %5455 = vmatprep.subr.mxu0 0.0
    %5456 = vmatpush1.msra.mxu0 0.0
    %5457 = vmatprep.subr.mxu0 0.0
    %5458 = vmatpush1.msra.mxu0 0.0
    %5459 = vmatprep.subr.mxu0 0.0
    %5460 = vmatpush1.msra.mxu0 0.0
    %5461 = vmatprep.subr.mxu0 0.0
    %5462 = vmatpush1.msra.mxu0 0.0
    %5463 = vmatprep.subr.mxu0 0.0
    %5464 = vmatpush1.msra.mxu0 0.0
    %5465 = vmatprep.subr.mxu0 0.0
    %5466 = vmatpush1.msra.mxu0 0.0
    %5467 = vmatprep.subr.mxu0 0.0
    %5468 = vmatpush1.msra.mxu0 0.0
    %5469 = vmatprep.mubr.f32.mxu0 0.0
    %5470 = vmatmul.mubr.f32.gmra.mrb[0].mxu0 %v5394
    %v5471 = vpop.f32.mrb[0].mxu0
    %v5472 = vadd.f32 0.0, %v5471
    %v5473 = vpop.f32.mrb[0].mxu0
    %v5474 = vadd.f32 0.0, %v5473
    %5475 = vmatprep.mubr.f32.mxu0 0.0
    %5476 = vmatmul.mubr.f32.gmra.mrb[0].mxu0 %v5397
    %v5477 = vpop.f32.mrb[0].mxu0
    %v5478 = vadd.f32 0.0, %v5477
    %v5479 = vpop.f32.mrb[0].mxu0
    %v5480 = vadd.f32 0.0, %v5479
    %5481 = vmatprep.mubr.f32.mxu0 0.0
    %5482 = vmatmul.mubr.f32.gmra.mrb[0].mxu0 %v5400
    %v5483 = vpop.f32.mrb[0].mxu0
    %v5484 = vadd.f32 0.0, %v5483
    %v5485 = vpop.f32.mrb[0].mxu0
    %v5486 = vadd.f32 0.0, %v5485
    %5487 = vmatprep.mubr.f32.mxu0 0.0
    %5488 = vmatmul.mubr.f32.gmra.mrb[0].mxu0 %v5403
    %v5489 = vpop.f32.mrb[0].mxu0
    %v5490 = vadd.f32 0.0, %v5489
    %v5491 = vpop.f32.mrb[0].mxu0
    %v5492 = vadd.f32 0.0, %v5491
    %5493 = vdwg.mxu0
    %v5495 = vsel %vm711, %v5384, 0
    %v5498 = vsel %vm711, %v5385, 0
    %v5501 = vsel %vm711, %v5386, 0
    %v5504 = vsel %vm711, %v5387, 0
    %5506 = vmatprep.subr.mxu0 %v5163
    %5507 = vmatpush1.msra.mxu0 %v5162
    %5508 = vmatprep.subr.mxu0 %v5239
    %5509 = vmatpush1.msra.mxu0 %v5237
    %5510 = vmatprep.subr.mxu0 %v5310
    %5511 = vmatpush1.msra.mxu0 %v5308
    %5512 = vmatprep.subr.mxu0 %v5381
    %5513 = vmatpush1.msra.mxu0 %v5379
    %5514 = vmatprep.subr.mxu0 0.0
    %5515 = vmatpush1.msra.mxu0 0.0
    %5516 = vmatprep.subr.mxu0 0.0
    %5517 = vmatpush1.msra.mxu0 0.0
    %5518 = vmatprep.subr.mxu0 0.0
    %5519 = vmatpush1.msra.mxu0 0.0
    %5520 = vmatprep.subr.mxu0 0.0
    %5521 = vmatpush1.msra.mxu0 0.0
    %5522 = vmatprep.subr.mxu0 0.0
    %5523 = vmatpush1.msra.mxu0 0.0
    %5524 = vmatprep.subr.mxu0 0.0
    %5525 = vmatpush1.msra.mxu0 0.0
    %5526 = vmatprep.subr.mxu0 0.0
    %5527 = vmatpush1.msra.mxu0 0.0
    %5528 = vmatprep.subr.mxu0 0.0
    %5529 = vmatpush1.msra.mxu0 0.0
    %5530 = vmatprep.subr.mxu0 0.0
    %5531 = vmatpush1.msra.mxu0 0.0
    %5532 = vmatprep.subr.mxu0 0.0
    %5533 = vmatpush1.msra.mxu0 0.0
    %5534 = vmatprep.subr.mxu0 0.0
    %5535 = vmatpush1.msra.mxu0 0.0
    %5536 = vmatprep.subr.mxu0 0.0
    %5537 = vmatpush1.msra.mxu0 0.0
    %5538 = vmatprep.subr.mxu0 0.0
    %5539 = vmatpush1.msra.mxu0 0.0
    %5540 = vmatprep.subr.mxu0 0.0
    %5541 = vmatpush1.msra.mxu0 0.0
    %5542 = vmatprep.subr.mxu0 0.0
    %5543 = vmatpush1.msra.mxu0 0.0
    %5544 = vmatprep.subr.mxu0 0.0
    %5545 = vmatpush1.msra.mxu0 0.0
    %5546 = vmatprep.subr.mxu0 0.0
    %5547 = vmatpush1.msra.mxu0 0.0
    %5548 = vmatprep.subr.mxu0 0.0
    %5549 = vmatpush1.msra.mxu0 0.0
    %5550 = vmatprep.subr.mxu0 0.0
    %5551 = vmatpush1.msra.mxu0 0.0
    %5552 = vmatprep.subr.mxu0 0.0
    %5553 = vmatpush1.msra.mxu0 0.0
    %5554 = vmatprep.subr.mxu0 0.0
    %5555 = vmatpush1.msra.mxu0 0.0
    %5556 = vmatprep.subr.mxu0 0.0
    %5557 = vmatpush1.msra.mxu0 0.0
    %5558 = vmatprep.subr.mxu0 0.0
    %5559 = vmatpush1.msra.mxu0 0.0
    %5560 = vmatprep.subr.mxu0 0.0
    %5561 = vmatpush1.msra.mxu0 0.0
    %5562 = vmatprep.subr.mxu0 0.0
    %5563 = vmatpush1.msra.mxu0 0.0
    %5564 = vmatprep.subr.mxu0 0.0
    %5565 = vmatpush1.msra.mxu0 0.0
    %5566 = vmatprep.subr.mxu0 0.0
    %5567 = vmatpush1.msra.mxu0 0.0
    %5568 = vmatprep.subr.mxu0 0.0
    %5569 = vmatpush1.msra.mxu0 0.0
    %5570 = vmatprep.mubr.f32.mxu0 0.0
    %5571 = vmatmul.mubr.f32.gmra.mrb[0].mxu0 %v5495
    %v5572 = vpop.f32.mrb[0].mxu0
    %v5573 = vadd.f32 %v5472, %v5572
    %v5574 = vpop.f32.mrb[0].mxu0
    %v5575 = vadd.f32 %v5474, %v5574
    %5576 = vmatprep.mubr.f32.mxu0 0.0
    %5577 = vmatmul.mubr.f32.gmra.mrb[0].mxu0 %v5498
    %v5578 = vpop.f32.mrb[0].mxu0
    %v5579 = vadd.f32 %v5478, %v5578
    %v5580 = vpop.f32.mrb[0].mxu0
    %v5581 = vadd.f32 %v5480, %v5580
    %5582 = vmatprep.mubr.f32.mxu0 0.0
    %5583 = vmatmul.mubr.f32.gmra.mrb[0].mxu0 %v5501
    %v5584 = vpop.f32.mrb[0].mxu0
    %v5585 = vadd.f32 %v5484, %v5584
    %v5586 = vpop.f32.mrb[0].mxu0
    %v5587 = vadd.f32 %v5486, %v5586
    %5588 = vmatprep.mubr.f32.mxu0 0.0
    %5589 = vmatmul.mubr.f32.gmra.mrb[0].mxu0 %v5504
    %v5590 = vpop.f32.mrb[0].mxu0
    %v5591 = vadd.f32 %v5490, %v5590
    %v5592 = vpop.f32.mrb[0].mxu0
    %v5593 = vadd.f32 %v5492, %v5592
    %5594 = vdwg.mxu0
    %s5595 = scalar_lea.vmem %s9, 96
    %v5596 = vld [vmem:[%s5595] sm:$0xff]
    %v5597 = vld [vmem:[%s5595 + $0x8] sm:$0xff]
    %v5598 = vld [vmem:[%s5595 + $0x10] sm:$0xff]
    %v5599 = vld [vmem:[%s5595 + $0x18] sm:$0xff]
    %5601 = vset.pattern.permute.xlu0 0
    %5602 = vperm.xlu0 %5601, %v5596
    %v5603 = vpop.permute.xlu0 %5602
    %5606 = vset.pattern.permute.xlu0 0
    %5607 = vperm.xlu0 %5606, %v5597
    %v5608 = vpop.permute.xlu0 %5607
    %5611 = vset.pattern.permute.xlu0 0
    %5612 = vperm.xlu0 %5611, %v5598
    %v5613 = vpop.permute.xlu0 %5612
    %5616 = vset.pattern.permute.xlu0 0
    %5617 = vperm.xlu0 %5616, %v5599
    %v5618 = vpop.permute.xlu0 %5617
    %v5620 = vadd.f32 %v5573, %v5603
    %v5621 = vadd.f32 %v5575, %v5603
    %v5622 = vadd.f32 %v5579, %v5608
    %v5623 = vadd.f32 %v5581, %v5608
    %v5624 = vadd.f32 %v5585, %v5613
    %v5625 = vadd.f32 %v5587, %v5613
    %v5626 = vadd.f32 %v5591, %v5618
    %v5627 = vadd.f32 %v5593, %v5618
    %v5628 = vmax.f32 %v5620, 0.0
    %v5629 = vmax.f32 %v5621, 0.0
    %v5630 = vmax.f32 %v5622, 0.0
    %v5631 = vmax.f32 %v5623, 0.0
    %v5632 = vmax.f32 %v5624, 0.0
    %v5633 = vmax.f32 %v5625, 0.0
    %v5634 = vmax.f32 %v5626, 0.0
    %v5635 = vmax.f32 %v5627, 0.0
    %5636 = vmatprep.subr.mxu0 %v67
    %5637 = vmatpush1.msra.mxu0 %v66
    %5638 = vmatprep.subr.mxu0 %v69
    %5639 = vmatpush1.msra.mxu0 %v68
    %5640 = vmatprep.subr.mxu0 %v71
    %5641 = vmatpush1.msra.mxu0 %v70
    %5642 = vmatprep.subr.mxu0 %v73
    %5643 = vmatpush1.msra.mxu0 %v72
    %5644 = vmatprep.subr.mxu0 %v75
    %5645 = vmatpush1.msra.mxu0 %v74
    %5646 = vmatprep.subr.mxu0 %v77
    %5647 = vmatpush1.msra.mxu0 %v76
    %5648 = vmatprep.subr.mxu0 %v79
    %5649 = vmatpush1.msra.mxu0 %v78
    %5650 = vmatprep.subr.mxu0 %v81
    %5651 = vmatpush1.msra.mxu0 %v80
    %5652 = vmatprep.subr.mxu0 %v83
    %5653 = vmatpush1.msra.mxu0 %v82
    %5654 = vmatprep.subr.mxu0 %v85
    %5655 = vmatpush1.msra.mxu0 %v84
    %5656 = vmatprep.subr.mxu0 %v87
    %5657 = vmatpush1.msra.mxu0 %v86
    %5658 = vmatprep.subr.mxu0 %v89
    %5659 = vmatpush1.msra.mxu0 %v88
    %5660 = vmatprep.subr.mxu0 %v91
    %5661 = vmatpush1.msra.mxu0 %v90
    %5662 = vmatprep.subr.mxu0 %v93
    %5663 = vmatpush1.msra.mxu0 %v92
    %5664 = vmatprep.subr.mxu0 %v95
    %5665 = vmatpush1.msra.mxu0 %v94
    %5666 = vmatprep.subr.mxu0 %v97
    %5667 = vmatpush1.msra.mxu0 %v96
    %5668 = vmatprep.subr.mxu0 %v99
    %5669 = vmatpush1.msra.mxu0 %v98
    %5670 = vmatprep.subr.mxu0 %v101
    %5671 = vmatpush1.msra.mxu0 %v100
    %5672 = vmatprep.subr.mxu0 %v103
    %5673 = vmatpush1.msra.mxu0 %v102
    %5674 = vmatprep.subr.mxu0 %v105
    %5675 = vmatpush1.msra.mxu0 %v104
    %5676 = vmatprep.subr.mxu0 %v107
    %5677 = vmatpush1.msra.mxu0 %v106
    %5678 = vmatprep.subr.mxu0 %v109
    %5679 = vmatpush1.msra.mxu0 %v108
    %5680 = vmatprep.subr.mxu0 %v111
    %5681 = vmatpush1.msra.mxu0 %v110
    %5682 = vmatprep.subr.mxu0 %v113
    %5683 = vmatpush1.msra.mxu0 %v112
    %5684 = vmatprep.subr.mxu0 %v115
    %5685 = vmatpush1.msra.mxu0 %v114
    %5686 = vmatprep.subr.mxu0 %v117
    %5687 = vmatpush1.msra.mxu0 %v116
    %5688 = vmatprep.subr.mxu0 %v119
    %5689 = vmatpush1.msra.mxu0 %v118
    %5690 = vmatprep.subr.mxu0 %v121
    %5691 = vmatpush1.msra.mxu0 %v120
    %5692 = vmatprep.subr.mxu0 %v123
    %5693 = vmatpush1.msra.mxu0 %v122
    %5694 = vmatprep.subr.mxu0 %v125
    %5695 = vmatpush1.msra.mxu0 %v124
    %5696 = vmatprep.subr.mxu0 %v127
    %5697 = vmatpush1.msra.mxu0 %v126
    %5698 = vmatprep.subr.mxu0 %v129
    %5699 = vmatpush1.msra.mxu0 %v128
    %5700 = vmatprep.mubr.f32.mxu0 %v5631
    %5701 = vmatmul.mubr.f32.gmra.mrb[0].mxu0 %v5630
    %v5702 = vpop.f32.mrb[0].mxu0
    %v5703 = vadd.f32 0.0, %v5702
    %v5704 = vpop.f32.mrb[0].mxu0
    %v5705 = vadd.f32 0.0, %v5704
    %5706 = vdwg.mxu0
    %5707 = vmatprep.subr.mxu0 %v132
    %5708 = vmatpush1.msra.mxu0 %v131
    %5709 = vmatprep.subr.mxu0 %v134
    %5710 = vmatpush1.msra.mxu0 %v133
    %5711 = vmatprep.subr.mxu0 %v136
    %5712 = vmatpush1.msra.mxu0 %v135
    %5713 = vmatprep.subr.mxu0 %v138
    %5714 = vmatpush1.msra.mxu0 %v137
    %5715 = vmatprep.subr.mxu0 %v140
    %5716 = vmatpush1.msra.mxu0 %v139
    %5717 = vmatprep.subr.mxu0 %v142
    %5718 = vmatpush1.msra.mxu0 %v141
    %5719 = vmatprep.subr.mxu0 %v144
    %5720 = vmatpush1.msra.mxu0 %v143
    %5721 = vmatprep.subr.mxu0 %v146
    %5722 = vmatpush1.msra.mxu0 %v145
    %5723 = vmatprep.subr.mxu0 %v148
    %5724 = vmatpush1.msra.mxu0 %v147
    %5725 = vmatprep.subr.mxu0 %v150
    %5726 = vmatpush1.msra.mxu0 %v149
    %5727 = vmatprep.subr.mxu0 %v152
    %5728 = vmatpush1.msra.mxu0 %v151
    %5729 = vmatprep.subr.mxu0 %v154
    %5730 = vmatpush1.msra.mxu0 %v153
    %5731 = vmatprep.subr.mxu0 %v156
    %5732 = vmatpush1.msra.mxu0 %v155
    %5733 = vmatprep.subr.mxu0 %v158
    %5734 = vmatpush1.msra.mxu0 %v157
    %5735 = vmatprep.subr.mxu0 %v160
    %5736 = vmatpush1.msra.mxu0 %v159
    %5737 = vmatprep.subr.mxu0 %v162
    %5738 = vmatpush1.msra.mxu0 %v161
    %5739 = vmatprep.subr.mxu0 %v164
    %5740 = vmatpush1.msra.mxu0 %v163
    %5741 = vmatprep.subr.mxu0 %v166
    %5742 = vmatpush1.msra.mxu0 %v165
    %5743 = vmatprep.subr.mxu0 %v168
    %5744 = vmatpush1.msra.mxu0 %v167
    %5745 = vmatprep.subr.mxu0 %v170
    %5746 = vmatpush1.msra.mxu0 %v169
    %5747 = vmatprep.subr.mxu0 %v172
    %5748 = vmatpush1.msra.mxu0 %v171
    %5749 = vmatprep.subr.mxu0 %v174
    %5750 = vmatpush1.msra.mxu0 %v173
    %5751 = vmatprep.subr.mxu0 %v176
    %5752 = vmatpush1.msra.mxu0 %v175
    %5753 = vmatprep.subr.mxu0 %v178
    %5754 = vmatpush1.msra.mxu0 %v177
    %5755 = vmatprep.subr.mxu0 %v180
    %5756 = vmatpush1.msra.mxu0 %v179
    %5757 = vmatprep.subr.mxu0 %v182
    %5758 = vmatpush1.msra.mxu0 %v181
    %5759 = vmatprep.subr.mxu0 %v184
    %5760 = vmatpush1.msra.mxu0 %v183
    %5761 = vmatprep.subr.mxu0 %v186
    %5762 = vmatpush1.msra.mxu0 %v185
    %5763 = vmatprep.subr.mxu0 %v188
    %5764 = vmatpush1.msra.mxu0 %v187
    %5765 = vmatprep.subr.mxu0 %v190
    %5766 = vmatpush1.msra.mxu0 %v189
    %5767 = vmatprep.subr.mxu0 %v192
    %5768 = vmatpush1.msra.mxu0 %v191
    %5769 = vmatprep.subr.mxu0 %v194
    %5770 = vmatpush1.msra.mxu0 %v193
    %5771 = vmatprep.mubr.f32.mxu0 %v5633
    %5772 = vmatmul.mubr.f32.gmra.mrb[0].mxu0 %v5632
    %v5773 = vpop.f32.mrb[0].mxu0
    %v5774 = vadd.f32 0.0, %v5773
    %v5775 = vpop.f32.mrb[0].mxu0
    %v5776 = vadd.f32 0.0, %v5775
    %5777 = vdwg.mxu0
    %5778 = vmatprep.subr.mxu0 %v197
    %5779 = vmatpush1.msra.mxu0 %v196
    %5780 = vmatprep.subr.mxu0 %v199
    %5781 = vmatpush1.msra.mxu0 %v198
    %5782 = vmatprep.subr.mxu0 %v201
    %5783 = vmatpush1.msra.mxu0 %v200
    %5784 = vmatprep.subr.mxu0 %v203
    %5785 = vmatpush1.msra.mxu0 %v202
    %5786 = vmatprep.subr.mxu0 %v205
    %5787 = vmatpush1.msra.mxu0 %v204
    %5788 = vmatprep.subr.mxu0 %v207
    %5789 = vmatpush1.msra.mxu0 %v206
    %5790 = vmatprep.subr.mxu0 %v209
    %5791 = vmatpush1.msra.mxu0 %v208
    %5792 = vmatprep.subr.mxu0 %v211
    %5793 = vmatpush1.msra.mxu0 %v210
    %5794 = vmatprep.subr.mxu0 %v213
    %5795 = vmatpush1.msra.mxu0 %v212
    %5796 = vmatprep.subr.mxu0 %v215
    %5797 = vmatpush1.msra.mxu0 %v214
    %5798 = vmatprep.subr.mxu0 %v217
    %5799 = vmatpush1.msra.mxu0 %v216
    %5800 = vmatprep.subr.mxu0 %v219
    %5801 = vmatpush1.msra.mxu0 %v218
    %5802 = vmatprep.subr.mxu0 %v221
    %5803 = vmatpush1.msra.mxu0 %v220
    %5804 = vmatprep.subr.mxu0 %v223
    %5805 = vmatpush1.msra.mxu0 %v222
    %5806 = vmatprep.subr.mxu0 %v225
    %5807 = vmatpush1.msra.mxu0 %v224
    %5808 = vmatprep.subr.mxu0 %v227
    %5809 = vmatpush1.msra.mxu0 %v226
    %5810 = vmatprep.subr.mxu0 %v229
    %5811 = vmatpush1.msra.mxu0 %v228
    %5812 = vmatprep.subr.mxu0 %v231
    %5813 = vmatpush1.msra.mxu0 %v230
    %5814 = vmatprep.subr.mxu0 %v233
    %5815 = vmatpush1.msra.mxu0 %v232
    %5816 = vmatprep.subr.mxu0 %v235
    %5817 = vmatpush1.msra.mxu0 %v234
    %5818 = vmatprep.subr.mxu0 %v237
    %5819 = vmatpush1.msra.mxu0 %v236
    %5820 = vmatprep.subr.mxu0 %v239
    %5821 = vmatpush1.msra.mxu0 %v238
    %5822 = vmatprep.subr.mxu0 %v241
    %5823 = vmatpush1.msra.mxu0 %v240
    %5824 = vmatprep.subr.mxu0 %v243
    %5825 = vmatpush1.msra.mxu0 %v242
    %5826 = vmatprep.subr.mxu0 %v245
    %5827 = vmatpush1.msra.mxu0 %v244
    %5828 = vmatprep.subr.mxu0 %v247
    %5829 = vmatpush1.msra.mxu0 %v246
    %5830 = vmatprep.subr.mxu0 %v249
    %5831 = vmatpush1.msra.mxu0 %v248
    %5832 = vmatprep.subr.mxu0 %v251
    %5833 = vmatpush1.msra.mxu0 %v250
    %5834 = vmatprep.subr.mxu0 %v253
    %5835 = vmatpush1.msra.mxu0 %v252
    %5836 = vmatprep.subr.mxu0 %v255
    %5837 = vmatpush1.msra.mxu0 %v254
    %5838 = vmatprep.subr.mxu0 %v257
    %5839 = vmatpush1.msra.mxu0 %v256
    %5840 = vmatprep.subr.mxu0 %v259
    %5841 = vmatpush1.msra.mxu0 %v258
    %5842 = vmatprep.mubr.f32.mxu0 %v5635
    %5843 = vmatmul.mubr.f32.gmra.mrb[0].mxu0 %v5634
    %v5844 = vpop.f32.mrb[0].mxu0
    %v5845 = vadd.f32 0.0, %v5844
    %v5846 = vpop.f32.mrb[0].mxu0
    %v5847 = vadd.f32 0.0, %v5846
    %5848 = vdwg.mxu0
    %s5849 = scalar_lea.vmem %s10, 96
    %v5850 = vld [vmem:[%s5849] sm:$0xff]
    %v5851 = vld [vmem:[%s5849 + $0x8] sm:$0xff]
    %v5852 = vld [vmem:[%s5849 + $0x10] sm:$0xff]
    %v5853 = vld [vmem:[%s5849 + $0x18] sm:$0xff]
    %s5854 = scalar_lea.vmem %s11, 96
    %v5855 = vld [vmem:[%s5854] sm:$0xff]
    %v5856 = vld [vmem:[%s5854 + $0x8] sm:$0xff]
    %v5857 = vld [vmem:[%s5854 + $0x10] sm:$0xff]
    %v5858 = vld [vmem:[%s5854 + $0x18] sm:$0xff]
    %5860 = vset.pattern.permute.xlu0 0
    %5861 = vperm.xlu0 %5860, %v5855
    %v5862 = vpop.permute.xlu0 %5861
    %5865 = vset.pattern.permute.xlu0 0
    %5866 = vperm.xlu0 %5865, %v5856
    %v5867 = vpop.permute.xlu0 %5866
    %5870 = vset.pattern.permute.xlu0 0
    %5871 = vperm.xlu0 %5870, %v5857
    %v5872 = vpop.permute.xlu0 %5871
    %5875 = vset.pattern.permute.xlu0 0
    %5876 = vperm.xlu0 %5875, %v5858
    %v5877 = vpop.permute.xlu0 %5876
    %v5880 = vsel %vm711, %v5850, 0
    %v5883 = vsel %vm711, %v5851, 0
    %v5886 = vsel %vm711, %v5852, 0
    %v5889 = vsel %vm711, %v5853, 0
    %5891 = vmatprep.subr.mxu0 %v5629
    %5892 = vmatpush1.msra.mxu0 %v5628
    %5893 = vmatprep.subr.mxu0 %v5705
    %5894 = vmatpush1.msra.mxu0 %v5703
    %5895 = vmatprep.subr.mxu0 %v5776
    %5896 = vmatpush1.msra.mxu0 %v5774
    %5897 = vmatprep.subr.mxu0 %v5847
    %5898 = vmatpush1.msra.mxu0 %v5845
    %5899 = vmatprep.subr.mxu0 0.0
    %5900 = vmatpush1.msra.mxu0 0.0
    %5901 = vmatprep.subr.mxu0 0.0
    %5902 = vmatpush1.msra.mxu0 0.0
    %5903 = vmatprep.subr.mxu0 0.0
    %5904 = vmatpush1.msra.mxu0 0.0
    %5905 = vmatprep.subr.mxu0 0.0
    %5906 = vmatpush1.msra.mxu0 0.0
    %5907 = vmatprep.subr.mxu0 0.0
    %5908 = vmatpush1.msra.mxu0 0.0
    %5909 = vmatprep.subr.mxu0 0.0
    %5910 = vmatpush1.msra.mxu0 0.0
    %5911 = vmatprep.subr.mxu0 0.0
    %5912 = vmatpush1.msra.mxu0 0.0
    %5913 = vmatprep.subr.mxu0 0.0
    %5914 = vmatpush1.msra.mxu0 0.0
    %5915 = vmatprep.subr.mxu0 0.0
    %5916 = vmatpush1.msra.mxu0 0.0
    %5917 = vmatprep.subr.mxu0 0.0
    %5918 = vmatpush1.msra.mxu0 0.0
    %5919 = vmatprep.subr.mxu0 0.0
    %5920 = vmatpush1.msra.mxu0 0.0
    %5921 = vmatprep.subr.mxu0 0.0
    %5922 = vmatpush1.msra.mxu0 0.0
    %5923 = vmatprep.subr.mxu0 0.0
    %5924 = vmatpush1.msra.mxu0 0.0
    %5925 = vmatprep.subr.mxu0 0.0
    %5926 = vmatpush1.msra.mxu0 0.0
    %5927 = vmatprep.subr.mxu0 0.0
    %5928 = vmatpush1.msra.mxu0 0.0
    %5929 = vmatprep.subr.mxu0 0.0
    %5930 = vmatpush1.msra.mxu0 0.0
    %5931 = vmatprep.subr.mxu0 0.0
    %5932 = vmatpush1.msra.mxu0 0.0
    %5933 = vmatprep.subr.mxu0 0.0
    %5934 = vmatpush1.msra.mxu0 0.0
    %5935 = vmatprep.subr.mxu0 0.0
    %5936 = vmatpush1.msra.mxu0 0.0
    %5937 = vmatprep.subr.mxu0 0.0
    %5938 = vmatpush1.msra.mxu0 0.0
    %5939 = vmatprep.subr.mxu0 0.0
    %5940 = vmatpush1.msra.mxu0 0.0
    %5941 = vmatprep.subr.mxu0 0.0
    %5942 = vmatpush1.msra.mxu0 0.0
    %5943 = vmatprep.subr.mxu0 0.0
    %5944 = vmatpush1.msra.mxu0 0.0
    %5945 = vmatprep.subr.mxu0 0.0
    %5946 = vmatpush1.msra.mxu0 0.0
    %5947 = vmatprep.subr.mxu0 0.0
    %5948 = vmatpush1.msra.mxu0 0.0
    %5949 = vmatprep.subr.mxu0 0.0
    %5950 = vmatpush1.msra.mxu0 0.0
    %5951 = vmatprep.subr.mxu0 0.0
    %5952 = vmatpush1.msra.mxu0 0.0
    %5953 = vmatprep.subr.mxu0 0.0
    %5954 = vmatpush1.msra.mxu0 0.0
    %5955 = vmatprep.mubr.f32.mxu0 0.0
    %5956 = vmatmul.mubr.f32.gmra.mrb[0].mxu0 %v5880
    %v5957 = vpop.f32.mrb[0].mxu0
    %v5958 = vadd.f32 %v5862, %v5957
    %v5959 = vpop.f32.mrb[0].mxu0
    %v5960 = vadd.f32 %v5862, %v5959
    %5961 = vmatprep.mubr.f32.mxu0 0.0
    %5962 = vmatmul.mubr.f32.gmra.mrb[0].mxu0 %v5883
    %v5963 = vpop.f32.mrb[0].mxu0
    %v5964 = vadd.f32 %v5867, %v5963
    %v5965 = vpop.f32.mrb[0].mxu0
    %v5966 = vadd.f32 %v5867, %v5965
    %5967 = vmatprep.mubr.f32.mxu0 0.0
    %5968 = vmatmul.mubr.f32.gmra.mrb[0].mxu0 %v5886
    %v5969 = vpop.f32.mrb[0].mxu0
    %v5970 = vadd.f32 %v5872, %v5969
    %v5971 = vpop.f32.mrb[0].mxu0
    %v5972 = vadd.f32 %v5872, %v5971
    %5973 = vmatprep.mubr.f32.mxu0 0.0
    %5974 = vmatmul.mubr.f32.gmra.mrb[0].mxu0 %v5889
    %v5975 = vpop.f32.mrb[0].mxu0
    %v5976 = vadd.f32 %v5877, %v5975
    %v5977 = vpop.f32.mrb[0].mxu0
    %v5978 = vadd.f32 %v5877, %v5977
    %5979 = vdwg.mxu0
    %v5980 = vmax.f32 %v5958, 0.0
    %v5981 = vmax.f32 %v5960, 0.0
    %v5982 = vmax.f32 %v5964, 0.0
    %v5983 = vmax.f32 %v5966, 0.0
    %v5984 = vmax.f32 %v5970, 0.0
    %v5985 = vmax.f32 %v5972, 0.0
    %v5986 = vmax.f32 %v5976, 0.0
    %v5987 = vmax.f32 %v5978, 0.0
    %5988 = vmatprep.subr.mxu0 %v67
    %5989 = vmatpush1.msra.mxu0 %v66
    %5990 = vmatprep.subr.mxu0 %v69
    %5991 = vmatpush1.msra.mxu0 %v68
    %5992 = vmatprep.subr.mxu0 %v71
    %5993 = vmatpush1.msra.mxu0 %v70
    %5994 = vmatprep.subr.mxu0 %v73
    %5995 = vmatpush1.msra.mxu0 %v72
    %5996 = vmatprep.subr.mxu0 %v75
    %5997 = vmatpush1.msra.mxu0 %v74
    %5998 = vmatprep.subr.mxu0 %v77
    %5999 = vmatpush1.msra.mxu0 %v76
    %6000 = vmatprep.subr.mxu0 %v79
    %6001 = vmatpush1.msra.mxu0 %v78
    %6002 = vmatprep.subr.mxu0 %v81
    %6003 = vmatpush1.msra.mxu0 %v80
    %6004 = vmatprep.subr.mxu0 %v83
    %6005 = vmatpush1.msra.mxu0 %v82
    %6006 = vmatprep.subr.mxu0 %v85
    %6007 = vmatpush1.msra.mxu0 %v84
    %6008 = vmatprep.subr.mxu0 %v87
    %6009 = vmatpush1.msra.mxu0 %v86
    %6010 = vmatprep.subr.mxu0 %v89
    %6011 = vmatpush1.msra.mxu0 %v88
    %6012 = vmatprep.subr.mxu0 %v91
    %6013 = vmatpush1.msra.mxu0 %v90
    %6014 = vmatprep.subr.mxu0 %v93
    %6015 = vmatpush1.msra.mxu0 %v92
    %6016 = vmatprep.subr.mxu0 %v95
    %6017 = vmatpush1.msra.mxu0 %v94
    %6018 = vmatprep.subr.mxu0 %v97
    %6019 = vmatpush1.msra.mxu0 %v96
    %6020 = vmatprep.subr.mxu0 %v99
    %6021 = vmatpush1.msra.mxu0 %v98
    %6022 = vmatprep.subr.mxu0 %v101
    %6023 = vmatpush1.msra.mxu0 %v100
    %6024 = vmatprep.subr.mxu0 %v103
    %6025 = vmatpush1.msra.mxu0 %v102
    %6026 = vmatprep.subr.mxu0 %v105
    %6027 = vmatpush1.msra.mxu0 %v104
    %6028 = vmatprep.subr.mxu0 %v107
    %6029 = vmatpush1.msra.mxu0 %v106
    %6030 = vmatprep.subr.mxu0 %v109
    %6031 = vmatpush1.msra.mxu0 %v108
    %6032 = vmatprep.subr.mxu0 %v111
    %6033 = vmatpush1.msra.mxu0 %v110
    %6034 = vmatprep.subr.mxu0 %v113
    %6035 = vmatpush1.msra.mxu0 %v112
    %6036 = vmatprep.subr.mxu0 %v115
    %6037 = vmatpush1.msra.mxu0 %v114
    %6038 = vmatprep.subr.mxu0 %v117
    %6039 = vmatpush1.msra.mxu0 %v116
    %6040 = vmatprep.subr.mxu0 %v119
    %6041 = vmatpush1.msra.mxu0 %v118
    %6042 = vmatprep.subr.mxu0 %v121
    %6043 = vmatpush1.msra.mxu0 %v120
    %6044 = vmatprep.subr.mxu0 %v123
    %6045 = vmatpush1.msra.mxu0 %v122
    %6046 = vmatprep.subr.mxu0 %v125
    %6047 = vmatpush1.msra.mxu0 %v124
    %6048 = vmatprep.subr.mxu0 %v127
    %6049 = vmatpush1.msra.mxu0 %v126
    %6050 = vmatprep.subr.mxu0 %v129
    %6051 = vmatpush1.msra.mxu0 %v128
    %6052 = vmatprep.mubr.f32.mxu0 %v5983
    %6053 = vmatmul.mubr.f32.gmra.mrb[0].mxu0 %v5982
    %v6054 = vpop.f32.mrb[0].mxu0
    %v6055 = vadd.f32 0.0, %v6054
    %v6056 = vpop.f32.mrb[0].mxu0
    %v6057 = vadd.f32 0.0, %v6056
    %6058 = vdwg.mxu0
    %6059 = vmatprep.subr.mxu0 %v132
    %6060 = vmatpush1.msra.mxu0 %v131
    %6061 = vmatprep.subr.mxu0 %v134
    %6062 = vmatpush1.msra.mxu0 %v133
    %6063 = vmatprep.subr.mxu0 %v136
    %6064 = vmatpush1.msra.mxu0 %v135
    %6065 = vmatprep.subr.mxu0 %v138
    %6066 = vmatpush1.msra.mxu0 %v137
    %6067 = vmatprep.subr.mxu0 %v140
    %6068 = vmatpush1.msra.mxu0 %v139
    %6069 = vmatprep.subr.mxu0 %v142
    %6070 = vmatpush1.msra.mxu0 %v141
    %6071 = vmatprep.subr.mxu0 %v144
    %6072 = vmatpush1.msra.mxu0 %v143
    %6073 = vmatprep.subr.mxu0 %v146
    %6074 = vmatpush1.msra.mxu0 %v145
    %6075 = vmatprep.subr.mxu0 %v148
    %6076 = vmatpush1.msra.mxu0 %v147
    %6077 = vmatprep.subr.mxu0 %v150
    %6078 = vmatpush1.msra.mxu0 %v149
    %6079 = vmatprep.subr.mxu0 %v152
    %6080 = vmatpush1.msra.mxu0 %v151
    %6081 = vmatprep.subr.mxu0 %v154
    %6082 = vmatpush1.msra.mxu0 %v153
    %6083 = vmatprep.subr.mxu0 %v156
    %6084 = vmatpush1.msra.mxu0 %v155
    %6085 = vmatprep.subr.mxu0 %v158
    %6086 = vmatpush1.msra.mxu0 %v157
    %6087 = vmatprep.subr.mxu0 %v160
    %6088 = vmatpush1.msra.mxu0 %v159
    %6089 = vmatprep.subr.mxu0 %v162
    %6090 = vmatpush1.msra.mxu0 %v161
    %6091 = vmatprep.subr.mxu0 %v164
    %6092 = vmatpush1.msra.mxu0 %v163
    %6093 = vmatprep.subr.mxu0 %v166
    %6094 = vmatpush1.msra.mxu0 %v165
    %6095 = vmatprep.subr.mxu0 %v168
    %6096 = vmatpush1.msra.mxu0 %v167
    %6097 = vmatprep.subr.mxu0 %v170
    %6098 = vmatpush1.msra.mxu0 %v169
    %6099 = vmatprep.subr.mxu0 %v172
    %6100 = vmatpush1.msra.mxu0 %v171
    %6101 = vmatprep.subr.mxu0 %v174
    %6102 = vmatpush1.msra.mxu0 %v173
    %6103 = vmatprep.subr.mxu0 %v176
    %6104 = vmatpush1.msra.mxu0 %v175
    %6105 = vmatprep.subr.mxu0 %v178
    %6106 = vmatpush1.msra.mxu0 %v177
    %6107 = vmatprep.subr.mxu0 %v180
    %6108 = vmatpush1.msra.mxu0 %v179
    %6109 = vmatprep.subr.mxu0 %v182
    %6110 = vmatpush1.msra.mxu0 %v181
    %6111 = vmatprep.subr.mxu0 %v184
    %6112 = vmatpush1.msra.mxu0 %v183
    %6113 = vmatprep.subr.mxu0 %v186
    %6114 = vmatpush1.msra.mxu0 %v185
    %6115 = vmatprep.subr.mxu0 %v188
    %6116 = vmatpush1.msra.mxu0 %v187
    %6117 = vmatprep.subr.mxu0 %v190
    %6118 = vmatpush1.msra.mxu0 %v189
    %6119 = vmatprep.subr.mxu0 %v192
    %6120 = vmatpush1.msra.mxu0 %v191
    %6121 = vmatprep.subr.mxu0 %v194
    %6122 = vmatpush1.msra.mxu0 %v193
    %6123 = vmatprep.mubr.f32.mxu0 %v5985
    %6124 = vmatmul.mubr.f32.gmra.mrb[0].mxu0 %v5984
    %v6125 = vpop.f32.mrb[0].mxu0
    %v6126 = vadd.f32 0.0, %v6125
    %v6127 = vpop.f32.mrb[0].mxu0
    %v6128 = vadd.f32 0.0, %v6127
    %6129 = vdwg.mxu0
    %6130 = vmatprep.subr.mxu0 %v197
    %6131 = vmatpush1.msra.mxu0 %v196
    %6132 = vmatprep.subr.mxu0 %v199
    %6133 = vmatpush1.msra.mxu0 %v198
    %6134 = vmatprep.subr.mxu0 %v201
    %6135 = vmatpush1.msra.mxu0 %v200
    %6136 = vmatprep.subr.mxu0 %v203
    %6137 = vmatpush1.msra.mxu0 %v202
    %6138 = vmatprep.subr.mxu0 %v205
    %6139 = vmatpush1.msra.mxu0 %v204
    %6140 = vmatprep.subr.mxu0 %v207
    %6141 = vmatpush1.msra.mxu0 %v206
    %6142 = vmatprep.subr.mxu0 %v209
    %6143 = vmatpush1.msra.mxu0 %v208
    %6144 = vmatprep.subr.mxu0 %v211
    %6145 = vmatpush1.msra.mxu0 %v210
    %6146 = vmatprep.subr.mxu0 %v213
    %6147 = vmatpush1.msra.mxu0 %v212
    %6148 = vmatprep.subr.mxu0 %v215
    %6149 = vmatpush1.msra.mxu0 %v214
    %6150 = vmatprep.subr.mxu0 %v217
    %6151 = vmatpush1.msra.mxu0 %v216
    %6152 = vmatprep.subr.mxu0 %v219
    %6153 = vmatpush1.msra.mxu0 %v218
    %6154 = vmatprep.subr.mxu0 %v221
    %6155 = vmatpush1.msra.mxu0 %v220
    %6156 = vmatprep.subr.mxu0 %v223
    %6157 = vmatpush1.msra.mxu0 %v222
    %6158 = vmatprep.subr.mxu0 %v225
    %6159 = vmatpush1.msra.mxu0 %v224
    %6160 = vmatprep.subr.mxu0 %v227
    %6161 = vmatpush1.msra.mxu0 %v226
    %6162 = vmatprep.subr.mxu0 %v229
    %6163 = vmatpush1.msra.mxu0 %v228
    %6164 = vmatprep.subr.mxu0 %v231
    %6165 = vmatpush1.msra.mxu0 %v230
    %6166 = vmatprep.subr.mxu0 %v233
    %6167 = vmatpush1.msra.mxu0 %v232
    %6168 = vmatprep.subr.mxu0 %v235
    %6169 = vmatpush1.msra.mxu0 %v234
    %6170 = vmatprep.subr.mxu0 %v237
    %6171 = vmatpush1.msra.mxu0 %v236
    %6172 = vmatprep.subr.mxu0 %v239
    %6173 = vmatpush1.msra.mxu0 %v238
    %6174 = vmatprep.subr.mxu0 %v241
    %6175 = vmatpush1.msra.mxu0 %v240
    %6176 = vmatprep.subr.mxu0 %v243
    %6177 = vmatpush1.msra.mxu0 %v242
    %6178 = vmatprep.subr.mxu0 %v245
    %6179 = vmatpush1.msra.mxu0 %v244
    %6180 = vmatprep.subr.mxu0 %v247
    %6181 = vmatpush1.msra.mxu0 %v246
    %6182 = vmatprep.subr.mxu0 %v249
    %6183 = vmatpush1.msra.mxu0 %v248
    %6184 = vmatprep.subr.mxu0 %v251
    %6185 = vmatpush1.msra.mxu0 %v250
    %6186 = vmatprep.subr.mxu0 %v253
    %6187 = vmatpush1.msra.mxu0 %v252
    %6188 = vmatprep.subr.mxu0 %v255
    %6189 = vmatpush1.msra.mxu0 %v254
    %6190 = vmatprep.subr.mxu0 %v257
    %6191 = vmatpush1.msra.mxu0 %v256
    %6192 = vmatprep.subr.mxu0 %v259
    %6193 = vmatpush1.msra.mxu0 %v258
    %6194 = vmatprep.mubr.f32.mxu0 %v5987
    %6195 = vmatmul.mubr.f32.gmra.mrb[0].mxu0 %v5986
    %v6196 = vpop.f32.mrb[0].mxu0
    %v6197 = vadd.f32 0.0, %v6196
    %v6198 = vpop.f32.mrb[0].mxu0
    %v6199 = vadd.f32 0.0, %v6198
    %6200 = vdwg.mxu0
    %6201 = vmatprep.subr.mxu0 %v261
    %6202 = vmatpush1.msra.mxu0 %v260
    %6203 = vmatprep.subr.mxu0 %v263
    %6204 = vmatpush1.msra.mxu0 %v262
    %6205 = vmatprep.subr.mxu0 %v265
    %6206 = vmatpush1.msra.mxu0 %v264
    %6207 = vmatprep.subr.mxu0 %v267
    %6208 = vmatpush1.msra.mxu0 %v266
    %6209 = vmatprep.subr.mxu0 %v269
    %6210 = vmatpush1.msra.mxu0 %v268
    %6211 = vmatprep.subr.mxu0 %v271
    %6212 = vmatpush1.msra.mxu0 %v270
    %6213 = vmatprep.subr.mxu0 %v273
    %6214 = vmatpush1.msra.mxu0 %v272
    %6215 = vmatprep.subr.mxu0 %v275
    %6216 = vmatpush1.msra.mxu0 %v274
    %6217 = vmatprep.subr.mxu0 %v277
    %6218 = vmatpush1.msra.mxu0 %v276
    %6219 = vmatprep.subr.mxu0 %v279
    %6220 = vmatpush1.msra.mxu0 %v278
    %6221 = vmatprep.subr.mxu0 %v281
    %6222 = vmatpush1.msra.mxu0 %v280
    %6223 = vmatprep.subr.mxu0 %v283
    %6224 = vmatpush1.msra.mxu0 %v282
    %6225 = vmatprep.subr.mxu0 %v285
    %6226 = vmatpush1.msra.mxu0 %v284
    %6227 = vmatprep.subr.mxu0 %v287
    %6228 = vmatpush1.msra.mxu0 %v286
    %6229 = vmatprep.subr.mxu0 %v289
    %6230 = vmatpush1.msra.mxu0 %v288
    %6231 = vmatprep.subr.mxu0 %v291
    %6232 = vmatpush1.msra.mxu0 %v290
    %6233 = vmatprep.subr.mxu0 %v293
    %6234 = vmatpush1.msra.mxu0 %v292
    %6235 = vmatprep.subr.mxu0 %v295
    %6236 = vmatpush1.msra.mxu0 %v294
    %6237 = vmatprep.subr.mxu0 %v297
    %6238 = vmatpush1.msra.mxu0 %v296
    %6239 = vmatprep.subr.mxu0 %v299
    %6240 = vmatpush1.msra.mxu0 %v298
    %6241 = vmatprep.subr.mxu0 %v301
    %6242 = vmatpush1.msra.mxu0 %v300
    %6243 = vmatprep.subr.mxu0 %v303
    %6244 = vmatpush1.msra.mxu0 %v302
    %6245 = vmatprep.subr.mxu0 %v305
    %6246 = vmatpush1.msra.mxu0 %v304
    %6247 = vmatprep.subr.mxu0 %v307
    %6248 = vmatpush1.msra.mxu0 %v306
    %6249 = vmatprep.subr.mxu0 %v309
    %6250 = vmatpush1.msra.mxu0 %v308
    %6251 = vmatprep.subr.mxu0 %v311
    %6252 = vmatpush1.msra.mxu0 %v310
    %6253 = vmatprep.subr.mxu0 %v313
    %6254 = vmatpush1.msra.mxu0 %v312
    %6255 = vmatprep.subr.mxu0 %v315
    %6256 = vmatpush1.msra.mxu0 %v314
    %6257 = vmatprep.subr.mxu0 %v317
    %6258 = vmatpush1.msra.mxu0 %v316
    %6259 = vmatprep.subr.mxu0 %v319
    %6260 = vmatpush1.msra.mxu0 %v318
    %6261 = vmatprep.subr.mxu0 %v321
    %6262 = vmatpush1.msra.mxu0 %v320
    %6263 = vmatprep.subr.mxu0 %v323
    %6264 = vmatpush1.msra.mxu0 %v322
    %6265 = vmatprep.mubr.f32.mxu0 %v5981
    %6266 = vmatmul.mubr.f32.gmra.mrb[0].mxu0 %v5980
    %v6267 = vpop.f32.mrb[0].mxu0
    %v6268 = vadd.f32 0.0, %v6267
    %v6269 = vpop.f32.mrb[0].mxu0
    %v6270 = vadd.f32 0.0, %v6269
    %6271 = vmatprep.mubr.f32.mxu0 %v6057
    %6272 = vmatmul.mubr.f32.gmra.mrb[0].mxu0 %v6055
    %v6273 = vpop.f32.mrb[0].mxu0
    %v6274 = vadd.f32 0.0, %v6273
    %v6275 = vpop.f32.mrb[0].mxu0
    %v6276 = vadd.f32 0.0, %v6275
    %6277 = vmatprep.mubr.f32.mxu0 %v6128
    %6278 = vmatmul.mubr.f32.gmra.mrb[0].mxu0 %v6126
    %v6279 = vpop.f32.mrb[0].mxu0
    %v6280 = vadd.f32 0.0, %v6279
    %v6281 = vpop.f32.mrb[0].mxu0
    %v6282 = vadd.f32 0.0, %v6281
    %6283 = vmatprep.mubr.f32.mxu0 %v6199
    %6284 = vmatmul.mubr.f32.gmra.mrb[0].mxu0 %v6197
    %v6285 = vpop.f32.mrb[0].mxu0
    %v6286 = vadd.f32 0.0, %v6285
    %v6287 = vpop.f32.mrb[0].mxu0
    %v6288 = vadd.f32 0.0, %v6287
    %6289 = vdwg.mxu0
    %s6290 = scalar_lea.vmem %s13, 64
    %v6291 = vld [vmem:[%s6290] sm:$0xff]
    %v6292 = vld [vmem:[%s6290 + $0x8] sm:$0xff]
    %v6293 = vld [vmem:[%s6290 + $0x10] sm:$0xff]
    %v6294 = vld [vmem:[%s6290 + $0x18] sm:$0xff]
    %s6295 = scalar_lea.vmem %s14, 96
    %v6296 = vld [vmem:[%s6295] sm:$0xff]
    %v6297 = vld [vmem:[%s6295 + $0x8] sm:$0xff]
    %v6298 = vld [vmem:[%s6295 + $0x10] sm:$0xff]
    %v6299 = vld [vmem:[%s6295 + $0x18] sm:$0xff]
    %v6301 = vsel %vm711, %v6296, 0
    %v6304 = vsel %vm711, %v6297, 0
    %v6307 = vsel %vm711, %v6298, 0
    %v6310 = vsel %vm711, %v6299, 0
    %6312 = vmatprep.subr.mxu0 %v6270
    %6313 = vmatpush1.msra.mxu0 %v6268
    %6314 = vmatprep.subr.mxu0 %v6276
    %6315 = vmatpush1.msra.mxu0 %v6274
    %6316 = vmatprep.subr.mxu0 %v6282
    %6317 = vmatpush1.msra.mxu0 %v6280
    %6318 = vmatprep.subr.mxu0 %v6288
    %6319 = vmatpush1.msra.mxu0 %v6286
    %6320 = vmatprep.subr.mxu0 0.0
    %6321 = vmatpush1.msra.mxu0 0.0
    %6322 = vmatprep.subr.mxu0 0.0
    %6323 = vmatpush1.msra.mxu0 0.0
    %6324 = vmatprep.subr.mxu0 0.0
    %6325 = vmatpush1.msra.mxu0 0.0
    %6326 = vmatprep.subr.mxu0 0.0
    %6327 = vmatpush1.msra.mxu0 0.0
    %6328 = vmatprep.subr.mxu0 0.0
    %6329 = vmatpush1.msra.mxu0 0.0
    %6330 = vmatprep.subr.mxu0 0.0
    %6331 = vmatpush1.msra.mxu0 0.0
    %6332 = vmatprep.subr.mxu0 0.0
    %6333 = vmatpush1.msra.mxu0 0.0
    %6334 = vmatprep.subr.mxu0 0.0
    %6335 = vmatpush1.msra.mxu0 0.0
    %6336 = vmatprep.subr.mxu0 0.0
    %6337 = vmatpush1.msra.mxu0 0.0
    %6338 = vmatprep.subr.mxu0 0.0
    %6339 = vmatpush1.msra.mxu0 0.0
    %6340 = vmatprep.subr.mxu0 0.0
    %6341 = vmatpush1.msra.mxu0 0.0
    %6342 = vmatprep.subr.mxu0 0.0
    %6343 = vmatpush1.msra.mxu0 0.0
    %6344 = vmatprep.subr.mxu0 0.0
    %6345 = vmatpush1.msra.mxu0 0.0
    %6346 = vmatprep.subr.mxu0 0.0
    %6347 = vmatpush1.msra.mxu0 0.0
    %6348 = vmatprep.subr.mxu0 0.0
    %6349 = vmatpush1.msra.mxu0 0.0
    %6350 = vmatprep.subr.mxu0 0.0
    %6351 = vmatpush1.msra.mxu0 0.0
    %6352 = vmatprep.subr.mxu0 0.0
    %6353 = vmatpush1.msra.mxu0 0.0
    %6354 = vmatprep.subr.mxu0 0.0
    %6355 = vmatpush1.msra.mxu0 0.0
    %6356 = vmatprep.subr.mxu0 0.0
    %6357 = vmatpush1.msra.mxu0 0.0
    %6358 = vmatprep.subr.mxu0 0.0
    %6359 = vmatpush1.msra.mxu0 0.0
    %6360 = vmatprep.subr.mxu0 0.0
    %6361 = vmatpush1.msra.mxu0 0.0
    %6362 = vmatprep.subr.mxu0 0.0
    %6363 = vmatpush1.msra.mxu0 0.0
    %6364 = vmatprep.subr.mxu0 0.0
    %6365 = vmatpush1.msra.mxu0 0.0
    %6366 = vmatprep.subr.mxu0 0.0
    %6367 = vmatpush1.msra.mxu0 0.0
    %6368 = vmatprep.subr.mxu0 0.0
    %6369 = vmatpush1.msra.mxu0 0.0
    %6370 = vmatprep.subr.mxu0 0.0
    %6371 = vmatpush1.msra.mxu0 0.0
    %6372 = vmatprep.subr.mxu0 0.0
    %6373 = vmatpush1.msra.mxu0 0.0
    %6374 = vmatprep.subr.mxu0 0.0
    %6375 = vmatpush1.msra.mxu0 0.0
    %6376 = vmatprep.mubr.f32.mxu0 0.0
    %6377 = vmatmul.mubr.f32.gmra.mrb[0].mxu0 %v6301
    %v6378 = vpop.f32.mrb[0].mxu0
    %v6379 = vadd.f32 0.0, %v6378
    %v6380 = vpop.f32.mrb[0].mxu0
    %v6381 = vadd.f32 0.0, %v6380
    %6382 = vmatprep.mubr.f32.mxu0 0.0
    %6383 = vmatmul.mubr.f32.gmra.mrb[0].mxu0 %v6304
    %v6384 = vpop.f32.mrb[0].mxu0
    %v6385 = vadd.f32 0.0, %v6384
    %v6386 = vpop.f32.mrb[0].mxu0
    %v6387 = vadd.f32 0.0, %v6386
    %6388 = vmatprep.mubr.f32.mxu0 0.0
    %6389 = vmatmul.mubr.f32.gmra.mrb[0].mxu0 %v6307
    %v6390 = vpop.f32.mrb[0].mxu0
    %v6391 = vadd.f32 0.0, %v6390
    %v6392 = vpop.f32.mrb[0].mxu0
    %v6393 = vadd.f32 0.0, %v6392
    %6394 = vmatprep.mubr.f32.mxu0 0.0
    %6395 = vmatmul.mubr.f32.gmra.mrb[0].mxu0 %v6310
    %v6396 = vpop.f32.mrb[0].mxu0
    %v6397 = vadd.f32 0.0, %v6396
    %v6398 = vpop.f32.mrb[0].mxu0
    %v6399 = vadd.f32 0.0, %v6398
    %6400 = vdwg.mxu0
    %v6402 = vsel %vm711, %v6291, 0
    %v6405 = vsel %vm711, %v6292, 0
    %v6408 = vsel %vm711, %v6293, 0
    %v6411 = vsel %vm711, %v6294, 0
    %6413 = vmatprep.subr.mxu0 %v5163
    %6414 = vmatpush1.msra.mxu0 %v5162
    %6415 = vmatprep.subr.mxu0 %v5239
    %6416 = vmatpush1.msra.mxu0 %v5237
    %6417 = vmatprep.subr.mxu0 %v5310
    %6418 = vmatpush1.msra.mxu0 %v5308
    %6419 = vmatprep.subr.mxu0 %v5381
    %6420 = vmatpush1.msra.mxu0 %v5379
    %6421 = vmatprep.subr.mxu0 0.0
    %6422 = vmatpush1.msra.mxu0 0.0
    %6423 = vmatprep.subr.mxu0 0.0
    %6424 = vmatpush1.msra.mxu0 0.0
    %6425 = vmatprep.subr.mxu0 0.0
    %6426 = vmatpush1.msra.mxu0 0.0
    %6427 = vmatprep.subr.mxu0 0.0
    %6428 = vmatpush1.msra.mxu0 0.0
    %6429 = vmatprep.subr.mxu0 0.0
    %6430 = vmatpush1.msra.mxu0 0.0
    %6431 = vmatprep.subr.mxu0 0.0
    %6432 = vmatpush1.msra.mxu0 0.0
    %6433 = vmatprep.subr.mxu0 0.0
    %6434 = vmatpush1.msra.mxu0 0.0
    %6435 = vmatprep.subr.mxu0 0.0
    %6436 = vmatpush1.msra.mxu0 0.0
    %6437 = vmatprep.subr.mxu0 0.0
    %6438 = vmatpush1.msra.mxu0 0.0
    %6439 = vmatprep.subr.mxu0 0.0
    %6440 = vmatpush1.msra.mxu0 0.0
    %6441 = vmatprep.subr.mxu0 0.0
    %6442 = vmatpush1.msra.mxu0 0.0
    %6443 = vmatprep.subr.mxu0 0.0
    %6444 = vmatpush1.msra.mxu0 0.0
    %6445 = vmatprep.subr.mxu0 0.0
    %6446 = vmatpush1.msra.mxu0 0.0
    %6447 = vmatprep.subr.mxu0 0.0
    %6448 = vmatpush1.msra.mxu0 0.0
    %6449 = vmatprep.subr.mxu0 0.0
    %6450 = vmatpush1.msra.mxu0 0.0
    %6451 = vmatprep.subr.mxu0 0.0
    %6452 = vmatpush1.msra.mxu0 0.0
    %6453 = vmatprep.subr.mxu0 0.0
    %6454 = vmatpush1.msra.mxu0 0.0
    %6455 = vmatprep.subr.mxu0 0.0
    %6456 = vmatpush1.msra.mxu0 0.0
    %6457 = vmatprep.subr.mxu0 0.0
    %6458 = vmatpush1.msra.mxu0 0.0
    %6459 = vmatprep.subr.mxu0 0.0
    %6460 = vmatpush1.msra.mxu0 0.0
    %6461 = vmatprep.subr.mxu0 0.0
    %6462 = vmatpush1.msra.mxu0 0.0
    %6463 = vmatprep.subr.mxu0 0.0
    %6464 = vmatpush1.msra.mxu0 0.0
    %6465 = vmatprep.subr.mxu0 0.0
    %6466 = vmatpush1.msra.mxu0 0.0
    %6467 = vmatprep.subr.mxu0 0.0
    %6468 = vmatpush1.msra.mxu0 0.0
    %6469 = vmatprep.subr.mxu0 0.0
    %6470 = vmatpush1.msra.mxu0 0.0
    %6471 = vmatprep.subr.mxu0 0.0
    %6472 = vmatpush1.msra.mxu0 0.0
    %6473 = vmatprep.subr.mxu0 0.0
    %6474 = vmatpush1.msra.mxu0 0.0
    %6475 = vmatprep.subr.mxu0 0.0
    %6476 = vmatpush1.msra.mxu0 0.0
    %6477 = vmatprep.mubr.f32.mxu0 0.0
    %6478 = vmatmul.mubr.f32.gmra.mrb[0].mxu0 %v6402
    %v6479 = vpop.f32.mrb[0].mxu0
    %v6480 = vadd.f32 %v6379, %v6479
    %v6481 = vpop.f32.mrb[0].mxu0
    %v6482 = vadd.f32 %v6381, %v6481
    %6483 = vmatprep.mubr.f32.mxu0 0.0
    %6484 = vmatmul.mubr.f32.gmra.mrb[0].mxu0 %v6405
    %v6485 = vpop.f32.mrb[0].mxu0
    %v6486 = vadd.f32 %v6385, %v6485
    %v6487 = vpop.f32.mrb[0].mxu0
    %v6488 = vadd.f32 %v6387, %v6487
    %6489 = vmatprep.mubr.f32.mxu0 0.0
    %6490 = vmatmul.mubr.f32.gmra.mrb[0].mxu0 %v6408
    %v6491 = vpop.f32.mrb[0].mxu0
    %v6492 = vadd.f32 %v6391, %v6491
    %v6493 = vpop.f32.mrb[0].mxu0
    %v6494 = vadd.f32 %v6393, %v6493
    %6495 = vmatprep.mubr.f32.mxu0 0.0
    %6496 = vmatmul.mubr.f32.gmra.mrb[0].mxu0 %v6411
    %v6497 = vpop.f32.mrb[0].mxu0
    %v6498 = vadd.f32 %v6397, %v6497
    %v6499 = vpop.f32.mrb[0].mxu0
    %v6500 = vadd.f32 %v6399, %v6499
    %6501 = vdwg.mxu0
    %s6502 = scalar_lea.vmem %s15, 96
    %v6503 = vld [vmem:[%s6502] sm:$0xff]
    %v6504 = vld [vmem:[%s6502 + $0x8] sm:$0xff]
    %v6505 = vld [vmem:[%s6502 + $0x10] sm:$0xff]
    %v6506 = vld [vmem:[%s6502 + $0x18] sm:$0xff]
    %6508 = vset.pattern.permute.xlu0 0
    %6509 = vperm.xlu0 %6508, %v6503
    %v6510 = vpop.permute.xlu0 %6509
    %6513 = vset.pattern.permute.xlu0 0
    %6514 = vperm.xlu0 %6513, %v6504
    %v6515 = vpop.permute.xlu0 %6514
    %6518 = vset.pattern.permute.xlu0 0
    %6519 = vperm.xlu0 %6518, %v6505
    %v6520 = vpop.permute.xlu0 %6519
    %6523 = vset.pattern.permute.xlu0 0
    %6524 = vperm.xlu0 %6523, %v6506
    %v6525 = vpop.permute.xlu0 %6524
    %v6527 = vadd.f32 %v6480, %v6510
    %v6528 = vadd.f32 %v6482, %v6510
    %v6529 = vadd.f32 %v6486, %v6515
    %v6530 = vadd.f32 %v6488, %v6515
    %v6531 = vadd.f32 %v6492, %v6520
    %v6532 = vadd.f32 %v6494, %v6520
    %v6533 = vadd.f32 %v6498, %v6525
    %v6534 = vadd.f32 %v6500, %v6525
    %v6535 = vmax.f32 %v6527, 0.0
    %v6536 = vmax.f32 %v6528, 0.0
    %v6537 = vmax.f32 %v6529, 0.0
    %v6538 = vmax.f32 %v6530, 0.0
    %v6539 = vmax.f32 %v6531, 0.0
    %v6540 = vmax.f32 %v6532, 0.0
    %v6541 = vmax.f32 %v6533, 0.0
    %v6542 = vmax.f32 %v6534, 0.0
    %6543 = vmatprep.subr.mxu0 %v67
    %6544 = vmatpush1.msra.mxu0 %v66
    %6545 = vmatprep.subr.mxu0 %v69
    %6546 = vmatpush1.msra.mxu0 %v68
    %6547 = vmatprep.subr.mxu0 %v71
    %6548 = vmatpush1.msra.mxu0 %v70
    %6549 = vmatprep.subr.mxu0 %v73
    %6550 = vmatpush1.msra.mxu0 %v72
    %6551 = vmatprep.subr.mxu0 %v75
    %6552 = vmatpush1.msra.mxu0 %v74
    %6553 = vmatprep.subr.mxu0 %v77
    %6554 = vmatpush1.msra.mxu0 %v76
    %6555 = vmatprep.subr.mxu0 %v79
    %6556 = vmatpush1.msra.mxu0 %v78
    %6557 = vmatprep.subr.mxu0 %v81
    %6558 = vmatpush1.msra.mxu0 %v80
    %6559 = vmatprep.subr.mxu0 %v83
    %6560 = vmatpush1.msra.mxu0 %v82
    %6561 = vmatprep.subr.mxu0 %v85
    %6562 = vmatpush1.msra.mxu0 %v84
    %6563 = vmatprep.subr.mxu0 %v87
    %6564 = vmatpush1.msra.mxu0 %v86
    %6565 = vmatprep.subr.mxu0 %v89
    %6566 = vmatpush1.msra.mxu0 %v88
    %6567 = vmatprep.subr.mxu0 %v91
    %6568 = vmatpush1.msra.mxu0 %v90
    %6569 = vmatprep.subr.mxu0 %v93
    %6570 = vmatpush1.msra.mxu0 %v92
    %6571 = vmatprep.subr.mxu0 %v95
    %6572 = vmatpush1.msra.mxu0 %v94
    %6573 = vmatprep.subr.mxu0 %v97
    %6574 = vmatpush1.msra.mxu0 %v96
    %6575 = vmatprep.subr.mxu0 %v99
    %6576 = vmatpush1.msra.mxu0 %v98
    %6577 = vmatprep.subr.mxu0 %v101
    %6578 = vmatpush1.msra.mxu0 %v100
    %6579 = vmatprep.subr.mxu0 %v103
    %6580 = vmatpush1.msra.mxu0 %v102
    %6581 = vmatprep.subr.mxu0 %v105
    %6582 = vmatpush1.msra.mxu0 %v104
    %6583 = vmatprep.subr.mxu0 %v107
    %6584 = vmatpush1.msra.mxu0 %v106
    %6585 = vmatprep.subr.mxu0 %v109
    %6586 = vmatpush1.msra.mxu0 %v108
    %6587 = vmatprep.subr.mxu0 %v111
    %6588 = vmatpush1.msra.mxu0 %v110
    %6589 = vmatprep.subr.mxu0 %v113
    %6590 = vmatpush1.msra.mxu0 %v112
    %6591 = vmatprep.subr.mxu0 %v115
    %6592 = vmatpush1.msra.mxu0 %v114
    %6593 = vmatprep.subr.mxu0 %v117
    %6594 = vmatpush1.msra.mxu0 %v116
    %6595 = vmatprep.subr.mxu0 %v119
    %6596 = vmatpush1.msra.mxu0 %v118
    %6597 = vmatprep.subr.mxu0 %v121
    %6598 = vmatpush1.msra.mxu0 %v120
    %6599 = vmatprep.subr.mxu0 %v123
    %6600 = vmatpush1.msra.mxu0 %v122
    %6601 = vmatprep.subr.mxu0 %v125
    %6602 = vmatpush1.msra.mxu0 %v124
    %6603 = vmatprep.subr.mxu0 %v127
    %6604 = vmatpush1.msra.mxu0 %v126
    %6605 = vmatprep.subr.mxu0 %v129
    %6606 = vmatpush1.msra.mxu0 %v128
    %6607 = vmatprep.mubr.f32.mxu0 %v6538
    %6608 = vmatmul.mubr.f32.gmra.mrb[0].mxu0 %v6537
    %v6609 = vpop.f32.mrb[0].mxu0
    %v6610 = vadd.f32 0.0, %v6609
    %v6611 = vpop.f32.mrb[0].mxu0
    %v6612 = vadd.f32 0.0, %v6611
    %6613 = vdwg.mxu0
    %6614 = vmatprep.subr.mxu0 %v132
    %6615 = vmatpush1.msra.mxu0 %v131
    %6616 = vmatprep.subr.mxu0 %v134
    %6617 = vmatpush1.msra.mxu0 %v133
    %6618 = vmatprep.subr.mxu0 %v136
    %6619 = vmatpush1.msra.mxu0 %v135
    %6620 = vmatprep.subr.mxu0 %v138
    %6621 = vmatpush1.msra.mxu0 %v137
    %6622 = vmatprep.subr.mxu0 %v140
    %6623 = vmatpush1.msra.mxu0 %v139
    %6624 = vmatprep.subr.mxu0 %v142
    %6625 = vmatpush1.msra.mxu0 %v141
    %6626 = vmatprep.subr.mxu0 %v144
    %6627 = vmatpush1.msra.mxu0 %v143
    %6628 = vmatprep.subr.mxu0 %v146
    %6629 = vmatpush1.msra.mxu0 %v145
    %6630 = vmatprep.subr.mxu0 %v148
    %6631 = vmatpush1.msra.mxu0 %v147
    %6632 = vmatprep.subr.mxu0 %v150
    %6633 = vmatpush1.msra.mxu0 %v149
    %6634 = vmatprep.subr.mxu0 %v152
    %6635 = vmatpush1.msra.mxu0 %v151
    %6636 = vmatprep.subr.mxu0 %v154
    %6637 = vmatpush1.msra.mxu0 %v153
    %6638 = vmatprep.subr.mxu0 %v156
    %6639 = vmatpush1.msra.mxu0 %v155
    %6640 = vmatprep.subr.mxu0 %v158
    %6641 = vmatpush1.msra.mxu0 %v157
    %6642 = vmatprep.subr.mxu0 %v160
    %6643 = vmatpush1.msra.mxu0 %v159
    %6644 = vmatprep.subr.mxu0 %v162
    %6645 = vmatpush1.msra.mxu0 %v161
    %6646 = vmatprep.subr.mxu0 %v164
    %6647 = vmatpush1.msra.mxu0 %v163
    %6648 = vmatprep.subr.mxu0 %v166
    %6649 = vmatpush1.msra.mxu0 %v165
    %6650 = vmatprep.subr.mxu0 %v168
    %6651 = vmatpush1.msra.mxu0 %v167
    %6652 = vmatprep.subr.mxu0 %v170
    %6653 = vmatpush1.msra.mxu0 %v169
    %6654 = vmatprep.subr.mxu0 %v172
    %6655 = vmatpush1.msra.mxu0 %v171
    %6656 = vmatprep.subr.mxu0 %v174
    %6657 = vmatpush1.msra.mxu0 %v173
    %6658 = vmatprep.subr.mxu0 %v176
    %6659 = vmatpush1.msra.mxu0 %v175
    %6660 = vmatprep.subr.mxu0 %v178
    %6661 = vmatpush1.msra.mxu0 %v177
    %6662 = vmatprep.subr.mxu0 %v180
    %6663 = vmatpush1.msra.mxu0 %v179
    %6664 = vmatprep.subr.mxu0 %v182
    %6665 = vmatpush1.msra.mxu0 %v181
    %6666 = vmatprep.subr.mxu0 %v184
    %6667 = vmatpush1.msra.mxu0 %v183
    %6668 = vmatprep.subr.mxu0 %v186
    %6669 = vmatpush1.msra.mxu0 %v185
    %6670 = vmatprep.subr.mxu0 %v188
    %6671 = vmatpush1.msra.mxu0 %v187
    %6672 = vmatprep.subr.mxu0 %v190
    %6673 = vmatpush1.msra.mxu0 %v189
    %6674 = vmatprep.subr.mxu0 %v192
    %6675 = vmatpush1.msra.mxu0 %v191
    %6676 = vmatprep.subr.mxu0 %v194
    %6677 = vmatpush1.msra.mxu0 %v193
    %6678 = vmatprep.mubr.f32.mxu0 %v6540
    %6679 = vmatmul.mubr.f32.gmra.mrb[0].mxu0 %v6539
    %v6680 = vpop.f32.mrb[0].mxu0
    %v6681 = vadd.f32 0.0, %v6680
    %v6682 = vpop.f32.mrb[0].mxu0
    %v6683 = vadd.f32 0.0, %v6682
    %6684 = vdwg.mxu0
    %6685 = vmatprep.subr.mxu0 %v197
    %6686 = vmatpush1.msra.mxu0 %v196
    %6687 = vmatprep.subr.mxu0 %v199
    %6688 = vmatpush1.msra.mxu0 %v198
    %6689 = vmatprep.subr.mxu0 %v201
    %6690 = vmatpush1.msra.mxu0 %v200
    %6691 = vmatprep.subr.mxu0 %v203
    %6692 = vmatpush1.msra.mxu0 %v202
    %6693 = vmatprep.subr.mxu0 %v205
    %6694 = vmatpush1.msra.mxu0 %v204
    %6695 = vmatprep.subr.mxu0 %v207
    %6696 = vmatpush1.msra.mxu0 %v206
    %6697 = vmatprep.subr.mxu0 %v209
    %6698 = vmatpush1.msra.mxu0 %v208
    %6699 = vmatprep.subr.mxu0 %v211
    %6700 = vmatpush1.msra.mxu0 %v210
    %6701 = vmatprep.subr.mxu0 %v213
    %6702 = vmatpush1.msra.mxu0 %v212
    %6703 = vmatprep.subr.mxu0 %v215
    %6704 = vmatpush1.msra.mxu0 %v214
    %6705 = vmatprep.subr.mxu0 %v217
    %6706 = vmatpush1.msra.mxu0 %v216
    %6707 = vmatprep.subr.mxu0 %v219
    %6708 = vmatpush1.msra.mxu0 %v218
    %6709 = vmatprep.subr.mxu0 %v221
    %6710 = vmatpush1.msra.mxu0 %v220
    %6711 = vmatprep.subr.mxu0 %v223
    %6712 = vmatpush1.msra.mxu0 %v222
    %6713 = vmatprep.subr.mxu0 %v225
    %6714 = vmatpush1.msra.mxu0 %v224
    %6715 = vmatprep.subr.mxu0 %v227
    %6716 = vmatpush1.msra.mxu0 %v226
    %6717 = vmatprep.subr.mxu0 %v229
    %6718 = vmatpush1.msra.mxu0 %v228
    %6719 = vmatprep.subr.mxu0 %v231
    %6720 = vmatpush1.msra.mxu0 %v230
    %6721 = vmatprep.subr.mxu0 %v233
    %6722 = vmatpush1.msra.mxu0 %v232
    %6723 = vmatprep.subr.mxu0 %v235
    %6724 = vmatpush1.msra.mxu0 %v234
    %6725 = vmatprep.subr.mxu0 %v237
    %6726 = vmatpush1.msra.mxu0 %v236
    %6727 = vmatprep.subr.mxu0 %v239
    %6728 = vmatpush1.msra.mxu0 %v238
    %6729 = vmatprep.subr.mxu0 %v241
    %6730 = vmatpush1.msra.mxu0 %v240
    %6731 = vmatprep.subr.mxu0 %v243
    %6732 = vmatpush1.msra.mxu0 %v242
    %6733 = vmatprep.subr.mxu0 %v245
    %6734 = vmatpush1.msra.mxu0 %v244
    %6735 = vmatprep.subr.mxu0 %v247
    %6736 = vmatpush1.msra.mxu0 %v246
    %6737 = vmatprep.subr.mxu0 %v249
    %6738 = vmatpush1.msra.mxu0 %v248
    %6739 = vmatprep.subr.mxu0 %v251
    %6740 = vmatpush1.msra.mxu0 %v250
    %6741 = vmatprep.subr.mxu0 %v253
    %6742 = vmatpush1.msra.mxu0 %v252
    %6743 = vmatprep.subr.mxu0 %v255
    %6744 = vmatpush1.msra.mxu0 %v254
    %6745 = vmatprep.subr.mxu0 %v257
    %6746 = vmatpush1.msra.mxu0 %v256
    %6747 = vmatprep.subr.mxu0 %v259
    %6748 = vmatpush1.msra.mxu0 %v258
    %6749 = vmatprep.mubr.f32.mxu0 %v6542
    %6750 = vmatmul.mubr.f32.gmra.mrb[0].mxu0 %v6541
    %v6751 = vpop.f32.mrb[0].mxu0
    %v6752 = vadd.f32 0.0, %v6751
    %v6753 = vpop.f32.mrb[0].mxu0
    %v6754 = vadd.f32 0.0, %v6753
    %6755 = vdwg.mxu0
    %s6756 = scalar_lea.vmem %s16, 96
    %v6757 = vld [vmem:[%s6756] sm:$0xff]
    %v6758 = vld [vmem:[%s6756 + $0x8] sm:$0xff]
    %v6759 = vld [vmem:[%s6756 + $0x10] sm:$0xff]
    %v6760 = vld [vmem:[%s6756 + $0x18] sm:$0xff]
    %s6761 = scalar_lea.vmem %s17, 96
    %v6762 = vld [vmem:[%s6761] sm:$0xff]
    %v6763 = vld [vmem:[%s6761 + $0x8] sm:$0xff]
    %v6764 = vld [vmem:[%s6761 + $0x10] sm:$0xff]
    %v6765 = vld [vmem:[%s6761 + $0x18] sm:$0xff]
    %6767 = vset.pattern.permute.xlu0 0
    %6768 = vperm.xlu0 %6767, %v6762
    %v6769 = vpop.permute.xlu0 %6768
    %6772 = vset.pattern.permute.xlu0 0
    %6773 = vperm.xlu0 %6772, %v6763
    %v6774 = vpop.permute.xlu0 %6773
    %6777 = vset.pattern.permute.xlu0 0
    %6778 = vperm.xlu0 %6777, %v6764
    %v6779 = vpop.permute.xlu0 %6778
    %6782 = vset.pattern.permute.xlu0 0
    %6783 = vperm.xlu0 %6782, %v6765
    %v6784 = vpop.permute.xlu0 %6783
    %v6787 = vsel %vm711, %v6757, 0
    %v6790 = vsel %vm711, %v6758, 0
    %v6793 = vsel %vm711, %v6759, 0
    %v6796 = vsel %vm711, %v6760, 0
    %6798 = vmatprep.subr.mxu0 %v6536
    %6799 = vmatpush1.msra.mxu0 %v6535
    %6800 = vmatprep.subr.mxu0 %v6612
    %6801 = vmatpush1.msra.mxu0 %v6610
    %6802 = vmatprep.subr.mxu0 %v6683
    %6803 = vmatpush1.msra.mxu0 %v6681
    %6804 = vmatprep.subr.mxu0 %v6754
    %6805 = vmatpush1.msra.mxu0 %v6752
    %6806 = vmatprep.subr.mxu0 0.0
    %6807 = vmatpush1.msra.mxu0 0.0
    %6808 = vmatprep.subr.mxu0 0.0
    %6809 = vmatpush1.msra.mxu0 0.0
    %6810 = vmatprep.subr.mxu0 0.0
    %6811 = vmatpush1.msra.mxu0 0.0
    %6812 = vmatprep.subr.mxu0 0.0
    %6813 = vmatpush1.msra.mxu0 0.0
    %6814 = vmatprep.subr.mxu0 0.0
    %6815 = vmatpush1.msra.mxu0 0.0
    %6816 = vmatprep.subr.mxu0 0.0
    %6817 = vmatpush1.msra.mxu0 0.0
    %6818 = vmatprep.subr.mxu0 0.0
    %6819 = vmatpush1.msra.mxu0 0.0
    %6820 = vmatprep.subr.mxu0 0.0
    %6821 = vmatpush1.msra.mxu0 0.0
    %6822 = vmatprep.subr.mxu0 0.0
    %6823 = vmatpush1.msra.mxu0 0.0
    %6824 = vmatprep.subr.mxu0 0.0
    %6825 = vmatpush1.msra.mxu0 0.0
    %6826 = vmatprep.subr.mxu0 0.0
    %6827 = vmatpush1.msra.mxu0 0.0
    %6828 = vmatprep.subr.mxu0 0.0
    %6829 = vmatpush1.msra.mxu0 0.0
    %6830 = vmatprep.subr.mxu0 0.0
    %6831 = vmatpush1.msra.mxu0 0.0
    %6832 = vmatprep.subr.mxu0 0.0
    %6833 = vmatpush1.msra.mxu0 0.0
    %6834 = vmatprep.subr.mxu0 0.0
    %6835 = vmatpush1.msra.mxu0 0.0
    %6836 = vmatprep.subr.mxu0 0.0
    %6837 = vmatpush1.msra.mxu0 0.0
    %6838 = vmatprep.subr.mxu0 0.0
    %6839 = vmatpush1.msra.mxu0 0.0
    %6840 = vmatprep.subr.mxu0 0.0
    %6841 = vmatpush1.msra.mxu0 0.0
    %6842 = vmatprep.subr.mxu0 0.0
    %6843 = vmatpush1.msra.mxu0 0.0
    %6844 = vmatprep.subr.mxu0 0.0
    %6845 = vmatpush1.msra.mxu0 0.0
    %6846 = vmatprep.subr.mxu0 0.0
    %6847 = vmatpush1.msra.mxu0 0.0
    %6848 = vmatprep.subr.mxu0 0.0
    %6849 = vmatpush1.msra.mxu0 0.0
    %6850 = vmatprep.subr.mxu0 0.0
    %6851 = vmatpush1.msra.mxu0 0.0
    %6852 = vmatprep.subr.mxu0 0.0
    %6853 = vmatpush1.msra.mxu0 0.0
    %6854 = vmatprep.subr.mxu0 0.0
    %6855 = vmatpush1.msra.mxu0 0.0
    %6856 = vmatprep.subr.mxu0 0.0
    %6857 = vmatpush1.msra.mxu0 0.0
    %6858 = vmatprep.subr.mxu0 0.0
    %6859 = vmatpush1.msra.mxu0 0.0
    %6860 = vmatprep.subr.mxu0 0.0
    %6861 = vmatpush1.msra.mxu0 0.0
    %6862 = vmatprep.mubr.f32.mxu0 0.0
    %6863 = vmatmul.mubr.f32.gmra.mrb[0].mxu0 %v6787
    %v6864 = vpop.f32.mrb[0].mxu0
    %v6865 = vadd.f32 %v6769, %v6864
    %v6866 = vpop.f32.mrb[0].mxu0
    %v6867 = vadd.f32 %v6769, %v6866
    %6868 = vmatprep.mubr.f32.mxu0 0.0
    %6869 = vmatmul.mubr.f32.gmra.mrb[0].mxu0 %v6790
    %v6870 = vpop.f32.mrb[0].mxu0
    %v6871 = vadd.f32 %v6774, %v6870
    %v6872 = vpop.f32.mrb[0].mxu0
    %v6873 = vadd.f32 %v6774, %v6872
    %6874 = vmatprep.mubr.f32.mxu0 0.0
    %6875 = vmatmul.mubr.f32.gmra.mrb[0].mxu0 %v6793
    %v6876 = vpop.f32.mrb[0].mxu0
    %v6877 = vadd.f32 %v6779, %v6876
    %v6878 = vpop.f32.mrb[0].mxu0
    %v6879 = vadd.f32 %v6779, %v6878
    %6880 = vmatprep.mubr.f32.mxu0 0.0
    %6881 = vmatmul.mubr.f32.gmra.mrb[0].mxu0 %v6796
    %v6882 = vpop.f32.mrb[0].mxu0
    %v6883 = vadd.f32 %v6784, %v6882
    %v6884 = vpop.f32.mrb[0].mxu0
    %v6885 = vadd.f32 %v6784, %v6884
    %6886 = vdwg.mxu0
    %v6887 = vmax.f32 %v6865, 0.0
    %v6888 = vmax.f32 %v6867, 0.0
    %v6889 = vmax.f32 %v6871, 0.0
    %v6890 = vmax.f32 %v6873, 0.0
    %v6891 = vmax.f32 %v6877, 0.0
    %v6892 = vmax.f32 %v6879, 0.0
    %v6893 = vmax.f32 %v6883, 0.0
    %v6894 = vmax.f32 %v6885, 0.0
    %6895 = vmatprep.subr.mxu0 %v67
    %6896 = vmatpush1.msra.mxu0 %v66
    %6897 = vmatprep.subr.mxu0 %v69
    %6898 = vmatpush1.msra.mxu0 %v68
    %6899 = vmatprep.subr.mxu0 %v71
    %6900 = vmatpush1.msra.mxu0 %v70
    %6901 = vmatprep.subr.mxu0 %v73
    %6902 = vmatpush1.msra.mxu0 %v72
    %6903 = vmatprep.subr.mxu0 %v75
    %6904 = vmatpush1.msra.mxu0 %v74
    %6905 = vmatprep.subr.mxu0 %v77
    %6906 = vmatpush1.msra.mxu0 %v76
    %6907 = vmatprep.subr.mxu0 %v79
    %6908 = vmatpush1.msra.mxu0 %v78
    %6909 = vmatprep.subr.mxu0 %v81
    %6910 = vmatpush1.msra.mxu0 %v80
    %6911 = vmatprep.subr.mxu0 %v83
    %6912 = vmatpush1.msra.mxu0 %v82
    %6913 = vmatprep.subr.mxu0 %v85
    %6914 = vmatpush1.msra.mxu0 %v84
    %6915 = vmatprep.subr.mxu0 %v87
    %6916 = vmatpush1.msra.mxu0 %v86
    %6917 = vmatprep.subr.mxu0 %v89
    %6918 = vmatpush1.msra.mxu0 %v88
    %6919 = vmatprep.subr.mxu0 %v91
    %6920 = vmatpush1.msra.mxu0 %v90
    %6921 = vmatprep.subr.mxu0 %v93
    %6922 = vmatpush1.msra.mxu0 %v92
    %6923 = vmatprep.subr.mxu0 %v95
    %6924 = vmatpush1.msra.mxu0 %v94
    %6925 = vmatprep.subr.mxu0 %v97
    %6926 = vmatpush1.msra.mxu0 %v96
    %6927 = vmatprep.subr.mxu0 %v99
    %6928 = vmatpush1.msra.mxu0 %v98
    %6929 = vmatprep.subr.mxu0 %v101
    %6930 = vmatpush1.msra.mxu0 %v100
    %6931 = vmatprep.subr.mxu0 %v103
    %6932 = vmatpush1.msra.mxu0 %v102
    %6933 = vmatprep.subr.mxu0 %v105
    %6934 = vmatpush1.msra.mxu0 %v104
    %6935 = vmatprep.subr.mxu0 %v107
    %6936 = vmatpush1.msra.mxu0 %v106
    %6937 = vmatprep.subr.mxu0 %v109
    %6938 = vmatpush1.msra.mxu0 %v108
    %6939 = vmatprep.subr.mxu0 %v111
    %6940 = vmatpush1.msra.mxu0 %v110
    %6941 = vmatprep.subr.mxu0 %v113
    %6942 = vmatpush1.msra.mxu0 %v112
    %6943 = vmatprep.subr.mxu0 %v115
    %6944 = vmatpush1.msra.mxu0 %v114
    %6945 = vmatprep.subr.mxu0 %v117
    %6946 = vmatpush1.msra.mxu0 %v116
    %6947 = vmatprep.subr.mxu0 %v119
    %6948 = vmatpush1.msra.mxu0 %v118
    %6949 = vmatprep.subr.mxu0 %v121
    %6950 = vmatpush1.msra.mxu0 %v120
    %6951 = vmatprep.subr.mxu0 %v123
    %6952 = vmatpush1.msra.mxu0 %v122
    %6953 = vmatprep.subr.mxu0 %v125
    %6954 = vmatpush1.msra.mxu0 %v124
    %6955 = vmatprep.subr.mxu0 %v127
    %6956 = vmatpush1.msra.mxu0 %v126
    %6957 = vmatprep.subr.mxu0 %v129
    %6958 = vmatpush1.msra.mxu0 %v128
    %6959 = vmatprep.mubr.f32.mxu0 %v6890
    %6960 = vmatmul.mubr.f32.gmra.mrb[0].mxu0 %v6889
    %v6961 = vpop.f32.mrb[0].mxu0
    %v6962 = vadd.f32 0.0, %v6961
    %v6963 = vpop.f32.mrb[0].mxu0
    %v6964 = vadd.f32 0.0, %v6963
    %6965 = vdwg.mxu0
    %6966 = vmatprep.subr.mxu0 %v132
    %6967 = vmatpush1.msra.mxu0 %v131
    %6968 = vmatprep.subr.mxu0 %v134
    %6969 = vmatpush1.msra.mxu0 %v133
    %6970 = vmatprep.subr.mxu0 %v136
    %6971 = vmatpush1.msra.mxu0 %v135
    %6972 = vmatprep.subr.mxu0 %v138
    %6973 = vmatpush1.msra.mxu0 %v137
    %6974 = vmatprep.subr.mxu0 %v140
    %6975 = vmatpush1.msra.mxu0 %v139
    %6976 = vmatprep.subr.mxu0 %v142
    %6977 = vmatpush1.msra.mxu0 %v141
    %6978 = vmatprep.subr.mxu0 %v144
    %6979 = vmatpush1.msra.mxu0 %v143
    %6980 = vmatprep.subr.mxu0 %v146
    %6981 = vmatpush1.msra.mxu0 %v145
    %6982 = vmatprep.subr.mxu0 %v148
    %6983 = vmatpush1.msra.mxu0 %v147
    %6984 = vmatprep.subr.mxu0 %v150
    %6985 = vmatpush1.msra.mxu0 %v149
    %6986 = vmatprep.subr.mxu0 %v152
    %6987 = vmatpush1.msra.mxu0 %v151
    %6988 = vmatprep.subr.mxu0 %v154
    %6989 = vmatpush1.msra.mxu0 %v153
    %6990 = vmatprep.subr.mxu0 %v156
    %6991 = vmatpush1.msra.mxu0 %v155
    %6992 = vmatprep.subr.mxu0 %v158
    %6993 = vmatpush1.msra.mxu0 %v157
    %6994 = vmatprep.subr.mxu0 %v160
    %6995 = vmatpush1.msra.mxu0 %v159
    %6996 = vmatprep.subr.mxu0 %v162
    %6997 = vmatpush1.msra.mxu0 %v161
    %6998 = vmatprep.subr.mxu0 %v164
    %6999 = vmatpush1.msra.mxu0 %v163
    %7000 = vmatprep.subr.mxu0 %v166
    %7001 = vmatpush1.msra.mxu0 %v165
    %7002 = vmatprep.subr.mxu0 %v168
    %7003 = vmatpush1.msra.mxu0 %v167
    %7004 = vmatprep.subr.mxu0 %v170
    %7005 = vmatpush1.msra.mxu0 %v169
    %7006 = vmatprep.subr.mxu0 %v172
    %7007 = vmatpush1.msra.mxu0 %v171
    %7008 = vmatprep.subr.mxu0 %v174
    %7009 = vmatpush1.msra.mxu0 %v173
    %7010 = vmatprep.subr.mxu0 %v176
    %7011 = vmatpush1.msra.mxu0 %v175
    %7012 = vmatprep.subr.mxu0 %v178
    %7013 = vmatpush1.msra.mxu0 %v177
    %7014 = vmatprep.subr.mxu0 %v180
    %7015 = vmatpush1.msra.mxu0 %v179
    %7016 = vmatprep.subr.mxu0 %v182
    %7017 = vmatpush1.msra.mxu0 %v181
    %7018 = vmatprep.subr.mxu0 %v184
    %7019 = vmatpush1.msra.mxu0 %v183
    %7020 = vmatprep.subr.mxu0 %v186
    %7021 = vmatpush1.msra.mxu0 %v185
    %7022 = vmatprep.subr.mxu0 %v188
    %7023 = vmatpush1.msra.mxu0 %v187
    %7024 = vmatprep.subr.mxu0 %v190
    %7025 = vmatpush1.msra.mxu0 %v189
    %7026 = vmatprep.subr.mxu0 %v192
    %7027 = vmatpush1.msra.mxu0 %v191
    %7028 = vmatprep.subr.mxu0 %v194
    %7029 = vmatpush1.msra.mxu0 %v193
    %7030 = vmatprep.mubr.f32.mxu0 %v6892
    %7031 = vmatmul.mubr.f32.gmra.mrb[0].mxu0 %v6891
    %v7032 = vpop.f32.mrb[0].mxu0
    %v7033 = vadd.f32 0.0, %v7032
    %v7034 = vpop.f32.mrb[0].mxu0
    %v7035 = vadd.f32 0.0, %v7034
    %7036 = vdwg.mxu0
    %7037 = vmatprep.subr.mxu0 %v197
    %7038 = vmatpush1.msra.mxu0 %v196
    %7039 = vmatprep.subr.mxu0 %v199
    %7040 = vmatpush1.msra.mxu0 %v198
    %7041 = vmatprep.subr.mxu0 %v201
    %7042 = vmatpush1.msra.mxu0 %v200
    %7043 = vmatprep.subr.mxu0 %v203
    %7044 = vmatpush1.msra.mxu0 %v202
    %7045 = vmatprep.subr.mxu0 %v205
    %7046 = vmatpush1.msra.mxu0 %v204
    %7047 = vmatprep.subr.mxu0 %v207
    %7048 = vmatpush1.msra.mxu0 %v206
    %7049 = vmatprep.subr.mxu0 %v209
    %7050 = vmatpush1.msra.mxu0 %v208
    %7051 = vmatprep.subr.mxu0 %v211
    %7052 = vmatpush1.msra.mxu0 %v210
    %7053 = vmatprep.subr.mxu0 %v213
    %7054 = vmatpush1.msra.mxu0 %v212
    %7055 = vmatprep.subr.mxu0 %v215
    %7056 = vmatpush1.msra.mxu0 %v214
    %7057 = vmatprep.subr.mxu0 %v217
    %7058 = vmatpush1.msra.mxu0 %v216
    %7059 = vmatprep.subr.mxu0 %v219
    %7060 = vmatpush1.msra.mxu0 %v218
    %7061 = vmatprep.subr.mxu0 %v221
    %7062 = vmatpush1.msra.mxu0 %v220
    %7063 = vmatprep.subr.mxu0 %v223
    %7064 = vmatpush1.msra.mxu0 %v222
    %7065 = vmatprep.subr.mxu0 %v225
    %7066 = vmatpush1.msra.mxu0 %v224
    %7067 = vmatprep.subr.mxu0 %v227
    %7068 = vmatpush1.msra.mxu0 %v226
    %7069 = vmatprep.subr.mxu0 %v229
    %7070 = vmatpush1.msra.mxu0 %v228
    %7071 = vmatprep.subr.mxu0 %v231
    %7072 = vmatpush1.msra.mxu0 %v230
    %7073 = vmatprep.subr.mxu0 %v233
    %7074 = vmatpush1.msra.mxu0 %v232
    %7075 = vmatprep.subr.mxu0 %v235
    %7076 = vmatpush1.msra.mxu0 %v234
    %7077 = vmatprep.subr.mxu0 %v237
    %7078 = vmatpush1.msra.mxu0 %v236
    %7079 = vmatprep.subr.mxu0 %v239
    %7080 = vmatpush1.msra.mxu0 %v238
    %7081 = vmatprep.subr.mxu0 %v241
    %7082 = vmatpush1.msra.mxu0 %v240
    %7083 = vmatprep.subr.mxu0 %v243
    %7084 = vmatpush1.msra.mxu0 %v242
    %7085 = vmatprep.subr.mxu0 %v245
    %7086 = vmatpush1.msra.mxu0 %v244
    %7087 = vmatprep.subr.mxu0 %v247
    %7088 = vmatpush1.msra.mxu0 %v246
    %7089 = vmatprep.subr.mxu0 %v249
    %7090 = vmatpush1.msra.mxu0 %v248
    %7091 = vmatprep.subr.mxu0 %v251
    %7092 = vmatpush1.msra.mxu0 %v250
    %7093 = vmatprep.subr.mxu0 %v253
    %7094 = vmatpush1.msra.mxu0 %v252
    %7095 = vmatprep.subr.mxu0 %v255
    %7096 = vmatpush1.msra.mxu0 %v254
    %7097 = vmatprep.subr.mxu0 %v257
    %7098 = vmatpush1.msra.mxu0 %v256
    %7099 = vmatprep.subr.mxu0 %v259
    %7100 = vmatpush1.msra.mxu0 %v258
    %7101 = vmatprep.mubr.f32.mxu0 %v6894
    %7102 = vmatmul.mubr.f32.gmra.mrb[0].mxu0 %v6893
    %v7103 = vpop.f32.mrb[0].mxu0
    %v7104 = vadd.f32 0.0, %v7103
    %v7105 = vpop.f32.mrb[0].mxu0
    %v7106 = vadd.f32 0.0, %v7105
    %7107 = vdwg.mxu0
    %s7108 = scalar_lea.vmem %s7, 96
    %v7109 = vld [vmem:[%s7108] sm:$0xff]
    %v7110 = vld [vmem:[%s7108 + $0x8] sm:$0xff]
    %v7111 = vld [vmem:[%s7108 + $0x10] sm:$0xff]
    %v7112 = vld [vmem:[%s7108 + $0x18] sm:$0xff]
    %s7113 = scalar_lea.vmem %s8, 96
    %v7114 = vld [vmem:[%s7113] sm:$0xff]
    %v7115 = vld [vmem:[%s7113 + $0x8] sm:$0xff]
    %v7116 = vld [vmem:[%s7113 + $0x10] sm:$0xff]
    %v7117 = vld [vmem:[%s7113 + $0x18] sm:$0xff]
    %v7119 = vsel %vm355, %v7114, 0
    %v7122 = vsel %vm355, %v7115, 0
    %v7125 = vsel %vm355, %v7116, 0
    %v7128 = vsel %vm355, %v7117, 0
    %7130 = vmatprep.subr.mxu0 %v371
    %7131 = vmatpush1.msra.mxu0 %v369
    %7132 = vmatprep.subr.mxu0 0.0
    %7133 = vmatpush1.msra.mxu0 0.0
    %7134 = vmatprep.subr.mxu0 0.0
    %7135 = vmatpush1.msra.mxu0 0.0
    %7136 = vmatprep.subr.mxu0 0.0
    %7137 = vmatpush1.msra.mxu0 0.0
    %7138 = vmatprep.subr.mxu0 0.0
    %7139 = vmatpush1.msra.mxu0 0.0
    %7140 = vmatprep.subr.mxu0 0.0
    %7141 = vmatpush1.msra.mxu0 0.0
    %7142 = vmatprep.subr.mxu0 0.0
    %7143 = vmatpush1.msra.mxu0 0.0
    %7144 = vmatprep.subr.mxu0 0.0
    %7145 = vmatpush1.msra.mxu0 0.0
    %7146 = vmatprep.subr.mxu0 0.0
    %7147 = vmatpush1.msra.mxu0 0.0
    %7148 = vmatprep.subr.mxu0 0.0
    %7149 = vmatpush1.msra.mxu0 0.0
    %7150 = vmatprep.subr.mxu0 0.0
    %7151 = vmatpush1.msra.mxu0 0.0
    %7152 = vmatprep.subr.mxu0 0.0
    %7153 = vmatpush1.msra.mxu0 0.0
    %7154 = vmatprep.subr.mxu0 0.0
    %7155 = vmatpush1.msra.mxu0 0.0
    %7156 = vmatprep.subr.mxu0 0.0
    %7157 = vmatpush1.msra.mxu0 0.0
    %7158 = vmatprep.subr.mxu0 0.0
    %7159 = vmatpush1.msra.mxu0 0.0
    %7160 = vmatprep.subr.mxu0 0.0
    %7161 = vmatpush1.msra.mxu0 0.0
    %7162 = vmatprep.subr.mxu0 0.0
    %7163 = vmatpush1.msra.mxu0 0.0
    %7164 = vmatprep.subr.mxu0 0.0
    %7165 = vmatpush1.msra.mxu0 0.0
    %7166 = vmatprep.subr.mxu0 0.0
    %7167 = vmatpush1.msra.mxu0 0.0
    %7168 = vmatprep.subr.mxu0 0.0
    %7169 = vmatpush1.msra.mxu0 0.0
    %7170 = vmatprep.subr.mxu0 0.0
    %7171 = vmatpush1.msra.mxu0 0.0
    %7172 = vmatprep.subr.mxu0 0.0
    %7173 = vmatpush1.msra.mxu0 0.0
    %7174 = vmatprep.subr.mxu0 0.0
    %7175 = vmatpush1.msra.mxu0 0.0
    %7176 = vmatprep.subr.mxu0 0.0
    %7177 = vmatpush1.msra.mxu0 0.0
    %7178 = vmatprep.subr.mxu0 0.0
    %7179 = vmatpush1.msra.mxu0 0.0
    %7180 = vmatprep.subr.mxu0 0.0
    %7181 = vmatpush1.msra.mxu0 0.0
    %7182 = vmatprep.subr.mxu0 0.0
    %7183 = vmatpush1.msra.mxu0 0.0
    %7184 = vmatprep.subr.mxu0 0.0
    %7185 = vmatpush1.msra.mxu0 0.0
    %7186 = vmatprep.subr.mxu0 0.0
    %7187 = vmatpush1.msra.mxu0 0.0
    %7188 = vmatprep.subr.mxu0 0.0
    %7189 = vmatpush1.msra.mxu0 0.0
    %7190 = vmatprep.subr.mxu0 0.0
    %7191 = vmatpush1.msra.mxu0 0.0
    %7192 = vmatprep.subr.mxu0 0.0
    %7193 = vmatpush1.msra.mxu0 0.0
    %7194 = vmatprep.mubr.f32.mxu0 0.0
    %7195 = vmatmul.mubr.f32.gmra.mrb[0].mxu0 %v7119
    %v7196 = vpop.f32.mrb[0].mxu0
    %v7197 = vadd.f32 0.0, %v7196
    %v7198 = vpop.f32.mrb[0].mxu0
    %v7199 = vadd.f32 0.0, %v7198
    %7200 = vmatprep.mubr.f32.mxu0 0.0
    %7201 = vmatmul.mubr.f32.gmra.mrb[0].mxu0 %v7122
    %v7202 = vpop.f32.mrb[0].mxu0
    %v7203 = vadd.f32 0.0, %v7202
    %v7204 = vpop.f32.mrb[0].mxu0
    %v7205 = vadd.f32 0.0, %v7204
    %7206 = vmatprep.mubr.f32.mxu0 0.0
    %7207 = vmatmul.mubr.f32.gmra.mrb[0].mxu0 %v7125
    %v7208 = vpop.f32.mrb[0].mxu0
    %v7209 = vadd.f32 0.0, %v7208
    %v7210 = vpop.f32.mrb[0].mxu0
    %v7211 = vadd.f32 0.0, %v7210
    %7212 = vmatprep.mubr.f32.mxu0 0.0
    %7213 = vmatmul.mubr.f32.gmra.mrb[0].mxu0 %v7128
    %v7214 = vpop.f32.mrb[0].mxu0
    %v7215 = vadd.f32 0.0, %v7214
    %v7216 = vpop.f32.mrb[0].mxu0
    %v7217 = vadd.f32 0.0, %v7216
    %7218 = vdwg.mxu0
    %v7220 = vsel %vm711, %v7109, 0
    %v7223 = vsel %vm711, %v7110, 0
    %v7226 = vsel %vm711, %v7111, 0
    %v7229 = vsel %vm711, %v7112, 0
    %7231 = vmatprep.subr.mxu0 %v6888
    %7232 = vmatpush1.msra.mxu0 %v6887
    %7233 = vmatprep.subr.mxu0 %v6964
    %7234 = vmatpush1.msra.mxu0 %v6962
    %7235 = vmatprep.subr.mxu0 %v7035
    %7236 = vmatpush1.msra.mxu0 %v7033
    %7237 = vmatprep.subr.mxu0 %v7106
    %7238 = vmatpush1.msra.mxu0 %v7104
    %7239 = vmatprep.subr.mxu0 0.0
    %7240 = vmatpush1.msra.mxu0 0.0
    %7241 = vmatprep.subr.mxu0 0.0
    %7242 = vmatpush1.msra.mxu0 0.0
    %7243 = vmatprep.subr.mxu0 0.0
    %7244 = vmatpush1.msra.mxu0 0.0
    %7245 = vmatprep.subr.mxu0 0.0
    %7246 = vmatpush1.msra.mxu0 0.0
    %7247 = vmatprep.subr.mxu0 0.0
    %7248 = vmatpush1.msra.mxu0 0.0
    %7249 = vmatprep.subr.mxu0 0.0
    %7250 = vmatpush1.msra.mxu0 0.0
    %7251 = vmatprep.subr.mxu0 0.0
    %7252 = vmatpush1.msra.mxu0 0.0
    %7253 = vmatprep.subr.mxu0 0.0
    %7254 = vmatpush1.msra.mxu0 0.0
    %7255 = vmatprep.subr.mxu0 0.0
    %7256 = vmatpush1.msra.mxu0 0.0
    %7257 = vmatprep.subr.mxu0 0.0
    %7258 = vmatpush1.msra.mxu0 0.0
    %7259 = vmatprep.subr.mxu0 0.0
    %7260 = vmatpush1.msra.mxu0 0.0
    %7261 = vmatprep.subr.mxu0 0.0
    %7262 = vmatpush1.msra.mxu0 0.0
    %7263 = vmatprep.subr.mxu0 0.0
    %7264 = vmatpush1.msra.mxu0 0.0
    %7265 = vmatprep.subr.mxu0 0.0
    %7266 = vmatpush1.msra.mxu0 0.0
    %7267 = vmatprep.subr.mxu0 0.0
    %7268 = vmatpush1.msra.mxu0 0.0
    %7269 = vmatprep.subr.mxu0 0.0
    %7270 = vmatpush1.msra.mxu0 0.0
    %7271 = vmatprep.subr.mxu0 0.0
    %7272 = vmatpush1.msra.mxu0 0.0
    %7273 = vmatprep.subr.mxu0 0.0
    %7274 = vmatpush1.msra.mxu0 0.0
    %7275 = vmatprep.subr.mxu0 0.0
    %7276 = vmatpush1.msra.mxu0 0.0
    %7277 = vmatprep.subr.mxu0 0.0
    %7278 = vmatpush1.msra.mxu0 0.0
    %7279 = vmatprep.subr.mxu0 0.0
    %7280 = vmatpush1.msra.mxu0 0.0
    %7281 = vmatprep.subr.mxu0 0.0
    %7282 = vmatpush1.msra.mxu0 0.0
    %7283 = vmatprep.subr.mxu0 0.0
    %7284 = vmatpush1.msra.mxu0 0.0
    %7285 = vmatprep.subr.mxu0 0.0
    %7286 = vmatpush1.msra.mxu0 0.0
    %7287 = vmatprep.subr.mxu0 0.0
    %7288 = vmatpush1.msra.mxu0 0.0
    %7289 = vmatprep.subr.mxu0 0.0
    %7290 = vmatpush1.msra.mxu0 0.0
    %7291 = vmatprep.subr.mxu0 0.0
    %7292 = vmatpush1.msra.mxu0 0.0
    %7293 = vmatprep.subr.mxu0 0.0
    %7294 = vmatpush1.msra.mxu0 0.0
    %7295 = vmatprep.mubr.f32.mxu0 0.0
    %7296 = vmatmul.mubr.f32.gmra.mrb[0].mxu0 %v7220
    %v7297 = vpop.f32.mrb[0].mxu0
    %v7298 = vadd.f32 %v7197, %v7297
    %v7299 = vpop.f32.mrb[0].mxu0
    %v7300 = vadd.f32 %v7199, %v7299
    %7301 = vmatprep.mubr.f32.mxu0 0.0
    %7302 = vmatmul.mubr.f32.gmra.mrb[0].mxu0 %v7223
    %v7303 = vpop.f32.mrb[0].mxu0
    %v7304 = vadd.f32 %v7203, %v7303
    %v7305 = vpop.f32.mrb[0].mxu0
    %v7306 = vadd.f32 %v7205, %v7305
    %7307 = vmatprep.mubr.f32.mxu0 0.0
    %7308 = vmatmul.mubr.f32.gmra.mrb[0].mxu0 %v7226
    %v7309 = vpop.f32.mrb[0].mxu0
    %v7310 = vadd.f32 %v7209, %v7309
    %v7311 = vpop.f32.mrb[0].mxu0
    %v7312 = vadd.f32 %v7211, %v7311
    %7313 = vmatprep.mubr.f32.mxu0 0.0
    %7314 = vmatmul.mubr.f32.gmra.mrb[0].mxu0 %v7229
    %v7315 = vpop.f32.mrb[0].mxu0
    %v7316 = vadd.f32 %v7215, %v7315
    %v7317 = vpop.f32.mrb[0].mxu0
    %v7318 = vadd.f32 %v7217, %v7317
    %7319 = vdwg.mxu0
    %s7320 = scalar_lea.vmem %s9, 128
    %v7321 = vld [vmem:[%s7320] sm:$0xff]
    %v7322 = vld [vmem:[%s7320 + $0x8] sm:$0xff]
    %v7323 = vld [vmem:[%s7320 + $0x10] sm:$0xff]
    %v7324 = vld [vmem:[%s7320 + $0x18] sm:$0xff]
    %7326 = vset.pattern.permute.xlu0 0
    %7327 = vperm.xlu0 %7326, %v7321
    %v7328 = vpop.permute.xlu0 %7327
    %7331 = vset.pattern.permute.xlu0 0
    %7332 = vperm.xlu0 %7331, %v7322
    %v7333 = vpop.permute.xlu0 %7332
    %7336 = vset.pattern.permute.xlu0 0
    %7337 = vperm.xlu0 %7336, %v7323
    %v7338 = vpop.permute.xlu0 %7337
    %7341 = vset.pattern.permute.xlu0 0
    %7342 = vperm.xlu0 %7341, %v7324
    %v7343 = vpop.permute.xlu0 %7342
    %v7345 = vadd.f32 %v7298, %v7328
    %v7346 = vadd.f32 %v7300, %v7328
    %v7347 = vadd.f32 %v7304, %v7333
    %v7348 = vadd.f32 %v7306, %v7333
    %v7349 = vadd.f32 %v7310, %v7338
    %v7350 = vadd.f32 %v7312, %v7338
    %v7351 = vadd.f32 %v7316, %v7343
    %v7352 = vadd.f32 %v7318, %v7343
    %v7353 = vmax.f32 %v7345, 0.0
    %v7354 = vmax.f32 %v7346, 0.0
    %v7355 = vmax.f32 %v7347, 0.0
    %v7356 = vmax.f32 %v7348, 0.0
    %v7357 = vmax.f32 %v7349, 0.0
    %v7358 = vmax.f32 %v7350, 0.0
    %v7359 = vmax.f32 %v7351, 0.0
    %v7360 = vmax.f32 %v7352, 0.0
    %7361 = vmatprep.subr.mxu0 %v67
    %7362 = vmatpush1.msra.mxu0 %v66
    %7363 = vmatprep.subr.mxu0 %v69
    %7364 = vmatpush1.msra.mxu0 %v68
    %7365 = vmatprep.subr.mxu0 %v71
    %7366 = vmatpush1.msra.mxu0 %v70
    %7367 = vmatprep.subr.mxu0 %v73
    %7368 = vmatpush1.msra.mxu0 %v72
    %7369 = vmatprep.subr.mxu0 %v75
    %7370 = vmatpush1.msra.mxu0 %v74
    %7371 = vmatprep.subr.mxu0 %v77
    %7372 = vmatpush1.msra.mxu0 %v76
    %7373 = vmatprep.subr.mxu0 %v79
    %7374 = vmatpush1.msra.mxu0 %v78
    %7375 = vmatprep.subr.mxu0 %v81
    %7376 = vmatpush1.msra.mxu0 %v80
    %7377 = vmatprep.subr.mxu0 %v83
    %7378 = vmatpush1.msra.mxu0 %v82
    %7379 = vmatprep.subr.mxu0 %v85
    %7380 = vmatpush1.msra.mxu0 %v84
    %7381 = vmatprep.subr.mxu0 %v87
    %7382 = vmatpush1.msra.mxu0 %v86
    %7383 = vmatprep.subr.mxu0 %v89
    %7384 = vmatpush1.msra.mxu0 %v88
    %7385 = vmatprep.subr.mxu0 %v91
    %7386 = vmatpush1.msra.mxu0 %v90
    %7387 = vmatprep.subr.mxu0 %v93
    %7388 = vmatpush1.msra.mxu0 %v92
    %7389 = vmatprep.subr.mxu0 %v95
    %7390 = vmatpush1.msra.mxu0 %v94
    %7391 = vmatprep.subr.mxu0 %v97
    %7392 = vmatpush1.msra.mxu0 %v96
    %7393 = vmatprep.subr.mxu0 %v99
    %7394 = vmatpush1.msra.mxu0 %v98
    %7395 = vmatprep.subr.mxu0 %v101
    %7396 = vmatpush1.msra.mxu0 %v100
    %7397 = vmatprep.subr.mxu0 %v103
    %7398 = vmatpush1.msra.mxu0 %v102
    %7399 = vmatprep.subr.mxu0 %v105
    %7400 = vmatpush1.msra.mxu0 %v104
    %7401 = vmatprep.subr.mxu0 %v107
    %7402 = vmatpush1.msra.mxu0 %v106
    %7403 = vmatprep.subr.mxu0 %v109
    %7404 = vmatpush1.msra.mxu0 %v108
    %7405 = vmatprep.subr.mxu0 %v111
    %7406 = vmatpush1.msra.mxu0 %v110
    %7407 = vmatprep.subr.mxu0 %v113
    %7408 = vmatpush1.msra.mxu0 %v112
    %7409 = vmatprep.subr.mxu0 %v115
    %7410 = vmatpush1.msra.mxu0 %v114
    %7411 = vmatprep.subr.mxu0 %v117
    %7412 = vmatpush1.msra.mxu0 %v116
    %7413 = vmatprep.subr.mxu0 %v119
    %7414 = vmatpush1.msra.mxu0 %v118
    %7415 = vmatprep.subr.mxu0 %v121
    %7416 = vmatpush1.msra.mxu0 %v120
    %7417 = vmatprep.subr.mxu0 %v123
    %7418 = vmatpush1.msra.mxu0 %v122
    %7419 = vmatprep.subr.mxu0 %v125
    %7420 = vmatpush1.msra.mxu0 %v124
    %7421 = vmatprep.subr.mxu0 %v127
    %7422 = vmatpush1.msra.mxu0 %v126
    %7423 = vmatprep.subr.mxu0 %v129
    %7424 = vmatpush1.msra.mxu0 %v128
    %7425 = vmatprep.mubr.f32.mxu0 %v7356
    %7426 = vmatmul.mubr.f32.gmra.mrb[0].mxu0 %v7355
    %v7427 = vpop.f32.mrb[0].mxu0
    %v7428 = vadd.f32 0.0, %v7427
    %v7429 = vpop.f32.mrb[0].mxu0
    %v7430 = vadd.f32 0.0, %v7429
    %7431 = vdwg.mxu0
    %7432 = vmatprep.subr.mxu0 %v132
    %7433 = vmatpush1.msra.mxu0 %v131
    %7434 = vmatprep.subr.mxu0 %v134
    %7435 = vmatpush1.msra.mxu0 %v133
    %7436 = vmatprep.subr.mxu0 %v136
    %7437 = vmatpush1.msra.mxu0 %v135
    %7438 = vmatprep.subr.mxu0 %v138
    %7439 = vmatpush1.msra.mxu0 %v137
    %7440 = vmatprep.subr.mxu0 %v140
    %7441 = vmatpush1.msra.mxu0 %v139
    %7442 = vmatprep.subr.mxu0 %v142
    %7443 = vmatpush1.msra.mxu0 %v141
    %7444 = vmatprep.subr.mxu0 %v144
    %7445 = vmatpush1.msra.mxu0 %v143
    %7446 = vmatprep.subr.mxu0 %v146
    %7447 = vmatpush1.msra.mxu0 %v145
    %7448 = vmatprep.subr.mxu0 %v148
    %7449 = vmatpush1.msra.mxu0 %v147
    %7450 = vmatprep.subr.mxu0 %v150
    %7451 = vmatpush1.msra.mxu0 %v149
    %7452 = vmatprep.subr.mxu0 %v152
    %7453 = vmatpush1.msra.mxu0 %v151
    %7454 = vmatprep.subr.mxu0 %v154
    %7455 = vmatpush1.msra.mxu0 %v153
    %7456 = vmatprep.subr.mxu0 %v156
    %7457 = vmatpush1.msra.mxu0 %v155
    %7458 = vmatprep.subr.mxu0 %v158
    %7459 = vmatpush1.msra.mxu0 %v157
    %7460 = vmatprep.subr.mxu0 %v160
    %7461 = vmatpush1.msra.mxu0 %v159
    %7462 = vmatprep.subr.mxu0 %v162
    %7463 = vmatpush1.msra.mxu0 %v161
    %7464 = vmatprep.subr.mxu0 %v164
    %7465 = vmatpush1.msra.mxu0 %v163
    %7466 = vmatprep.subr.mxu0 %v166
    %7467 = vmatpush1.msra.mxu0 %v165
    %7468 = vmatprep.subr.mxu0 %v168
    %7469 = vmatpush1.msra.mxu0 %v167
    %7470 = vmatprep.subr.mxu0 %v170
    %7471 = vmatpush1.msra.mxu0 %v169
    %7472 = vmatprep.subr.mxu0 %v172
    %7473 = vmatpush1.msra.mxu0 %v171
    %7474 = vmatprep.subr.mxu0 %v174
    %7475 = vmatpush1.msra.mxu0 %v173
    %7476 = vmatprep.subr.mxu0 %v176
    %7477 = vmatpush1.msra.mxu0 %v175
    %7478 = vmatprep.subr.mxu0 %v178
    %7479 = vmatpush1.msra.mxu0 %v177
    %7480 = vmatprep.subr.mxu0 %v180
    %7481 = vmatpush1.msra.mxu0 %v179
    %7482 = vmatprep.subr.mxu0 %v182
    %7483 = vmatpush1.msra.mxu0 %v181
    %7484 = vmatprep.subr.mxu0 %v184
    %7485 = vmatpush1.msra.mxu0 %v183
    %7486 = vmatprep.subr.mxu0 %v186
    %7487 = vmatpush1.msra.mxu0 %v185
    %7488 = vmatprep.subr.mxu0 %v188
    %7489 = vmatpush1.msra.mxu0 %v187
    %7490 = vmatprep.subr.mxu0 %v190
    %7491 = vmatpush1.msra.mxu0 %v189
    %7492 = vmatprep.subr.mxu0 %v192
    %7493 = vmatpush1.msra.mxu0 %v191
    %7494 = vmatprep.subr.mxu0 %v194
    %7495 = vmatpush1.msra.mxu0 %v193
    %7496 = vmatprep.mubr.f32.mxu0 %v7358
    %7497 = vmatmul.mubr.f32.gmra.mrb[0].mxu0 %v7357
    %v7498 = vpop.f32.mrb[0].mxu0
    %v7499 = vadd.f32 0.0, %v7498
    %v7500 = vpop.f32.mrb[0].mxu0
    %v7501 = vadd.f32 0.0, %v7500
    %7502 = vdwg.mxu0
    %7503 = vmatprep.subr.mxu0 %v197
    %7504 = vmatpush1.msra.mxu0 %v196
    %7505 = vmatprep.subr.mxu0 %v199
    %7506 = vmatpush1.msra.mxu0 %v198
    %7507 = vmatprep.subr.mxu0 %v201
    %7508 = vmatpush1.msra.mxu0 %v200
    %7509 = vmatprep.subr.mxu0 %v203
    %7510 = vmatpush1.msra.mxu0 %v202
    %7511 = vmatprep.subr.mxu0 %v205
    %7512 = vmatpush1.msra.mxu0 %v204
    %7513 = vmatprep.subr.mxu0 %v207
    %7514 = vmatpush1.msra.mxu0 %v206
    %7515 = vmatprep.subr.mxu0 %v209
    %7516 = vmatpush1.msra.mxu0 %v208
    %7517 = vmatprep.subr.mxu0 %v211
    %7518 = vmatpush1.msra.mxu0 %v210
    %7519 = vmatprep.subr.mxu0 %v213
    %7520 = vmatpush1.msra.mxu0 %v212
    %7521 = vmatprep.subr.mxu0 %v215
    %7522 = vmatpush1.msra.mxu0 %v214
    %7523 = vmatprep.subr.mxu0 %v217
    %7524 = vmatpush1.msra.mxu0 %v216
    %7525 = vmatprep.subr.mxu0 %v219
    %7526 = vmatpush1.msra.mxu0 %v218
    %7527 = vmatprep.subr.mxu0 %v221
    %7528 = vmatpush1.msra.mxu0 %v220
    %7529 = vmatprep.subr.mxu0 %v223
    %7530 = vmatpush1.msra.mxu0 %v222
    %7531 = vmatprep.subr.mxu0 %v225
    %7532 = vmatpush1.msra.mxu0 %v224
    %7533 = vmatprep.subr.mxu0 %v227
    %7534 = vmatpush1.msra.mxu0 %v226
    %7535 = vmatprep.subr.mxu0 %v229
    %7536 = vmatpush1.msra.mxu0 %v228
    %7537 = vmatprep.subr.mxu0 %v231
    %7538 = vmatpush1.msra.mxu0 %v230
    %7539 = vmatprep.subr.mxu0 %v233
    %7540 = vmatpush1.msra.mxu0 %v232
    %7541 = vmatprep.subr.mxu0 %v235
    %7542 = vmatpush1.msra.mxu0 %v234
    %7543 = vmatprep.subr.mxu0 %v237
    %7544 = vmatpush1.msra.mxu0 %v236
    %7545 = vmatprep.subr.mxu0 %v239
    %7546 = vmatpush1.msra.mxu0 %v238
    %7547 = vmatprep.subr.mxu0 %v241
    %7548 = vmatpush1.msra.mxu0 %v240
    %7549 = vmatprep.subr.mxu0 %v243
    %7550 = vmatpush1.msra.mxu0 %v242
    %7551 = vmatprep.subr.mxu0 %v245
    %7552 = vmatpush1.msra.mxu0 %v244
    %7553 = vmatprep.subr.mxu0 %v247
    %7554 = vmatpush1.msra.mxu0 %v246
    %7555 = vmatprep.subr.mxu0 %v249
    %7556 = vmatpush1.msra.mxu0 %v248
    %7557 = vmatprep.subr.mxu0 %v251
    %7558 = vmatpush1.msra.mxu0 %v250
    %7559 = vmatprep.subr.mxu0 %v253
    %7560 = vmatpush1.msra.mxu0 %v252
    %7561 = vmatprep.subr.mxu0 %v255
    %7562 = vmatpush1.msra.mxu0 %v254
    %7563 = vmatprep.subr.mxu0 %v257
    %7564 = vmatpush1.msra.mxu0 %v256
    %7565 = vmatprep.subr.mxu0 %v259
    %7566 = vmatpush1.msra.mxu0 %v258
    %7567 = vmatprep.mubr.f32.mxu0 %v7360
    %7568 = vmatmul.mubr.f32.gmra.mrb[0].mxu0 %v7359
    %v7569 = vpop.f32.mrb[0].mxu0
    %v7570 = vadd.f32 0.0, %v7569
    %v7571 = vpop.f32.mrb[0].mxu0
    %v7572 = vadd.f32 0.0, %v7571
    %7573 = vdwg.mxu0
    %s7574 = scalar_lea.vmem %s10, 128
    %v7575 = vld [vmem:[%s7574] sm:$0xff]
    %v7576 = vld [vmem:[%s7574 + $0x8] sm:$0xff]
    %v7577 = vld [vmem:[%s7574 + $0x10] sm:$0xff]
    %v7578 = vld [vmem:[%s7574 + $0x18] sm:$0xff]
    %s7579 = scalar_lea.vmem %s11, 128
    %v7580 = vld [vmem:[%s7579] sm:$0xff]
    %v7581 = vld [vmem:[%s7579 + $0x8] sm:$0xff]
    %v7582 = vld [vmem:[%s7579 + $0x10] sm:$0xff]
    %v7583 = vld [vmem:[%s7579 + $0x18] sm:$0xff]
    %7585 = vset.pattern.permute.xlu0 0
    %7586 = vperm.xlu0 %7585, %v7580
    %v7587 = vpop.permute.xlu0 %7586
    %7590 = vset.pattern.permute.xlu0 0
    %7591 = vperm.xlu0 %7590, %v7581
    %v7592 = vpop.permute.xlu0 %7591
    %7595 = vset.pattern.permute.xlu0 0
    %7596 = vperm.xlu0 %7595, %v7582
    %v7597 = vpop.permute.xlu0 %7596
    %7600 = vset.pattern.permute.xlu0 0
    %7601 = vperm.xlu0 %7600, %v7583
    %v7602 = vpop.permute.xlu0 %7601
    %v7605 = vsel %vm711, %v7575, 0
    %v7608 = vsel %vm711, %v7576, 0
    %v7611 = vsel %vm711, %v7577, 0
    %v7614 = vsel %vm711, %v7578, 0
    %7616 = vmatprep.subr.mxu0 %v7354
    %7617 = vmatpush1.msra.mxu0 %v7353
    %7618 = vmatprep.subr.mxu0 %v7430
    %7619 = vmatpush1.msra.mxu0 %v7428
    %7620 = vmatprep.subr.mxu0 %v7501
    %7621 = vmatpush1.msra.mxu0 %v7499
    %7622 = vmatprep.subr.mxu0 %v7572
    %7623 = vmatpush1.msra.mxu0 %v7570
    %7624 = vmatprep.subr.mxu0 0.0
    %7625 = vmatpush1.msra.mxu0 0.0
    %7626 = vmatprep.subr.mxu0 0.0
    %7627 = vmatpush1.msra.mxu0 0.0
    %7628 = vmatprep.subr.mxu0 0.0
    %7629 = vmatpush1.msra.mxu0 0.0
    %7630 = vmatprep.subr.mxu0 0.0
    %7631 = vmatpush1.msra.mxu0 0.0
    %7632 = vmatprep.subr.mxu0 0.0
    %7633 = vmatpush1.msra.mxu0 0.0
    %7634 = vmatprep.subr.mxu0 0.0
    %7635 = vmatpush1.msra.mxu0 0.0
    %7636 = vmatprep.subr.mxu0 0.0
    %7637 = vmatpush1.msra.mxu0 0.0
    %7638 = vmatprep.subr.mxu0 0.0
    %7639 = vmatpush1.msra.mxu0 0.0
    %7640 = vmatprep.subr.mxu0 0.0
    %7641 = vmatpush1.msra.mxu0 0.0
    %7642 = vmatprep.subr.mxu0 0.0
    %7643 = vmatpush1.msra.mxu0 0.0
    %7644 = vmatprep.subr.mxu0 0.0
    %7645 = vmatpush1.msra.mxu0 0.0
    %7646 = vmatprep.subr.mxu0 0.0
    %7647 = vmatpush1.msra.mxu0 0.0
    %7648 = vmatprep.subr.mxu0 0.0
    %7649 = vmatpush1.msra.mxu0 0.0
    %7650 = vmatprep.subr.mxu0 0.0
    %7651 = vmatpush1.msra.mxu0 0.0
    %7652 = vmatprep.subr.mxu0 0.0
    %7653 = vmatpush1.msra.mxu0 0.0
    %7654 = vmatprep.subr.mxu0 0.0
    %7655 = vmatpush1.msra.mxu0 0.0
    %7656 = vmatprep.subr.mxu0 0.0
    %7657 = vmatpush1.msra.mxu0 0.0
    %7658 = vmatprep.subr.mxu0 0.0
    %7659 = vmatpush1.msra.mxu0 0.0
    %7660 = vmatprep.subr.mxu0 0.0
    %7661 = vmatpush1.msra.mxu0 0.0
    %7662 = vmatprep.subr.mxu0 0.0
    %7663 = vmatpush1.msra.mxu0 0.0
    %7664 = vmatprep.subr.mxu0 0.0
    %7665 = vmatpush1.msra.mxu0 0.0
    %7666 = vmatprep.subr.mxu0 0.0
    %7667 = vmatpush1.msra.mxu0 0.0
    %7668 = vmatprep.subr.mxu0 0.0
    %7669 = vmatpush1.msra.mxu0 0.0
    %7670 = vmatprep.subr.mxu0 0.0
    %7671 = vmatpush1.msra.mxu0 0.0
    %7672 = vmatprep.subr.mxu0 0.0
    %7673 = vmatpush1.msra.mxu0 0.0
    %7674 = vmatprep.subr.mxu0 0.0
    %7675 = vmatpush1.msra.mxu0 0.0
    %7676 = vmatprep.subr.mxu0 0.0
    %7677 = vmatpush1.msra.mxu0 0.0
    %7678 = vmatprep.subr.mxu0 0.0
    %7679 = vmatpush1.msra.mxu0 0.0
    %7680 = vmatprep.mubr.f32.mxu0 0.0
    %7681 = vmatmul.mubr.f32.gmra.mrb[0].mxu0 %v7605
    %v7682 = vpop.f32.mrb[0].mxu0
    %v7683 = vadd.f32 %v7587, %v7682
    %v7684 = vpop.f32.mrb[0].mxu0
    %v7685 = vadd.f32 %v7587, %v7684
    %7686 = vmatprep.mubr.f32.mxu0 0.0
    %7687 = vmatmul.mubr.f32.gmra.mrb[0].mxu0 %v7608
    %v7688 = vpop.f32.mrb[0].mxu0
    %v7689 = vadd.f32 %v7592, %v7688
    %v7690 = vpop.f32.mrb[0].mxu0
    %v7691 = vadd.f32 %v7592, %v7690
    %7692 = vmatprep.mubr.f32.mxu0 0.0
    %7693 = vmatmul.mubr.f32.gmra.mrb[0].mxu0 %v7611
    %v7694 = vpop.f32.mrb[0].mxu0
    %v7695 = vadd.f32 %v7597, %v7694
    %v7696 = vpop.f32.mrb[0].mxu0
    %v7697 = vadd.f32 %v7597, %v7696
    %7698 = vmatprep.mubr.f32.mxu0 0.0
    %7699 = vmatmul.mubr.f32.gmra.mrb[0].mxu0 %v7614
    %v7700 = vpop.f32.mrb[0].mxu0
    %v7701 = vadd.f32 %v7602, %v7700
    %v7702 = vpop.f32.mrb[0].mxu0
    %v7703 = vadd.f32 %v7602, %v7702
    %7704 = vdwg.mxu0
    %v7705 = vmax.f32 %v7683, 0.0
    %v7706 = vmax.f32 %v7685, 0.0
    %v7707 = vmax.f32 %v7689, 0.0
    %v7708 = vmax.f32 %v7691, 0.0
    %v7709 = vmax.f32 %v7695, 0.0
    %v7710 = vmax.f32 %v7697, 0.0
    %v7711 = vmax.f32 %v7701, 0.0
    %v7712 = vmax.f32 %v7703, 0.0
    %7713 = vmatprep.subr.mxu0 %v67
    %7714 = vmatpush1.msra.mxu0 %v66
    %7715 = vmatprep.subr.mxu0 %v69
    %7716 = vmatpush1.msra.mxu0 %v68
    %7717 = vmatprep.subr.mxu0 %v71
    %7718 = vmatpush1.msra.mxu0 %v70
    %7719 = vmatprep.subr.mxu0 %v73
    %7720 = vmatpush1.msra.mxu0 %v72
    %7721 = vmatprep.subr.mxu0 %v75
    %7722 = vmatpush1.msra.mxu0 %v74
    %7723 = vmatprep.subr.mxu0 %v77
    %7724 = vmatpush1.msra.mxu0 %v76
    %7725 = vmatprep.subr.mxu0 %v79
    %7726 = vmatpush1.msra.mxu0 %v78
    %7727 = vmatprep.subr.mxu0 %v81
    %7728 = vmatpush1.msra.mxu0 %v80
    %7729 = vmatprep.subr.mxu0 %v83
    %7730 = vmatpush1.msra.mxu0 %v82
    %7731 = vmatprep.subr.mxu0 %v85
    %7732 = vmatpush1.msra.mxu0 %v84
    %7733 = vmatprep.subr.mxu0 %v87
    %7734 = vmatpush1.msra.mxu0 %v86
    %7735 = vmatprep.subr.mxu0 %v89
    %7736 = vmatpush1.msra.mxu0 %v88
    %7737 = vmatprep.subr.mxu0 %v91
    %7738 = vmatpush1.msra.mxu0 %v90
    %7739 = vmatprep.subr.mxu0 %v93
    %7740 = vmatpush1.msra.mxu0 %v92
    %7741 = vmatprep.subr.mxu0 %v95
    %7742 = vmatpush1.msra.mxu0 %v94
    %7743 = vmatprep.subr.mxu0 %v97
    %7744 = vmatpush1.msra.mxu0 %v96
    %7745 = vmatprep.subr.mxu0 %v99
    %7746 = vmatpush1.msra.mxu0 %v98
    %7747 = vmatprep.subr.mxu0 %v101
    %7748 = vmatpush1.msra.mxu0 %v100
    %7749 = vmatprep.subr.mxu0 %v103
    %7750 = vmatpush1.msra.mxu0 %v102
    %7751 = vmatprep.subr.mxu0 %v105
    %7752 = vmatpush1.msra.mxu0 %v104
    %7753 = vmatprep.subr.mxu0 %v107
    %7754 = vmatpush1.msra.mxu0 %v106
    %7755 = vmatprep.subr.mxu0 %v109
    %7756 = vmatpush1.msra.mxu0 %v108
    %7757 = vmatprep.subr.mxu0 %v111
    %7758 = vmatpush1.msra.mxu0 %v110
    %7759 = vmatprep.subr.mxu0 %v113
    %7760 = vmatpush1.msra.mxu0 %v112
    %7761 = vmatprep.subr.mxu0 %v115
    %7762 = vmatpush1.msra.mxu0 %v114
    %7763 = vmatprep.subr.mxu0 %v117
    %7764 = vmatpush1.msra.mxu0 %v116
    %7765 = vmatprep.subr.mxu0 %v119
    %7766 = vmatpush1.msra.mxu0 %v118
    %7767 = vmatprep.subr.mxu0 %v121
    %7768 = vmatpush1.msra.mxu0 %v120
    %7769 = vmatprep.subr.mxu0 %v123
    %7770 = vmatpush1.msra.mxu0 %v122
    %7771 = vmatprep.subr.mxu0 %v125
    %7772 = vmatpush1.msra.mxu0 %v124
    %7773 = vmatprep.subr.mxu0 %v127
    %7774 = vmatpush1.msra.mxu0 %v126
    %7775 = vmatprep.subr.mxu0 %v129
    %7776 = vmatpush1.msra.mxu0 %v128
    %7777 = vmatprep.mubr.f32.mxu0 %v7708
    %7778 = vmatmul.mubr.f32.gmra.mrb[0].mxu0 %v7707
    %v7779 = vpop.f32.mrb[0].mxu0
    %v7780 = vadd.f32 0.0, %v7779
    %v7781 = vpop.f32.mrb[0].mxu0
    %v7782 = vadd.f32 0.0, %v7781
    %7783 = vdwg.mxu0
    %7784 = vmatprep.subr.mxu0 %v132
    %7785 = vmatpush1.msra.mxu0 %v131
    %7786 = vmatprep.subr.mxu0 %v134
    %7787 = vmatpush1.msra.mxu0 %v133
    %7788 = vmatprep.subr.mxu0 %v136
    %7789 = vmatpush1.msra.mxu0 %v135
    %7790 = vmatprep.subr.mxu0 %v138
    %7791 = vmatpush1.msra.mxu0 %v137
    %7792 = vmatprep.subr.mxu0 %v140
    %7793 = vmatpush1.msra.mxu0 %v139
    %7794 = vmatprep.subr.mxu0 %v142
    %7795 = vmatpush1.msra.mxu0 %v141
    %7796 = vmatprep.subr.mxu0 %v144
    %7797 = vmatpush1.msra.mxu0 %v143
    %7798 = vmatprep.subr.mxu0 %v146
    %7799 = vmatpush1.msra.mxu0 %v145
    %7800 = vmatprep.subr.mxu0 %v148
    %7801 = vmatpush1.msra.mxu0 %v147
    %7802 = vmatprep.subr.mxu0 %v150
    %7803 = vmatpush1.msra.mxu0 %v149
    %7804 = vmatprep.subr.mxu0 %v152
    %7805 = vmatpush1.msra.mxu0 %v151
    %7806 = vmatprep.subr.mxu0 %v154
    %7807 = vmatpush1.msra.mxu0 %v153
    %7808 = vmatprep.subr.mxu0 %v156
    %7809 = vmatpush1.msra.mxu0 %v155
    %7810 = vmatprep.subr.mxu0 %v158
    %7811 = vmatpush1.msra.mxu0 %v157
    %7812 = vmatprep.subr.mxu0 %v160
    %7813 = vmatpush1.msra.mxu0 %v159
    %7814 = vmatprep.subr.mxu0 %v162
    %7815 = vmatpush1.msra.mxu0 %v161
    %7816 = vmatprep.subr.mxu0 %v164
    %7817 = vmatpush1.msra.mxu0 %v163
    %7818 = vmatprep.subr.mxu0 %v166
    %7819 = vmatpush1.msra.mxu0 %v165
    %7820 = vmatprep.subr.mxu0 %v168
    %7821 = vmatpush1.msra.mxu0 %v167
    %7822 = vmatprep.subr.mxu0 %v170
    %7823 = vmatpush1.msra.mxu0 %v169
    %7824 = vmatprep.subr.mxu0 %v172
    %7825 = vmatpush1.msra.mxu0 %v171
    %7826 = vmatprep.subr.mxu0 %v174
    %7827 = vmatpush1.msra.mxu0 %v173
    %7828 = vmatprep.subr.mxu0 %v176
    %7829 = vmatpush1.msra.mxu0 %v175
    %7830 = vmatprep.subr.mxu0 %v178
    %7831 = vmatpush1.msra.mxu0 %v177
    %7832 = vmatprep.subr.mxu0 %v180
    %7833 = vmatpush1.msra.mxu0 %v179
    %7834 = vmatprep.subr.mxu0 %v182
    %7835 = vmatpush1.msra.mxu0 %v181
    %7836 = vmatprep.subr.mxu0 %v184
    %7837 = vmatpush1.msra.mxu0 %v183
    %7838 = vmatprep.subr.mxu0 %v186
    %7839 = vmatpush1.msra.mxu0 %v185
    %7840 = vmatprep.subr.mxu0 %v188
    %7841 = vmatpush1.msra.mxu0 %v187
    %7842 = vmatprep.subr.mxu0 %v190
    %7843 = vmatpush1.msra.mxu0 %v189
    %7844 = vmatprep.subr.mxu0 %v192
    %7845 = vmatpush1.msra.mxu0 %v191
    %7846 = vmatprep.subr.mxu0 %v194
    %7847 = vmatpush1.msra.mxu0 %v193
    %7848 = vmatprep.mubr.f32.mxu0 %v7710
    %7849 = vmatmul.mubr.f32.gmra.mrb[0].mxu0 %v7709
    %v7850 = vpop.f32.mrb[0].mxu0
    %v7851 = vadd.f32 0.0, %v7850
    %v7852 = vpop.f32.mrb[0].mxu0
    %v7853 = vadd.f32 0.0, %v7852
    %7854 = vdwg.mxu0
    %7855 = vmatprep.subr.mxu0 %v197
    %7856 = vmatpush1.msra.mxu0 %v196
    %7857 = vmatprep.subr.mxu0 %v199
    %7858 = vmatpush1.msra.mxu0 %v198
    %7859 = vmatprep.subr.mxu0 %v201
    %7860 = vmatpush1.msra.mxu0 %v200
    %7861 = vmatprep.subr.mxu0 %v203
    %7862 = vmatpush1.msra.mxu0 %v202
    %7863 = vmatprep.subr.mxu0 %v205
    %7864 = vmatpush1.msra.mxu0 %v204
    %7865 = vmatprep.subr.mxu0 %v207
    %7866 = vmatpush1.msra.mxu0 %v206
    %7867 = vmatprep.subr.mxu0 %v209
    %7868 = vmatpush1.msra.mxu0 %v208
    %7869 = vmatprep.subr.mxu0 %v211
    %7870 = vmatpush1.msra.mxu0 %v210
    %7871 = vmatprep.subr.mxu0 %v213
    %7872 = vmatpush1.msra.mxu0 %v212
    %7873 = vmatprep.subr.mxu0 %v215
    %7874 = vmatpush1.msra.mxu0 %v214
    %7875 = vmatprep.subr.mxu0 %v217
    %7876 = vmatpush1.msra.mxu0 %v216
    %7877 = vmatprep.subr.mxu0 %v219
    %7878 = vmatpush1.msra.mxu0 %v218
    %7879 = vmatprep.subr.mxu0 %v221
    %7880 = vmatpush1.msra.mxu0 %v220
    %7881 = vmatprep.subr.mxu0 %v223
    %7882 = vmatpush1.msra.mxu0 %v222
    %7883 = vmatprep.subr.mxu0 %v225
    %7884 = vmatpush1.msra.mxu0 %v224
    %7885 = vmatprep.subr.mxu0 %v227
    %7886 = vmatpush1.msra.mxu0 %v226
    %7887 = vmatprep.subr.mxu0 %v229
    %7888 = vmatpush1.msra.mxu0 %v228
    %7889 = vmatprep.subr.mxu0 %v231
    %7890 = vmatpush1.msra.mxu0 %v230
    %7891 = vmatprep.subr.mxu0 %v233
    %7892 = vmatpush1.msra.mxu0 %v232
    %7893 = vmatprep.subr.mxu0 %v235
    %7894 = vmatpush1.msra.mxu0 %v234
    %7895 = vmatprep.subr.mxu0 %v237
    %7896 = vmatpush1.msra.mxu0 %v236
    %7897 = vmatprep.subr.mxu0 %v239
    %7898 = vmatpush1.msra.mxu0 %v238
    %7899 = vmatprep.subr.mxu0 %v241
    %7900 = vmatpush1.msra.mxu0 %v240
    %7901 = vmatprep.subr.mxu0 %v243
    %7902 = vmatpush1.msra.mxu0 %v242
    %7903 = vmatprep.subr.mxu0 %v245
    %7904 = vmatpush1.msra.mxu0 %v244
    %7905 = vmatprep.subr.mxu0 %v247
    %7906 = vmatpush1.msra.mxu0 %v246
    %7907 = vmatprep.subr.mxu0 %v249
    %7908 = vmatpush1.msra.mxu0 %v248
    %7909 = vmatprep.subr.mxu0 %v251
    %7910 = vmatpush1.msra.mxu0 %v250
    %7911 = vmatprep.subr.mxu0 %v253
    %7912 = vmatpush1.msra.mxu0 %v252
    %7913 = vmatprep.subr.mxu0 %v255
    %7914 = vmatpush1.msra.mxu0 %v254
    %7915 = vmatprep.subr.mxu0 %v257
    %7916 = vmatpush1.msra.mxu0 %v256
    %7917 = vmatprep.subr.mxu0 %v259
    %7918 = vmatpush1.msra.mxu0 %v258
    %7919 = vmatprep.mubr.f32.mxu0 %v7712
    %7920 = vmatmul.mubr.f32.gmra.mrb[0].mxu0 %v7711
    %v7921 = vpop.f32.mrb[0].mxu0
    %v7922 = vadd.f32 0.0, %v7921
    %v7923 = vpop.f32.mrb[0].mxu0
    %v7924 = vadd.f32 0.0, %v7923
    %7925 = vdwg.mxu0
    %7926 = vmatprep.subr.mxu0 %v261
    %7927 = vmatpush1.msra.mxu0 %v260
    %7928 = vmatprep.subr.mxu0 %v263
    %7929 = vmatpush1.msra.mxu0 %v262
    %7930 = vmatprep.subr.mxu0 %v265
    %7931 = vmatpush1.msra.mxu0 %v264
    %7932 = vmatprep.subr.mxu0 %v267
    %7933 = vmatpush1.msra.mxu0 %v266
    %7934 = vmatprep.subr.mxu0 %v269
    %7935 = vmatpush1.msra.mxu0 %v268
    %7936 = vmatprep.subr.mxu0 %v271
    %7937 = vmatpush1.msra.mxu0 %v270
    %7938 = vmatprep.subr.mxu0 %v273
    %7939 = vmatpush1.msra.mxu0 %v272
    %7940 = vmatprep.subr.mxu0 %v275
    %7941 = vmatpush1.msra.mxu0 %v274
    %7942 = vmatprep.subr.mxu0 %v277
    %7943 = vmatpush1.msra.mxu0 %v276
    %7944 = vmatprep.subr.mxu0 %v279
    %7945 = vmatpush1.msra.mxu0 %v278
    %7946 = vmatprep.subr.mxu0 %v281
    %7947 = vmatpush1.msra.mxu0 %v280
    %7948 = vmatprep.subr.mxu0 %v283
    %7949 = vmatpush1.msra.mxu0 %v282
    %7950 = vmatprep.subr.mxu0 %v285
    %7951 = vmatpush1.msra.mxu0 %v284
    %7952 = vmatprep.subr.mxu0 %v287
    %7953 = vmatpush1.msra.mxu0 %v286
    %7954 = vmatprep.subr.mxu0 %v289
    %7955 = vmatpush1.msra.mxu0 %v288
    %7956 = vmatprep.subr.mxu0 %v291
    %7957 = vmatpush1.msra.mxu0 %v290
    %7958 = vmatprep.subr.mxu0 %v293
    %7959 = vmatpush1.msra.mxu0 %v292
    %7960 = vmatprep.subr.mxu0 %v295
    %7961 = vmatpush1.msra.mxu0 %v294
    %7962 = vmatprep.subr.mxu0 %v297
    %7963 = vmatpush1.msra.mxu0 %v296
    %7964 = vmatprep.subr.mxu0 %v299
    %7965 = vmatpush1.msra.mxu0 %v298
    %7966 = vmatprep.subr.mxu0 %v301
    %7967 = vmatpush1.msra.mxu0 %v300
    %7968 = vmatprep.subr.mxu0 %v303
    %7969 = vmatpush1.msra.mxu0 %v302
    %7970 = vmatprep.subr.mxu0 %v305
    %7971 = vmatpush1.msra.mxu0 %v304
    %7972 = vmatprep.subr.mxu0 %v307
    %7973 = vmatpush1.msra.mxu0 %v306
    %7974 = vmatprep.subr.mxu0 %v309
    %7975 = vmatpush1.msra.mxu0 %v308
    %7976 = vmatprep.subr.mxu0 %v311
    %7977 = vmatpush1.msra.mxu0 %v310
    %7978 = vmatprep.subr.mxu0 %v313
    %7979 = vmatpush1.msra.mxu0 %v312
    %7980 = vmatprep.subr.mxu0 %v315
    %7981 = vmatpush1.msra.mxu0 %v314
    %7982 = vmatprep.subr.mxu0 %v317
    %7983 = vmatpush1.msra.mxu0 %v316
    %7984 = vmatprep.subr.mxu0 %v319
    %7985 = vmatpush1.msra.mxu0 %v318
    %7986 = vmatprep.subr.mxu0 %v321
    %7987 = vmatpush1.msra.mxu0 %v320
    %7988 = vmatprep.subr.mxu0 %v323
    %7989 = vmatpush1.msra.mxu0 %v322
    %7990 = vmatprep.mubr.f32.mxu0 %v7706
    %7991 = vmatmul.mubr.f32.gmra.mrb[0].mxu0 %v7705
    %v7992 = vpop.f32.mrb[0].mxu0
    %v7993 = vadd.f32 0.0, %v7992
    %v7994 = vpop.f32.mrb[0].mxu0
    %v7995 = vadd.f32 0.0, %v7994
    %7996 = vmatprep.mubr.f32.mxu0 %v7782
    %7997 = vmatmul.mubr.f32.gmra.mrb[0].mxu0 %v7780
    %v7998 = vpop.f32.mrb[0].mxu0
    %v7999 = vadd.f32 0.0, %v7998
    %v8000 = vpop.f32.mrb[0].mxu0
    %v8001 = vadd.f32 0.0, %v8000
    %8002 = vmatprep.mubr.f32.mxu0 %v7853
    %8003 = vmatmul.mubr.f32.gmra.mrb[0].mxu0 %v7851
    %v8004 = vpop.f32.mrb[0].mxu0
    %v8005 = vadd.f32 0.0, %v8004
    %v8006 = vpop.f32.mrb[0].mxu0
    %v8007 = vadd.f32 0.0, %v8006
    %8008 = vmatprep.mubr.f32.mxu0 %v7924
    %8009 = vmatmul.mubr.f32.gmra.mrb[0].mxu0 %v7922
    %v8010 = vpop.f32.mrb[0].mxu0
    %v8011 = vadd.f32 0.0, %v8010
    %v8012 = vpop.f32.mrb[0].mxu0
    %v8013 = vadd.f32 0.0, %v8012
    %8014 = vdwg.mxu0
    %s8015 = scalar_lea.vmem %s13, 96
    %v8016 = vld [vmem:[%s8015] sm:$0xff]
    %v8017 = vld [vmem:[%s8015 + $0x8] sm:$0xff]
    %v8018 = vld [vmem:[%s8015 + $0x10] sm:$0xff]
    %v8019 = vld [vmem:[%s8015 + $0x18] sm:$0xff]
    %s8020 = scalar_lea.vmem %s14, 128
    %v8021 = vld [vmem:[%s8020] sm:$0xff]
    %v8022 = vld [vmem:[%s8020 + $0x8] sm:$0xff]
    %v8023 = vld [vmem:[%s8020 + $0x10] sm:$0xff]
    %v8024 = vld [vmem:[%s8020 + $0x18] sm:$0xff]
    %v8026 = vsel %vm711, %v8021, 0
    %v8029 = vsel %vm711, %v8022, 0
    %v8032 = vsel %vm711, %v8023, 0
    %v8035 = vsel %vm711, %v8024, 0
    %8037 = vmatprep.subr.mxu0 %v7995
    %8038 = vmatpush1.msra.mxu0 %v7993
    %8039 = vmatprep.subr.mxu0 %v8001
    %8040 = vmatpush1.msra.mxu0 %v7999
    %8041 = vmatprep.subr.mxu0 %v8007
    %8042 = vmatpush1.msra.mxu0 %v8005
    %8043 = vmatprep.subr.mxu0 %v8013
    %8044 = vmatpush1.msra.mxu0 %v8011
    %8045 = vmatprep.subr.mxu0 0.0
    %8046 = vmatpush1.msra.mxu0 0.0
    %8047 = vmatprep.subr.mxu0 0.0
    %8048 = vmatpush1.msra.mxu0 0.0
    %8049 = vmatprep.subr.mxu0 0.0
    %8050 = vmatpush1.msra.mxu0 0.0
    %8051 = vmatprep.subr.mxu0 0.0
    %8052 = vmatpush1.msra.mxu0 0.0
    %8053 = vmatprep.subr.mxu0 0.0
    %8054 = vmatpush1.msra.mxu0 0.0
    %8055 = vmatprep.subr.mxu0 0.0
    %8056 = vmatpush1.msra.mxu0 0.0
    %8057 = vmatprep.subr.mxu0 0.0
    %8058 = vmatpush1.msra.mxu0 0.0
    %8059 = vmatprep.subr.mxu0 0.0
    %8060 = vmatpush1.msra.mxu0 0.0
    %8061 = vmatprep.subr.mxu0 0.0
    %8062 = vmatpush1.msra.mxu0 0.0
    %8063 = vmatprep.subr.mxu0 0.0
    %8064 = vmatpush1.msra.mxu0 0.0
    %8065 = vmatprep.subr.mxu0 0.0
    %8066 = vmatpush1.msra.mxu0 0.0
    %8067 = vmatprep.subr.mxu0 0.0
    %8068 = vmatpush1.msra.mxu0 0.0
    %8069 = vmatprep.subr.mxu0 0.0
    %8070 = vmatpush1.msra.mxu0 0.0
    %8071 = vmatprep.subr.mxu0 0.0
    %8072 = vmatpush1.msra.mxu0 0.0
    %8073 = vmatprep.subr.mxu0 0.0
    %8074 = vmatpush1.msra.mxu0 0.0
    %8075 = vmatprep.subr.mxu0 0.0
    %8076 = vmatpush1.msra.mxu0 0.0
    %8077 = vmatprep.subr.mxu0 0.0
    %8078 = vmatpush1.msra.mxu0 0.0
    %8079 = vmatprep.subr.mxu0 0.0
    %8080 = vmatpush1.msra.mxu0 0.0
    %8081 = vmatprep.subr.mxu0 0.0
    %8082 = vmatpush1.msra.mxu0 0.0
    %8083 = vmatprep.subr.mxu0 0.0
    %8084 = vmatpush1.msra.mxu0 0.0
    %8085 = vmatprep.subr.mxu0 0.0
    %8086 = vmatpush1.msra.mxu0 0.0
    %8087 = vmatprep.subr.mxu0 0.0
    %8088 = vmatpush1.msra.mxu0 0.0
    %8089 = vmatprep.subr.mxu0 0.0
    %8090 = vmatpush1.msra.mxu0 0.0
    %8091 = vmatprep.subr.mxu0 0.0
    %8092 = vmatpush1.msra.mxu0 0.0
    %8093 = vmatprep.subr.mxu0 0.0
    %8094 = vmatpush1.msra.mxu0 0.0
    %8095 = vmatprep.subr.mxu0 0.0
    %8096 = vmatpush1.msra.mxu0 0.0
    %8097 = vmatprep.subr.mxu0 0.0
    %8098 = vmatpush1.msra.mxu0 0.0
    %8099 = vmatprep.subr.mxu0 0.0
    %8100 = vmatpush1.msra.mxu0 0.0
    %8101 = vmatprep.mubr.f32.mxu0 0.0
    %8102 = vmatmul.mubr.f32.gmra.mrb[0].mxu0 %v8026
    %v8103 = vpop.f32.mrb[0].mxu0
    %v8104 = vadd.f32 0.0, %v8103
    %v8105 = vpop.f32.mrb[0].mxu0
    %v8106 = vadd.f32 0.0, %v8105
    %8107 = vmatprep.mubr.f32.mxu0 0.0
    %8108 = vmatmul.mubr.f32.gmra.mrb[0].mxu0 %v8029
    %v8109 = vpop.f32.mrb[0].mxu0
    %v8110 = vadd.f32 0.0, %v8109
    %v8111 = vpop.f32.mrb[0].mxu0
    %v8112 = vadd.f32 0.0, %v8111
    %8113 = vmatprep.mubr.f32.mxu0 0.0
    %8114 = vmatmul.mubr.f32.gmra.mrb[0].mxu0 %v8032
    %v8115 = vpop.f32.mrb[0].mxu0
    %v8116 = vadd.f32 0.0, %v8115
    %v8117 = vpop.f32.mrb[0].mxu0
    %v8118 = vadd.f32 0.0, %v8117
    %8119 = vmatprep.mubr.f32.mxu0 0.0
    %8120 = vmatmul.mubr.f32.gmra.mrb[0].mxu0 %v8035
    %v8121 = vpop.f32.mrb[0].mxu0
    %v8122 = vadd.f32 0.0, %v8121
    %v8123 = vpop.f32.mrb[0].mxu0
    %v8124 = vadd.f32 0.0, %v8123
    %8125 = vdwg.mxu0
    %v8127 = vsel %vm711, %v8016, 0
    %v8130 = vsel %vm711, %v8017, 0
    %v8133 = vsel %vm711, %v8018, 0
    %v8136 = vsel %vm711, %v8019, 0
    %8138 = vmatprep.subr.mxu0 %v6888
    %8139 = vmatpush1.msra.mxu0 %v6887
    %8140 = vmatprep.subr.mxu0 %v6964
    %8141 = vmatpush1.msra.mxu0 %v6962
    %8142 = vmatprep.subr.mxu0 %v7035
    %8143 = vmatpush1.msra.mxu0 %v7033
    %8144 = vmatprep.subr.mxu0 %v7106
    %8145 = vmatpush1.msra.mxu0 %v7104
    %8146 = vmatprep.subr.mxu0 0.0
    %8147 = vmatpush1.msra.mxu0 0.0
    %8148 = vmatprep.subr.mxu0 0.0
    %8149 = vmatpush1.msra.mxu0 0.0
    %8150 = vmatprep.subr.mxu0 0.0
    %8151 = vmatpush1.msra.mxu0 0.0
    %8152 = vmatprep.subr.mxu0 0.0
    %8153 = vmatpush1.msra.mxu0 0.0
    %8154 = vmatprep.subr.mxu0 0.0
    %8155 = vmatpush1.msra.mxu0 0.0
    %8156 = vmatprep.subr.mxu0 0.0
    %8157 = vmatpush1.msra.mxu0 0.0
    %8158 = vmatprep.subr.mxu0 0.0
    %8159 = vmatpush1.msra.mxu0 0.0
    %8160 = vmatprep.subr.mxu0 0.0
    %8161 = vmatpush1.msra.mxu0 0.0
    %8162 = vmatprep.subr.mxu0 0.0
    %8163 = vmatpush1.msra.mxu0 0.0
    %8164 = vmatprep.subr.mxu0 0.0
    %8165 = vmatpush1.msra.mxu0 0.0
    %8166 = vmatprep.subr.mxu0 0.0
    %8167 = vmatpush1.msra.mxu0 0.0
    %8168 = vmatprep.subr.mxu0 0.0
    %8169 = vmatpush1.msra.mxu0 0.0
    %8170 = vmatprep.subr.mxu0 0.0
    %8171 = vmatpush1.msra.mxu0 0.0
    %8172 = vmatprep.subr.mxu0 0.0
    %8173 = vmatpush1.msra.mxu0 0.0
    %8174 = vmatprep.subr.mxu0 0.0
    %8175 = vmatpush1.msra.mxu0 0.0
    %8176 = vmatprep.subr.mxu0 0.0
    %8177 = vmatpush1.msra.mxu0 0.0
    %8178 = vmatprep.subr.mxu0 0.0
    %8179 = vmatpush1.msra.mxu0 0.0
    %8180 = vmatprep.subr.mxu0 0.0
    %8181 = vmatpush1.msra.mxu0 0.0
    %8182 = vmatprep.subr.mxu0 0.0
    %8183 = vmatpush1.msra.mxu0 0.0
    %8184 = vmatprep.subr.mxu0 0.0
    %8185 = vmatpush1.msra.mxu0 0.0
    %8186 = vmatprep.subr.mxu0 0.0
    %8187 = vmatpush1.msra.mxu0 0.0
    %8188 = vmatprep.subr.mxu0 0.0
    %8189 = vmatpush1.msra.mxu0 0.0
    %8190 = vmatprep.subr.mxu0 0.0
    %8191 = vmatpush1.msra.mxu0 0.0
    %8192 = vmatprep.subr.mxu0 0.0
    %8193 = vmatpush1.msra.mxu0 0.0
    %8194 = vmatprep.subr.mxu0 0.0
    %8195 = vmatpush1.msra.mxu0 0.0
    %8196 = vmatprep.subr.mxu0 0.0
    %8197 = vmatpush1.msra.mxu0 0.0
    %8198 = vmatprep.subr.mxu0 0.0
    %8199 = vmatpush1.msra.mxu0 0.0
    %8200 = vmatprep.subr.mxu0 0.0
    %8201 = vmatpush1.msra.mxu0 0.0
    %8202 = vmatprep.mubr.f32.mxu0 0.0
    %8203 = vmatmul.mubr.f32.gmra.mrb[0].mxu0 %v8127
    %v8204 = vpop.f32.mrb[0].mxu0
    %v8205 = vadd.f32 %v8104, %v8204
    %v8206 = vpop.f32.mrb[0].mxu0
    %v8207 = vadd.f32 %v8106, %v8206
    %8208 = vmatprep.mubr.f32.mxu0 0.0
    %8209 = vmatmul.mubr.f32.gmra.mrb[0].mxu0 %v8130
    %v8210 = vpop.f32.mrb[0].mxu0
    %v8211 = vadd.f32 %v8110, %v8210
    %v8212 = vpop.f32.mrb[0].mxu0
    %v8213 = vadd.f32 %v8112, %v8212
    %8214 = vmatprep.mubr.f32.mxu0 0.0
    %8215 = vmatmul.mubr.f32.gmra.mrb[0].mxu0 %v8133
    %v8216 = vpop.f32.mrb[0].mxu0
    %v8217 = vadd.f32 %v8116, %v8216
    %v8218 = vpop.f32.mrb[0].mxu0
    %v8219 = vadd.f32 %v8118, %v8218
    %8220 = vmatprep.mubr.f32.mxu0 0.0
    %8221 = vmatmul.mubr.f32.gmra.mrb[0].mxu0 %v8136
    %v8222 = vpop.f32.mrb[0].mxu0
    %v8223 = vadd.f32 %v8122, %v8222
    %v8224 = vpop.f32.mrb[0].mxu0
    %v8225 = vadd.f32 %v8124, %v8224
    %8226 = vdwg.mxu0
    %s8227 = scalar_lea.vmem %s15, 128
    %v8228 = vld [vmem:[%s8227] sm:$0xff]
    %v8229 = vld [vmem:[%s8227 + $0x8] sm:$0xff]
    %v8230 = vld [vmem:[%s8227 + $0x10] sm:$0xff]
    %v8231 = vld [vmem:[%s8227 + $0x18] sm:$0xff]
    %8233 = vset.pattern.permute.xlu0 0
    %8234 = vperm.xlu0 %8233, %v8228
    %v8235 = vpop.permute.xlu0 %8234
    %8238 = vset.pattern.permute.xlu0 0
    %8239 = vperm.xlu0 %8238, %v8229
    %v8240 = vpop.permute.xlu0 %8239
    %8243 = vset.pattern.permute.xlu0 0
    %8244 = vperm.xlu0 %8243, %v8230
    %v8245 = vpop.permute.xlu0 %8244
    %8248 = vset.pattern.permute.xlu0 0
    %8249 = vperm.xlu0 %8248, %v8231
    %v8250 = vpop.permute.xlu0 %8249
    %v8252 = vadd.f32 %v8205, %v8235
    %v8253 = vadd.f32 %v8207, %v8235
    %v8254 = vadd.f32 %v8211, %v8240
    %v8255 = vadd.f32 %v8213, %v8240
    %v8256 = vadd.f32 %v8217, %v8245
    %v8257 = vadd.f32 %v8219, %v8245
    %v8258 = vadd.f32 %v8223, %v8250
    %v8259 = vadd.f32 %v8225, %v8250
    %v8260 = vmax.f32 %v8252, 0.0
    %v8261 = vmax.f32 %v8253, 0.0
    %v8262 = vmax.f32 %v8254, 0.0
    %v8263 = vmax.f32 %v8255, 0.0
    %v8264 = vmax.f32 %v8256, 0.0
    %v8265 = vmax.f32 %v8257, 0.0
    %v8266 = vmax.f32 %v8258, 0.0
    %v8267 = vmax.f32 %v8259, 0.0
    %8268 = vmatprep.subr.mxu0 %v67
    %8269 = vmatpush1.msra.mxu0 %v66
    %8270 = vmatprep.subr.mxu0 %v69
    %8271 = vmatpush1.msra.mxu0 %v68
    %8272 = vmatprep.subr.mxu0 %v71
    %8273 = vmatpush1.msra.mxu0 %v70
    %8274 = vmatprep.subr.mxu0 %v73
    %8275 = vmatpush1.msra.mxu0 %v72
    %8276 = vmatprep.subr.mxu0 %v75
    %8277 = vmatpush1.msra.mxu0 %v74
    %8278 = vmatprep.subr.mxu0 %v77
    %8279 = vmatpush1.msra.mxu0 %v76
    %8280 = vmatprep.subr.mxu0 %v79
    %8281 = vmatpush1.msra.mxu0 %v78
    %8282 = vmatprep.subr.mxu0 %v81
    %8283 = vmatpush1.msra.mxu0 %v80
    %8284 = vmatprep.subr.mxu0 %v83
    %8285 = vmatpush1.msra.mxu0 %v82
    %8286 = vmatprep.subr.mxu0 %v85
    %8287 = vmatpush1.msra.mxu0 %v84
    %8288 = vmatprep.subr.mxu0 %v87
    %8289 = vmatpush1.msra.mxu0 %v86
    %8290 = vmatprep.subr.mxu0 %v89
    %8291 = vmatpush1.msra.mxu0 %v88
    %8292 = vmatprep.subr.mxu0 %v91
    %8293 = vmatpush1.msra.mxu0 %v90
    %8294 = vmatprep.subr.mxu0 %v93
    %8295 = vmatpush1.msra.mxu0 %v92
    %8296 = vmatprep.subr.mxu0 %v95
    %8297 = vmatpush1.msra.mxu0 %v94
    %8298 = vmatprep.subr.mxu0 %v97
    %8299 = vmatpush1.msra.mxu0 %v96
    %8300 = vmatprep.subr.mxu0 %v99
    %8301 = vmatpush1.msra.mxu0 %v98
    %8302 = vmatprep.subr.mxu0 %v101
    %8303 = vmatpush1.msra.mxu0 %v100
    %8304 = vmatprep.subr.mxu0 %v103
    %8305 = vmatpush1.msra.mxu0 %v102
    %8306 = vmatprep.subr.mxu0 %v105
    %8307 = vmatpush1.msra.mxu0 %v104
    %8308 = vmatprep.subr.mxu0 %v107
    %8309 = vmatpush1.msra.mxu0 %v106
    %8310 = vmatprep.subr.mxu0 %v109
    %8311 = vmatpush1.msra.mxu0 %v108
    %8312 = vmatprep.subr.mxu0 %v111
    %8313 = vmatpush1.msra.mxu0 %v110
    %8314 = vmatprep.subr.mxu0 %v113
    %8315 = vmatpush1.msra.mxu0 %v112
    %8316 = vmatprep.subr.mxu0 %v115
    %8317 = vmatpush1.msra.mxu0 %v114
    %8318 = vmatprep.subr.mxu0 %v117
    %8319 = vmatpush1.msra.mxu0 %v116
    %8320 = vmatprep.subr.mxu0 %v119
    %8321 = vmatpush1.msra.mxu0 %v118
    %8322 = vmatprep.subr.mxu0 %v121
    %8323 = vmatpush1.msra.mxu0 %v120
    %8324 = vmatprep.subr.mxu0 %v123
    %8325 = vmatpush1.msra.mxu0 %v122
    %8326 = vmatprep.subr.mxu0 %v125
    %8327 = vmatpush1.msra.mxu0 %v124
    %8328 = vmatprep.subr.mxu0 %v127
    %8329 = vmatpush1.msra.mxu0 %v126
    %8330 = vmatprep.subr.mxu0 %v129
    %8331 = vmatpush1.msra.mxu0 %v128
    %8332 = vmatprep.mubr.f32.mxu0 %v8263
    %8333 = vmatmul.mubr.f32.gmra.mrb[0].mxu0 %v8262
    %v8334 = vpop.f32.mrb[0].mxu0
    %v8335 = vadd.f32 0.0, %v8334
    %v8336 = vpop.f32.mrb[0].mxu0
    %v8337 = vadd.f32 0.0, %v8336
    %8338 = vdwg.mxu0
    %8339 = vmatprep.subr.mxu0 %v132
    %8340 = vmatpush1.msra.mxu0 %v131
    %8341 = vmatprep.subr.mxu0 %v134
    %8342 = vmatpush1.msra.mxu0 %v133
    %8343 = vmatprep.subr.mxu0 %v136
    %8344 = vmatpush1.msra.mxu0 %v135
    %8345 = vmatprep.subr.mxu0 %v138
    %8346 = vmatpush1.msra.mxu0 %v137
    %8347 = vmatprep.subr.mxu0 %v140
    %8348 = vmatpush1.msra.mxu0 %v139
    %8349 = vmatprep.subr.mxu0 %v142
    %8350 = vmatpush1.msra.mxu0 %v141
    %8351 = vmatprep.subr.mxu0 %v144
    %8352 = vmatpush1.msra.mxu0 %v143
    %8353 = vmatprep.subr.mxu0 %v146
    %8354 = vmatpush1.msra.mxu0 %v145
    %8355 = vmatprep.subr.mxu0 %v148
    %8356 = vmatpush1.msra.mxu0 %v147
    %8357 = vmatprep.subr.mxu0 %v150
    %8358 = vmatpush1.msra.mxu0 %v149
    %8359 = vmatprep.subr.mxu0 %v152
    %8360 = vmatpush1.msra.mxu0 %v151
    %8361 = vmatprep.subr.mxu0 %v154
    %8362 = vmatpush1.msra.mxu0 %v153
    %8363 = vmatprep.subr.mxu0 %v156
    %8364 = vmatpush1.msra.mxu0 %v155
    %8365 = vmatprep.subr.mxu0 %v158
    %8366 = vmatpush1.msra.mxu0 %v157
    %8367 = vmatprep.subr.mxu0 %v160
    %8368 = vmatpush1.msra.mxu0 %v159
    %8369 = vmatprep.subr.mxu0 %v162
    %8370 = vmatpush1.msra.mxu0 %v161
    %8371 = vmatprep.subr.mxu0 %v164
    %8372 = vmatpush1.msra.mxu0 %v163
    %8373 = vmatprep.subr.mxu0 %v166
    %8374 = vmatpush1.msra.mxu0 %v165
    %8375 = vmatprep.subr.mxu0 %v168
    %8376 = vmatpush1.msra.mxu0 %v167
    %8377 = vmatprep.subr.mxu0 %v170
    %8378 = vmatpush1.msra.mxu0 %v169
    %8379 = vmatprep.subr.mxu0 %v172
    %8380 = vmatpush1.msra.mxu0 %v171
    %8381 = vmatprep.subr.mxu0 %v174
    %8382 = vmatpush1.msra.mxu0 %v173
    %8383 = vmatprep.subr.mxu0 %v176
    %8384 = vmatpush1.msra.mxu0 %v175
    %8385 = vmatprep.subr.mxu0 %v178
    %8386 = vmatpush1.msra.mxu0 %v177
    %8387 = vmatprep.subr.mxu0 %v180
    %8388 = vmatpush1.msra.mxu0 %v179
    %8389 = vmatprep.subr.mxu0 %v182
    %8390 = vmatpush1.msra.mxu0 %v181
    %8391 = vmatprep.subr.mxu0 %v184
    %8392 = vmatpush1.msra.mxu0 %v183
    %8393 = vmatprep.subr.mxu0 %v186
    %8394 = vmatpush1.msra.mxu0 %v185
    %8395 = vmatprep.subr.mxu0 %v188
    %8396 = vmatpush1.msra.mxu0 %v187
    %8397 = vmatprep.subr.mxu0 %v190
    %8398 = vmatpush1.msra.mxu0 %v189
    %8399 = vmatprep.subr.mxu0 %v192
    %8400 = vmatpush1.msra.mxu0 %v191
    %8401 = vmatprep.subr.mxu0 %v194
    %8402 = vmatpush1.msra.mxu0 %v193
    %8403 = vmatprep.mubr.f32.mxu0 %v8265
    %8404 = vmatmul.mubr.f32.gmra.mrb[0].mxu0 %v8264
    %v8405 = vpop.f32.mrb[0].mxu0
    %v8406 = vadd.f32 0.0, %v8405
    %v8407 = vpop.f32.mrb[0].mxu0
    %v8408 = vadd.f32 0.0, %v8407
    %8409 = vdwg.mxu0
    %8410 = vmatprep.subr.mxu0 %v197
    %8411 = vmatpush1.msra.mxu0 %v196
    %8412 = vmatprep.subr.mxu0 %v199
    %8413 = vmatpush1.msra.mxu0 %v198
    %8414 = vmatprep.subr.mxu0 %v201
    %8415 = vmatpush1.msra.mxu0 %v200
    %8416 = vmatprep.subr.mxu0 %v203
    %8417 = vmatpush1.msra.mxu0 %v202
    %8418 = vmatprep.subr.mxu0 %v205
    %8419 = vmatpush1.msra.mxu0 %v204
    %8420 = vmatprep.subr.mxu0 %v207
    %8421 = vmatpush1.msra.mxu0 %v206
    %8422 = vmatprep.subr.mxu0 %v209
    %8423 = vmatpush1.msra.mxu0 %v208
    %8424 = vmatprep.subr.mxu0 %v211
    %8425 = vmatpush1.msra.mxu0 %v210
    %8426 = vmatprep.subr.mxu0 %v213
    %8427 = vmatpush1.msra.mxu0 %v212
    %8428 = vmatprep.subr.mxu0 %v215
    %8429 = vmatpush1.msra.mxu0 %v214
    %8430 = vmatprep.subr.mxu0 %v217
    %8431 = vmatpush1.msra.mxu0 %v216
    %8432 = vmatprep.subr.mxu0 %v219
    %8433 = vmatpush1.msra.mxu0 %v218
    %8434 = vmatprep.subr.mxu0 %v221
    %8435 = vmatpush1.msra.mxu0 %v220
    %8436 = vmatprep.subr.mxu0 %v223
    %8437 = vmatpush1.msra.mxu0 %v222
    %8438 = vmatprep.subr.mxu0 %v225
    %8439 = vmatpush1.msra.mxu0 %v224
    %8440 = vmatprep.subr.mxu0 %v227
    %8441 = vmatpush1.msra.mxu0 %v226
    %8442 = vmatprep.subr.mxu0 %v229
    %8443 = vmatpush1.msra.mxu0 %v228
    %8444 = vmatprep.subr.mxu0 %v231
    %8445 = vmatpush1.msra.mxu0 %v230
    %8446 = vmatprep.subr.mxu0 %v233
    %8447 = vmatpush1.msra.mxu0 %v232
    %8448 = vmatprep.subr.mxu0 %v235
    %8449 = vmatpush1.msra.mxu0 %v234
    %8450 = vmatprep.subr.mxu0 %v237
    %8451 = vmatpush1.msra.mxu0 %v236
    %8452 = vmatprep.subr.mxu0 %v239
    %8453 = vmatpush1.msra.mxu0 %v238
    %8454 = vmatprep.subr.mxu0 %v241
    %8455 = vmatpush1.msra.mxu0 %v240
    %8456 = vmatprep.subr.mxu0 %v243
    %8457 = vmatpush1.msra.mxu0 %v242
    %8458 = vmatprep.subr.mxu0 %v245
    %8459 = vmatpush1.msra.mxu0 %v244
    %8460 = vmatprep.subr.mxu0 %v247
    %8461 = vmatpush1.msra.mxu0 %v246
    %8462 = vmatprep.subr.mxu0 %v249
    %8463 = vmatpush1.msra.mxu0 %v248
    %8464 = vmatprep.subr.mxu0 %v251
    %8465 = vmatpush1.msra.mxu0 %v250
    %8466 = vmatprep.subr.mxu0 %v253
    %8467 = vmatpush1.msra.mxu0 %v252
    %8468 = vmatprep.subr.mxu0 %v255
    %8469 = vmatpush1.msra.mxu0 %v254
    %8470 = vmatprep.subr.mxu0 %v257
    %8471 = vmatpush1.msra.mxu0 %v256
    %8472 = vmatprep.subr.mxu0 %v259
    %8473 = vmatpush1.msra.mxu0 %v258
    %8474 = vmatprep.mubr.f32.mxu0 %v8267
    %8475 = vmatmul.mubr.f32.gmra.mrb[0].mxu0 %v8266
    %v8476 = vpop.f32.mrb[0].mxu0
    %v8477 = vadd.f32 0.0, %v8476
    %v8478 = vpop.f32.mrb[0].mxu0
    %v8479 = vadd.f32 0.0, %v8478
    %8480 = vdwg.mxu0
    %v8481 = vld [vmem:[%s18] sm:$0x3]
    %v8482 = vld [vmem:[%s19] sm:$0x3]
    %8484 = vset.pattern.permute.xlu0 0
    %8485 = vperm.xlu0 %8484, %v8482
    %v8486 = vpop.permute.xlu0 %8485
    %v8489 = vsel %vm711, %v8481, 0
    %8491 = vmatprep.subr.mxu0 %v8261
    %8492 = vmatpush1.msra.mxu0 %v8260
    %8493 = vmatprep.subr.mxu0 %v8337
    %8494 = vmatpush1.msra.mxu0 %v8335
    %8495 = vmatprep.subr.mxu0 %v8408
    %8496 = vmatpush1.msra.mxu0 %v8406
    %8497 = vmatprep.subr.mxu0 %v8479
    %8498 = vmatpush1.msra.mxu0 %v8477
    %8499 = vmatprep.subr.mxu0 0.0
    %8500 = vmatpush1.msra.mxu0 0.0
    %8501 = vmatprep.subr.mxu0 0.0
    %8502 = vmatpush1.msra.mxu0 0.0
    %8503 = vmatprep.subr.mxu0 0.0
    %8504 = vmatpush1.msra.mxu0 0.0
    %8505 = vmatprep.subr.mxu0 0.0
    %8506 = vmatpush1.msra.mxu0 0.0
    %8507 = vmatprep.subr.mxu0 0.0
    %8508 = vmatpush1.msra.mxu0 0.0
    %8509 = vmatprep.subr.mxu0 0.0
    %8510 = vmatpush1.msra.mxu0 0.0
    %8511 = vmatprep.subr.mxu0 0.0
    %8512 = vmatpush1.msra.mxu0 0.0
    %8513 = vmatprep.subr.mxu0 0.0
    %8514 = vmatpush1.msra.mxu0 0.0
    %8515 = vmatprep.subr.mxu0 0.0
    %8516 = vmatpush1.msra.mxu0 0.0
    %8517 = vmatprep.subr.mxu0 0.0
    %8518 = vmatpush1.msra.mxu0 0.0
    %8519 = vmatprep.subr.mxu0 0.0
    %8520 = vmatpush1.msra.mxu0 0.0
    %8521 = vmatprep.subr.mxu0 0.0
    %8522 = vmatpush1.msra.mxu0 0.0
    %8523 = vmatprep.subr.mxu0 0.0
    %8524 = vmatpush1.msra.mxu0 0.0
    %8525 = vmatprep.subr.mxu0 0.0
    %8526 = vmatpush1.msra.mxu0 0.0
    %8527 = vmatprep.subr.mxu0 0.0
    %8528 = vmatpush1.msra.mxu0 0.0
    %8529 = vmatprep.subr.mxu0 0.0
    %8530 = vmatpush1.msra.mxu0 0.0
    %8531 = vmatprep.subr.mxu0 0.0
    %8532 = vmatpush1.msra.mxu0 0.0
    %8533 = vmatprep.subr.mxu0 0.0
    %8534 = vmatpush1.msra.mxu0 0.0
    %8535 = vmatprep.subr.mxu0 0.0
    %8536 = vmatpush1.msra.mxu0 0.0
    %8537 = vmatprep.subr.mxu0 0.0
    %8538 = vmatpush1.msra.mxu0 0.0
    %8539 = vmatprep.subr.mxu0 0.0
    %8540 = vmatpush1.msra.mxu0 0.0
    %8541 = vmatprep.subr.mxu0 0.0
    %8542 = vmatpush1.msra.mxu0 0.0
    %8543 = vmatprep.subr.mxu0 0.0
    %8544 = vmatpush1.msra.mxu0 0.0
    %8545 = vmatprep.subr.mxu0 0.0
    %8546 = vmatpush1.msra.mxu0 0.0
    %8547 = vmatprep.subr.mxu0 0.0
    %8548 = vmatpush1.msra.mxu0 0.0
    %8549 = vmatprep.subr.mxu0 0.0
    %8550 = vmatpush1.msra.mxu0 0.0
    %8551 = vmatprep.subr.mxu0 0.0
    %8552 = vmatpush1.msra.mxu0 0.0
    %8553 = vmatprep.subr.mxu0 0.0
    %8554 = vmatpush1.msra.mxu0 0.0
    %8555 = vmatprep.mubr.f32.mxu0 0.0
    %8556 = vmatmul.mubr.f32.gmra.mrb[0].mxu0 %v8489
    %v8557 = vpop.f32.mrb[0].mxu0
    %v8558 = vadd.f32 %v8486, %v8557
    %v8559 = vpop.f32.mrb[0].mxu0
    %v8560 = vadd.f32 %v8486, %v8559
    %8561 = vdwg.mxu0
    %v8562 = vld [vmem:[%s3] sm:$0xff]
    %v8563 = vld [vmem:[%s3 + $0x8] sm:$0xff]
    %v8564 = vld [vmem:[%s3 + $0x10] sm:$0xff]
    %v8565 = vld [vmem:[%s3 + $0x18] sm:$0xff]
    %v8566 = vld [vmem:[%s3 + $0x20] sm:$0xff]
    %v8567 = vld [vmem:[%s3 + $0x28] sm:$0xff]
    %v8568 = vld [vmem:[%s3 + $0x30] sm:$0xff]
    %v8569 = vld [vmem:[%s3 + $0x38] sm:$0xff]
    %v8570 = vld [vmem:[%s3 + $0x40] sm:$0xff]
    %v8571 = vld [vmem:[%s3 + $0x48] sm:$0xff]
    %v8572 = vld [vmem:[%s3 + $0x50] sm:$0xff]
    %v8573 = vld [vmem:[%s3 + $0x58] sm:$0xff]
    %v8574 = vld [vmem:[%s3 + $0x60] sm:$0xff]
    %v8575 = vld [vmem:[%s3 + $0x68] sm:$0xff]
    %v8576 = vld [vmem:[%s3 + $0x70] sm:$0xff]
    %v8577 = vld [vmem:[%s3 + $0x78] sm:$0xff]
    %v8578 = vld [vmem:[%s3 + $0x80] sm:$0xff]
    %v8579 = vld [vmem:[%s3 + $0x88] sm:$0xff]
    %v8580 = vld [vmem:[%s3 + $0x90] sm:$0xff]
    %v8581 = vld [vmem:[%s3 + $0x98] sm:$0xff]
    %v8582 = vld [vmem:[%s3 + $0xa0] sm:$0xff]
    %v8583 = vld [vmem:[%s3 + $0xa8] sm:$0xff]
    %v8584 = vld [vmem:[%s3 + $0xb0] sm:$0xff]
    %v8585 = vld [vmem:[%s3 + $0xb8] sm:$0xff]
    %v8586 = vld [vmem:[%s3 + $0xc0] sm:$0xff]
    %v8587 = vld [vmem:[%s3 + $0xc8] sm:$0xff]
    %v8588 = vld [vmem:[%s3 + $0xd0] sm:$0xff]
    %v8589 = vld [vmem:[%s3 + $0xd8] sm:$0xff]
    %v8590 = vld [vmem:[%s3 + $0xe0] sm:$0xff]
    %v8591 = vld [vmem:[%s3 + $0xe8] sm:$0xff]
    %v8592 = vld [vmem:[%s3 + $0xf0] sm:$0xff]
    %v8593 = vld [vmem:[%s3 + $0xf8] sm:$0xff]
    %8594 = vmatprep.subr.mxu0 0.0
    %8595 = vmatpush1.msra.mxu0 %v8562
    %8596 = vmatprep.subr.mxu0 0.0
    %8597 = vmatpush1.msra.mxu0 %v8563
    %8598 = vmatprep.subr.mxu0 0.0
    %8599 = vmatpush1.msra.mxu0 %v8564
    %8600 = vmatprep.subr.mxu0 0.0
    %8601 = vmatpush1.msra.mxu0 %v8565
    %8602 = vmatprep.subr.mxu0 0.0
    %8603 = vmatpush1.msra.mxu0 %v8566
    %8604 = vmatprep.subr.mxu0 0.0
    %8605 = vmatpush1.msra.mxu0 %v8567
    %8606 = vmatprep.subr.mxu0 0.0
    %8607 = vmatpush1.msra.mxu0 %v8568
    %8608 = vmatprep.subr.mxu0 0.0
    %8609 = vmatpush1.msra.mxu0 %v8569
    %8610 = vmatprep.subr.mxu0 0.0
    %8611 = vmatpush1.msra.mxu0 %v8570
    %8612 = vmatprep.subr.mxu0 0.0
    %8613 = vmatpush1.msra.mxu0 %v8571
    %8614 = vmatprep.subr.mxu0 0.0
    %8615 = vmatpush1.msra.mxu0 %v8572
    %8616 = vmatprep.subr.mxu0 0.0
    %8617 = vmatpush1.msra.mxu0 %v8573
    %8618 = vmatprep.subr.mxu0 0.0
    %8619 = vmatpush1.msra.mxu0 %v8574
    %8620 = vmatprep.subr.mxu0 0.0
    %8621 = vmatpush1.msra.mxu0 %v8575
    %8622 = vmatprep.subr.mxu0 0.0
    %8623 = vmatpush1.msra.mxu0 %v8576
    %8624 = vmatprep.subr.mxu0 0.0
    %8625 = vmatpush1.msra.mxu0 %v8577
    %8626 = vmatprep.subr.mxu0 0.0
    %8627 = vmatpush1.msra.mxu0 %v8578
    %8628 = vmatprep.subr.mxu0 0.0
    %8629 = vmatpush1.msra.mxu0 %v8579
    %8630 = vmatprep.subr.mxu0 0.0
    %8631 = vmatpush1.msra.mxu0 %v8580
    %8632 = vmatprep.subr.mxu0 0.0
    %8633 = vmatpush1.msra.mxu0 %v8581
    %8634 = vmatprep.subr.mxu0 0.0
    %8635 = vmatpush1.msra.mxu0 %v8582
    %8636 = vmatprep.subr.mxu0 0.0
    %8637 = vmatpush1.msra.mxu0 %v8583
    %8638 = vmatprep.subr.mxu0 0.0
    %8639 = vmatpush1.msra.mxu0 %v8584
    %8640 = vmatprep.subr.mxu0 0.0
    %8641 = vmatpush1.msra.mxu0 %v8585
    %8642 = vmatprep.subr.mxu0 0.0
    %8643 = vmatpush1.msra.mxu0 %v8586
    %8644 = vmatprep.subr.mxu0 0.0
    %8645 = vmatpush1.msra.mxu0 %v8587
    %8646 = vmatprep.subr.mxu0 0.0
    %8647 = vmatpush1.msra.mxu0 %v8588
    %8648 = vmatprep.subr.mxu0 0.0
    %8649 = vmatpush1.msra.mxu0 %v8589
    %8650 = vmatprep.subr.mxu0 0.0
    %8651 = vmatpush1.msra.mxu0 %v8590
    %8652 = vmatprep.subr.mxu0 0.0
    %8653 = vmatpush1.msra.mxu0 %v8591
    %8654 = vmatprep.subr.mxu0 0.0
    %8655 = vmatpush1.msra.mxu0 %v8592
    %8656 = vmatprep.subr.mxu0 0.0
    %8657 = vmatpush1.msra.mxu0 %v8593
    %8658 = vmatprep.mubr.f32.mxu0 %v8560
    %8659 = vmatmul.mubr.f32.gmra.mrb[0].mxu0 %v8558
    %v8660 = vpop.f32.mrb[0].mxu0
    %v8661 = vadd.f32 0.0, %v8660
    %v8662 = vpop.f32.mrb[0].mxu0
    %8663 = vdwg.mxu0
    %v8664 = vadd.f32 %v8661, 1.0
    %v8665 = vld [vmem:[%s5] sm:$0x1]
    %v8667 = vlaneseq
    %v8668 = vshrl.u32 %v8667, 7
    %v8669 = vsub.s32 0, %v8668
    %v8670 = vrot.slane %v8665, %v8669
    %v8672 = vmul.f32 %v8664, %v8670
    %v8674 = vrot.slane %v8672, 1
    %v8676 = vadd.f32 %v8661, %v8674
    %v8677 = vsub.f32 0.0, %v8676
    %v8678 = vmul.f32 %v8677, 1.442695
    %v8679 = vpow.pop %v8678
    %v8680 = vadd.f32 %v8679, 1.0
    %v8681 = vrcp.pop %v8680
    %v8682 = vmul.f32 1.0, %v8681
    %v8683 = vlog2.pop %v8664
    %v8684 = vmul.f32 %v8683, 0.6931472
    %v8685 = vld [vmem:[%s4] sm:$0xff]
    %v8686 = vld [vmem:[%s4 + $0x8] sm:$0xff]
    %v8687 = vld [vmem:[%s4 + $0x10] sm:$0xff]
    %v8688 = vld [vmem:[%s4 + $0x18] sm:$0xff]
    %v8689 = vld [vmem:[%s4 + $0x20] sm:$0xff]
    %v8690 = vld [vmem:[%s4 + $0x28] sm:$0xff]
    %v8691 = vld [vmem:[%s4 + $0x30] sm:$0xff]
    %v8692 = vld [vmem:[%s4 + $0x38] sm:$0xff]
    %v8693 = vld [vmem:[%s4 + $0x40] sm:$0xff]
    %v8694 = vld [vmem:[%s4 + $0x48] sm:$0xff]
    %v8695 = vld [vmem:[%s4 + $0x50] sm:$0xff]
    %v8696 = vld [vmem:[%s4 + $0x58] sm:$0xff]
    %v8697 = vld [vmem:[%s4 + $0x60] sm:$0xff]
    %v8698 = vld [vmem:[%s4 + $0x68] sm:$0xff]
    %v8699 = vld [vmem:[%s4 + $0x70] sm:$0xff]
    %v8700 = vld [vmem:[%s4 + $0x78] sm:$0xff]
    %v8702 = vrot.slane %v8684, 1
    %8704 = vmatprep.subr.mxu0 0.0
    %8705 = vmatpush1.msra.mxu0 %v8685
    %8706 = vmatprep.subr.mxu0 0.0
    %8707 = vmatpush1.msra.mxu0 %v8686
    %8708 = vmatprep.subr.mxu0 0.0
    %8709 = vmatpush1.msra.mxu0 %v8687
    %8710 = vmatprep.subr.mxu0 0.0
    %8711 = vmatpush1.msra.mxu0 %v8688
    %8712 = vmatprep.subr.mxu0 0.0
    %8713 = vmatpush1.msra.mxu0 %v8689
    %8714 = vmatprep.subr.mxu0 0.0
    %8715 = vmatpush1.msra.mxu0 %v8690
    %8716 = vmatprep.subr.mxu0 0.0
    %8717 = vmatpush1.msra.mxu0 %v8691
    %8718 = vmatprep.subr.mxu0 0.0
    %8719 = vmatpush1.msra.mxu0 %v8692
    %8720 = vmatprep.subr.mxu0 0.0
    %8721 = vmatpush1.msra.mxu0 %v8693
    %8722 = vmatprep.subr.mxu0 0.0
    %8723 = vmatpush1.msra.mxu0 %v8694
    %8724 = vmatprep.subr.mxu0 0.0
    %8725 = vmatpush1.msra.mxu0 %v8695
    %8726 = vmatprep.subr.mxu0 0.0
    %8727 = vmatpush1.msra.mxu0 %v8696
    %8728 = vmatprep.subr.mxu0 0.0
    %8729 = vmatpush1.msra.mxu0 %v8697
    %8730 = vmatprep.subr.mxu0 0.0
    %8731 = vmatpush1.msra.mxu0 %v8698
    %8732 = vmatprep.subr.mxu0 0.0
    %8733 = vmatpush1.msra.mxu0 %v8699
    %8734 = vmatprep.subr.mxu0 0.0
    %8735 = vmatpush1.msra.mxu0 %v8700
    %8736 = vmatprep.subr.mxu0 0.0
    %8737 = vmatpush1.msra.mxu0 0.0
    %8738 = vmatprep.subr.mxu0 0.0
    %8739 = vmatpush1.msra.mxu0 0.0
    %8740 = vmatprep.subr.mxu0 0.0
    %8741 = vmatpush1.msra.mxu0 0.0
    %8742 = vmatprep.subr.mxu0 0.0
    %8743 = vmatpush1.msra.mxu0 0.0
    %8744 = vmatprep.subr.mxu0 0.0
    %8745 = vmatpush1.msra.mxu0 0.0
    %8746 = vmatprep.subr.mxu0 0.0
    %8747 = vmatpush1.msra.mxu0 0.0
    %8748 = vmatprep.subr.mxu0 0.0
    %8749 = vmatpush1.msra.mxu0 0.0
    %8750 = vmatprep.subr.mxu0 0.0
    %8751 = vmatpush1.msra.mxu0 0.0
    %8752 = vmatprep.subr.mxu0 0.0
    %8753 = vmatpush1.msra.mxu0 0.0
    %8754 = vmatprep.subr.mxu0 0.0
    %8755 = vmatpush1.msra.mxu0 0.0
    %8756 = vmatprep.subr.mxu0 0.0
    %8757 = vmatpush1.msra.mxu0 0.0
    %8758 = vmatprep.subr.mxu0 0.0
    %8759 = vmatpush1.msra.mxu0 0.0
    %8760 = vmatprep.subr.mxu0 0.0
    %8761 = vmatpush1.msra.mxu0 0.0
    %8762 = vmatprep.subr.mxu0 0.0
    %8763 = vmatpush1.msra.mxu0 0.0
    %8764 = vmatprep.subr.mxu0 0.0
    %8765 = vmatpush1.msra.mxu0 0.0
    %8766 = vmatprep.subr.mxu0 0.0
    %8767 = vmatpush1.msra.mxu0 0.0
    %8768 = vmatprep.mubr.f32.mxu0 0.0
    %8769 = vmatmul.mubr.f32.gmra.mrb[0].mxu0 %v8702
    %v8770 = vpop.f32.mrb[0].mxu0
    %v8771 = vadd.f32 22.703016, %v8770
    %v8772 = vpop.f32.mrb[0].mxu0
    %8773 = vdwg.mxu0
    %8774 = vst [vmem:[#allocation2] sm:$0x1] %v8661
    %8775 = vst [vmem:[#allocation2] sm:$0x2] %v8664
    %8776 = vst [vmem:[#allocation2 + $0x2] sm:$0x1] %v8682
    %8777 = vst [vmem:[#allocation2 + $0x3] sm:$0x1] %v8771
    // Predicated region
    $region82: #{_forward_impl.1} parent=1 // pred_check
      _
    $region83: #{_forward_impl.1} parent=1 // pred_check_branch
      %8779 = sbr.rel (0) target = $region85
    $region84: #{_forward_impl.1} parent=1 // pred_region
      %s8781 = ssub.s32 64, 64
      %8782 = vsyncadd [#allocation3], %s8781
      %s8784 = sshll.u32 [#allocation2], 4
      %s8785 = int_to_ptr.vmem [resolvable:$true] %s8784
      %8787 = dma.vmem_to_hbm [thread:$0]  %s8785, 64, %s20, [#allocation3]
    $region85: #{_forward_impl.1} parent=1 // pred_fallthru
      _
    // Predicated region
    $region86: #{_forward_impl.1} parent=1 // pred_check
      _
    $region87: #{_forward_impl.1} parent=1 // pred_check_branch
      %8789 = sbr.rel (0) target = $region89
    $region88: #{_forward_impl.1} parent=1 // pred_region
      %8790 = dma.done [#allocation3], 64
    $region89: #{_forward_impl.1} parent=1 // pred_fallthru
      _
    %8791 = vsyncpa [#allocation3], 1

</llo_original>
